<compile_context>
chip_gen: v5e
topology: v5e:2x2
jax: 0.10.0
libtpu: 0.0.40
codegen_flags: <defaults>
</compile_context>

<pallas_src>
import jax
import jax.numpy as jnp
from jax.experimental import pallas as pl
from jax.experimental.pallas import tpu as pltpu

# ---- module hyper-parameters (defaults of QstEncoder) ----
QST_VOCAB_SIZE = 15
WORD_EMBED_SIZE = 10
EMBED_SIZE = 10
NUM_LAYERS = 3
HIDDEN_SIZE = 5

LANE = 128          # one lane block per gate / per feature chunk
BATCH_BLOCK = 8     # rows per grid step (one full f32 sublane tile)


def qst_encoder_kernel(ids_ref, embed_ref, w_ih_ref, w_hh_ref, b_ref,
                       fc_w_ref, fc_b_ref, out_ref, x_ref, feat_ref):
    SB, lane = x_ref.shape          # (S*BB, 128)
    BB = out_ref.shape[0]           # batch block (8)
    S = SB // BB
    L = w_ih_ref.shape[0]
    f32 = jnp.float32

    # ---- 1) embedding: one one-hot matmul for every (t, b) row + one tanh ----
    ids = ids_ref[...]                                            # (SB, 1) int32
    lanes = jax.lax.broadcasted_iota(jnp.int32, (SB, lane), 1)
    onehot = (lanes == ids).astype(f32)                           # (SB, 128)
    x_ref[...] = jnp.tanh(
        jnp.dot(onehot, embed_ref[...], preferred_element_type=f32))

    # ---- 2) stacked LSTM (PyTorch gate order [i, f, g, o]) ----
    for l in range(L):
        # Hoisted input-to-hidden projection for ALL timesteps, bias folded in.
        xp = jnp.dot(x_ref[...], w_ih_ref[l],
                     preferred_element_type=f32) + b_ref[l]       # (SB, 4*128)
        h = jnp.zeros((BB, lane), f32)
        c = jnp.zeros((BB, lane), f32)
        for t in range(S):
            # single recurrent MXU push per timestep
            gates = xp[t * BB:(t + 1) * BB, :] + jnp.dot(
                h, w_hh_ref[l], preferred_element_type=f32)       # (BB, 4*128)
            # 128-aligned gate blocks -> clean vreg slices
            i_g = jax.nn.sigmoid(gates[:, 0 * lane:1 * lane])
            f_g = jax.nn.sigmoid(gates[:, 1 * lane:2 * lane])
            g_g = jnp.tanh(gates[:, 2 * lane:3 * lane])
            o_g = jax.nn.sigmoid(gates[:, 3 * lane:4 * lane])
            c = f_g * c + i_g * g_g
            h = o_g * jnp.tanh(c)
            # next layer's input, stored at an aligned sublane offset
            x_ref[t * BB:(t + 1) * BB, :] = h
        # final (h, c) of this layer -> 128-wide feature blocks (no masked concat)
        feat_ref[:, (2 * l) * lane:(2 * l + 1) * lane] = h
        feat_ref[:, (2 * l + 1) * lane:(2 * l + 2) * lane] = c

    # ---- 3) tanh + fc; lane-dense (BB, 128) output ----
    feat = jnp.tanh(feat_ref[...])                                # (BB, 2L*128)
    out_ref[...] = jnp.dot(feat, fc_w_ref[...],
                           preferred_element_type=f32) + fc_b_ref[...]


def prepare_kernel_params(params):
    """Pad / transpose / permute weights host-side into the kernel layout."""
    H, E, L = HIDDEN_SIZE, WORD_EMBED_SIZE, NUM_LAYERS
    embed_p = jnp.zeros((LANE, LANE), jnp.float32)
    embed_p = embed_p.at[:QST_VOCAB_SIZE, :E].set(params["embed"])

    w_ih_p = jnp.zeros((L, LANE, 4 * LANE), jnp.float32)
    w_hh_p = jnp.zeros((L, LANE, 4 * LANE), jnp.float32)
    b_p = jnp.zeros((L, 1, 4 * LANE), jnp.float32)
    b_sum = params["b_ih"] + params["b_hh"]                     # (L, 1, 4H)
    for l in range(L):
        in_w = E if l == 0 else H
        for g in range(4):
            w_ih_p = w_ih_p.at[l, :in_w, g * LANE:g * LANE + H].set(
                params["w_ih"][l, g * H:(g + 1) * H, :in_w].T)
            w_hh_p = w_hh_p.at[l, :H, g * LANE:g * LANE + H].set(
                params["w_hh"][l, g * H:(g + 1) * H, :].T)
            b_p = b_p.at[l, 0, g * LANE:g * LANE + H].set(
                b_sum[l, 0, g * H:(g + 1) * H])

    # fc weight, pre-transposed and column-permuted to the padded
    # [h_0 | c_0 | h_1 | c_1 | h_2 | c_2] 128-wide block layout.
    fc_w_p = jnp.zeros((2 * L * LANE, LANE), jnp.float32)
    for j in range(2 * L):
        fc_w_p = fc_w_p.at[j * LANE:j * LANE + H, :EMBED_SIZE].set(
            params["fc_w"][:, j * H:(j + 1) * H].T)
    fc_b_p = jnp.zeros((1, LANE), jnp.float32).at[0, :EMBED_SIZE].set(
        params["fc_b"][0])

    return {"embed_p": embed_p, "w_ih_p": w_ih_p, "w_hh_p": w_hh_p,
            "b_p": b_p, "fc_w_p": fc_w_p, "fc_b_p": fc_b_p}


def qst_encoder_forward(qst, kparams):
    B, S = qst.shape
    BB = BATCH_BLOCK
    nb = (B + BB - 1) // BB
    Bp = nb * BB
    L = kparams["w_ih_p"].shape[0]

    # pad batch (token id 0 rows are harmless, sliced away) and reorder ids to
    # (block, t, b) row-major so the kernel sees t-major 8-row sublane blocks.
    qst_p = jnp.zeros((Bp, S), jnp.int32).at[:B].set(qst.astype(jnp.int32))
    ids = jnp.transpose(qst_p.reshape(nb, BB, S), (0, 2, 1))
    ids = ids.reshape(nb * S * BB, 1)

    out = pl.pallas_call(
        qst_encoder_kernel,
        out_shape=jax.ShapeDtypeStruct((Bp, LANE), jnp.float32),
        grid=(nb,),
        in_specs=[
            pl.BlockSpec((S * BB, 1), lambda i: (i, 0)),
            pl.BlockSpec(kparams["embed_p"].shape, lambda i: (0, 0)),
            pl.BlockSpec(kparams["w_ih_p"].shape, lambda i: (0, 0, 0)),
            pl.BlockSpec(kparams["w_hh_p"].shape, lambda i: (0, 0, 0)),
            pl.BlockSpec(kparams["b_p"].shape, lambda i: (0, 0, 0)),
            pl.BlockSpec(kparams["fc_w_p"].shape, lambda i: (0, 0)),
            pl.BlockSpec(kparams["fc_b_p"].shape, lambda i: (0, 0)),
        ],
        out_specs=pl.BlockSpec((BB, LANE), lambda i: (i, 0)),
        scratch_shapes=[
            pltpu.VMEM((S * BB, LANE), jnp.float32),        # layer input slab
            pltpu.VMEM((BB, 2 * L * LANE), jnp.float32),    # padded features
        ],
        compiler_params=pltpu.CompilerParams(
            dimension_semantics=("parallel",)),
    )(ids, kparams["embed_p"], kparams["w_ih_p"], kparams["w_hh_p"],
      kparams["b_p"], kparams["fc_w_p"], kparams["fc_b_p"])
    return out[:B, :EMBED_SIZE]


def init_params(key):
    ks = jax.random.split(key, 8)
    H, E, L = HIDDEN_SIZE, WORD_EMBED_SIZE, NUM_LAYERS
    max_in = E
    scale = 1.0 / jnp.sqrt(H)
    u = lambda k, shape, s: jax.random.uniform(k, shape, jnp.float32, -s, s)
    params = {
        "embed": jax.random.normal(ks[0], (QST_VOCAB_SIZE, E), jnp.float32),
        # stacked LSTM weights; layers >0 only use the first H input columns
        "w_ih": u(ks[1], (L, 4 * H, max_in), scale),
        "w_hh": u(ks[2], (L, 4 * H, H), scale),
        "b_ih": u(ks[3], (L, 1, 4 * H), scale),
        "b_hh": u(ks[4], (L, 1, 4 * H), scale),
        "fc_w": u(ks[5], (EMBED_SIZE, 2 * L * H), 1.0 / jnp.sqrt(2 * L * H)),
        "fc_b": u(ks[6], (1, EMBED_SIZE), 1.0 / jnp.sqrt(2 * L * H)),
    }
    return params


def reference_forward(qst, params):
    """Pure-JAX reference of the same math (sanity check only)."""
    H, E, L = HIDDEN_SIZE, WORD_EMBED_SIZE, NUM_LAYERS
    B, S = qst.shape
    x = jnp.tanh(params["embed"][qst])                    # (B, S, E)
    xs = [x[:, t, :] for t in range(S)]
    feats = []
    for l in range(L):
        in_w = E if l == 0 else H
        w_ih = params["w_ih"][l][:, :in_w]
        w_hh = params["w_hh"][l]
        b = params["b_ih"][l] + params["b_hh"][l]
        h = jnp.zeros((B, H), jnp.float32)
        c = jnp.zeros((B, H), jnp.float32)
        new_xs = []
        for t in range(S):
            gates = xs[t] @ w_ih.T + h @ w_hh.T + b
            i_g = jax.nn.sigmoid(gates[:, 0:H])
            f_g = jax.nn.sigmoid(gates[:, H:2 * H])
            g_g = jnp.tanh(gates[:, 2 * H:3 * H])
            o_g = jax.nn.sigmoid(gates[:, 3 * H:4 * H])
            c = f_g * c + i_g * g_g
            h = o_g * jnp.tanh(c)
            new_xs.append(h)
        xs = new_xs
        feats += [h, c]
    feat = jnp.tanh(jnp.concatenate(feats, axis=1))
    return feat @ params["fc_w"].T + params["fc_b"]


if __name__ == "__main__":
    key = jax.random.PRNGKey(0)
    k_param, k_data = jax.random.split(key)
    params = init_params(k_param)
    kparams = prepare_kernel_params(params)   # one-time host-side repacking

    batch, seq = 2, 8
    qst = jax.random.randint(k_data, (batch, seq), 0, QST_VOCAB_SIZE, jnp.int32)

    out = qst_encoder_forward(qst, kparams)
    out = jax.block_until_ready(out)

    ref = reference_forward(qst, params)
    assert out.shape == (batch, EMBED_SIZE)
    assert jnp.allclose(out, ref, atol=5e-2, rtol=5e-2)

    print("KERNEL_OK")
</pallas_src>

<mosaic_0001>
module attributes {stable_mosaic.version = 11 : i64} {
  func.func @qst_encoder_kernel(%arg0: i32, %arg1: memref<64x1xi32, #tpu.memory_space<vmem>>, %arg2: memref<128x128xf32, #tpu.memory_space<vmem>>, %arg3: memref<3x128x512xf32, #tpu.memory_space<vmem>>, %arg4: memref<3x128x512xf32, #tpu.memory_space<vmem>>, %arg5: memref<3x1x512xf32, #tpu.memory_space<vmem>>, %arg6: memref<768x128xf32, #tpu.memory_space<vmem>>, %arg7: memref<1x128xf32, #tpu.memory_space<vmem>>, %arg8: memref<8x128xf32, #tpu.memory_space<vmem>>, %arg9: memref<64x128xf32, #tpu.memory_space<vmem>>, %arg10: memref<8x768xf32, #tpu.memory_space<vmem>>) attributes {dimension_semantics = [#tpu.dimension_semantics<parallel>], iteration_bounds = array<i64: 1>, scalar_prefetch = 0 : i64, scratch_operands = 2 : i64, tpu.core_type = #tpu.core_type<tc>, window_params = [{transform_indices = @transform_0, window_bounds = array<i64: 64, 1>}, {pipeline_mode = #tpu.pipeline_mode<synchronous>, transform_indices = @transform_1, window_bounds = array<i64: 128, 128>}, {pipeline_mode = #tpu.pipeline_mode<synchronous>, transform_indices = @transform_2, window_bounds = array<i64: 3, 128, 512>}, {pipeline_mode = #tpu.pipeline_mode<synchronous>, transform_indices = @transform_3, window_bounds = array<i64: 3, 128, 512>}, {pipeline_mode = #tpu.pipeline_mode<synchronous>, transform_indices = @transform_4, window_bounds = array<i64: 3, 1, 512>}, {pipeline_mode = #tpu.pipeline_mode<synchronous>, transform_indices = @transform_5, window_bounds = array<i64: 768, 128>}, {pipeline_mode = #tpu.pipeline_mode<synchronous>, transform_indices = @transform_6, window_bounds = array<i64: 1, 128>}, {transform_indices = @transform_7, window_bounds = array<i64: 8, 128>}]} {
    %c0 = arith.constant 0 : index
    %c0_0 = arith.constant 0 : index
    %0 = vector.load %arg1[%c0, %c0_0] : memref<64x1xi32, #tpu.memory_space<vmem>>, vector<64x1xi32>
    %1 = tpu.iota {dimensions = array<i32: 1>} : vector<64x128xi32>
    %2 = vector.broadcast %0 : vector<64x1xi32> to vector<64x128xi32>
    %3 = arith.cmpi eq, %1, %2 : vector<64x128xi32>
    %4 = arith.extui %3 : vector<64x128xi1> to vector<64x128xi32>
    %5 = arith.sitofp %4 : vector<64x128xi32> to vector<64x128xf32>
    %c0_1 = arith.constant 0 : index
    %c0_2 = arith.constant 0 : index
    %6 = vector.load %arg2[%c0_1, %c0_2] : memref<128x128xf32, #tpu.memory_space<vmem>>, vector<128x128xf32>
    %cst = arith.constant dense<0.000000e+00> : vector<64x128xf32>
    %7 = tpu.matmul %5, %6, %cst {dimension_numbers = #tpu.dot_dimension_numbers<[1], [0], [0], [1], [0, 0, 1, 1], [], []>} : vector<64x128xf32>, vector<128x128xf32>, vector<64x128xf32> -> vector<64x128xf32>
    %8 = math.tanh %7 : vector<64x128xf32>
    %c0_3 = arith.constant 0 : index
    %c0_4 = arith.constant 0 : index
    %9 = vector.load %arg9[%c0_3, %c0_4] : memref<64x128xf32, #tpu.memory_space<vmem>>, vector<64x128xf32>
    tpu.vector_store %arg9[%c0_3, %c0_4], %8 {strides = array<i32>} : memref<64x128xf32, #tpu.memory_space<vmem>>, vector<64x128xf32>,
    %c0_5 = arith.constant 0 : index
    %c0_6 = arith.constant 0 : index
    %10 = vector.load %arg9[%c0_5, %c0_6] : memref<64x128xf32, #tpu.memory_space<vmem>>, vector<64x128xf32>
    %c0_7 = arith.constant 0 : index
    %c0_8 = arith.constant 0 : index
    %c0_9 = arith.constant 0 : index
    %11 = vector.load %arg3[%c0_7, %c0_8, %c0_9] : memref<3x128x512xf32, #tpu.memory_space<vmem>>, vector<1x128x512xf32>
    %12 = vector.shape_cast %11 : vector<1x128x512xf32> to vector<128x512xf32>
    %cst_10 = arith.constant dense<0.000000e+00> : vector<64x512xf32>
    %13 = tpu.matmul %10, %12, %cst_10 {dimension_numbers = #tpu.dot_dimension_numbers<[1], [0], [0], [1], [0, 0, 1, 1], [], []>} : vector<64x128xf32>, vector<128x512xf32>, vector<64x512xf32> -> vector<64x512xf32>
    %c0_11 = arith.constant 0 : index
    %c0_12 = arith.constant 0 : index
    %c0_13 = arith.constant 0 : index
    %14 = vector.load %arg5[%c0_11, %c0_12, %c0_13] : memref<3x1x512xf32, #tpu.memory_space<vmem>>, vector<1x1x512xf32>
    %15 = vector.shape_cast %14 : vector<1x1x512xf32> to vector<1x512xf32>
    %16 = vector.broadcast %15 : vector<1x512xf32> to vector<64x512xf32>
    %17 = arith.addf %13, %16 : vector<64x512xf32>
    %cst_14 = arith.constant 0.000000e+00 : f32
    %18 = vector.broadcast %cst_14 : f32 to vector<8x128xf32>
    %cst_15 = arith.constant 0.000000e+00 : f32
    %19 = vector.broadcast %cst_15 : f32 to vector<8x128xf32>
    %20 = vector.extract_strided_slice %17 {offsets = [0, 0], sizes = [8, 512], strides = [1, 1]} : vector<64x512xf32> to vector<8x512xf32>
    %c0_16 = arith.constant 0 : index
    %c0_17 = arith.constant 0 : index
    %c0_18 = arith.constant 0 : index
    %21 = vector.load %arg4[%c0_16, %c0_17, %c0_18] : memref<3x128x512xf32, #tpu.memory_space<vmem>>, vector<1x128x512xf32>
    %22 = vector.shape_cast %21 : vector<1x128x512xf32> to vector<128x512xf32>
    %cst_19 = arith.constant dense<0.000000e+00> : vector<8x512xf32>
    %23 = tpu.matmul %18, %22, %cst_19 {dimension_numbers = #tpu.dot_dimension_numbers<[1], [0], [0], [1], [0, 0, 1, 1], [], []>} : vector<8x128xf32>, vector<128x512xf32>, vector<8x512xf32> -> vector<8x512xf32>
    %24 = arith.addf %20, %23 : vector<8x512xf32>
    %25 = vector.extract_strided_slice %24 {offsets = [0, 0], sizes = [8, 128], strides = [1, 1]} : vector<8x512xf32> to vector<8x128xf32>
    %26 = arith.negf %25 : vector<8x128xf32>
    %27 = math.exp %26 : vector<8x128xf32>
    %cst_20 = arith.constant 1.000000e+00 : f32
    %28 = vector.broadcast %cst_20 : f32 to vector<8x128xf32>
    %29 = arith.addf %28, %27 : vector<8x128xf32>
    %30 = arith.divf %28, %29 : vector<8x128xf32>
    %31 = vector.extract_strided_slice %24 {offsets = [0, 128], sizes = [8, 128], strides = [1, 1]} : vector<8x512xf32> to vector<8x128xf32>
    %32 = arith.negf %31 : vector<8x128xf32>
    %33 = math.exp %32 : vector<8x128xf32>
    %cst_21 = arith.constant 1.000000e+00 : f32
    %34 = vector.broadcast %cst_21 : f32 to vector<8x128xf32>
    %35 = arith.addf %34, %33 : vector<8x128xf32>
    %36 = arith.divf %34, %35 : vector<8x128xf32>
    %37 = vector.extract_strided_slice %24 {offsets = [0, 256], sizes = [8, 128], strides = [1, 1]} : vector<8x512xf32> to vector<8x128xf32>
    %38 = math.tanh %37 : vector<8x128xf32>
    %39 = vector.extract_strided_slice %24 {offsets = [0, 384], sizes = [8, 128], strides = [1, 1]} : vector<8x512xf32> to vector<8x128xf32>
    %40 = arith.negf %39 : vector<8x128xf32>
    %41 = math.exp %40 : vector<8x128xf32>
    %cst_22 = arith.constant 1.000000e+00 : f32
    %42 = vector.broadcast %cst_22 : f32 to vector<8x128xf32>
    %43 = arith.addf %42, %41 : vector<8x128xf32>
    %44 = arith.divf %42, %43 : vector<8x128xf32>
    %45 = arith.mulf %36, %19 : vector<8x128xf32>
    %46 = arith.mulf %30, %38 : vector<8x128xf32>
    %47 = arith.addf %45, %46 : vector<8x128xf32>
    %48 = math.tanh %47 : vector<8x128xf32>
    %49 = arith.mulf %44, %48 : vector<8x128xf32>
    %c0_23 = arith.constant 0 : index
    %c0_24 = arith.constant 0 : index
    %50 = vector.load %arg9[%c0_23, %c0_24] : memref<64x128xf32, #tpu.memory_space<vmem>>, vector<8x128xf32>
    tpu.vector_store %arg9[%c0_23, %c0_24], %49 {strides = array<i32>} : memref<64x128xf32, #tpu.memory_space<vmem>>, vector<8x128xf32>,
    %51 = vector.extract_strided_slice %17 {offsets = [8, 0], sizes = [8, 512], strides = [1, 1]} : vector<64x512xf32> to vector<8x512xf32>
    %c0_25 = arith.constant 0 : index
    %c0_26 = arith.constant 0 : index
    %c0_27 = arith.constant 0 : index
    %52 = vector.load %arg4[%c0_25, %c0_26, %c0_27] : memref<3x128x512xf32, #tpu.memory_space<vmem>>, vector<1x128x512xf32>
    %53 = vector.shape_cast %52 : vector<1x128x512xf32> to vector<128x512xf32>
    %cst_28 = arith.constant dense<0.000000e+00> : vector<8x512xf32>
    %54 = tpu.matmul %49, %53, %cst_28 {dimension_numbers = #tpu.dot_dimension_numbers<[1], [0], [0], [1], [0, 0, 1, 1], [], []>} : vector<8x128xf32>, vector<128x512xf32>, vector<8x512xf32> -> vector<8x512xf32>
    %55 = arith.addf %51, %54 : vector<8x512xf32>
    %56 = vector.extract_strided_slice %55 {offsets = [0, 0], sizes = [8, 128], strides = [1, 1]} : vector<8x512xf32> to vector<8x128xf32>
    %57 = arith.negf %56 : vector<8x128xf32>
    %58 = math.exp %57 : vector<8x128xf32>
    %cst_29 = arith.constant 1.000000e+00 : f32
    %59 = vector.broadcast %cst_29 : f32 to vector<8x128xf32>
    %60 = arith.addf %59, %58 : vector<8x128xf32>
    %61 = arith.divf %59, %60 : vector<8x128xf32>
    %62 = vector.extract_strided_slice %55 {offsets = [0, 128], sizes = [8, 128], strides = [1, 1]} : vector<8x512xf32> to vector<8x128xf32>
    %63 = arith.negf %62 : vector<8x128xf32>
    %64 = math.exp %63 : vector<8x128xf32>
    %cst_30 = arith.constant 1.000000e+00 : f32
    %65 = vector.broadcast %cst_30 : f32 to vector<8x128xf32>
    %66 = arith.addf %65, %64 : vector<8x128xf32>
    %67 = arith.divf %65, %66 : vector<8x128xf32>
    %68 = vector.extract_strided_slice %55 {offsets = [0, 256], sizes = [8, 128], strides = [1, 1]} : vector<8x512xf32> to vector<8x128xf32>
    %69 = math.tanh %68 : vector<8x128xf32>
    %70 = vector.extract_strided_slice %55 {offsets = [0, 384], sizes = [8, 128], strides = [1, 1]} : vector<8x512xf32> to vector<8x128xf32>
    %71 = arith.negf %70 : vector<8x128xf32>
    %72 = math.exp %71 : vector<8x128xf32>
    %cst_31 = arith.constant 1.000000e+00 : f32
    %73 = vector.broadcast %cst_31 : f32 to vector<8x128xf32>
    %74 = arith.addf %73, %72 : vector<8x128xf32>
    %75 = arith.divf %73, %74 : vector<8x128xf32>
    %76 = arith.mulf %67, %47 : vector<8x128xf32>
    %77 = arith.mulf %61, %69 : vector<8x128xf32>
    %78 = arith.addf %76, %77 : vector<8x128xf32>
    %79 = math.tanh %78 : vector<8x128xf32>
    %80 = arith.mulf %75, %79 : vector<8x128xf32>
    %c8 = arith.constant 8 : index
    %c0_32 = arith.constant 0 : index
    %81 = vector.load %arg9[%c8, %c0_32] : memref<64x128xf32, #tpu.memory_space<vmem>>, vector<8x128xf32>
    tpu.vector_store %arg9[%c8, %c0_32], %80 {strides = array<i32>} : memref<64x128xf32, #tpu.memory_space<vmem>>, vector<8x128xf32>,
    %82 = vector.extract_strided_slice %17 {offsets = [16, 0], sizes = [8, 512], strides = [1, 1]} : vector<64x512xf32> to vector<8x512xf32>
    %c0_33 = arith.constant 0 : index
    %c0_34 = arith.constant 0 : index
    %c0_35 = arith.constant 0 : index
    %83 = vector.load %arg4[%c0_33, %c0_34, %c0_35] : memref<3x128x512xf32, #tpu.memory_space<vmem>>, vector<1x128x512xf32>
    %84 = vector.shape_cast %83 : vector<1x128x512xf32> to vector<128x512xf32>
    %cst_36 = arith.constant dense<0.000000e+00> : vector<8x512xf32>
    %85 = tpu.matmul %80, %84, %cst_36 {dimension_numbers = #tpu.dot_dimension_numbers<[1], [0], [0], [1], [0, 0, 1, 1], [], []>} : vector<8x128xf32>, vector<128x512xf32>, vector<8x512xf32> -> vector<8x512xf32>
    %86 = arith.addf %82, %85 : vector<8x512xf32>
    %87 = vector.extract_strided_slice %86 {offsets = [0, 0], sizes = [8, 128], strides = [1, 1]} : vector<8x512xf32> to vector<8x128xf32>
    %88 = arith.negf %87 : vector<8x128xf32>
    %89 = math.exp %88 : vector<8x128xf32>
    %cst_37 = arith.constant 1.000000e+00 : f32
    %90 = vector.broadcast %cst_37 : f32 to vector<8x128xf32>
    %91 = arith.addf %90, %89 : vector<8x128xf32>
    %92 = arith.divf %90, %91 : vector<8x128xf32>
    %93 = vector.extract_strided_slice %86 {offsets = [0, 128], sizes = [8, 128], strides = [1, 1]} : vector<8x512xf32> to vector<8x128xf32>
    %94 = arith.negf %93 : vector<8x128xf32>
    %95 = math.exp %94 : vector<8x128xf32>
    %cst_38 = arith.constant 1.000000e+00 : f32
    %96 = vector.broadcast %cst_38 : f32 to vector<8x128xf32>
    %97 = arith.addf %96, %95 : vector<8x128xf32>
    %98 = arith.divf %96, %97 : vector<8x128xf32>
    %99 = vector.extract_strided_slice %86 {offsets = [0, 256], sizes = [8, 128], strides = [1, 1]} : vector<8x512xf32> to vector<8x128xf32>
    %100 = math.tanh %99 : vector<8x128xf32>
    %101 = vector.extract_strided_slice %86 {offsets = [0, 384], sizes = [8, 128], strides = [1, 1]} : vector<8x512xf32> to vector<8x128xf32>
    %102 = arith.negf %101 : vector<8x128xf32>
    %103 = math.exp %102 : vector<8x128xf32>
    %cst_39 = arith.constant 1.000000e+00 : f32
    %104 = vector.broadcast %cst_39 : f32 to vector<8x128xf32>
    %105 = arith.addf %104, %103 : vector<8x128xf32>
    %106 = arith.divf %104, %105 : vector<8x128xf32>
    %107 = arith.mulf %98, %78 : vector<8x128xf32>
    %108 = arith.mulf %92, %100 : vector<8x128xf32>
    %109 = arith.addf %107, %108 : vector<8x128xf32>
    %110 = math.tanh %109 : vector<8x128xf32>
    %111 = arith.mulf %106, %110 : vector<8x128xf32>
    %c16 = arith.constant 16 : index
    %c0_40 = arith.constant 0 : index
    %112 = vector.load %arg9[%c16, %c0_40] : memref<64x128xf32, #tpu.memory_space<vmem>>, vector<8x128xf32>
    tpu.vector_store %arg9[%c16, %c0_40], %111 {strides = array<i32>} : memref<64x128xf32, #tpu.memory_space<vmem>>, vector<8x128xf32>,
    %113 = vector.extract_strided_slice %17 {offsets = [24, 0], sizes = [8, 512], strides = [1, 1]} : vector<64x512xf32> to vector<8x512xf32>
    %c0_41 = arith.constant 0 : index
    %c0_42 = arith.constant 0 : index
    %c0_43 = arith.constant 0 : index
    %114 = vector.load %arg4[%c0_41, %c0_42, %c0_43] : memref<3x128x512xf32, #tpu.memory_space<vmem>>, vector<1x128x512xf32>
    %115 = vector.shape_cast %114 : vector<1x128x512xf32> to vector<128x512xf32>
    %cst_44 = arith.constant dense<0.000000e+00> : vector<8x512xf32>
    %116 = tpu.matmul %111, %115, %cst_44 {dimension_numbers = #tpu.dot_dimension_numbers<[1], [0], [0], [1], [0, 0, 1, 1], [], []>} : vector<8x128xf32>, vector<128x512xf32>, vector<8x512xf32> -> vector<8x512xf32>
    %117 = arith.addf %113, %116 : vector<8x512xf32>
    %118 = vector.extract_strided_slice %117 {offsets = [0, 0], sizes = [8, 128], strides = [1, 1]} : vector<8x512xf32> to vector<8x128xf32>
    %119 = arith.negf %118 : vector<8x128xf32>
    %120 = math.exp %119 : vector<8x128xf32>
    %cst_45 = arith.constant 1.000000e+00 : f32
    %121 = vector.broadcast %cst_45 : f32 to vector<8x128xf32>
    %122 = arith.addf %121, %120 : vector<8x128xf32>
    %123 = arith.divf %121, %122 : vector<8x128xf32>
    %124 = vector.extract_strided_slice %117 {offsets = [0, 128], sizes = [8, 128], strides = [1, 1]} : vector<8x512xf32> to vector<8x128xf32>
    %125 = arith.negf %124 : vector<8x128xf32>
    %126 = math.exp %125 : vector<8x128xf32>
    %cst_46 = arith.constant 1.000000e+00 : f32
    %127 = vector.broadcast %cst_46 : f32 to vector<8x128xf32>
    %128 = arith.addf %127, %126 : vector<8x128xf32>
    %129 = arith.divf %127, %128 : vector<8x128xf32>
    %130 = vector.extract_strided_slice %117 {offsets = [0, 256], sizes = [8, 128], strides = [1, 1]} : vector<8x512xf32> to vector<8x128xf32>
    %131 = math.tanh %130 : vector<8x128xf32>
    %132 = vector.extract_strided_slice %117 {offsets = [0, 384], sizes = [8, 128], strides = [1, 1]} : vector<8x512xf32> to vector<8x128xf32>
    %133 = arith.negf %132 : vector<8x128xf32>
    %134 = math.exp %133 : vector<8x128xf32>
    %cst_47 = arith.constant 1.000000e+00 : f32
    %135 = vector.broadcast %cst_47 : f32 to vector<8x128xf32>
    %136 = arith.addf %135, %134 : vector<8x128xf32>
    %137 = arith.divf %135, %136 : vector<8x128xf32>
    %138 = arith.mulf %129, %109 : vector<8x128xf32>
    %139 = arith.mulf %123, %131 : vector<8x128xf32>
    %140 = arith.addf %138, %139 : vector<8x128xf32>
    %141 = math.tanh %140 : vector<8x128xf32>
    %142 = arith.mulf %137, %141 : vector<8x128xf32>
    %c24 = arith.constant 24 : index
    %c0_48 = arith.constant 0 : index
    %143 = vector.load %arg9[%c24, %c0_48] : memref<64x128xf32, #tpu.memory_space<vmem>>, vector<8x128xf32>
    tpu.vector_store %arg9[%c24, %c0_48], %142 {strides = array<i32>} : memref<64x128xf32, #tpu.memory_space<vmem>>, vector<8x128xf32>,
    %144 = vector.extract_strided_slice %17 {offsets = [32, 0], sizes = [8, 512], strides = [1, 1]} : vector<64x512xf32> to vector<8x512xf32>
    %c0_49 = arith.constant 0 : index
    %c0_50 = arith.constant 0 : index
    %c0_51 = arith.constant 0 : index
    %145 = vector.load %arg4[%c0_49, %c0_50, %c0_51] : memref<3x128x512xf32, #tpu.memory_space<vmem>>, vector<1x128x512xf32>
    %146 = vector.shape_cast %145 : vector<1x128x512xf32> to vector<128x512xf32>
    %cst_52 = arith.constant dense<0.000000e+00> : vector<8x512xf32>
    %147 = tpu.matmul %142, %146, %cst_52 {dimension_numbers = #tpu.dot_dimension_numbers<[1], [0], [0], [1], [0, 0, 1, 1], [], []>} : vector<8x128xf32>, vector<128x512xf32>, vector<8x512xf32> -> vector<8x512xf32>
    %148 = arith.addf %144, %147 : vector<8x512xf32>
    %149 = vector.extract_strided_slice %148 {offsets = [0, 0], sizes = [8, 128], strides = [1, 1]} : vector<8x512xf32> to vector<8x128xf32>
    %150 = arith.negf %149 : vector<8x128xf32>
    %151 = math.exp %150 : vector<8x128xf32>
    %cst_53 = arith.constant 1.000000e+00 : f32
    %152 = vector.broadcast %cst_53 : f32 to vector<8x128xf32>
    %153 = arith.addf %152, %151 : vector<8x128xf32>
    %154 = arith.divf %152, %153 : vector<8x128xf32>
    %155 = vector.extract_strided_slice %148 {offsets = [0, 128], sizes = [8, 128], strides = [1, 1]} : vector<8x512xf32> to vector<8x128xf32>
    %156 = arith.negf %155 : vector<8x128xf32>
    %157 = math.exp %156 : vector<8x128xf32>
    %cst_54 = arith.constant 1.000000e+00 : f32
    %158 = vector.broadcast %cst_54 : f32 to vector<8x128xf32>
    %159 = arith.addf %158, %157 : vector<8x128xf32>
    %160 = arith.divf %158, %159 : vector<8x128xf32>
    %161 = vector.extract_strided_slice %148 {offsets = [0, 256], sizes = [8, 128], strides = [1, 1]} : vector<8x512xf32> to vector<8x128xf32>
    %162 = math.tanh %161 : vector<8x128xf32>
    %163 = vector.extract_strided_slice %148 {offsets = [0, 384], sizes = [8, 128], strides = [1, 1]} : vector<8x512xf32> to vector<8x128xf32>
    %164 = arith.negf %163 : vector<8x128xf32>
    %165 = math.exp %164 : vector<8x128xf32>
    %cst_55 = arith.constant 1.000000e+00 : f32
    %166 = vector.broadcast %cst_55 : f32 to vector<8x128xf32>
    %167 = arith.addf %166, %165 : vector<8x128xf32>
    %168 = arith.divf %166, %167 : vector<8x128xf32>
    %169 = arith.mulf %160, %140 : vector<8x128xf32>
    %170 = arith.mulf %154, %162 : vector<8x128xf32>
    %171 = arith.addf %169, %170 : vector<8x128xf32>
    %172 = math.tanh %171 : vector<8x128xf32>
    %173 = arith.mulf %168, %172 : vector<8x128xf32>
    %c32 = arith.constant 32 : index
    %c0_56 = arith.constant 0 : index
    %174 = vector.load %arg9[%c32, %c0_56] : memref<64x128xf32, #tpu.memory_space<vmem>>, vector<8x128xf32>
    tpu.vector_store %arg9[%c32, %c0_56], %173 {strides = array<i32>} : memref<64x128xf32, #tpu.memory_space<vmem>>, vector<8x128xf32>,
    %175 = vector.extract_strided_slice %17 {offsets = [40, 0], sizes = [8, 512], strides = [1, 1]} : vector<64x512xf32> to vector<8x512xf32>
    %c0_57 = arith.constant 0 : index
    %c0_58 = arith.constant 0 : index
    %c0_59 = arith.constant 0 : index
    %176 = vector.load %arg4[%c0_57, %c0_58, %c0_59] : memref<3x128x512xf32, #tpu.memory_space<vmem>>, vector<1x128x512xf32>
    %177 = vector.shape_cast %176 : vector<1x128x512xf32> to vector<128x512xf32>
    %cst_60 = arith.constant dense<0.000000e+00> : vector<8x512xf32>
    %178 = tpu.matmul %173, %177, %cst_60 {dimension_numbers = #tpu.dot_dimension_numbers<[1], [0], [0], [1], [0, 0, 1, 1], [], []>} : vector<8x128xf32>, vector<128x512xf32>, vector<8x512xf32> -> vector<8x512xf32>
    %179 = arith.addf %175, %178 : vector<8x512xf32>
    %180 = vector.extract_strided_slice %179 {offsets = [0, 0], sizes = [8, 128], strides = [1, 1]} : vector<8x512xf32> to vector<8x128xf32>
    %181 = arith.negf %180 : vector<8x128xf32>
    %182 = math.exp %181 : vector<8x128xf32>
    %cst_61 = arith.constant 1.000000e+00 : f32
    %183 = vector.broadcast %cst_61 : f32 to vector<8x128xf32>
    %184 = arith.addf %183, %182 : vector<8x128xf32>
    %185 = arith.divf %183, %184 : vector<8x128xf32>
    %186 = vector.extract_strided_slice %179 {offsets = [0, 128], sizes = [8, 128], strides = [1, 1]} : vector<8x512xf32> to vector<8x128xf32>
    %187 = arith.negf %186 : vector<8x128xf32>
    %188 = math.exp %187 : vector<8x128xf32>
    %cst_62 = arith.constant 1.000000e+00 : f32
    %189 = vector.broadcast %cst_62 : f32 to vector<8x128xf32>
    %190 = arith.addf %189, %188 : vector<8x128xf32>
    %191 = arith.divf %189, %190 : vector<8x128xf32>
    %192 = vector.extract_strided_slice %179 {offsets = [0, 256], sizes = [8, 128], strides = [1, 1]} : vector<8x512xf32> to vector<8x128xf32>
    %193 = math.tanh %192 : vector<8x128xf32>
    %194 = vector.extract_strided_slice %179 {offsets = [0, 384], sizes = [8, 128], strides = [1, 1]} : vector<8x512xf32> to vector<8x128xf32>
    %195 = arith.negf %194 : vector<8x128xf32>
    %196 = math.exp %195 : vector<8x128xf32>
    %cst_63 = arith.constant 1.000000e+00 : f32
    %197 = vector.broadcast %cst_63 : f32 to vector<8x128xf32>
    %198 = arith.addf %197, %196 : vector<8x128xf32>
    %199 = arith.divf %197, %198 : vector<8x128xf32>
    %200 = arith.mulf %191, %171 : vector<8x128xf32>
    %201 = arith.mulf %185, %193 : vector<8x128xf32>
    %202 = arith.addf %200, %201 : vector<8x128xf32>
    %203 = math.tanh %202 : vector<8x128xf32>
    %204 = arith.mulf %199, %203 : vector<8x128xf32>
    %c40 = arith.constant 40 : index
    %c0_64 = arith.constant 0 : index
    %205 = vector.load %arg9[%c40, %c0_64] : memref<64x128xf32, #tpu.memory_space<vmem>>, vector<8x128xf32>
    tpu.vector_store %arg9[%c40, %c0_64], %204 {strides = array<i32>} : memref<64x128xf32, #tpu.memory_space<vmem>>, vector<8x128xf32>,
    %206 = vector.extract_strided_slice %17 {offsets = [48, 0], sizes = [8, 512], strides = [1, 1]} : vector<64x512xf32> to vector<8x512xf32>
    %c0_65 = arith.constant 0 : index
    %c0_66 = arith.constant 0 : index
    %c0_67 = arith.constant 0 : index
    %207 = vector.load %arg4[%c0_65, %c0_66, %c0_67] : memref<3x128x512xf32, #tpu.memory_space<vmem>>, vector<1x128x512xf32>
    %208 = vector.shape_cast %207 : vector<1x128x512xf32> to vector<128x512xf32>
    %cst_68 = arith.constant dense<0.000000e+00> : vector<8x512xf32>
    %209 = tpu.matmul %204, %208, %cst_68 {dimension_numbers = #tpu.dot_dimension_numbers<[1], [0], [0], [1], [0, 0, 1, 1], [], []>} : vector<8x128xf32>, vector<128x512xf32>, vector<8x512xf32> -> vector<8x512xf32>
    %210 = arith.addf %206, %209 : vector<8x512xf32>
    %211 = vector.extract_strided_slice %210 {offsets = [0, 0], sizes = [8, 128], strides = [1, 1]} : vector<8x512xf32> to vector<8x128xf32>
    %212 = arith.negf %211 : vector<8x128xf32>
    %213 = math.exp %212 : vector<8x128xf32>
    %cst_69 = arith.constant 1.000000e+00 : f32
    %214 = vector.broadcast %cst_69 : f32 to vector<8x128xf32>
    %215 = arith.addf %214, %213 : vector<8x128xf32>
    %216 = arith.divf %214, %215 : vector<8x128xf32>
    %217 = vector.extract_strided_slice %210 {offsets = [0, 128], sizes = [8, 128], strides = [1, 1]} : vector<8x512xf32> to vector<8x128xf32>
    %218 = arith.negf %217 : vector<8x128xf32>
    %219 = math.exp %218 : vector<8x128xf32>
    %cst_70 = arith.constant 1.000000e+00 : f32
    %220 = vector.broadcast %cst_70 : f32 to vector<8x128xf32>
    %221 = arith.addf %220, %219 : vector<8x128xf32>
    %222 = arith.divf %220, %221 : vector<8x128xf32>
    %223 = vector.extract_strided_slice %210 {offsets = [0, 256], sizes = [8, 128], strides = [1, 1]} : vector<8x512xf32> to vector<8x128xf32>
    %224 = math.tanh %223 : vector<8x128xf32>
    %225 = vector.extract_strided_slice %210 {offsets = [0, 384], sizes = [8, 128], strides = [1, 1]} : vector<8x512xf32> to vector<8x128xf32>
    %226 = arith.negf %225 : vector<8x128xf32>
    %227 = math.exp %226 : vector<8x128xf32>
    %cst_71 = arith.constant 1.000000e+00 : f32
    %228 = vector.broadcast %cst_71 : f32 to vector<8x128xf32>
    %229 = arith.addf %228, %227 : vector<8x128xf32>
    %230 = arith.divf %228, %229 : vector<8x128xf32>
    %231 = arith.mulf %222, %202 : vector<8x128xf32>
    %232 = arith.mulf %216, %224 : vector<8x128xf32>
    %233 = arith.addf %231, %232 : vector<8x128xf32>
    %234 = math.tanh %233 : vector<8x128xf32>
    %235 = arith.mulf %230, %234 : vector<8x128xf32>
    %c48 = arith.constant 48 : index
    %c0_72 = arith.constant 0 : index
    %236 = vector.load %arg9[%c48, %c0_72] : memref<64x128xf32, #tpu.memory_space<vmem>>, vector<8x128xf32>
    tpu.vector_store %arg9[%c48, %c0_72], %235 {strides = array<i32>} : memref<64x128xf32, #tpu.memory_space<vmem>>, vector<8x128xf32>,
    %237 = vector.extract_strided_slice %17 {offsets = [56, 0], sizes = [8, 512], strides = [1, 1]} : vector<64x512xf32> to vector<8x512xf32>
    %c0_73 = arith.constant 0 : index
    %c0_74 = arith.constant 0 : index
    %c0_75 = arith.constant 0 : index
    %238 = vector.load %arg4[%c0_73, %c0_74, %c0_75] : memref<3x128x512xf32, #tpu.memory_space<vmem>>, vector<1x128x512xf32>
    %239 = vector.shape_cast %238 : vector<1x128x512xf32> to vector<128x512xf32>
    %cst_76 = arith.constant dense<0.000000e+00> : vector<8x512xf32>
    %240 = tpu.matmul %235, %239, %cst_76 {dimension_numbers = #tpu.dot_dimension_numbers<[1], [0], [0], [1], [0, 0, 1, 1], [], []>} : vector<8x128xf32>, vector<128x512xf32>, vector<8x512xf32> -> vector<8x512xf32>
    %241 = arith.addf %237, %240 : vector<8x512xf32>
    %242 = vector.extract_strided_slice %241 {offsets = [0, 0], sizes = [8, 128], strides = [1, 1]} : vector<8x512xf32> to vector<8x128xf32>
    %243 = arith.negf %242 : vector<8x128xf32>
    %244 = math.exp %243 : vector<8x128xf32>
    %cst_77 = arith.constant 1.000000e+00 : f32
    %245 = vector.broadcast %cst_77 : f32 to vector<8x128xf32>
    %246 = arith.addf %245, %244 : vector<8x128xf32>
    %247 = arith.divf %245, %246 : vector<8x128xf32>
    %248 = vector.extract_strided_slice %241 {offsets = [0, 128], sizes = [8, 128], strides = [1, 1]} : vector<8x512xf32> to vector<8x128xf32>
    %249 = arith.negf %248 : vector<8x128xf32>
    %250 = math.exp %249 : vector<8x128xf32>
    %cst_78 = arith.constant 1.000000e+00 : f32
    %251 = vector.broadcast %cst_78 : f32 to vector<8x128xf32>
    %252 = arith.addf %251, %250 : vector<8x128xf32>
    %253 = arith.divf %251, %252 : vector<8x128xf32>
    %254 = vector.extract_strided_slice %241 {offsets = [0, 256], sizes = [8, 128], strides = [1, 1]} : vector<8x512xf32> to vector<8x128xf32>
    %255 = math.tanh %254 : vector<8x128xf32>
    %256 = vector.extract_strided_slice %241 {offsets = [0, 384], sizes = [8, 128], strides = [1, 1]} : vector<8x512xf32> to vector<8x128xf32>
    %257 = arith.negf %256 : vector<8x128xf32>
    %258 = math.exp %257 : vector<8x128xf32>
    %cst_79 = arith.constant 1.000000e+00 : f32
    %259 = vector.broadcast %cst_79 : f32 to vector<8x128xf32>
    %260 = arith.addf %259, %258 : vector<8x128xf32>
    %261 = arith.divf %259, %260 : vector<8x128xf32>
    %262 = arith.mulf %253, %233 : vector<8x128xf32>
    %263 = arith.mulf %247, %255 : vector<8x128xf32>
    %264 = arith.addf %262, %263 : vector<8x128xf32>
    %265 = math.tanh %264 : vector<8x128xf32>
    %266 = arith.mulf %261, %265 : vector<8x128xf32>
    %c56 = arith.constant 56 : index
    %c0_80 = arith.constant 0 : index
    %267 = vector.load %arg9[%c56, %c0_80] : memref<64x128xf32, #tpu.memory_space<vmem>>, vector<8x128xf32>
    tpu.vector_store %arg9[%c56, %c0_80], %266 {strides = array<i32>} : memref<64x128xf32, #tpu.memory_space<vmem>>, vector<8x128xf32>,
    %c0_81 = arith.constant 0 : index
    %c0_82 = arith.constant 0 : index
    %268 = vector.load %arg10[%c0_81, %c0_82] : memref<8x768xf32, #tpu.memory_space<vmem>>, vector<8x128xf32>
    tpu.vector_store %arg10[%c0_81, %c0_82], %266 {strides = array<i32>} : memref<8x768xf32, #tpu.memory_space<vmem>>, vector<8x128xf32>,
    %c0_83 = arith.constant 0 : index
    %c128 = arith.constant 128 : index
    %269 = vector.load %arg10[%c0_83, %c128] : memref<8x768xf32, #tpu.memory_space<vmem>>, vector<8x128xf32>
    tpu.vector_store %arg10[%c0_83, %c128], %264 {strides = array<i32>} : memref<8x768xf32, #tpu.memory_space<vmem>>, vector<8x128xf32>,
    %c0_84 = arith.constant 0 : index
    %c0_85 = arith.constant 0 : index
    %270 = vector.load %arg9[%c0_84, %c0_85] : memref<64x128xf32, #tpu.memory_space<vmem>>, vector<64x128xf32>
    %c1 = arith.constant 1 : index
    %c0_86 = arith.constant 0 : index
    %c0_87 = arith.constant 0 : index
    %271 = vector.load %arg3[%c1, %c0_86, %c0_87] : memref<3x128x512xf32, #tpu.memory_space<vmem>>, vector<1x128x512xf32>
    %272 = vector.shape_cast %271 : vector<1x128x512xf32> to vector<128x512xf32>
    %cst_88 = arith.constant dense<0.000000e+00> : vector<64x512xf32>
    %273 = tpu.matmul %270, %272, %cst_88 {dimension_numbers = #tpu.dot_dimension_numbers<[1], [0], [0], [1], [0, 0, 1, 1], [], []>} : vector<64x128xf32>, vector<128x512xf32>, vector<64x512xf32> -> vector<64x512xf32>
    %c1_89 = arith.constant 1 : index
    %c0_90 = arith.constant 0 : index
    %c0_91 = arith.constant 0 : index
    %274 = vector.load %arg5[%c1_89, %c0_90, %c0_91] : memref<3x1x512xf32, #tpu.memory_space<vmem>>, vector<1x1x512xf32>
    %275 = vector.shape_cast %274 : vector<1x1x512xf32> to vector<1x512xf32>
    %276 = vector.broadcast %275 : vector<1x512xf32> to vector<64x512xf32>
    %277 = arith.addf %273, %276 : vector<64x512xf32>
    %cst_92 = arith.constant 0.000000e+00 : f32
    %278 = vector.broadcast %cst_92 : f32 to vector<8x128xf32>
    %cst_93 = arith.constant 0.000000e+00 : f32
    %279 = vector.broadcast %cst_93 : f32 to vector<8x128xf32>
    %280 = vector.extract_strided_slice %277 {offsets = [0, 0], sizes = [8, 512], strides = [1, 1]} : vector<64x512xf32> to vector<8x512xf32>
    %c1_94 = arith.constant 1 : index
    %c0_95 = arith.constant 0 : index
    %c0_96 = arith.constant 0 : index
    %281 = vector.load %arg4[%c1_94, %c0_95, %c0_96] : memref<3x128x512xf32, #tpu.memory_space<vmem>>, vector<1x128x512xf32>
    %282 = vector.shape_cast %281 : vector<1x128x512xf32> to vector<128x512xf32>
    %cst_97 = arith.constant dense<0.000000e+00> : vector<8x512xf32>
    %283 = tpu.matmul %278, %282, %cst_97 {dimension_numbers = #tpu.dot_dimension_numbers<[1], [0], [0], [1], [0, 0, 1, 1], [], []>} : vector<8x128xf32>, vector<128x512xf32>, vector<8x512xf32> -> vector<8x512xf32>
    %284 = arith.addf %280, %283 : vector<8x512xf32>
    %285 = vector.extract_strided_slice %284 {offsets = [0, 0], sizes = [8, 128], strides = [1, 1]} : vector<8x512xf32> to vector<8x128xf32>
    %286 = arith.negf %285 : vector<8x128xf32>
    %287 = math.exp %286 : vector<8x128xf32>
    %cst_98 = arith.constant 1.000000e+00 : f32
    %288 = vector.broadcast %cst_98 : f32 to vector<8x128xf32>
    %289 = arith.addf %288, %287 : vector<8x128xf32>
    %290 = arith.divf %288, %289 : vector<8x128xf32>
    %291 = vector.extract_strided_slice %284 {offsets = [0, 128], sizes = [8, 128], strides = [1, 1]} : vector<8x512xf32> to vector<8x128xf32>
    %292 = arith.negf %291 : vector<8x128xf32>
    %293 = math.exp %292 : vector<8x128xf32>
    %cst_99 = arith.constant 1.000000e+00 : f32
    %294 = vector.broadcast %cst_99 : f32 to vector<8x128xf32>
    %295 = arith.addf %294, %293 : vector<8x128xf32>
    %296 = arith.divf %294, %295 : vector<8x128xf32>
    %297 = vector.extract_strided_slice %284 {offsets = [0, 256], sizes = [8, 128], strides = [1, 1]} : vector<8x512xf32> to vector<8x128xf32>
    %298 = math.tanh %297 : vector<8x128xf32>
    %299 = vector.extract_strided_slice %284 {offsets = [0, 384], sizes = [8, 128], strides = [1, 1]} : vector<8x512xf32> to vector<8x128xf32>
    %300 = arith.negf %299 : vector<8x128xf32>
    %301 = math.exp %300 : vector<8x128xf32>
    %cst_100 = arith.constant 1.000000e+00 : f32
    %302 = vector.broadcast %cst_100 : f32 to vector<8x128xf32>
    %303 = arith.addf %302, %301 : vector<8x128xf32>
    %304 = arith.divf %302, %303 : vector<8x128xf32>
    %305 = arith.mulf %296, %279 : vector<8x128xf32>
    %306 = arith.mulf %290, %298 : vector<8x128xf32>
    %307 = arith.addf %305, %306 : vector<8x128xf32>
    %308 = math.tanh %307 : vector<8x128xf32>
    %309 = arith.mulf %304, %308 : vector<8x128xf32>
    %c0_101 = arith.constant 0 : index
    %c0_102 = arith.constant 0 : index
    %310 = vector.load %arg9[%c0_101, %c0_102] : memref<64x128xf32, #tpu.memory_space<vmem>>, vector<8x128xf32>
    tpu.vector_store %arg9[%c0_101, %c0_102], %309 {strides = array<i32>} : memref<64x128xf32, #tpu.memory_space<vmem>>, vector<8x128xf32>,
    %311 = vector.extract_strided_slice %277 {offsets = [8, 0], sizes = [8, 512], strides = [1, 1]} : vector<64x512xf32> to vector<8x512xf32>
    %c1_103 = arith.constant 1 : index
    %c0_104 = arith.constant 0 : index
    %c0_105 = arith.constant 0 : index
    %312 = vector.load %arg4[%c1_103, %c0_104, %c0_105] : memref<3x128x512xf32, #tpu.memory_space<vmem>>, vector<1x128x512xf32>
    %313 = vector.shape_cast %312 : vector<1x128x512xf32> to vector<128x512xf32>
    %cst_106 = arith.constant dense<0.000000e+00> : vector<8x512xf32>
    %314 = tpu.matmul %309, %313, %cst_106 {dimension_numbers = #tpu.dot_dimension_numbers<[1], [0], [0], [1], [0, 0, 1, 1], [], []>} : vector<8x128xf32>, vector<128x512xf32>, vector<8x512xf32> -> vector<8x512xf32>
    %315 = arith.addf %311, %314 : vector<8x512xf32>
    %316 = vector.extract_strided_slice %315 {offsets = [0, 0], sizes = [8, 128], strides = [1, 1]} : vector<8x512xf32> to vector<8x128xf32>
    %317 = arith.negf %316 : vector<8x128xf32>
    %318 = math.exp %317 : vector<8x128xf32>
    %cst_107 = arith.constant 1.000000e+00 : f32
    %319 = vector.broadcast %cst_107 : f32 to vector<8x128xf32>
    %320 = arith.addf %319, %318 : vector<8x128xf32>
    %321 = arith.divf %319, %320 : vector<8x128xf32>
    %322 = vector.extract_strided_slice %315 {offsets = [0, 128], sizes = [8, 128], strides = [1, 1]} : vector<8x512xf32> to vector<8x128xf32>
    %323 = arith.negf %322 : vector<8x128xf32>
    %324 = math.exp %323 : vector<8x128xf32>
    %cst_108 = arith.constant 1.000000e+00 : f32
    %325 = vector.broadcast %cst_108 : f32 to vector<8x128xf32>
    %326 = arith.addf %325, %324 : vector<8x128xf32>
    %327 = arith.divf %325, %326 : vector<8x128xf32>
    %328 = vector.extract_strided_slice %315 {offsets = [0, 256], sizes = [8, 128], strides = [1, 1]} : vector<8x512xf32> to vector<8x128xf32>
    %329 = math.tanh %328 : vector<8x128xf32>
    %330 = vector.extract_strided_slice %315 {offsets = [0, 384], sizes = [8, 128], strides = [1, 1]} : vector<8x512xf32> to vector<8x128xf32>
    %331 = arith.negf %330 : vector<8x128xf32>
    %332 = math.exp %331 : vector<8x128xf32>
    %cst_109 = arith.constant 1.000000e+00 : f32
    %333 = vector.broadcast %cst_109 : f32 to vector<8x128xf32>
    %334 = arith.addf %333, %332 : vector<8x128xf32>
    %335 = arith.divf %333, %334 : vector<8x128xf32>
    %336 = arith.mulf %327, %307 : vector<8x128xf32>
    %337 = arith.mulf %321, %329 : vector<8x128xf32>
    %338 = arith.addf %336, %337 : vector<8x128xf32>
    %339 = math.tanh %338 : vector<8x128xf32>
    %340 = arith.mulf %335, %339 : vector<8x128xf32>
    %c8_110 = arith.constant 8 : index
    %c0_111 = arith.constant 0 : index
    %341 = vector.load %arg9[%c8_110, %c0_111] : memref<64x128xf32, #tpu.memory_space<vmem>>, vector<8x128xf32>
    tpu.vector_store %arg9[%c8_110, %c0_111], %340 {strides = array<i32>} : memref<64x128xf32, #tpu.memory_space<vmem>>, vector<8x128xf32>,
    %342 = vector.extract_strided_slice %277 {offsets = [16, 0], sizes = [8, 512], strides = [1, 1]} : vector<64x512xf32> to vector<8x512xf32>
    %c1_112 = arith.constant 1 : index
    %c0_113 = arith.constant 0 : index
    %c0_114 = arith.constant 0 : index
    %343 = vector.load %arg4[%c1_112, %c0_113, %c0_114] : memref<3x128x512xf32, #tpu.memory_space<vmem>>, vector<1x128x512xf32>
    %344 = vector.shape_cast %343 : vector<1x128x512xf32> to vector<128x512xf32>
    %cst_115 = arith.constant dense<0.000000e+00> : vector<8x512xf32>
    %345 = tpu.matmul %340, %344, %cst_115 {dimension_numbers = #tpu.dot_dimension_numbers<[1], [0], [0], [1], [0, 0, 1, 1], [], []>} : vector<8x128xf32>, vector<128x512xf32>, vector<8x512xf32> -> vector<8x512xf32>
    %346 = arith.addf %342, %345 : vector<8x512xf32>
    %347 = vector.extract_strided_slice %346 {offsets = [0, 0], sizes = [8, 128], strides = [1, 1]} : vector<8x512xf32> to vector<8x128xf32>
    %348 = arith.negf %347 : vector<8x128xf32>
    %349 = math.exp %348 : vector<8x128xf32>
    %cst_116 = arith.constant 1.000000e+00 : f32
    %350 = vector.broadcast %cst_116 : f32 to vector<8x128xf32>
    %351 = arith.addf %350, %349 : vector<8x128xf32>
    %352 = arith.divf %350, %351 : vector<8x128xf32>
    %353 = vector.extract_strided_slice %346 {offsets = [0, 128], sizes = [8, 128], strides = [1, 1]} : vector<8x512xf32> to vector<8x128xf32>
    %354 = arith.negf %353 : vector<8x128xf32>
    %355 = math.exp %354 : vector<8x128xf32>
    %cst_117 = arith.constant 1.000000e+00 : f32
    %356 = vector.broadcast %cst_117 : f32 to vector<8x128xf32>
    %357 = arith.addf %356, %355 : vector<8x128xf32>
    %358 = arith.divf %356, %357 : vector<8x128xf32>
    %359 = vector.extract_strided_slice %346 {offsets = [0, 256], sizes = [8, 128], strides = [1, 1]} : vector<8x512xf32> to vector<8x128xf32>
    %360 = math.tanh %359 : vector<8x128xf32>
    %361 = vector.extract_strided_slice %346 {offsets = [0, 384], sizes = [8, 128], strides = [1, 1]} : vector<8x512xf32> to vector<8x128xf32>
    %362 = arith.negf %361 : vector<8x128xf32>
    %363 = math.exp %362 : vector<8x128xf32>
    %cst_118 = arith.constant 1.000000e+00 : f32
    %364 = vector.broadcast %cst_118 : f32 to vector<8x128xf32>
    %365 = arith.addf %364, %363 : vector<8x128xf32>
    %366 = arith.divf %364, %365 : vector<8x128xf32>
    %367 = arith.mulf %358, %338 : vector<8x128xf32>
    %368 = arith.mulf %352, %360 : vector<8x128xf32>
    %369 = arith.addf %367, %368 : vector<8x128xf32>
    %370 = math.tanh %369 : vector<8x128xf32>
    %371 = arith.mulf %366, %370 : vector<8x128xf32>
    %c16_119 = arith.constant 16 : index
    %c0_120 = arith.constant 0 : index
    %372 = vector.load %arg9[%c16_119, %c0_120] : memref<64x128xf32, #tpu.memory_space<vmem>>, vector<8x128xf32>
    tpu.vector_store %arg9[%c16_119, %c0_120], %371 {strides = array<i32>} : memref<64x128xf32, #tpu.memory_space<vmem>>, vector<8x128xf32>,
    %373 = vector.extract_strided_slice %277 {offsets = [24, 0], sizes = [8, 512], strides = [1, 1]} : vector<64x512xf32> to vector<8x512xf32>
    %c1_121 = arith.constant 1 : index
    %c0_122 = arith.constant 0 : index
    %c0_123 = arith.constant 0 : index
    %374 = vector.load %arg4[%c1_121, %c0_122, %c0_123] : memref<3x128x512xf32, #tpu.memory_space<vmem>>, vector<1x128x512xf32>
    %375 = vector.shape_cast %374 : vector<1x128x512xf32> to vector<128x512xf32>
    %cst_124 = arith.constant dense<0.000000e+00> : vector<8x512xf32>
    %376 = tpu.matmul %371, %375, %cst_124 {dimension_numbers = #tpu.dot_dimension_numbers<[1], [0], [0], [1], [0, 0, 1, 1], [], []>} : vector<8x128xf32>, vector<128x512xf32>, vector<8x512xf32> -> vector<8x512xf32>
    %377 = arith.addf %373, %376 : vector<8x512xf32>
    %378 = vector.extract_strided_slice %377 {offsets = [0, 0], sizes = [8, 128], strides = [1, 1]} : vector<8x512xf32> to vector<8x128xf32>
    %379 = arith.negf %378 : vector<8x128xf32>
    %380 = math.exp %379 : vector<8x128xf32>
    %cst_125 = arith.constant 1.000000e+00 : f32
    %381 = vector.broadcast %cst_125 : f32 to vector<8x128xf32>
    %382 = arith.addf %381, %380 : vector<8x128xf32>
    %383 = arith.divf %381, %382 : vector<8x128xf32>
    %384 = vector.extract_strided_slice %377 {offsets = [0, 128], sizes = [8, 128], strides = [1, 1]} : vector<8x512xf32> to vector<8x128xf32>
    %385 = arith.negf %384 : vector<8x128xf32>
    %386 = math.exp %385 : vector<8x128xf32>
    %cst_126 = arith.constant 1.000000e+00 : f32
    %387 = vector.broadcast %cst_126 : f32 to vector<8x128xf32>
    %388 = arith.addf %387, %386 : vector<8x128xf32>
    %389 = arith.divf %387, %388 : vector<8x128xf32>
    %390 = vector.extract_strided_slice %377 {offsets = [0, 256], sizes = [8, 128], strides = [1, 1]} : vector<8x512xf32> to vector<8x128xf32>
    %391 = math.tanh %390 : vector<8x128xf32>
    %392 = vector.extract_strided_slice %377 {offsets = [0, 384], sizes = [8, 128], strides = [1, 1]} : vector<8x512xf32> to vector<8x128xf32>
    %393 = arith.negf %392 : vector<8x128xf32>
    %394 = math.exp %393 : vector<8x128xf32>
    %cst_127 = arith.constant 1.000000e+00 : f32
    %395 = vector.broadcast %cst_127 : f32 to vector<8x128xf32>
    %396 = arith.addf %395, %394 : vector<8x128xf32>
    %397 = arith.divf %395, %396 : vector<8x128xf32>
    %398 = arith.mulf %389, %369 : vector<8x128xf32>
    %399 = arith.mulf %383, %391 : vector<8x128xf32>
    %400 = arith.addf %398, %399 : vector<8x128xf32>
    %401 = math.tanh %400 : vector<8x128xf32>
    %402 = arith.mulf %397, %401 : vector<8x128xf32>
    %c24_128 = arith.constant 24 : index
    %c0_129 = arith.constant 0 : index
    %403 = vector.load %arg9[%c24_128, %c0_129] : memref<64x128xf32, #tpu.memory_space<vmem>>, vector<8x128xf32>
    tpu.vector_store %arg9[%c24_128, %c0_129], %402 {strides = array<i32>} : memref<64x128xf32, #tpu.memory_space<vmem>>, vector<8x128xf32>,
    %404 = vector.extract_strided_slice %277 {offsets = [32, 0], sizes = [8, 512], strides = [1, 1]} : vector<64x512xf32> to vector<8x512xf32>
    %c1_130 = arith.constant 1 : index
    %c0_131 = arith.constant 0 : index
    %c0_132 = arith.constant 0 : index
    %405 = vector.load %arg4[%c1_130, %c0_131, %c0_132] : memref<3x128x512xf32, #tpu.memory_space<vmem>>, vector<1x128x512xf32>
    %406 = vector.shape_cast %405 : vector<1x128x512xf32> to vector<128x512xf32>
    %cst_133 = arith.constant dense<0.000000e+00> : vector<8x512xf32>
    %407 = tpu.matmul %402, %406, %cst_133 {dimension_numbers = #tpu.dot_dimension_numbers<[1], [0], [0], [1], [0, 0, 1, 1], [], []>} : vector<8x128xf32>, vector<128x512xf32>, vector<8x512xf32> -> vector<8x512xf32>
    %408 = arith.addf %404, %407 : vector<8x512xf32>
    %409 = vector.extract_strided_slice %408 {offsets = [0, 0], sizes = [8, 128], strides = [1, 1]} : vector<8x512xf32> to vector<8x128xf32>
    %410 = arith.negf %409 : vector<8x128xf32>
    %411 = math.exp %410 : vector<8x128xf32>
    %cst_134 = arith.constant 1.000000e+00 : f32
    %412 = vector.broadcast %cst_134 : f32 to vector<8x128xf32>
    %413 = arith.addf %412, %411 : vector<8x128xf32>
    %414 = arith.divf %412, %413 : vector<8x128xf32>
    %415 = vector.extract_strided_slice %408 {offsets = [0, 128], sizes = [8, 128], strides = [1, 1]} : vector<8x512xf32> to vector<8x128xf32>
    %416 = arith.negf %415 : vector<8x128xf32>
    %417 = math.exp %416 : vector<8x128xf32>
    %cst_135 = arith.constant 1.000000e+00 : f32
    %418 = vector.broadcast %cst_135 : f32 to vector<8x128xf32>
    %419 = arith.addf %418, %417 : vector<8x128xf32>
    %420 = arith.divf %418, %419 : vector<8x128xf32>
    %421 = vector.extract_strided_slice %408 {offsets = [0, 256], sizes = [8, 128], strides = [1, 1]} : vector<8x512xf32> to vector<8x128xf32>
    %422 = math.tanh %421 : vector<8x128xf32>
    %423 = vector.extract_strided_slice %408 {offsets = [0, 384], sizes = [8, 128], strides = [1, 1]} : vector<8x512xf32> to vector<8x128xf32>
    %424 = arith.negf %423 : vector<8x128xf32>
    %425 = math.exp %424 : vector<8x128xf32>
    %cst_136 = arith.constant 1.000000e+00 : f32
    %426 = vector.broadcast %cst_136 : f32 to vector<8x128xf32>
    %427 = arith.addf %426, %425 : vector<8x128xf32>
    %428 = arith.divf %426, %427 : vector<8x128xf32>
    %429 = arith.mulf %420, %400 : vector<8x128xf32>
    %430 = arith.mulf %414, %422 : vector<8x128xf32>
    %431 = arith.addf %429, %430 : vector<8x128xf32>
    %432 = math.tanh %431 : vector<8x128xf32>
    %433 = arith.mulf %428, %432 : vector<8x128xf32>
    %c32_137 = arith.constant 32 : index
    %c0_138 = arith.constant 0 : index
    %434 = vector.load %arg9[%c32_137, %c0_138] : memref<64x128xf32, #tpu.memory_space<vmem>>, vector<8x128xf32>
    tpu.vector_store %arg9[%c32_137, %c0_138], %433 {strides = array<i32>} : memref<64x128xf32, #tpu.memory_space<vmem>>, vector<8x128xf32>,
    %435 = vector.extract_strided_slice %277 {offsets = [40, 0], sizes = [8, 512], strides = [1, 1]} : vector<64x512xf32> to vector<8x512xf32>
    %c1_139 = arith.constant 1 : index
    %c0_140 = arith.constant 0 : index
    %c0_141 = arith.constant 0 : index
    %436 = vector.load %arg4[%c1_139, %c0_140, %c0_141] : memref<3x128x512xf32, #tpu.memory_space<vmem>>, vector<1x128x512xf32>
    %437 = vector.shape_cast %436 : vector<1x128x512xf32> to vector<128x512xf32>
    %cst_142 = arith.constant dense<0.000000e+00> : vector<8x512xf32>
    %438 = tpu.matmul %433, %437, %cst_142 {dimension_numbers = #tpu.dot_dimension_numbers<[1], [0], [0], [1], [0, 0, 1, 1], [], []>} : vector<8x128xf32>, vector<128x512xf32>, vector<8x512xf32> -> vector<8x512xf32>
    %439 = arith.addf %435, %438 : vector<8x512xf32>
    %440 = vector.extract_strided_slice %439 {offsets = [0, 0], sizes = [8, 128], strides = [1, 1]} : vector<8x512xf32> to vector<8x128xf32>
    %441 = arith.negf %440 : vector<8x128xf32>
    %442 = math.exp %441 : vector<8x128xf32>
    %cst_143 = arith.constant 1.000000e+00 : f32
    %443 = vector.broadcast %cst_143 : f32 to vector<8x128xf32>
    %444 = arith.addf %443, %442 : vector<8x128xf32>
    %445 = arith.divf %443, %444 : vector<8x128xf32>
    %446 = vector.extract_strided_slice %439 {offsets = [0, 128], sizes = [8, 128], strides = [1, 1]} : vector<8x512xf32> to vector<8x128xf32>
    %447 = arith.negf %446 : vector<8x128xf32>
    %448 = math.exp %447 : vector<8x128xf32>
    %cst_144 = arith.constant 1.000000e+00 : f32
    %449 = vector.broadcast %cst_144 : f32 to vector<8x128xf32>
    %450 = arith.addf %449, %448 : vector<8x128xf32>
    %451 = arith.divf %449, %450 : vector<8x128xf32>
    %452 = vector.extract_strided_slice %439 {offsets = [0, 256], sizes = [8, 128], strides = [1, 1]} : vector<8x512xf32> to vector<8x128xf32>
    %453 = math.tanh %452 : vector<8x128xf32>
    %454 = vector.extract_strided_slice %439 {offsets = [0, 384], sizes = [8, 128], strides = [1, 1]} : vector<8x512xf32> to vector<8x128xf32>
    %455 = arith.negf %454 : vector<8x128xf32>
    %456 = math.exp %455 : vector<8x128xf32>
    %cst_145 = arith.constant 1.000000e+00 : f32
    %457 = vector.broadcast %cst_145 : f32 to vector<8x128xf32>
    %458 = arith.addf %457, %456 : vector<8x128xf32>
    %459 = arith.divf %457, %458 : vector<8x128xf32>
    %460 = arith.mulf %451, %431 : vector<8x128xf32>
    %461 = arith.mulf %445, %453 : vector<8x128xf32>
    %462 = arith.addf %460, %461 : vector<8x128xf32>
    %463 = math.tanh %462 : vector<8x128xf32>
    %464 = arith.mulf %459, %463 : vector<8x128xf32>
    %c40_146 = arith.constant 40 : index
    %c0_147 = arith.constant 0 : index
    %465 = vector.load %arg9[%c40_146, %c0_147] : memref<64x128xf32, #tpu.memory_space<vmem>>, vector<8x128xf32>
    tpu.vector_store %arg9[%c40_146, %c0_147], %464 {strides = array<i32>} : memref<64x128xf32, #tpu.memory_space<vmem>>, vector<8x128xf32>,
    %466 = vector.extract_strided_slice %277 {offsets = [48, 0], sizes = [8, 512], strides = [1, 1]} : vector<64x512xf32> to vector<8x512xf32>
    %c1_148 = arith.constant 1 : index
    %c0_149 = arith.constant 0 : index
    %c0_150 = arith.constant 0 : index
    %467 = vector.load %arg4[%c1_148, %c0_149, %c0_150] : memref<3x128x512xf32, #tpu.memory_space<vmem>>, vector<1x128x512xf32>
    %468 = vector.shape_cast %467 : vector<1x128x512xf32> to vector<128x512xf32>
    %cst_151 = arith.constant dense<0.000000e+00> : vector<8x512xf32>
    %469 = tpu.matmul %464, %468, %cst_151 {dimension_numbers = #tpu.dot_dimension_numbers<[1], [0], [0], [1], [0, 0, 1, 1], [], []>} : vector<8x128xf32>, vector<128x512xf32>, vector<8x512xf32> -> vector<8x512xf32>
    %470 = arith.addf %466, %469 : vector<8x512xf32>
    %471 = vector.extract_strided_slice %470 {offsets = [0, 0], sizes = [8, 128], strides = [1, 1]} : vector<8x512xf32> to vector<8x128xf32>
    %472 = arith.negf %471 : vector<8x128xf32>
    %473 = math.exp %472 : vector<8x128xf32>
    %cst_152 = arith.constant 1.000000e+00 : f32
    %474 = vector.broadcast %cst_152 : f32 to vector<8x128xf32>
    %475 = arith.addf %474, %473 : vector<8x128xf32>
    %476 = arith.divf %474, %475 : vector<8x128xf32>
    %477 = vector.extract_strided_slice %470 {offsets = [0, 128], sizes = [8, 128], strides = [1, 1]} : vector<8x512xf32> to vector<8x128xf32>
    %478 = arith.negf %477 : vector<8x128xf32>
    %479 = math.exp %478 : vector<8x128xf32>
    %cst_153 = arith.constant 1.000000e+00 : f32
    %480 = vector.broadcast %cst_153 : f32 to vector<8x128xf32>
    %481 = arith.addf %480, %479 : vector<8x128xf32>
    %482 = arith.divf %480, %481 : vector<8x128xf32>
    %483 = vector.extract_strided_slice %470 {offsets = [0, 256], sizes = [8, 128], strides = [1, 1]} : vector<8x512xf32> to vector<8x128xf32>
    %484 = math.tanh %483 : vector<8x128xf32>
    %485 = vector.extract_strided_slice %470 {offsets = [0, 384], sizes = [8, 128], strides = [1, 1]} : vector<8x512xf32> to vector<8x128xf32>
    %486 = arith.negf %485 : vector<8x128xf32>
    %487 = math.exp %486 : vector<8x128xf32>
    %cst_154 = arith.constant 1.000000e+00 : f32
    %488 = vector.broadcast %cst_154 : f32 to vector<8x128xf32>
    %489 = arith.addf %488, %487 : vector<8x128xf32>
    %490 = arith.divf %488, %489 : vector<8x128xf32>
    %491 = arith.mulf %482, %462 : vector<8x128xf32>
    %492 = arith.mulf %476, %484 : vector<8x128xf32>
    %493 = arith.addf %491, %492 : vector<8x128xf32>
    %494 = math.tanh %493 : vector<8x128xf32>
    %495 = arith.mulf %490, %494 : vector<8x128xf32>
    %c48_155 = arith.constant 48 : index
    %c0_156 = arith.constant 0 : index
    %496 = vector.load %arg9[%c48_155, %c0_156] : memref<64x128xf32, #tpu.memory_space<vmem>>, vector<8x128xf32>
    tpu.vector_store %arg9[%c48_155, %c0_156], %495 {strides = array<i32>} : memref<64x128xf32, #tpu.memory_space<vmem>>, vector<8x128xf32>,
    %497 = vector.extract_strided_slice %277 {offsets = [56, 0], sizes = [8, 512], strides = [1, 1]} : vector<64x512xf32> to vector<8x512xf32>
    %c1_157 = arith.constant 1 : index
    %c0_158 = arith.constant 0 : index
    %c0_159 = arith.constant 0 : index
    %498 = vector.load %arg4[%c1_157, %c0_158, %c0_159] : memref<3x128x512xf32, #tpu.memory_space<vmem>>, vector<1x128x512xf32>
    %499 = vector.shape_cast %498 : vector<1x128x512xf32> to vector<128x512xf32>
    %cst_160 = arith.constant dense<0.000000e+00> : vector<8x512xf32>
    %500 = tpu.matmul %495, %499, %cst_160 {dimension_numbers = #tpu.dot_dimension_numbers<[1], [0], [0], [1], [0, 0, 1, 1], [], []>} : vector<8x128xf32>, vector<128x512xf32>, vector<8x512xf32> -> vector<8x512xf32>
    %501 = arith.addf %497, %500 : vector<8x512xf32>
    %502 = vector.extract_strided_slice %501 {offsets = [0, 0], sizes = [8, 128], strides = [1, 1]} : vector<8x512xf32> to vector<8x128xf32>
    %503 = arith.negf %502 : vector<8x128xf32>
    %504 = math.exp %503 : vector<8x128xf32>
    %cst_161 = arith.constant 1.000000e+00 : f32
    %505 = vector.broadcast %cst_161 : f32 to vector<8x128xf32>
    %506 = arith.addf %505, %504 : vector<8x128xf32>
    %507 = arith.divf %505, %506 : vector<8x128xf32>
    %508 = vector.extract_strided_slice %501 {offsets = [0, 128], sizes = [8, 128], strides = [1, 1]} : vector<8x512xf32> to vector<8x128xf32>
    %509 = arith.negf %508 : vector<8x128xf32>
    %510 = math.exp %509 : vector<8x128xf32>
    %cst_162 = arith.constant 1.000000e+00 : f32
    %511 = vector.broadcast %cst_162 : f32 to vector<8x128xf32>
    %512 = arith.addf %511, %510 : vector<8x128xf32>
    %513 = arith.divf %511, %512 : vector<8x128xf32>
    %514 = vector.extract_strided_slice %501 {offsets = [0, 256], sizes = [8, 128], strides = [1, 1]} : vector<8x512xf32> to vector<8x128xf32>
    %515 = math.tanh %514 : vector<8x128xf32>
    %516 = vector.extract_strided_slice %501 {offsets = [0, 384], sizes = [8, 128], strides = [1, 1]} : vector<8x512xf32> to vector<8x128xf32>
    %517 = arith.negf %516 : vector<8x128xf32>
    %518 = math.exp %517 : vector<8x128xf32>
    %cst_163 = arith.constant 1.000000e+00 : f32
    %519 = vector.broadcast %cst_163 : f32 to vector<8x128xf32>
    %520 = arith.addf %519, %518 : vector<8x128xf32>
    %521 = arith.divf %519, %520 : vector<8x128xf32>
    %522 = arith.mulf %513, %493 : vector<8x128xf32>
    %523 = arith.mulf %507, %515 : vector<8x128xf32>
    %524 = arith.addf %522, %523 : vector<8x128xf32>
    %525 = math.tanh %524 : vector<8x128xf32>
    %526 = arith.mulf %521, %525 : vector<8x128xf32>
    %c56_164 = arith.constant 56 : index
    %c0_165 = arith.constant 0 : index
    %527 = vector.load %arg9[%c56_164, %c0_165] : memref<64x128xf32, #tpu.memory_space<vmem>>, vector<8x128xf32>
    tpu.vector_store %arg9[%c56_164, %c0_165], %526 {strides = array<i32>} : memref<64x128xf32, #tpu.memory_space<vmem>>, vector<8x128xf32>,
    %c0_166 = arith.constant 0 : index
    %c256 = arith.constant 256 : index
    %528 = vector.load %arg10[%c0_166, %c256] : memref<8x768xf32, #tpu.memory_space<vmem>>, vector<8x128xf32>
    tpu.vector_store %arg10[%c0_166, %c256], %526 {strides = array<i32>} : memref<8x768xf32, #tpu.memory_space<vmem>>, vector<8x128xf32>,
    %c0_167 = arith.constant 0 : index
    %c384 = arith.constant 384 : index
    %529 = vector.load %arg10[%c0_167, %c384] : memref<8x768xf32, #tpu.memory_space<vmem>>, vector<8x128xf32>
    tpu.vector_store %arg10[%c0_167, %c384], %524 {strides = array<i32>} : memref<8x768xf32, #tpu.memory_space<vmem>>, vector<8x128xf32>,
    %c0_168 = arith.constant 0 : index
    %c0_169 = arith.constant 0 : index
    %530 = vector.load %arg9[%c0_168, %c0_169] : memref<64x128xf32, #tpu.memory_space<vmem>>, vector<64x128xf32>
    %c2 = arith.constant 2 : index
    %c0_170 = arith.constant 0 : index
    %c0_171 = arith.constant 0 : index
    %531 = vector.load %arg3[%c2, %c0_170, %c0_171] : memref<3x128x512xf32, #tpu.memory_space<vmem>>, vector<1x128x512xf32>
    %532 = vector.shape_cast %531 : vector<1x128x512xf32> to vector<128x512xf32>
    %cst_172 = arith.constant dense<0.000000e+00> : vector<64x512xf32>
    %533 = tpu.matmul %530, %532, %cst_172 {dimension_numbers = #tpu.dot_dimension_numbers<[1], [0], [0], [1], [0, 0, 1, 1], [], []>} : vector<64x128xf32>, vector<128x512xf32>, vector<64x512xf32> -> vector<64x512xf32>
    %c2_173 = arith.constant 2 : index
    %c0_174 = arith.constant 0 : index
    %c0_175 = arith.constant 0 : index
    %534 = vector.load %arg5[%c2_173, %c0_174, %c0_175] : memref<3x1x512xf32, #tpu.memory_space<vmem>>, vector<1x1x512xf32>
    %535 = vector.shape_cast %534 : vector<1x1x512xf32> to vector<1x512xf32>
    %536 = vector.broadcast %535 : vector<1x512xf32> to vector<64x512xf32>
    %537 = arith.addf %533, %536 : vector<64x512xf32>
    %cst_176 = arith.constant 0.000000e+00 : f32
    %538 = vector.broadcast %cst_176 : f32 to vector<8x128xf32>
    %cst_177 = arith.constant 0.000000e+00 : f32
    %539 = vector.broadcast %cst_177 : f32 to vector<8x128xf32>
    %540 = vector.extract_strided_slice %537 {offsets = [0, 0], sizes = [8, 512], strides = [1, 1]} : vector<64x512xf32> to vector<8x512xf32>
    %c2_178 = arith.constant 2 : index
    %c0_179 = arith.constant 0 : index
    %c0_180 = arith.constant 0 : index
    %541 = vector.load %arg4[%c2_178, %c0_179, %c0_180] : memref<3x128x512xf32, #tpu.memory_space<vmem>>, vector<1x128x512xf32>
    %542 = vector.shape_cast %541 : vector<1x128x512xf32> to vector<128x512xf32>
    %cst_181 = arith.constant dense<0.000000e+00> : vector<8x512xf32>
    %543 = tpu.matmul %538, %542, %cst_181 {dimension_numbers = #tpu.dot_dimension_numbers<[1], [0], [0], [1], [0, 0, 1, 1], [], []>} : vector<8x128xf32>, vector<128x512xf32>, vector<8x512xf32> -> vector<8x512xf32>
    %544 = arith.addf %540, %543 : vector<8x512xf32>
    %545 = vector.extract_strided_slice %544 {offsets = [0, 0], sizes = [8, 128], strides = [1, 1]} : vector<8x512xf32> to vector<8x128xf32>
    %546 = arith.negf %545 : vector<8x128xf32>
    %547 = math.exp %546 : vector<8x128xf32>
    %cst_182 = arith.constant 1.000000e+00 : f32
    %548 = vector.broadcast %cst_182 : f32 to vector<8x128xf32>
    %549 = arith.addf %548, %547 : vector<8x128xf32>
    %550 = arith.divf %548, %549 : vector<8x128xf32>
    %551 = vector.extract_strided_slice %544 {offsets = [0, 128], sizes = [8, 128], strides = [1, 1]} : vector<8x512xf32> to vector<8x128xf32>
    %552 = arith.negf %551 : vector<8x128xf32>
    %553 = math.exp %552 : vector<8x128xf32>
    %cst_183 = arith.constant 1.000000e+00 : f32
    %554 = vector.broadcast %cst_183 : f32 to vector<8x128xf32>
    %555 = arith.addf %554, %553 : vector<8x128xf32>
    %556 = arith.divf %554, %555 : vector<8x128xf32>
    %557 = vector.extract_strided_slice %544 {offsets = [0, 256], sizes = [8, 128], strides = [1, 1]} : vector<8x512xf32> to vector<8x128xf32>
    %558 = math.tanh %557 : vector<8x128xf32>
    %559 = vector.extract_strided_slice %544 {offsets = [0, 384], sizes = [8, 128], strides = [1, 1]} : vector<8x512xf32> to vector<8x128xf32>
    %560 = arith.negf %559 : vector<8x128xf32>
    %561 = math.exp %560 : vector<8x128xf32>
    %cst_184 = arith.constant 1.000000e+00 : f32
    %562 = vector.broadcast %cst_184 : f32 to vector<8x128xf32>
    %563 = arith.addf %562, %561 : vector<8x128xf32>
    %564 = arith.divf %562, %563 : vector<8x128xf32>
    %565 = arith.mulf %556, %539 : vector<8x128xf32>
    %566 = arith.mulf %550, %558 : vector<8x128xf32>
    %567 = arith.addf %565, %566 : vector<8x128xf32>
    %568 = math.tanh %567 : vector<8x128xf32>
    %569 = arith.mulf %564, %568 : vector<8x128xf32>
    %c0_185 = arith.constant 0 : index
    %c0_186 = arith.constant 0 : index
    %570 = vector.load %arg9[%c0_185, %c0_186] : memref<64x128xf32, #tpu.memory_space<vmem>>, vector<8x128xf32>
    tpu.vector_store %arg9[%c0_185, %c0_186], %569 {strides = array<i32>} : memref<64x128xf32, #tpu.memory_space<vmem>>, vector<8x128xf32>,
    %571 = vector.extract_strided_slice %537 {offsets = [8, 0], sizes = [8, 512], strides = [1, 1]} : vector<64x512xf32> to vector<8x512xf32>
    %c2_187 = arith.constant 2 : index
    %c0_188 = arith.constant 0 : index
    %c0_189 = arith.constant 0 : index
    %572 = vector.load %arg4[%c2_187, %c0_188, %c0_189] : memref<3x128x512xf32, #tpu.memory_space<vmem>>, vector<1x128x512xf32>
    %573 = vector.shape_cast %572 : vector<1x128x512xf32> to vector<128x512xf32>
    %cst_190 = arith.constant dense<0.000000e+00> : vector<8x512xf32>
    %574 = tpu.matmul %569, %573, %cst_190 {dimension_numbers = #tpu.dot_dimension_numbers<[1], [0], [0], [1], [0, 0, 1, 1], [], []>} : vector<8x128xf32>, vector<128x512xf32>, vector<8x512xf32> -> vector<8x512xf32>
    %575 = arith.addf %571, %574 : vector<8x512xf32>
    %576 = vector.extract_strided_slice %575 {offsets = [0, 0], sizes = [8, 128], strides = [1, 1]} : vector<8x512xf32> to vector<8x128xf32>
    %577 = arith.negf %576 : vector<8x128xf32>
    %578 = math.exp %577 : vector<8x128xf32>
    %cst_191 = arith.constant 1.000000e+00 : f32
    %579 = vector.broadcast %cst_191 : f32 to vector<8x128xf32>
    %580 = arith.addf %579, %578 : vector<8x128xf32>
    %581 = arith.divf %579, %580 : vector<8x128xf32>
    %582 = vector.extract_strided_slice %575 {offsets = [0, 128], sizes = [8, 128], strides = [1, 1]} : vector<8x512xf32> to vector<8x128xf32>
    %583 = arith.negf %582 : vector<8x128xf32>
    %584 = math.exp %583 : vector<8x128xf32>
    %cst_192 = arith.constant 1.000000e+00 : f32
    %585 = vector.broadcast %cst_192 : f32 to vector<8x128xf32>
    %586 = arith.addf %585, %584 : vector<8x128xf32>
    %587 = arith.divf %585, %586 : vector<8x128xf32>
    %588 = vector.extract_strided_slice %575 {offsets = [0, 256], sizes = [8, 128], strides = [1, 1]} : vector<8x512xf32> to vector<8x128xf32>
    %589 = math.tanh %588 : vector<8x128xf32>
    %590 = vector.extract_strided_slice %575 {offsets = [0, 384], sizes = [8, 128], strides = [1, 1]} : vector<8x512xf32> to vector<8x128xf32>
    %591 = arith.negf %590 : vector<8x128xf32>
    %592 = math.exp %591 : vector<8x128xf32>
    %cst_193 = arith.constant 1.000000e+00 : f32
    %593 = vector.broadcast %cst_193 : f32 to vector<8x128xf32>
    %594 = arith.addf %593, %592 : vector<8x128xf32>
    %595 = arith.divf %593, %594 : vector<8x128xf32>
    %596 = arith.mulf %587, %567 : vector<8x128xf32>
    %597 = arith.mulf %581, %589 : vector<8x128xf32>
    %598 = arith.addf %596, %597 : vector<8x128xf32>
    %599 = math.tanh %598 : vector<8x128xf32>
    %600 = arith.mulf %595, %599 : vector<8x128xf32>
    %c8_194 = arith.constant 8 : index
    %c0_195 = arith.constant 0 : index
    %601 = vector.load %arg9[%c8_194, %c0_195] : memref<64x128xf32, #tpu.memory_space<vmem>>, vector<8x128xf32>
    tpu.vector_store %arg9[%c8_194, %c0_195], %600 {strides = array<i32>} : memref<64x128xf32, #tpu.memory_space<vmem>>, vector<8x128xf32>,
    %602 = vector.extract_strided_slice %537 {offsets = [16, 0], sizes = [8, 512], strides = [1, 1]} : vector<64x512xf32> to vector<8x512xf32>
    %c2_196 = arith.constant 2 : index
    %c0_197 = arith.constant 0 : index
    %c0_198 = arith.constant 0 : index
    %603 = vector.load %arg4[%c2_196, %c0_197, %c0_198] : memref<3x128x512xf32, #tpu.memory_space<vmem>>, vector<1x128x512xf32>
    %604 = vector.shape_cast %603 : vector<1x128x512xf32> to vector<128x512xf32>
    %cst_199 = arith.constant dense<0.000000e+00> : vector<8x512xf32>
    %605 = tpu.matmul %600, %604, %cst_199 {dimension_numbers = #tpu.dot_dimension_numbers<[1], [0], [0], [1], [0, 0, 1, 1], [], []>} : vector<8x128xf32>, vector<128x512xf32>, vector<8x512xf32> -> vector<8x512xf32>
    %606 = arith.addf %602, %605 : vector<8x512xf32>
    %607 = vector.extract_strided_slice %606 {offsets = [0, 0], sizes = [8, 128], strides = [1, 1]} : vector<8x512xf32> to vector<8x128xf32>
    %608 = arith.negf %607 : vector<8x128xf32>
    %609 = math.exp %608 : vector<8x128xf32>
    %cst_200 = arith.constant 1.000000e+00 : f32
    %610 = vector.broadcast %cst_200 : f32 to vector<8x128xf32>
    %611 = arith.addf %610, %609 : vector<8x128xf32>
    %612 = arith.divf %610, %611 : vector<8x128xf32>
    %613 = vector.extract_strided_slice %606 {offsets = [0, 128], sizes = [8, 128], strides = [1, 1]} : vector<8x512xf32> to vector<8x128xf32>
    %614 = arith.negf %613 : vector<8x128xf32>
    %615 = math.exp %614 : vector<8x128xf32>
    %cst_201 = arith.constant 1.000000e+00 : f32
    %616 = vector.broadcast %cst_201 : f32 to vector<8x128xf32>
    %617 = arith.addf %616, %615 : vector<8x128xf32>
    %618 = arith.divf %616, %617 : vector<8x128xf32>
    %619 = vector.extract_strided_slice %606 {offsets = [0, 256], sizes = [8, 128], strides = [1, 1]} : vector<8x512xf32> to vector<8x128xf32>
    %620 = math.tanh %619 : vector<8x128xf32>
    %621 = vector.extract_strided_slice %606 {offsets = [0, 384], sizes = [8, 128], strides = [1, 1]} : vector<8x512xf32> to vector<8x128xf32>
    %622 = arith.negf %621 : vector<8x128xf32>
    %623 = math.exp %622 : vector<8x128xf32>
    %cst_202 = arith.constant 1.000000e+00 : f32
    %624 = vector.broadcast %cst_202 : f32 to vector<8x128xf32>
    %625 = arith.addf %624, %623 : vector<8x128xf32>
    %626 = arith.divf %624, %625 : vector<8x128xf32>
    %627 = arith.mulf %618, %598 : vector<8x128xf32>
    %628 = arith.mulf %612, %620 : vector<8x128xf32>
    %629 = arith.addf %627, %628 : vector<8x128xf32>
    %630 = math.tanh %629 : vector<8x128xf32>
    %631 = arith.mulf %626, %630 : vector<8x128xf32>
    %c16_203 = arith.constant 16 : index
    %c0_204 = arith.constant 0 : index
    %632 = vector.load %arg9[%c16_203, %c0_204] : memref<64x128xf32, #tpu.memory_space<vmem>>, vector<8x128xf32>
    tpu.vector_store %arg9[%c16_203, %c0_204], %631 {strides = array<i32>} : memref<64x128xf32, #tpu.memory_space<vmem>>, vector<8x128xf32>,
    %633 = vector.extract_strided_slice %537 {offsets = [24, 0], sizes = [8, 512], strides = [1, 1]} : vector<64x512xf32> to vector<8x512xf32>
    %c2_205 = arith.constant 2 : index
    %c0_206 = arith.constant 0 : index
    %c0_207 = arith.constant 0 : index
    %634 = vector.load %arg4[%c2_205, %c0_206, %c0_207] : memref<3x128x512xf32, #tpu.memory_space<vmem>>, vector<1x128x512xf32>
    %635 = vector.shape_cast %634 : vector<1x128x512xf32> to vector<128x512xf32>
    %cst_208 = arith.constant dense<0.000000e+00> : vector<8x512xf32>
    %636 = tpu.matmul %631, %635, %cst_208 {dimension_numbers = #tpu.dot_dimension_numbers<[1], [0], [0], [1], [0, 0, 1, 1], [], []>} : vector<8x128xf32>, vector<128x512xf32>, vector<8x512xf32> -> vector<8x512xf32>
    %637 = arith.addf %633, %636 : vector<8x512xf32>
    %638 = vector.extract_strided_slice %637 {offsets = [0, 0], sizes = [8, 128], strides = [1, 1]} : vector<8x512xf32> to vector<8x128xf32>
    %639 = arith.negf %638 : vector<8x128xf32>
    %640 = math.exp %639 : vector<8x128xf32>
    %cst_209 = arith.constant 1.000000e+00 : f32
    %641 = vector.broadcast %cst_209 : f32 to vector<8x128xf32>
    %642 = arith.addf %641, %640 : vector<8x128xf32>
    %643 = arith.divf %641, %642 : vector<8x128xf32>
    %644 = vector.extract_strided_slice %637 {offsets = [0, 128], sizes = [8, 128], strides = [1, 1]} : vector<8x512xf32> to vector<8x128xf32>
    %645 = arith.negf %644 : vector<8x128xf32>
    %646 = math.exp %645 : vector<8x128xf32>
    %cst_210 = arith.constant 1.000000e+00 : f32
    %647 = vector.broadcast %cst_210 : f32 to vector<8x128xf32>
    %648 = arith.addf %647, %646 : vector<8x128xf32>
    %649 = arith.divf %647, %648 : vector<8x128xf32>
    %650 = vector.extract_strided_slice %637 {offsets = [0, 256], sizes = [8, 128], strides = [1, 1]} : vector<8x512xf32> to vector<8x128xf32>
    %651 = math.tanh %650 : vector<8x128xf32>
    %652 = vector.extract_strided_slice %637 {offsets = [0, 384], sizes = [8, 128], strides = [1, 1]} : vector<8x512xf32> to vector<8x128xf32>
    %653 = arith.negf %652 : vector<8x128xf32>
    %654 = math.exp %653 : vector<8x128xf32>
    %cst_211 = arith.constant 1.000000e+00 : f32
    %655 = vector.broadcast %cst_211 : f32 to vector<8x128xf32>
    %656 = arith.addf %655, %654 : vector<8x128xf32>
    %657 = arith.divf %655, %656 : vector<8x128xf32>
    %658 = arith.mulf %649, %629 : vector<8x128xf32>
    %659 = arith.mulf %643, %651 : vector<8x128xf32>
    %660 = arith.addf %658, %659 : vector<8x128xf32>
    %661 = math.tanh %660 : vector<8x128xf32>
    %662 = arith.mulf %657, %661 : vector<8x128xf32>
    %c24_212 = arith.constant 24 : index
    %c0_213 = arith.constant 0 : index
    %663 = vector.load %arg9[%c24_212, %c0_213] : memref<64x128xf32, #tpu.memory_space<vmem>>, vector<8x128xf32>
    tpu.vector_store %arg9[%c24_212, %c0_213], %662 {strides = array<i32>} : memref<64x128xf32, #tpu.memory_space<vmem>>, vector<8x128xf32>,
    %664 = vector.extract_strided_slice %537 {offsets = [32, 0], sizes = [8, 512], strides = [1, 1]} : vector<64x512xf32> to vector<8x512xf32>
    %c2_214 = arith.constant 2 : index
    %c0_215 = arith.constant 0 : index
    %c0_216 = arith.constant 0 : index
    %665 = vector.load %arg4[%c2_214, %c0_215, %c0_216] : memref<3x128x512xf32, #tpu.memory_space<vmem>>, vector<1x128x512xf32>
    %666 = vector.shape_cast %665 : vector<1x128x512xf32> to vector<128x512xf32>
    %cst_217 = arith.constant dense<0.000000e+00> : vector<8x512xf32>
    %667 = tpu.matmul %662, %666, %cst_217 {dimension_numbers = #tpu.dot_dimension_numbers<[1], [0], [0], [1], [0, 0, 1, 1], [], []>} : vector<8x128xf32>, vector<128x512xf32>, vector<8x512xf32> -> vector<8x512xf32>
    %668 = arith.addf %664, %667 : vector<8x512xf32>
    %669 = vector.extract_strided_slice %668 {offsets = [0, 0], sizes = [8, 128], strides = [1, 1]} : vector<8x512xf32> to vector<8x128xf32>
    %670 = arith.negf %669 : vector<8x128xf32>
    %671 = math.exp %670 : vector<8x128xf32>
    %cst_218 = arith.constant 1.000000e+00 : f32
    %672 = vector.broadcast %cst_218 : f32 to vector<8x128xf32>
    %673 = arith.addf %672, %671 : vector<8x128xf32>
    %674 = arith.divf %672, %673 : vector<8x128xf32>
    %675 = vector.extract_strided_slice %668 {offsets = [0, 128], sizes = [8, 128], strides = [1, 1]} : vector<8x512xf32> to vector<8x128xf32>
    %676 = arith.negf %675 : vector<8x128xf32>
    %677 = math.exp %676 : vector<8x128xf32>
    %cst_219 = arith.constant 1.000000e+00 : f32
    %678 = vector.broadcast %cst_219 : f32 to vector<8x128xf32>
    %679 = arith.addf %678, %677 : vector<8x128xf32>
    %680 = arith.divf %678, %679 : vector<8x128xf32>
    %681 = vector.extract_strided_slice %668 {offsets = [0, 256], sizes = [8, 128], strides = [1, 1]} : vector<8x512xf32> to vector<8x128xf32>
    %682 = math.tanh %681 : vector<8x128xf32>
    %683 = vector.extract_strided_slice %668 {offsets = [0, 384], sizes = [8, 128], strides = [1, 1]} : vector<8x512xf32> to vector<8x128xf32>
    %684 = arith.negf %683 : vector<8x128xf32>
    %685 = math.exp %684 : vector<8x128xf32>
    %cst_220 = arith.constant 1.000000e+00 : f32
    %686 = vector.broadcast %cst_220 : f32 to vector<8x128xf32>
    %687 = arith.addf %686, %685 : vector<8x128xf32>
    %688 = arith.divf %686, %687 : vector<8x128xf32>
    %689 = arith.mulf %680, %660 : vector<8x128xf32>
    %690 = arith.mulf %674, %682 : vector<8x128xf32>
    %691 = arith.addf %689, %690 : vector<8x128xf32>
    %692 = math.tanh %691 : vector<8x128xf32>
    %693 = arith.mulf %688, %692 : vector<8x128xf32>
    %c32_221 = arith.constant 32 : index
    %c0_222 = arith.constant 0 : index
    %694 = vector.load %arg9[%c32_221, %c0_222] : memref<64x128xf32, #tpu.memory_space<vmem>>, vector<8x128xf32>
    tpu.vector_store %arg9[%c32_221, %c0_222], %693 {strides = array<i32>} : memref<64x128xf32, #tpu.memory_space<vmem>>, vector<8x128xf32>,
    %695 = vector.extract_strided_slice %537 {offsets = [40, 0], sizes = [8, 512], strides = [1, 1]} : vector<64x512xf32> to vector<8x512xf32>
    %c2_223 = arith.constant 2 : index
    %c0_224 = arith.constant 0 : index
    %c0_225 = arith.constant 0 : index
    %696 = vector.load %arg4[%c2_223, %c0_224, %c0_225] : memref<3x128x512xf32, #tpu.memory_space<vmem>>, vector<1x128x512xf32>
    %697 = vector.shape_cast %696 : vector<1x128x512xf32> to vector<128x512xf32>
    %cst_226 = arith.constant dense<0.000000e+00> : vector<8x512xf32>
    %698 = tpu.matmul %693, %697, %cst_226 {dimension_numbers = #tpu.dot_dimension_numbers<[1], [0], [0], [1], [0, 0, 1, 1], [], []>} : vector<8x128xf32>, vector<128x512xf32>, vector<8x512xf32> -> vector<8x512xf32>
    %699 = arith.addf %695, %698 : vector<8x512xf32>
    %700 = vector.extract_strided_slice %699 {offsets = [0, 0], sizes = [8, 128], strides = [1, 1]} : vector<8x512xf32> to vector<8x128xf32>
    %701 = arith.negf %700 : vector<8x128xf32>
    %702 = math.exp %701 : vector<8x128xf32>
    %cst_227 = arith.constant 1.000000e+00 : f32
    %703 = vector.broadcast %cst_227 : f32 to vector<8x128xf32>
    %704 = arith.addf %703, %702 : vector<8x128xf32>
    %705 = arith.divf %703, %704 : vector<8x128xf32>
    %706 = vector.extract_strided_slice %699 {offsets = [0, 128], sizes = [8, 128], strides = [1, 1]} : vector<8x512xf32> to vector<8x128xf32>
    %707 = arith.negf %706 : vector<8x128xf32>
    %708 = math.exp %707 : vector<8x128xf32>
    %cst_228 = arith.constant 1.000000e+00 : f32
    %709 = vector.broadcast %cst_228 : f32 to vector<8x128xf32>
    %710 = arith.addf %709, %708 : vector<8x128xf32>
    %711 = arith.divf %709, %710 : vector<8x128xf32>
    %712 = vector.extract_strided_slice %699 {offsets = [0, 256], sizes = [8, 128], strides = [1, 1]} : vector<8x512xf32> to vector<8x128xf32>
    %713 = math.tanh %712 : vector<8x128xf32>
    %714 = vector.extract_strided_slice %699 {offsets = [0, 384], sizes = [8, 128], strides = [1, 1]} : vector<8x512xf32> to vector<8x128xf32>
    %715 = arith.negf %714 : vector<8x128xf32>
    %716 = math.exp %715 : vector<8x128xf32>
    %cst_229 = arith.constant 1.000000e+00 : f32
    %717 = vector.broadcast %cst_229 : f32 to vector<8x128xf32>
    %718 = arith.addf %717, %716 : vector<8x128xf32>
    %719 = arith.divf %717, %718 : vector<8x128xf32>
    %720 = arith.mulf %711, %691 : vector<8x128xf32>
    %721 = arith.mulf %705, %713 : vector<8x128xf32>
    %722 = arith.addf %720, %721 : vector<8x128xf32>
    %723 = math.tanh %722 : vector<8x128xf32>
    %724 = arith.mulf %719, %723 : vector<8x128xf32>
    %c40_230 = arith.constant 40 : index
    %c0_231 = arith.constant 0 : index
    %725 = vector.load %arg9[%c40_230, %c0_231] : memref<64x128xf32, #tpu.memory_space<vmem>>, vector<8x128xf32>
    tpu.vector_store %arg9[%c40_230, %c0_231], %724 {strides = array<i32>} : memref<64x128xf32, #tpu.memory_space<vmem>>, vector<8x128xf32>,
    %726 = vector.extract_strided_slice %537 {offsets = [48, 0], sizes = [8, 512], strides = [1, 1]} : vector<64x512xf32> to vector<8x512xf32>
    %c2_232 = arith.constant 2 : index
    %c0_233 = arith.constant 0 : index
    %c0_234 = arith.constant 0 : index
    %727 = vector.load %arg4[%c2_232, %c0_233, %c0_234] : memref<3x128x512xf32, #tpu.memory_space<vmem>>, vector<1x128x512xf32>
    %728 = vector.shape_cast %727 : vector<1x128x512xf32> to vector<128x512xf32>
    %cst_235 = arith.constant dense<0.000000e+00> : vector<8x512xf32>
    %729 = tpu.matmul %724, %728, %cst_235 {dimension_numbers = #tpu.dot_dimension_numbers<[1], [0], [0], [1], [0, 0, 1, 1], [], []>} : vector<8x128xf32>, vector<128x512xf32>, vector<8x512xf32> -> vector<8x512xf32>
    %730 = arith.addf %726, %729 : vector<8x512xf32>
    %731 = vector.extract_strided_slice %730 {offsets = [0, 0], sizes = [8, 128], strides = [1, 1]} : vector<8x512xf32> to vector<8x128xf32>
    %732 = arith.negf %731 : vector<8x128xf32>
    %733 = math.exp %732 : vector<8x128xf32>
    %cst_236 = arith.constant 1.000000e+00 : f32
    %734 = vector.broadcast %cst_236 : f32 to vector<8x128xf32>
    %735 = arith.addf %734, %733 : vector<8x128xf32>
    %736 = arith.divf %734, %735 : vector<8x128xf32>
    %737 = vector.extract_strided_slice %730 {offsets = [0, 128], sizes = [8, 128], strides = [1, 1]} : vector<8x512xf32> to vector<8x128xf32>
    %738 = arith.negf %737 : vector<8x128xf32>
    %739 = math.exp %738 : vector<8x128xf32>
    %cst_237 = arith.constant 1.000000e+00 : f32
    %740 = vector.broadcast %cst_237 : f32 to vector<8x128xf32>
    %741 = arith.addf %740, %739 : vector<8x128xf32>
    %742 = arith.divf %740, %741 : vector<8x128xf32>
    %743 = vector.extract_strided_slice %730 {offsets = [0, 256], sizes = [8, 128], strides = [1, 1]} : vector<8x512xf32> to vector<8x128xf32>
    %744 = math.tanh %743 : vector<8x128xf32>
    %745 = vector.extract_strided_slice %730 {offsets = [0, 384], sizes = [8, 128], strides = [1, 1]} : vector<8x512xf32> to vector<8x128xf32>
    %746 = arith.negf %745 : vector<8x128xf32>
    %747 = math.exp %746 : vector<8x128xf32>
    %cst_238 = arith.constant 1.000000e+00 : f32
    %748 = vector.broadcast %cst_238 : f32 to vector<8x128xf32>
    %749 = arith.addf %748, %747 : vector<8x128xf32>
    %750 = arith.divf %748, %749 : vector<8x128xf32>
    %751 = arith.mulf %742, %722 : vector<8x128xf32>
    %752 = arith.mulf %736, %744 : vector<8x128xf32>
    %753 = arith.addf %751, %752 : vector<8x128xf32>
    %754 = math.tanh %753 : vector<8x128xf32>
    %755 = arith.mulf %750, %754 : vector<8x128xf32>
    %c48_239 = arith.constant 48 : index
    %c0_240 = arith.constant 0 : index
    %756 = vector.load %arg9[%c48_239, %c0_240] : memref<64x128xf32, #tpu.memory_space<vmem>>, vector<8x128xf32>
    tpu.vector_store %arg9[%c48_239, %c0_240], %755 {strides = array<i32>} : memref<64x128xf32, #tpu.memory_space<vmem>>, vector<8x128xf32>,
    %757 = vector.extract_strided_slice %537 {offsets = [56, 0], sizes = [8, 512], strides = [1, 1]} : vector<64x512xf32> to vector<8x512xf32>
    %c2_241 = arith.constant 2 : index
    %c0_242 = arith.constant 0 : index
    %c0_243 = arith.constant 0 : index
    %758 = vector.load %arg4[%c2_241, %c0_242, %c0_243] : memref<3x128x512xf32, #tpu.memory_space<vmem>>, vector<1x128x512xf32>
    %759 = vector.shape_cast %758 : vector<1x128x512xf32> to vector<128x512xf32>
    %cst_244 = arith.constant dense<0.000000e+00> : vector<8x512xf32>
    %760 = tpu.matmul %755, %759, %cst_244 {dimension_numbers = #tpu.dot_dimension_numbers<[1], [0], [0], [1], [0, 0, 1, 1], [], []>} : vector<8x128xf32>, vector<128x512xf32>, vector<8x512xf32> -> vector<8x512xf32>
    %761 = arith.addf %757, %760 : vector<8x512xf32>
    %762 = vector.extract_strided_slice %761 {offsets = [0, 0], sizes = [8, 128], strides = [1, 1]} : vector<8x512xf32> to vector<8x128xf32>
    %763 = arith.negf %762 : vector<8x128xf32>
    %764 = math.exp %763 : vector<8x128xf32>
    %cst_245 = arith.constant 1.000000e+00 : f32
    %765 = vector.broadcast %cst_245 : f32 to vector<8x128xf32>
    %766 = arith.addf %765, %764 : vector<8x128xf32>
    %767 = arith.divf %765, %766 : vector<8x128xf32>
    %768 = vector.extract_strided_slice %761 {offsets = [0, 128], sizes = [8, 128], strides = [1, 1]} : vector<8x512xf32> to vector<8x128xf32>
    %769 = arith.negf %768 : vector<8x128xf32>
    %770 = math.exp %769 : vector<8x128xf32>
    %cst_246 = arith.constant 1.000000e+00 : f32
    %771 = vector.broadcast %cst_246 : f32 to vector<8x128xf32>
    %772 = arith.addf %771, %770 : vector<8x128xf32>
    %773 = arith.divf %771, %772 : vector<8x128xf32>
    %774 = vector.extract_strided_slice %761 {offsets = [0, 256], sizes = [8, 128], strides = [1, 1]} : vector<8x512xf32> to vector<8x128xf32>
    %775 = math.tanh %774 : vector<8x128xf32>
    %776 = vector.extract_strided_slice %761 {offsets = [0, 384], sizes = [8, 128], strides = [1, 1]} : vector<8x512xf32> to vector<8x128xf32>
    %777 = arith.negf %776 : vector<8x128xf32>
    %778 = math.exp %777 : vector<8x128xf32>
    %cst_247 = arith.constant 1.000000e+00 : f32
    %779 = vector.broadcast %cst_247 : f32 to vector<8x128xf32>
    %780 = arith.addf %779, %778 : vector<8x128xf32>
    %781 = arith.divf %779, %780 : vector<8x128xf32>
    %782 = arith.mulf %773, %753 : vector<8x128xf32>
    %783 = arith.mulf %767, %775 : vector<8x128xf32>
    %784 = arith.addf %782, %783 : vector<8x128xf32>
    %785 = math.tanh %784 : vector<8x128xf32>
    %786 = arith.mulf %781, %785 : vector<8x128xf32>
    %c56_248 = arith.constant 56 : index
    %c0_249 = arith.constant 0 : index
    %787 = vector.load %arg9[%c56_248, %c0_249] : memref<64x128xf32, #tpu.memory_space<vmem>>, vector<8x128xf32>
    tpu.vector_store %arg9[%c56_248, %c0_249], %786 {strides = array<i32>} : memref<64x128xf32, #tpu.memory_space<vmem>>, vector<8x128xf32>,
    %c0_250 = arith.constant 0 : index
    %c512 = arith.constant 512 : index
    %788 = vector.load %arg10[%c0_250, %c512] : memref<8x768xf32, #tpu.memory_space<vmem>>, vector<8x128xf32>
    tpu.vector_store %arg10[%c0_250, %c512], %786 {strides = array<i32>} : memref<8x768xf32, #tpu.memory_space<vmem>>, vector<8x128xf32>,
    %c0_251 = arith.constant 0 : index
    %c640 = arith.constant 640 : index
    %789 = vector.load %arg10[%c0_251, %c640] : memref<8x768xf32, #tpu.memory_space<vmem>>, vector<8x128xf32>
    tpu.vector_store %arg10[%c0_251, %c640], %784 {strides = array<i32>} : memref<8x768xf32, #tpu.memory_space<vmem>>, vector<8x128xf32>,
    %c0_252 = arith.constant 0 : index
    %c0_253 = arith.constant 0 : index
    %790 = vector.load %arg10[%c0_252, %c0_253] : memref<8x768xf32, #tpu.memory_space<vmem>>, vector<8x768xf32>
    %791 = math.tanh %790 : vector<8x768xf32>
    %c0_254 = arith.constant 0 : index
    %c0_255 = arith.constant 0 : index
    %792 = vector.load %arg6[%c0_254, %c0_255] : memref<768x128xf32, #tpu.memory_space<vmem>>, vector<768x128xf32>
    %cst_256 = arith.constant dense<0.000000e+00> : vector<8x128xf32>
    %793 = tpu.matmul %791, %792, %cst_256 {dimension_numbers = #tpu.dot_dimension_numbers<[1], [0], [0], [1], [0, 0, 1, 1], [], []>} : vector<8x768xf32>, vector<768x128xf32>, vector<8x128xf32> -> vector<8x128xf32>
    %c0_257 = arith.constant 0 : index
    %c0_258 = arith.constant 0 : index
    %794 = vector.load %arg7[%c0_257, %c0_258] : memref<1x128xf32, #tpu.memory_space<vmem>>, vector<1x128xf32>
    %795 = vector.broadcast %794 : vector<1x128xf32> to vector<8x128xf32>
    %796 = arith.addf %793, %795 : vector<8x128xf32>
    %c0_259 = arith.constant 0 : index
    %c0_260 = arith.constant 0 : index
    %797 = vector.load %arg8[%c0_259, %c0_260] : memref<8x128xf32, #tpu.memory_space<vmem>>, vector<8x128xf32>
    tpu.vector_store %arg8[%c0_259, %c0_260], %796 {strides = array<i32>} : memref<8x128xf32, #tpu.memory_space<vmem>>, vector<8x128xf32>,
    return
  }
  func.func @transform_0(%arg0: i32) -> (i32, i32) {
    %c0_i32 = arith.constant 0 : i32
    %c0_i32_0 = arith.constant 0 : i32
    return %arg0, %c0_i32 : i32, i32
  }
  func.func @transform_1(%arg0: i32) -> (i32, i32) {
    %c0_i32 = arith.constant 0 : i32
    %c0_i32_0 = arith.constant 0 : i32
    %c0_i32_1 = arith.constant 0 : i32
    return %c0_i32, %c0_i32_0 : i32, i32
  }
  func.func @transform_2(%arg0: i32) -> (i32, i32, i32) {
    %c0_i32 = arith.constant 0 : i32
    %c0_i32_0 = arith.constant 0 : i32
    %c0_i32_1 = arith.constant 0 : i32
    %c0_i32_2 = arith.constant 0 : i32
    return %c0_i32, %c0_i32_0, %c0_i32_1 : i32, i32, i32
  }
  func.func @transform_3(%arg0: i32) -> (i32, i32, i32) {
    %c0_i32 = arith.constant 0 : i32
    %c0_i32_0 = arith.constant 0 : i32
    %c0_i32_1 = arith.constant 0 : i32
    %c0_i32_2 = arith.constant 0 : i32
    return %c0_i32, %c0_i32_0, %c0_i32_1 : i32, i32, i32
  }
  func.func @transform_4(%arg0: i32) -> (i32, i32, i32) {
    %c0_i32 = arith.constant 0 : i32
    %c0_i32_0 = arith.constant 0 : i32
    %c0_i32_1 = arith.constant 0 : i32
    %c0_i32_2 = arith.constant 0 : i32
    return %c0_i32, %c0_i32_0, %c0_i32_1 : i32, i32, i32
  }
  func.func @transform_5(%arg0: i32) -> (i32, i32) {
    %c0_i32 = arith.constant 0 : i32
    %c0_i32_0 = arith.constant 0 : i32
    %c0_i32_1 = arith.constant 0 : i32
    return %c0_i32, %c0_i32_0 : i32, i32
  }
  func.func @transform_6(%arg0: i32) -> (i32, i32) {
    %c0_i32 = arith.constant 0 : i32
    %c0_i32_0 = arith.constant 0 : i32
    %c0_i32_1 = arith.constant 0 : i32
    return %c0_i32, %c0_i32_0 : i32, i32
  }
  func.func @transform_7(%arg0: i32) -> (i32, i32) {
    %c0_i32 = arith.constant 0 : i32
    %c0_i32_0 = arith.constant 0 : i32
    return %arg0, %c0_i32 : i32, i32
  }
}

</mosaic_0001>

<llo_original>
// kernel: tpu_custom_call.1
$region0: #{tpu_custom_call.1}
  #allocation0 [shape = 'u32[]', space=smem, size = 0x4, offset = 0x4, fixed_abs, tag = 'smem constant byte address 0x4 - core index']
  #allocation1 [shape = 'u32[72,128]{1,0:T(1,128)}', space=vmem, size = 0x9000, scoped, tag = 'internal scratch']
  #allocation2 [shape = 'f32[64,128]{1,0:T(8,128)}', space=vmem, size = 0x8000, scoped, tag = 'scratch operand']
  #allocation3 [shape = 'f32[8,768]{1,0:T(8,128)}', space=vmem, size = 0x6000, scoped, tag = 'scratch operand']
  %s0 = inlined_call_operand.vmem [shape: s32[64,1], index: 0, kind: input, shape index: {}]
  %s1 = inlined_call_operand.hbm [shape: f32[128,128], index: 1, kind: input, shape index: {}]
  %s2 = inlined_call_operand.hbm [shape: f32[3,128,512], index: 2, kind: input, shape index: {}]
  %s3 = inlined_call_operand.hbm [shape: f32[3,128,512], index: 3, kind: input, shape index: {}]
  %s4 = inlined_call_operand.vmem [shape: f32[3,1,512], index: 4, kind: input, shape index: {}]
  %s5 = inlined_call_operand.hbm [shape: f32[768,128], index: 5, kind: input, shape index: {}]
  %s6 = inlined_call_operand.vmem [shape: f32[1,128], index: 6, kind: input, shape index: {}]
  %s7 = inlined_call_operand.hbm [shape: f32[8,128], index: 7, kind: output, shape index: {}]
  %s8 = sld [smem:[#allocation0]]
  $region54: #{tpu_custom_call.1} parent=0
    _
  %s10 = ssub.s32 1, %s8
  %s11 = scalar_select 0, %s10, %s8
  $region1: #{tpu_custom_call.1} parent=0
    #allocation4 [shape = 'u8[65536]{0}', space=vmem, size = 0x10000, scoped, tag = 'input window, operand 1, single buffered']
    #allocation5 [shape = 's32[1]{0}', space=sflag, size = 0x4, scoped, tag = 'scoped memory for tpu_custom_call.1']
    #allocation6 [shape = 's32[1]{0}', space=sflag, size = 0x4, scoped, tag = 'scoped memory for tpu_custom_call.1']
    #allocation7 [shape = 'u8[786432]{0}', space=vmem, size = 0xc0000, scoped, tag = 'input window, operand 2, single buffered']
    #allocation8 [shape = 's32[1]{0}', space=sflag, size = 0x4, scoped, tag = 'scoped memory for tpu_custom_call.1']
    #allocation9 [shape = 'u8[786432]{0}', space=vmem, size = 0xc0000, scoped, tag = 'input window, operand 3, single buffered']
    #allocation10 [shape = 'u8[393216]{0}', space=vmem, size = 0x60000, scoped, tag = 'input window, operand 5, single buffered']
    #allocation11 [shape = 's32[1]{0}', space=sflag, size = 0x4, scoped, tag = 'scoped memory for tpu_custom_call.1']
    #allocation12 [shape = 'u8[4096]{0}', space=vmem, size = 0x1000, scoped, tag = 'output window, operand 0, single buffered']
    %12 = vsyncpa [#allocation5], 0
    %13 = vsyncpa [#allocation8], 0
    %14 = vsyncpa [#allocation11], 0
    %15 = vsyncpa [#allocation6], 0
    // Predicated region
    $region2: #{tpu_custom_call.1} parent=1 // pred_check
      _
    $region3: #{tpu_custom_call.1} parent=1 // pred_check_branch
      %17 = sbr.rel (0) target = $region5
    $region4: #{tpu_custom_call.1} parent=1 // pred_region
      _
    $region5: #{tpu_custom_call.1} parent=1 // pred_fallthru
      _
    // Predicated region
    $region6: #{tpu_custom_call.1} parent=1 // pred_check
      _
    $region7: #{tpu_custom_call.1} parent=1 // pred_check_branch
      %19 = sbr.rel (0) target = $region9
    $region8: #{tpu_custom_call.1} parent=1 // pred_region
      %21 = vsyncadd [#allocation5], 0
      %s22 = sshll.u32 %s1, 4
      %s23 = int_to_ptr.hbm [resolvable:$true] %s22
      %s24 = sshll.u32 [#allocation4], 4
      %s25 = int_to_ptr.vmem [resolvable:$true] %s24
      %30 = dma.hbm_to_vmem [thread:$0]  %s23, 2048, %s25, [#allocation5], 128, 128, 8
    $region9: #{tpu_custom_call.1} parent=1 // pred_fallthru
      _
    // Predicated region
    $region10: #{tpu_custom_call.1} parent=1 // pred_check
      _
    $region11: #{tpu_custom_call.1} parent=1 // pred_check_branch
      %32 = sbr.rel (0) target = $region13
    $region12: #{tpu_custom_call.1} parent=1 // pred_region
      %34 = vsyncadd [#allocation8], 0
      %s35 = sshll.u32 %s2, 4
      %s36 = int_to_ptr.hbm [resolvable:$true] %s35
      %s37 = sshll.u32 [#allocation7], 4
      %s38 = int_to_ptr.vmem [resolvable:$true] %s37
      %43 = dma.hbm_to_vmem [thread:$0]  %s36, 24576, %s38, [#allocation8], 512, 512, 32
    $region13: #{tpu_custom_call.1} parent=1 // pred_fallthru
      _
    // Predicated region
    $region14: #{tpu_custom_call.1} parent=1 // pred_check
      _
    $region15: #{tpu_custom_call.1} parent=1 // pred_check_branch
      %45 = sbr.rel (0) target = $region17
    $region16: #{tpu_custom_call.1} parent=1 // pred_region
      %47 = vsyncadd [#allocation8], 0
      %s48 = sshll.u32 %s3, 4
      %s49 = int_to_ptr.hbm [resolvable:$true] %s48
      %s50 = sshll.u32 [#allocation9], 4
      %s51 = int_to_ptr.vmem [resolvable:$true] %s50
      %56 = dma.hbm_to_vmem [thread:$0]  %s49, 24576, %s51, [#allocation8], 512, 512, 32
    $region17: #{tpu_custom_call.1} parent=1 // pred_fallthru
      _
    // Predicated region
    $region18: #{tpu_custom_call.1} parent=1 // pred_check
      _
    $region19: #{tpu_custom_call.1} parent=1 // pred_check_branch
      %58 = sbr.rel (0) target = $region21
    $region20: #{tpu_custom_call.1} parent=1 // pred_region
      _
    $region21: #{tpu_custom_call.1} parent=1 // pred_fallthru
      _
    // Predicated region
    $region22: #{tpu_custom_call.1} parent=1 // pred_check
      _
    $region23: #{tpu_custom_call.1} parent=1 // pred_check_branch
      %60 = sbr.rel (0) target = $region25
    $region24: #{tpu_custom_call.1} parent=1 // pred_region
      %62 = vsyncadd [#allocation11], 0
      %s63 = sshll.u32 %s5, 4
      %s64 = int_to_ptr.hbm [resolvable:$true] %s63
      %s65 = sshll.u32 [#allocation10], 4
      %s66 = int_to_ptr.vmem [resolvable:$true] %s65
      %71 = dma.hbm_to_vmem [thread:$0]  %s64, 12288, %s66, [#allocation11], 128, 128, 8
    $region25: #{tpu_custom_call.1} parent=1 // pred_fallthru
      _
    // Predicated region
    $region26: #{tpu_custom_call.1} parent=1 // pred_check
      _
    $region27: #{tpu_custom_call.1} parent=1 // pred_check_branch
      %73 = sbr.rel (0) target = $region29
    $region28: #{tpu_custom_call.1} parent=1 // pred_region
      _
    $region29: #{tpu_custom_call.1} parent=1 // pred_fallthru
      _
    // Predicated region
    $region30: #{tpu_custom_call.1} parent=1 // pred_check
      _
    $region31: #{tpu_custom_call.1} parent=1 // pred_check_branch
      %75 = sbr.rel (0) target = $region33
    $region32: #{tpu_custom_call.1} parent=1 // pred_region
      %77 = dma.done [#allocation5], 2048
    $region33: #{tpu_custom_call.1} parent=1 // pred_fallthru
      _
    // Predicated region
    $region34: #{tpu_custom_call.1} parent=1 // pred_check
      _
    $region35: #{tpu_custom_call.1} parent=1 // pred_check_branch
      %79 = sbr.rel (0) target = $region37
    $region36: #{tpu_custom_call.1} parent=1 // pred_region
      %81 = dma.done [#allocation8], 24576
    $region37: #{tpu_custom_call.1} parent=1 // pred_fallthru
      _
    // Predicated region
    $region38: #{tpu_custom_call.1} parent=1 // pred_check
      _
    $region39: #{tpu_custom_call.1} parent=1 // pred_check_branch
      %83 = sbr.rel (0) target = $region41
    $region40: #{tpu_custom_call.1} parent=1 // pred_region
      %85 = dma.done [#allocation8], 24576
    $region41: #{tpu_custom_call.1} parent=1 // pred_fallthru
      _
    // Predicated region
    $region42: #{tpu_custom_call.1} parent=1 // pred_check
      _
    $region43: #{tpu_custom_call.1} parent=1 // pred_check_branch
      %87 = sbr.rel (0) target = $region45
    $region44: #{tpu_custom_call.1} parent=1 // pred_region
      %89 = dma.done [#allocation11], 12288
    $region45: #{tpu_custom_call.1} parent=1 // pred_fallthru
      _
    %v90 = vld [vmem:[%s0] sm:$0xff]
    %v91 = vld [vmem:[%s0 + $0x8] sm:$0xff]
    %v92 = vld [vmem:[%s0 + $0x10] sm:$0xff]
    %v93 = vld [vmem:[%s0 + $0x18] sm:$0xff]
    %v94 = vld [vmem:[%s0 + $0x20] sm:$0xff]
    %v95 = vld [vmem:[%s0 + $0x28] sm:$0xff]
    %v96 = vld [vmem:[%s0 + $0x30] sm:$0xff]
    %v97 = vld [vmem:[%s0 + $0x38] sm:$0xff]
    %v98 = vlaneseq
    %v99 = vand.u32 %v98, 127
    %100 = vset.pattern.permute.xlu0 0
    %101 = vperm.xlu0 %100, %v90
    %v102 = vpop.permute.xlu0 %101
    %103 = vset.pattern.permute.xlu0 0
    %104 = vperm.xlu0 %103, %v91
    %v105 = vpop.permute.xlu0 %104
    %106 = vset.pattern.permute.xlu0 0
    %107 = vperm.xlu0 %106, %v92
    %v108 = vpop.permute.xlu0 %107
    %109 = vset.pattern.permute.xlu0 0
    %110 = vperm.xlu0 %109, %v93
    %v111 = vpop.permute.xlu0 %110
    %112 = vset.pattern.permute.xlu0 0
    %113 = vperm.xlu0 %112, %v94
    %v114 = vpop.permute.xlu0 %113
    %115 = vset.pattern.permute.xlu0 0
    %116 = vperm.xlu0 %115, %v95
    %v117 = vpop.permute.xlu0 %116
    %118 = vset.pattern.permute.xlu0 0
    %119 = vperm.xlu0 %118, %v96
    %v120 = vpop.permute.xlu0 %119
    %121 = vset.pattern.permute.xlu0 0
    %122 = vperm.xlu0 %121, %v97
    %v123 = vpop.permute.xlu0 %122
    %vm124 = vcmp.eq.s32.totalorder %v99, %v102
    %vm125 = vcmp.eq.s32.totalorder %v99, %v105
    %vm126 = vcmp.eq.s32.totalorder %v99, %v108
    %vm127 = vcmp.eq.s32.totalorder %v99, %v111
    %vm128 = vcmp.eq.s32.totalorder %v99, %v114
    %vm129 = vcmp.eq.s32.totalorder %v99, %v117
    %vm130 = vcmp.eq.s32.totalorder %v99, %v120
    %vm131 = vcmp.eq.s32.totalorder %v99, %v123
    %v132 = vsel %vm124, 1, 0
    %v133 = vsel %vm125, 1, 0
    %v134 = vsel %vm126, 1, 0
    %v135 = vsel %vm127, 1, 0
    %v136 = vsel %vm128, 1, 0
    %v137 = vsel %vm129, 1, 0
    %v138 = vsel %vm130, 1, 0
    %v139 = vsel %vm131, 1, 0
    %v140 = vcvt.s32.f32 %v132
    %v141 = vcvt.s32.f32 %v133
    %v142 = vcvt.s32.f32 %v134
    %v143 = vcvt.s32.f32 %v135
    %v144 = vcvt.s32.f32 %v136
    %v145 = vcvt.s32.f32 %v137
    %v146 = vcvt.s32.f32 %v138
    %v147 = vcvt.s32.f32 %v139
    %v148 = vld [vmem:[#allocation4] sm:$0xff]
    %v149 = vld [vmem:[#allocation4 + $0x8] sm:$0xff]
    %v150 = vld [vmem:[#allocation4 + $0x10] sm:$0xff]
    %v151 = vld [vmem:[#allocation4 + $0x18] sm:$0xff]
    %v152 = vld [vmem:[#allocation4 + $0x20] sm:$0xff]
    %v153 = vld [vmem:[#allocation4 + $0x28] sm:$0xff]
    %v154 = vld [vmem:[#allocation4 + $0x30] sm:$0xff]
    %v155 = vld [vmem:[#allocation4 + $0x38] sm:$0xff]
    %v156 = vld [vmem:[#allocation4 + $0x40] sm:$0xff]
    %v157 = vld [vmem:[#allocation4 + $0x48] sm:$0xff]
    %v158 = vld [vmem:[#allocation4 + $0x50] sm:$0xff]
    %v159 = vld [vmem:[#allocation4 + $0x58] sm:$0xff]
    %v160 = vld [vmem:[#allocation4 + $0x60] sm:$0xff]
    %v161 = vld [vmem:[#allocation4 + $0x68] sm:$0xff]
    %v162 = vld [vmem:[#allocation4 + $0x70] sm:$0xff]
    %v163 = vld [vmem:[#allocation4 + $0x78] sm:$0xff]
    %164 = vmatpush.msra.mxu0 %v163
    %165 = vmatpush.msra.mxu0 %v162
    %166 = vmatpush.msra.mxu0 %v161
    %167 = vmatpush.msra.mxu0 %v160
    %168 = vmatpush.msra.mxu0 %v159
    %169 = vmatpush.msra.mxu0 %v158
    %170 = vmatpush.msra.mxu0 %v157
    %171 = vmatpush.msra.mxu0 %v156
    %172 = vmatpush.msra.mxu0 %v155
    %173 = vmatpush.msra.mxu0 %v154
    %174 = vmatpush.msra.mxu0 %v153
    %175 = vmatpush.msra.mxu0 %v152
    %176 = vmatpush.msra.mxu0 %v151
    %177 = vmatpush.msra.mxu0 %v150
    %178 = vmatpush.msra.mxu0 %v149
    %179 = vmatpush.msra.mxu0 %v148
    %180 = vmatmul.f32.gmra.mxu0 %v140
    %v181 = vpop.f32.mrf.mxu0
    %v182 = vadd.f32 0.0, %v181
    %183 = vmatmul.f32.gmra.mxu0 %v141
    %v184 = vpop.f32.mrf.mxu0
    %v185 = vadd.f32 0.0, %v184
    %186 = vmatmul.f32.gmra.mxu0 %v142
    %v187 = vpop.f32.mrf.mxu0
    %v188 = vadd.f32 0.0, %v187
    %189 = vmatmul.f32.gmra.mxu0 %v143
    %v190 = vpop.f32.mrf.mxu0
    %v191 = vadd.f32 0.0, %v190
    %192 = vmatmul.f32.gmra.mxu0 %v144
    %v193 = vpop.f32.mrf.mxu0
    %v194 = vadd.f32 0.0, %v193
    %195 = vmatmul.f32.gmra.mxu0 %v145
    %v196 = vpop.f32.mrf.mxu0
    %v197 = vadd.f32 0.0, %v196
    %198 = vmatmul.f32.gmra.mxu0 %v146
    %v199 = vpop.f32.mrf.mxu0
    %v200 = vadd.f32 0.0, %v199
    %201 = vmatmul.f32.gmra.mxu0 %v147
    %v202 = vpop.f32.mrf.mxu0
    %v203 = vadd.f32 0.0, %v202
    %204 = vdwg.mxu0
    %v205 = vtanh.pop %v182
    %v206 = vtanh.pop %v185
    %v207 = vtanh.pop %v188
    %v208 = vtanh.pop %v191
    %v209 = vtanh.pop %v194
    %v210 = vtanh.pop %v197
    %v211 = vtanh.pop %v200
    %v212 = vtanh.pop %v203
    %213 = vst [vmem:[#allocation2] sm:$0xff] %v205
    %214 = vst [vmem:[#allocation2 + $0x8] sm:$0xff] %v206
    %215 = vst [vmem:[#allocation2 + $0x10] sm:$0xff] %v207
    %216 = vst [vmem:[#allocation2 + $0x18] sm:$0xff] %v208
    %217 = vst [vmem:[#allocation2 + $0x20] sm:$0xff] %v209
    %218 = vst [vmem:[#allocation2 + $0x28] sm:$0xff] %v210
    %219 = vst [vmem:[#allocation2 + $0x30] sm:$0xff] %v211
    %220 = vst [vmem:[#allocation2 + $0x38] sm:$0xff] %v212
    %v221 = vld [vmem:[#allocation2] sm:$0xff]
    %v222 = vld [vmem:[#allocation2 + $0x8] sm:$0xff]
    %v223 = vld [vmem:[#allocation2 + $0x10] sm:$0xff]
    %v224 = vld [vmem:[#allocation2 + $0x18] sm:$0xff]
    %v225 = vld [vmem:[#allocation2 + $0x20] sm:$0xff]
    %v226 = vld [vmem:[#allocation2 + $0x28] sm:$0xff]
    %v227 = vld [vmem:[#allocation2 + $0x30] sm:$0xff]
    %v228 = vld [vmem:[#allocation2 + $0x38] sm:$0xff]
    %v229 = vld [vmem:[#allocation7] sm:$0xff]
    %v230 = vld [vmem:[#allocation7 + $0x8] sm:$0xff]
    %v231 = vld [vmem:[#allocation7 + $0x10] sm:$0xff]
    %v232 = vld [vmem:[#allocation7 + $0x18] sm:$0xff]
    %v233 = vld [vmem:[#allocation7 + $0x20] sm:$0xff]
    %v234 = vld [vmem:[#allocation7 + $0x28] sm:$0xff]
    %v235 = vld [vmem:[#allocation7 + $0x30] sm:$0xff]
    %v236 = vld [vmem:[#allocation7 + $0x38] sm:$0xff]
    %v237 = vld [vmem:[#allocation7 + $0x40] sm:$0xff]
    %v238 = vld [vmem:[#allocation7 + $0x48] sm:$0xff]
    %v239 = vld [vmem:[#allocation7 + $0x50] sm:$0xff]
    %v240 = vld [vmem:[#allocation7 + $0x58] sm:$0xff]
    %v241 = vld [vmem:[#allocation7 + $0x60] sm:$0xff]
    %v242 = vld [vmem:[#allocation7 + $0x68] sm:$0xff]
    %v243 = vld [vmem:[#allocation7 + $0x70] sm:$0xff]
    %v244 = vld [vmem:[#allocation7 + $0x78] sm:$0xff]
    %v245 = vld [vmem:[#allocation7 + $0x80] sm:$0xff]
    %v246 = vld [vmem:[#allocation7 + $0x88] sm:$0xff]
    %v247 = vld [vmem:[#allocation7 + $0x90] sm:$0xff]
    %v248 = vld [vmem:[#allocation7 + $0x98] sm:$0xff]
    %v249 = vld [vmem:[#allocation7 + $0xa0] sm:$0xff]
    %v250 = vld [vmem:[#allocation7 + $0xa8] sm:$0xff]
    %v251 = vld [vmem:[#allocation7 + $0xb0] sm:$0xff]
    %v252 = vld [vmem:[#allocation7 + $0xb8] sm:$0xff]
    %v253 = vld [vmem:[#allocation7 + $0xc0] sm:$0xff]
    %v254 = vld [vmem:[#allocation7 + $0xc8] sm:$0xff]
    %v255 = vld [vmem:[#allocation7 + $0xd0] sm:$0xff]
    %v256 = vld [vmem:[#allocation7 + $0xd8] sm:$0xff]
    %v257 = vld [vmem:[#allocation7 + $0xe0] sm:$0xff]
    %v258 = vld [vmem:[#allocation7 + $0xe8] sm:$0xff]
    %v259 = vld [vmem:[#allocation7 + $0xf0] sm:$0xff]
    %v260 = vld [vmem:[#allocation7 + $0xf8] sm:$0xff]
    %v261 = vld [vmem:[#allocation7 + $0x100] sm:$0xff]
    %v262 = vld [vmem:[#allocation7 + $0x108] sm:$0xff]
    %v263 = vld [vmem:[#allocation7 + $0x110] sm:$0xff]
    %v264 = vld [vmem:[#allocation7 + $0x118] sm:$0xff]
    %v265 = vld [vmem:[#allocation7 + $0x120] sm:$0xff]
    %v266 = vld [vmem:[#allocation7 + $0x128] sm:$0xff]
    %v267 = vld [vmem:[#allocation7 + $0x130] sm:$0xff]
    %v268 = vld [vmem:[#allocation7 + $0x138] sm:$0xff]
    %v269 = vld [vmem:[#allocation7 + $0x140] sm:$0xff]
    %v270 = vld [vmem:[#allocation7 + $0x148] sm:$0xff]
    %v271 = vld [vmem:[#allocation7 + $0x150] sm:$0xff]
    %v272 = vld [vmem:[#allocation7 + $0x158] sm:$0xff]
    %v273 = vld [vmem:[#allocation7 + $0x160] sm:$0xff]
    %v274 = vld [vmem:[#allocation7 + $0x168] sm:$0xff]
    %v275 = vld [vmem:[#allocation7 + $0x170] sm:$0xff]
    %v276 = vld [vmem:[#allocation7 + $0x178] sm:$0xff]
    %v277 = vld [vmem:[#allocation7 + $0x180] sm:$0xff]
    %v278 = vld [vmem:[#allocation7 + $0x188] sm:$0xff]
    %v279 = vld [vmem:[#allocation7 + $0x190] sm:$0xff]
    %v280 = vld [vmem:[#allocation7 + $0x198] sm:$0xff]
    %v281 = vld [vmem:[#allocation7 + $0x1a0] sm:$0xff]
    %v282 = vld [vmem:[#allocation7 + $0x1a8] sm:$0xff]
    %v283 = vld [vmem:[#allocation7 + $0x1b0] sm:$0xff]
    %v284 = vld [vmem:[#allocation7 + $0x1b8] sm:$0xff]
    %v285 = vld [vmem:[#allocation7 + $0x1c0] sm:$0xff]
    %v286 = vld [vmem:[#allocation7 + $0x1c8] sm:$0xff]
    %v287 = vld [vmem:[#allocation7 + $0x1d0] sm:$0xff]
    %v288 = vld [vmem:[#allocation7 + $0x1d8] sm:$0xff]
    %v289 = vld [vmem:[#allocation7 + $0x1e0] sm:$0xff]
    %v290 = vld [vmem:[#allocation7 + $0x1e8] sm:$0xff]
    %v291 = vld [vmem:[#allocation7 + $0x1f0] sm:$0xff]
    %v292 = vld [vmem:[#allocation7 + $0x1f8] sm:$0xff]
    %v293 = vld [vmem:[%s4] sm:$0xf]
    %v295 = vperm.slane %v293, 0
    %v296 = vperm.slane %v293, 1
    %v297 = vperm.slane %v293, 2
    %v298 = vperm.slane %v293, 3
    %303 = vmatpush.msra.mxu0 %v289
    %304 = vmatpush.msra.mxu0 %v285
    %305 = vmatpush.msra.mxu0 %v281
    %306 = vmatpush.msra.mxu0 %v277
    %307 = vmatpush.msra.mxu0 %v273
    %308 = vmatpush.msra.mxu0 %v269
    %309 = vmatpush.msra.mxu0 %v265
    %310 = vmatpush.msra.mxu0 %v261
    %311 = vmatpush.msra.mxu0 %v257
    %312 = vmatpush.msra.mxu0 %v253
    %313 = vmatpush.msra.mxu0 %v249
    %314 = vmatpush.msra.mxu0 %v245
    %315 = vmatpush.msra.mxu0 %v241
    %316 = vmatpush.msra.mxu0 %v237
    %317 = vmatpush.msra.mxu0 %v233
    %318 = vmatpush.msra.mxu0 %v229
    %319 = vmatmul.f32.gmra.mxu0 %v221
    %v320 = vpop.f32.mrf.mxu0
    %v321 = vadd.f32 %v295, %v320
    %322 = vmatmul.f32.gmra.mxu0 %v222
    %v323 = vpop.f32.mrf.mxu0
    %v324 = vadd.f32 %v295, %v323
    %325 = vmatmul.f32.gmra.mxu0 %v223
    %v326 = vpop.f32.mrf.mxu0
    %v327 = vadd.f32 %v295, %v326
    %328 = vmatmul.f32.gmra.mxu0 %v224
    %v329 = vpop.f32.mrf.mxu0
    %v330 = vadd.f32 %v295, %v329
    %331 = vmatmul.f32.gmra.mxu0 %v225
    %v332 = vpop.f32.mrf.mxu0
    %v333 = vadd.f32 %v295, %v332
    %334 = vmatmul.f32.gmra.mxu0 %v226
    %v335 = vpop.f32.mrf.mxu0
    %v336 = vadd.f32 %v295, %v335
    %337 = vmatmul.f32.gmra.mxu0 %v227
    %v338 = vpop.f32.mrf.mxu0
    %v339 = vadd.f32 %v295, %v338
    %340 = vmatmul.f32.gmra.mxu0 %v228
    %v341 = vpop.f32.mrf.mxu0
    %v342 = vadd.f32 %v295, %v341
    %343 = vdwg.mxu0
    %344 = vmatpush.msra.mxu0 %v290
    %345 = vmatpush.msra.mxu0 %v286
    %346 = vmatpush.msra.mxu0 %v282
    %347 = vmatpush.msra.mxu0 %v278
    %348 = vmatpush.msra.mxu0 %v274
    %349 = vmatpush.msra.mxu0 %v270
    %350 = vmatpush.msra.mxu0 %v266
    %351 = vmatpush.msra.mxu0 %v262
    %352 = vmatpush.msra.mxu0 %v258
    %353 = vmatpush.msra.mxu0 %v254
    %354 = vmatpush.msra.mxu0 %v250
    %355 = vmatpush.msra.mxu0 %v246
    %356 = vmatpush.msra.mxu0 %v242
    %357 = vmatpush.msra.mxu0 %v238
    %358 = vmatpush.msra.mxu0 %v234
    %359 = vmatpush.msra.mxu0 %v230
    %360 = vmatmul.f32.gmra.mxu0 %v221
    %v361 = vpop.f32.mrf.mxu0
    %v362 = vadd.f32 %v296, %v361
    %363 = vmatmul.f32.gmra.mxu0 %v222
    %v364 = vpop.f32.mrf.mxu0
    %v365 = vadd.f32 %v296, %v364
    %366 = vmatmul.f32.gmra.mxu0 %v223
    %v367 = vpop.f32.mrf.mxu0
    %v368 = vadd.f32 %v296, %v367
    %369 = vmatmul.f32.gmra.mxu0 %v224
    %v370 = vpop.f32.mrf.mxu0
    %v371 = vadd.f32 %v296, %v370
    %372 = vmatmul.f32.gmra.mxu0 %v225
    %v373 = vpop.f32.mrf.mxu0
    %v374 = vadd.f32 %v296, %v373
    %375 = vmatmul.f32.gmra.mxu0 %v226
    %v376 = vpop.f32.mrf.mxu0
    %v377 = vadd.f32 %v296, %v376
    %378 = vmatmul.f32.gmra.mxu0 %v227
    %v379 = vpop.f32.mrf.mxu0
    %v380 = vadd.f32 %v296, %v379
    %381 = vmatmul.f32.gmra.mxu0 %v228
    %v382 = vpop.f32.mrf.mxu0
    %v383 = vadd.f32 %v296, %v382
    %384 = vdwg.mxu0
    %385 = vmatpush.msra.mxu0 %v291
    %386 = vmatpush.msra.mxu0 %v287
    %387 = vmatpush.msra.mxu0 %v283
    %388 = vmatpush.msra.mxu0 %v279
    %389 = vmatpush.msra.mxu0 %v275
    %390 = vmatpush.msra.mxu0 %v271
    %391 = vmatpush.msra.mxu0 %v267
    %392 = vmatpush.msra.mxu0 %v263
    %393 = vmatpush.msra.mxu0 %v259
    %394 = vmatpush.msra.mxu0 %v255
    %395 = vmatpush.msra.mxu0 %v251
    %396 = vmatpush.msra.mxu0 %v247
    %397 = vmatpush.msra.mxu0 %v243
    %398 = vmatpush.msra.mxu0 %v239
    %399 = vmatpush.msra.mxu0 %v235
    %400 = vmatpush.msra.mxu0 %v231
    %401 = vmatmul.f32.gmra.mxu0 %v221
    %v402 = vpop.f32.mrf.mxu0
    %v403 = vadd.f32 %v297, %v402
    %404 = vmatmul.f32.gmra.mxu0 %v222
    %v405 = vpop.f32.mrf.mxu0
    %v406 = vadd.f32 %v297, %v405
    %407 = vmatmul.f32.gmra.mxu0 %v223
    %v408 = vpop.f32.mrf.mxu0
    %v409 = vadd.f32 %v297, %v408
    %410 = vmatmul.f32.gmra.mxu0 %v224
    %v411 = vpop.f32.mrf.mxu0
    %v412 = vadd.f32 %v297, %v411
    %413 = vmatmul.f32.gmra.mxu0 %v225
    %v414 = vpop.f32.mrf.mxu0
    %v415 = vadd.f32 %v297, %v414
    %416 = vmatmul.f32.gmra.mxu0 %v226
    %v417 = vpop.f32.mrf.mxu0
    %v418 = vadd.f32 %v297, %v417
    %419 = vmatmul.f32.gmra.mxu0 %v227
    %v420 = vpop.f32.mrf.mxu0
    %v421 = vadd.f32 %v297, %v420
    %422 = vmatmul.f32.gmra.mxu0 %v228
    %v423 = vpop.f32.mrf.mxu0
    %v424 = vadd.f32 %v297, %v423
    %425 = vdwg.mxu0
    %426 = vmatpush.msra.mxu0 %v292
    %427 = vmatpush.msra.mxu0 %v288
    %428 = vmatpush.msra.mxu0 %v284
    %429 = vmatpush.msra.mxu0 %v280
    %430 = vmatpush.msra.mxu0 %v276
    %431 = vmatpush.msra.mxu0 %v272
    %432 = vmatpush.msra.mxu0 %v268
    %433 = vmatpush.msra.mxu0 %v264
    %434 = vmatpush.msra.mxu0 %v260
    %435 = vmatpush.msra.mxu0 %v256
    %436 = vmatpush.msra.mxu0 %v252
    %437 = vmatpush.msra.mxu0 %v248
    %438 = vmatpush.msra.mxu0 %v244
    %439 = vmatpush.msra.mxu0 %v240
    %440 = vmatpush.msra.mxu0 %v236
    %441 = vmatpush.msra.mxu0 %v232
    %442 = vmatmul.f32.gmra.mxu0 %v221
    %v443 = vpop.f32.mrf.mxu0
    %v444 = vadd.f32 %v298, %v443
    %445 = vmatmul.f32.gmra.mxu0 %v222
    %v446 = vpop.f32.mrf.mxu0
    %v447 = vadd.f32 %v298, %v446
    %448 = vmatmul.f32.gmra.mxu0 %v223
    %v449 = vpop.f32.mrf.mxu0
    %v450 = vadd.f32 %v298, %v449
    %451 = vmatmul.f32.gmra.mxu0 %v224
    %v452 = vpop.f32.mrf.mxu0
    %v453 = vadd.f32 %v298, %v452
    %454 = vmatmul.f32.gmra.mxu0 %v225
    %v455 = vpop.f32.mrf.mxu0
    %v456 = vadd.f32 %v298, %v455
    %457 = vmatmul.f32.gmra.mxu0 %v226
    %v458 = vpop.f32.mrf.mxu0
    %v459 = vadd.f32 %v298, %v458
    %460 = vmatmul.f32.gmra.mxu0 %v227
    %v461 = vpop.f32.mrf.mxu0
    %v462 = vadd.f32 %v298, %v461
    %463 = vmatmul.f32.gmra.mxu0 %v228
    %v464 = vpop.f32.mrf.mxu0
    %v465 = vadd.f32 %v298, %v464
    %466 = vdwg.mxu0
    %v467 = vld [vmem:[#allocation9] sm:$0xff]
    %v468 = vld [vmem:[#allocation9 + $0x8] sm:$0xff]
    %v469 = vld [vmem:[#allocation9 + $0x10] sm:$0xff]
    %v470 = vld [vmem:[#allocation9 + $0x18] sm:$0xff]
    %v471 = vld [vmem:[#allocation9 + $0x20] sm:$0xff]
    %v472 = vld [vmem:[#allocation9 + $0x28] sm:$0xff]
    %v473 = vld [vmem:[#allocation9 + $0x30] sm:$0xff]
    %v474 = vld [vmem:[#allocation9 + $0x38] sm:$0xff]
    %v475 = vld [vmem:[#allocation9 + $0x40] sm:$0xff]
    %v476 = vld [vmem:[#allocation9 + $0x48] sm:$0xff]
    %v477 = vld [vmem:[#allocation9 + $0x50] sm:$0xff]
    %v478 = vld [vmem:[#allocation9 + $0x58] sm:$0xff]
    %v479 = vld [vmem:[#allocation9 + $0x60] sm:$0xff]
    %v480 = vld [vmem:[#allocation9 + $0x68] sm:$0xff]
    %v481 = vld [vmem:[#allocation9 + $0x70] sm:$0xff]
    %v482 = vld [vmem:[#allocation9 + $0x78] sm:$0xff]
    %v483 = vld [vmem:[#allocation9 + $0x80] sm:$0xff]
    %v484 = vld [vmem:[#allocation9 + $0x88] sm:$0xff]
    %v485 = vld [vmem:[#allocation9 + $0x90] sm:$0xff]
    %v486 = vld [vmem:[#allocation9 + $0x98] sm:$0xff]
    %v487 = vld [vmem:[#allocation9 + $0xa0] sm:$0xff]
    %v488 = vld [vmem:[#allocation9 + $0xa8] sm:$0xff]
    %v489 = vld [vmem:[#allocation9 + $0xb0] sm:$0xff]
    %v490 = vld [vmem:[#allocation9 + $0xb8] sm:$0xff]
    %v491 = vld [vmem:[#allocation9 + $0xc0] sm:$0xff]
    %v492 = vld [vmem:[#allocation9 + $0xc8] sm:$0xff]
    %v493 = vld [vmem:[#allocation9 + $0xd0] sm:$0xff]
    %v494 = vld [vmem:[#allocation9 + $0xd8] sm:$0xff]
    %v495 = vld [vmem:[#allocation9 + $0xe0] sm:$0xff]
    %v496 = vld [vmem:[#allocation9 + $0xe8] sm:$0xff]
    %v497 = vld [vmem:[#allocation9 + $0xf0] sm:$0xff]
    %v498 = vld [vmem:[#allocation9 + $0xf8] sm:$0xff]
    %v499 = vld [vmem:[#allocation9 + $0x100] sm:$0xff]
    %v500 = vld [vmem:[#allocation9 + $0x108] sm:$0xff]
    %v501 = vld [vmem:[#allocation9 + $0x110] sm:$0xff]
    %v502 = vld [vmem:[#allocation9 + $0x118] sm:$0xff]
    %v503 = vld [vmem:[#allocation9 + $0x120] sm:$0xff]
    %v504 = vld [vmem:[#allocation9 + $0x128] sm:$0xff]
    %v505 = vld [vmem:[#allocation9 + $0x130] sm:$0xff]
    %v506 = vld [vmem:[#allocation9 + $0x138] sm:$0xff]
    %v507 = vld [vmem:[#allocation9 + $0x140] sm:$0xff]
    %v508 = vld [vmem:[#allocation9 + $0x148] sm:$0xff]
    %v509 = vld [vmem:[#allocation9 + $0x150] sm:$0xff]
    %v510 = vld [vmem:[#allocation9 + $0x158] sm:$0xff]
    %v511 = vld [vmem:[#allocation9 + $0x160] sm:$0xff]
    %v512 = vld [vmem:[#allocation9 + $0x168] sm:$0xff]
    %v513 = vld [vmem:[#allocation9 + $0x170] sm:$0xff]
    %v514 = vld [vmem:[#allocation9 + $0x178] sm:$0xff]
    %v515 = vld [vmem:[#allocation9 + $0x180] sm:$0xff]
    %v516 = vld [vmem:[#allocation9 + $0x188] sm:$0xff]
    %v517 = vld [vmem:[#allocation9 + $0x190] sm:$0xff]
    %v518 = vld [vmem:[#allocation9 + $0x198] sm:$0xff]
    %v519 = vld [vmem:[#allocation9 + $0x1a0] sm:$0xff]
    %v520 = vld [vmem:[#allocation9 + $0x1a8] sm:$0xff]
    %v521 = vld [vmem:[#allocation9 + $0x1b0] sm:$0xff]
    %v522 = vld [vmem:[#allocation9 + $0x1b8] sm:$0xff]
    %v523 = vld [vmem:[#allocation9 + $0x1c0] sm:$0xff]
    %v524 = vld [vmem:[#allocation9 + $0x1c8] sm:$0xff]
    %v525 = vld [vmem:[#allocation9 + $0x1d0] sm:$0xff]
    %v526 = vld [vmem:[#allocation9 + $0x1d8] sm:$0xff]
    %v527 = vld [vmem:[#allocation9 + $0x1e0] sm:$0xff]
    %v528 = vld [vmem:[#allocation9 + $0x1e8] sm:$0xff]
    %v529 = vld [vmem:[#allocation9 + $0x1f0] sm:$0xff]
    %v530 = vld [vmem:[#allocation9 + $0x1f8] sm:$0xff]
    %531 = vmatpush.msra.mxu0 %v527
    %532 = vmatpush.msra.mxu0 %v523
    %533 = vmatpush.msra.mxu0 %v519
    %534 = vmatpush.msra.mxu0 %v515
    %535 = vmatpush.msra.mxu0 %v511
    %536 = vmatpush.msra.mxu0 %v507
    %537 = vmatpush.msra.mxu0 %v503
    %538 = vmatpush.msra.mxu0 %v499
    %539 = vmatpush.msra.mxu0 %v495
    %540 = vmatpush.msra.mxu0 %v491
    %541 = vmatpush.msra.mxu0 %v487
    %542 = vmatpush.msra.mxu0 %v483
    %543 = vmatpush.msra.mxu0 %v479
    %544 = vmatpush.msra.mxu0 %v475
    %545 = vmatpush.msra.mxu0 %v471
    %546 = vmatpush.msra.mxu0 %v467
    %547 = vmatmul.f32.gmra.mxu0 0.0
    %v548 = vpop.f32.mrf.mxu0
    %v549 = vadd.f32 0.0, %v548
    %550 = vdwg.mxu0
    %551 = vmatpush.msra.mxu0 %v528
    %552 = vmatpush.msra.mxu0 %v524
    %553 = vmatpush.msra.mxu0 %v520
    %554 = vmatpush.msra.mxu0 %v516
    %555 = vmatpush.msra.mxu0 %v512
    %556 = vmatpush.msra.mxu0 %v508
    %557 = vmatpush.msra.mxu0 %v504
    %558 = vmatpush.msra.mxu0 %v500
    %559 = vmatpush.msra.mxu0 %v496
    %560 = vmatpush.msra.mxu0 %v492
    %561 = vmatpush.msra.mxu0 %v488
    %562 = vmatpush.msra.mxu0 %v484
    %563 = vmatpush.msra.mxu0 %v480
    %564 = vmatpush.msra.mxu0 %v476
    %565 = vmatpush.msra.mxu0 %v472
    %566 = vmatpush.msra.mxu0 %v468
    %567 = vmatmul.f32.gmra.mxu0 0.0
    %v568 = vpop.f32.mrf.mxu0
    %v569 = vadd.f32 0.0, %v568
    %570 = vdwg.mxu0
    %571 = vmatpush.msra.mxu0 %v529
    %572 = vmatpush.msra.mxu0 %v525
    %573 = vmatpush.msra.mxu0 %v521
    %574 = vmatpush.msra.mxu0 %v517
    %575 = vmatpush.msra.mxu0 %v513
    %576 = vmatpush.msra.mxu0 %v509
    %577 = vmatpush.msra.mxu0 %v505
    %578 = vmatpush.msra.mxu0 %v501
    %579 = vmatpush.msra.mxu0 %v497
    %580 = vmatpush.msra.mxu0 %v493
    %581 = vmatpush.msra.mxu0 %v489
    %582 = vmatpush.msra.mxu0 %v485
    %583 = vmatpush.msra.mxu0 %v481
    %584 = vmatpush.msra.mxu0 %v477
    %585 = vmatpush.msra.mxu0 %v473
    %586 = vmatpush.msra.mxu0 %v469
    %587 = vmatmul.f32.gmra.mxu0 0.0
    %v588 = vpop.f32.mrf.mxu0
    %v589 = vadd.f32 0.0, %v588
    %590 = vdwg.mxu0
    %591 = vmatpush.msra.mxu0 %v530
    %592 = vmatpush.msra.mxu0 %v526
    %593 = vmatpush.msra.mxu0 %v522
    %594 = vmatpush.msra.mxu0 %v518
    %595 = vmatpush.msra.mxu0 %v514
    %596 = vmatpush.msra.mxu0 %v510
    %597 = vmatpush.msra.mxu0 %v506
    %598 = vmatpush.msra.mxu0 %v502
    %599 = vmatpush.msra.mxu0 %v498
    %600 = vmatpush.msra.mxu0 %v494
    %601 = vmatpush.msra.mxu0 %v490
    %602 = vmatpush.msra.mxu0 %v486
    %603 = vmatpush.msra.mxu0 %v482
    %604 = vmatpush.msra.mxu0 %v478
    %605 = vmatpush.msra.mxu0 %v474
    %606 = vmatpush.msra.mxu0 %v470
    %607 = vmatmul.f32.gmra.mxu0 0.0
    %v608 = vpop.f32.mrf.mxu0
    %v609 = vadd.f32 0.0, %v608
    %610 = vdwg.mxu0
    %v611 = vadd.f32 %v321, %v549
    %v612 = vadd.f32 %v362, %v569
    %v613 = vadd.f32 %v403, %v589
    %v614 = vadd.f32 %v444, %v609
    %v615 = vxor.u32 %v611, 2147483648
    %v616 = vmul.f32 %v615, 1.442695
    %v617 = vpow.pop %v616
    %v618 = vadd.f32 %v617, 1.0
    %v619 = vrcp.pop %v618
    %v620 = vmul.f32 %v618, %v619
    %v621 = vsub.f32 1.0, %v620
    %v622 = vmul.f32 %v619, %v621
    %v623 = vadd.f32 %v619, %v622
    %vm624 = vweird.f32 %v618
    %vm625 = vweird.f32 %v619
    %vm626 = vmor %vm624, %vm625
    %v627 = vsel %vm626, %v619, %v623
    %v628 = vand.u32 2147483647, %v618
    %vm629 = vcmp.eq.f32.partialorder %v628, 8.507059e+37
    %v630 = vand.u32 %v618, 2147483648
    %v631 = vor.u32 1.1754944e-38, %v630
    %v632 = vsel %vm629, %v631, %v627
    %v633 = vmul.f32 1.0, %v632
    %v634 = vxor.u32 %v612, 2147483648
    %v635 = vmul.f32 %v634, 1.442695
    %v636 = vpow.pop %v635
    %v637 = vadd.f32 %v636, 1.0
    %v638 = vrcp.pop %v637
    %v639 = vmul.f32 %v637, %v638
    %v640 = vsub.f32 1.0, %v639
    %v641 = vmul.f32 %v638, %v640
    %v642 = vadd.f32 %v638, %v641
    %vm643 = vweird.f32 %v637
    %vm644 = vweird.f32 %v638
    %vm645 = vmor %vm643, %vm644
    %v646 = vsel %vm645, %v638, %v642
    %v647 = vand.u32 2147483647, %v637
    %vm648 = vcmp.eq.f32.partialorder %v647, 8.507059e+37
    %v649 = vand.u32 %v637, 2147483648
    %v650 = vor.u32 1.1754944e-38, %v649
    %v651 = vsel %vm648, %v650, %v646
    %v652 = vmul.f32 1.0, %v651
    %v653 = vtanh.pop %v613
    %v654 = vxor.u32 %v614, 2147483648
    %v655 = vmul.f32 %v654, 1.442695
    %v656 = vpow.pop %v655
    %v657 = vadd.f32 %v656, 1.0
    %v658 = vrcp.pop %v657
    %v659 = vmul.f32 %v657, %v658
    %v660 = vsub.f32 1.0, %v659
    %v661 = vmul.f32 %v658, %v660
    %v662 = vadd.f32 %v658, %v661
    %vm663 = vweird.f32 %v657
    %vm664 = vweird.f32 %v658
    %vm665 = vmor %vm663, %vm664
    %v666 = vsel %vm665, %v658, %v662
    %v667 = vand.u32 2147483647, %v657
    %vm668 = vcmp.eq.f32.partialorder %v667, 8.507059e+37
    %v669 = vand.u32 %v657, 2147483648
    %v670 = vor.u32 1.1754944e-38, %v669
    %v671 = vsel %vm668, %v670, %v666
    %v672 = vmul.f32 1.0, %v671
    %v673 = vmul.f32 %v652, 0.0
    %v674 = vmul.f32 %v633, %v653
    %v675 = vadd.f32 %v673, %v674
    %v676 = vtanh.pop %v675
    %v677 = vmul.f32 %v672, %v676
    %678 = vst [vmem:[#allocation2] sm:$0xff] %v677
    %v679 = vld [vmem:[#allocation9] sm:$0xff]
    %v680 = vld [vmem:[#allocation9 + $0x8] sm:$0xff]
    %v681 = vld [vmem:[#allocation9 + $0x10] sm:$0xff]
    %v682 = vld [vmem:[#allocation9 + $0x18] sm:$0xff]
    %v683 = vld [vmem:[#allocation9 + $0x20] sm:$0xff]
    %v684 = vld [vmem:[#allocation9 + $0x28] sm:$0xff]
    %v685 = vld [vmem:[#allocation9 + $0x30] sm:$0xff]
    %v686 = vld [vmem:[#allocation9 + $0x38] sm:$0xff]
    %v687 = vld [vmem:[#allocation9 + $0x40] sm:$0xff]
    %v688 = vld [vmem:[#allocation9 + $0x48] sm:$0xff]
    %v689 = vld [vmem:[#allocation9 + $0x50] sm:$0xff]
    %v690 = vld [vmem:[#allocation9 + $0x58] sm:$0xff]
    %v691 = vld [vmem:[#allocation9 + $0x60] sm:$0xff]
    %v692 = vld [vmem:[#allocation9 + $0x68] sm:$0xff]
    %v693 = vld [vmem:[#allocation9 + $0x70] sm:$0xff]
    %v694 = vld [vmem:[#allocation9 + $0x78] sm:$0xff]
    %v695 = vld [vmem:[#allocation9 + $0x80] sm:$0xff]
    %v696 = vld [vmem:[#allocation9 + $0x88] sm:$0xff]
    %v697 = vld [vmem:[#allocation9 + $0x90] sm:$0xff]
    %v698 = vld [vmem:[#allocation9 + $0x98] sm:$0xff]
    %v699 = vld [vmem:[#allocation9 + $0xa0] sm:$0xff]
    %v700 = vld [vmem:[#allocation9 + $0xa8] sm:$0xff]
    %v701 = vld [vmem:[#allocation9 + $0xb0] sm:$0xff]
    %v702 = vld [vmem:[#allocation9 + $0xb8] sm:$0xff]
    %v703 = vld [vmem:[#allocation9 + $0xc0] sm:$0xff]
    %v704 = vld [vmem:[#allocation9 + $0xc8] sm:$0xff]
    %v705 = vld [vmem:[#allocation9 + $0xd0] sm:$0xff]
    %v706 = vld [vmem:[#allocation9 + $0xd8] sm:$0xff]
    %v707 = vld [vmem:[#allocation9 + $0xe0] sm:$0xff]
    %v708 = vld [vmem:[#allocation9 + $0xe8] sm:$0xff]
    %v709 = vld [vmem:[#allocation9 + $0xf0] sm:$0xff]
    %v710 = vld [vmem:[#allocation9 + $0xf8] sm:$0xff]
    %v711 = vld [vmem:[#allocation9 + $0x100] sm:$0xff]
    %v712 = vld [vmem:[#allocation9 + $0x108] sm:$0xff]
    %v713 = vld [vmem:[#allocation9 + $0x110] sm:$0xff]
    %v714 = vld [vmem:[#allocation9 + $0x118] sm:$0xff]
    %v715 = vld [vmem:[#allocation9 + $0x120] sm:$0xff]
    %v716 = vld [vmem:[#allocation9 + $0x128] sm:$0xff]
    %v717 = vld [vmem:[#allocation9 + $0x130] sm:$0xff]
    %v718 = vld [vmem:[#allocation9 + $0x138] sm:$0xff]
    %v719 = vld [vmem:[#allocation9 + $0x140] sm:$0xff]
    %v720 = vld [vmem:[#allocation9 + $0x148] sm:$0xff]
    %v721 = vld [vmem:[#allocation9 + $0x150] sm:$0xff]
    %v722 = vld [vmem:[#allocation9 + $0x158] sm:$0xff]
    %v723 = vld [vmem:[#allocation9 + $0x160] sm:$0xff]
    %v724 = vld [vmem:[#allocation9 + $0x168] sm:$0xff]
    %v725 = vld [vmem:[#allocation9 + $0x170] sm:$0xff]
    %v726 = vld [vmem:[#allocation9 + $0x178] sm:$0xff]
    %v727 = vld [vmem:[#allocation9 + $0x180] sm:$0xff]
    %v728 = vld [vmem:[#allocation9 + $0x188] sm:$0xff]
    %v729 = vld [vmem:[#allocation9 + $0x190] sm:$0xff]
    %v730 = vld [vmem:[#allocation9 + $0x198] sm:$0xff]
    %v731 = vld [vmem:[#allocation9 + $0x1a0] sm:$0xff]
    %v732 = vld [vmem:[#allocation9 + $0x1a8] sm:$0xff]
    %v733 = vld [vmem:[#allocation9 + $0x1b0] sm:$0xff]
    %v734 = vld [vmem:[#allocation9 + $0x1b8] sm:$0xff]
    %v735 = vld [vmem:[#allocation9 + $0x1c0] sm:$0xff]
    %v736 = vld [vmem:[#allocation9 + $0x1c8] sm:$0xff]
    %v737 = vld [vmem:[#allocation9 + $0x1d0] sm:$0xff]
    %v738 = vld [vmem:[#allocation9 + $0x1d8] sm:$0xff]
    %v739 = vld [vmem:[#allocation9 + $0x1e0] sm:$0xff]
    %v740 = vld [vmem:[#allocation9 + $0x1e8] sm:$0xff]
    %v741 = vld [vmem:[#allocation9 + $0x1f0] sm:$0xff]
    %v742 = vld [vmem:[#allocation9 + $0x1f8] sm:$0xff]
    %743 = vmatpush.msra.mxu0 %v739
    %744 = vmatpush.msra.mxu0 %v735
    %745 = vmatpush.msra.mxu0 %v731
    %746 = vmatpush.msra.mxu0 %v727
    %747 = vmatpush.msra.mxu0 %v723
    %748 = vmatpush.msra.mxu0 %v719
    %749 = vmatpush.msra.mxu0 %v715
    %750 = vmatpush.msra.mxu0 %v711
    %751 = vmatpush.msra.mxu0 %v707
    %752 = vmatpush.msra.mxu0 %v703
    %753 = vmatpush.msra.mxu0 %v699
    %754 = vmatpush.msra.mxu0 %v695
    %755 = vmatpush.msra.mxu0 %v691
    %756 = vmatpush.msra.mxu0 %v687
    %757 = vmatpush.msra.mxu0 %v683
    %758 = vmatpush.msra.mxu0 %v679
    %759 = vmatmul.f32.gmra.mxu0 %v677
    %v760 = vpop.f32.mrf.mxu0
    %v761 = vadd.f32 0.0, %v760
    %762 = vdwg.mxu0
    %763 = vmatpush.msra.mxu0 %v740
    %764 = vmatpush.msra.mxu0 %v736
    %765 = vmatpush.msra.mxu0 %v732
    %766 = vmatpush.msra.mxu0 %v728
    %767 = vmatpush.msra.mxu0 %v724
    %768 = vmatpush.msra.mxu0 %v720
    %769 = vmatpush.msra.mxu0 %v716
    %770 = vmatpush.msra.mxu0 %v712
    %771 = vmatpush.msra.mxu0 %v708
    %772 = vmatpush.msra.mxu0 %v704
    %773 = vmatpush.msra.mxu0 %v700
    %774 = vmatpush.msra.mxu0 %v696
    %775 = vmatpush.msra.mxu0 %v692
    %776 = vmatpush.msra.mxu0 %v688
    %777 = vmatpush.msra.mxu0 %v684
    %778 = vmatpush.msra.mxu0 %v680
    %779 = vmatmul.f32.gmra.mxu0 %v677
    %v780 = vpop.f32.mrf.mxu0
    %v781 = vadd.f32 0.0, %v780
    %782 = vdwg.mxu0
    %783 = vmatpush.msra.mxu0 %v741
    %784 = vmatpush.msra.mxu0 %v737
    %785 = vmatpush.msra.mxu0 %v733
    %786 = vmatpush.msra.mxu0 %v729
    %787 = vmatpush.msra.mxu0 %v725
    %788 = vmatpush.msra.mxu0 %v721
    %789 = vmatpush.msra.mxu0 %v717
    %790 = vmatpush.msra.mxu0 %v713
    %791 = vmatpush.msra.mxu0 %v709
    %792 = vmatpush.msra.mxu0 %v705
    %793 = vmatpush.msra.mxu0 %v701
    %794 = vmatpush.msra.mxu0 %v697
    %795 = vmatpush.msra.mxu0 %v693
    %796 = vmatpush.msra.mxu0 %v689
    %797 = vmatpush.msra.mxu0 %v685
    %798 = vmatpush.msra.mxu0 %v681
    %799 = vmatmul.f32.gmra.mxu0 %v677
    %v800 = vpop.f32.mrf.mxu0
    %v801 = vadd.f32 0.0, %v800
    %802 = vdwg.mxu0
    %803 = vmatpush.msra.mxu0 %v742
    %804 = vmatpush.msra.mxu0 %v738
    %805 = vmatpush.msra.mxu0 %v734
    %806 = vmatpush.msra.mxu0 %v730
    %807 = vmatpush.msra.mxu0 %v726
    %808 = vmatpush.msra.mxu0 %v722
    %809 = vmatpush.msra.mxu0 %v718
    %810 = vmatpush.msra.mxu0 %v714
    %811 = vmatpush.msra.mxu0 %v710
    %812 = vmatpush.msra.mxu0 %v706
    %813 = vmatpush.msra.mxu0 %v702
    %814 = vmatpush.msra.mxu0 %v698
    %815 = vmatpush.msra.mxu0 %v694
    %816 = vmatpush.msra.mxu0 %v690
    %817 = vmatpush.msra.mxu0 %v686
    %818 = vmatpush.msra.mxu0 %v682
    %819 = vmatmul.f32.gmra.mxu0 %v677
    %v820 = vpop.f32.mrf.mxu0
    %v821 = vadd.f32 0.0, %v820
    %822 = vdwg.mxu0
    %v823 = vadd.f32 %v324, %v761
    %v824 = vadd.f32 %v365, %v781
    %v825 = vadd.f32 %v406, %v801
    %v826 = vadd.f32 %v447, %v821
    %v827 = vxor.u32 %v823, 2147483648
    %v828 = vmul.f32 %v827, 1.442695
    %v829 = vpow.pop %v828
    %v830 = vadd.f32 %v829, 1.0
    %v831 = vrcp.pop %v830
    %v832 = vmul.f32 %v830, %v831
    %v833 = vsub.f32 1.0, %v832
    %v834 = vmul.f32 %v831, %v833
    %v835 = vadd.f32 %v831, %v834
    %vm836 = vweird.f32 %v830
    %vm837 = vweird.f32 %v831
    %vm838 = vmor %vm836, %vm837
    %v839 = vsel %vm838, %v831, %v835
    %v840 = vand.u32 2147483647, %v830
    %vm841 = vcmp.eq.f32.partialorder %v840, 8.507059e+37
    %v842 = vand.u32 %v830, 2147483648
    %v843 = vor.u32 1.1754944e-38, %v842
    %v844 = vsel %vm841, %v843, %v839
    %v845 = vmul.f32 1.0, %v844
    %v846 = vxor.u32 %v824, 2147483648
    %v847 = vmul.f32 %v846, 1.442695
    %v848 = vpow.pop %v847
    %v849 = vadd.f32 %v848, 1.0
    %v850 = vrcp.pop %v849
    %v851 = vmul.f32 %v849, %v850
    %v852 = vsub.f32 1.0, %v851
    %v853 = vmul.f32 %v850, %v852
    %v854 = vadd.f32 %v850, %v853
    %vm855 = vweird.f32 %v849
    %vm856 = vweird.f32 %v850
    %vm857 = vmor %vm855, %vm856
    %v858 = vsel %vm857, %v850, %v854
    %v859 = vand.u32 2147483647, %v849
    %vm860 = vcmp.eq.f32.partialorder %v859, 8.507059e+37
    %v861 = vand.u32 %v849, 2147483648
    %v862 = vor.u32 1.1754944e-38, %v861
    %v863 = vsel %vm860, %v862, %v858
    %v864 = vmul.f32 1.0, %v863
    %v865 = vtanh.pop %v825
    %v866 = vxor.u32 %v826, 2147483648
    %v867 = vmul.f32 %v866, 1.442695
    %v868 = vpow.pop %v867
    %v869 = vadd.f32 %v868, 1.0
    %v870 = vrcp.pop %v869
    %v871 = vmul.f32 %v869, %v870
    %v872 = vsub.f32 1.0, %v871
    %v873 = vmul.f32 %v870, %v872
    %v874 = vadd.f32 %v870, %v873
    %vm875 = vweird.f32 %v869
    %vm876 = vweird.f32 %v870
    %vm877 = vmor %vm875, %vm876
    %v878 = vsel %vm877, %v870, %v874
    %v879 = vand.u32 2147483647, %v869
    %vm880 = vcmp.eq.f32.partialorder %v879, 8.507059e+37
    %v881 = vand.u32 %v869, 2147483648
    %v882 = vor.u32 1.1754944e-38, %v881
    %v883 = vsel %vm880, %v882, %v878
    %v884 = vmul.f32 1.0, %v883
    %v885 = vmul.f32 %v864, %v675
    %v886 = vmul.f32 %v845, %v865
    %v887 = vadd.f32 %v885, %v886
    %v888 = vtanh.pop %v887
    %v889 = vmul.f32 %v884, %v888
    %890 = vst [vmem:[#allocation2 + $0x8] sm:$0xff] %v889
    %v891 = vld [vmem:[#allocation9] sm:$0xff]
    %v892 = vld [vmem:[#allocation9 + $0x8] sm:$0xff]
    %v893 = vld [vmem:[#allocation9 + $0x10] sm:$0xff]
    %v894 = vld [vmem:[#allocation9 + $0x18] sm:$0xff]
    %v895 = vld [vmem:[#allocation9 + $0x20] sm:$0xff]
    %v896 = vld [vmem:[#allocation9 + $0x28] sm:$0xff]
    %v897 = vld [vmem:[#allocation9 + $0x30] sm:$0xff]
    %v898 = vld [vmem:[#allocation9 + $0x38] sm:$0xff]
    %v899 = vld [vmem:[#allocation9 + $0x40] sm:$0xff]
    %v900 = vld [vmem:[#allocation9 + $0x48] sm:$0xff]
    %v901 = vld [vmem:[#allocation9 + $0x50] sm:$0xff]
    %v902 = vld [vmem:[#allocation9 + $0x58] sm:$0xff]
    %v903 = vld [vmem:[#allocation9 + $0x60] sm:$0xff]
    %v904 = vld [vmem:[#allocation9 + $0x68] sm:$0xff]
    %v905 = vld [vmem:[#allocation9 + $0x70] sm:$0xff]
    %v906 = vld [vmem:[#allocation9 + $0x78] sm:$0xff]
    %v907 = vld [vmem:[#allocation9 + $0x80] sm:$0xff]
    %v908 = vld [vmem:[#allocation9 + $0x88] sm:$0xff]
    %v909 = vld [vmem:[#allocation9 + $0x90] sm:$0xff]
    %v910 = vld [vmem:[#allocation9 + $0x98] sm:$0xff]
    %v911 = vld [vmem:[#allocation9 + $0xa0] sm:$0xff]
    %v912 = vld [vmem:[#allocation9 + $0xa8] sm:$0xff]
    %v913 = vld [vmem:[#allocation9 + $0xb0] sm:$0xff]
    %v914 = vld [vmem:[#allocation9 + $0xb8] sm:$0xff]
    %v915 = vld [vmem:[#allocation9 + $0xc0] sm:$0xff]
    %v916 = vld [vmem:[#allocation9 + $0xc8] sm:$0xff]
    %v917 = vld [vmem:[#allocation9 + $0xd0] sm:$0xff]
    %v918 = vld [vmem:[#allocation9 + $0xd8] sm:$0xff]
    %v919 = vld [vmem:[#allocation9 + $0xe0] sm:$0xff]
    %v920 = vld [vmem:[#allocation9 + $0xe8] sm:$0xff]
    %v921 = vld [vmem:[#allocation9 + $0xf0] sm:$0xff]
    %v922 = vld [vmem:[#allocation9 + $0xf8] sm:$0xff]
    %v923 = vld [vmem:[#allocation9 + $0x100] sm:$0xff]
    %v924 = vld [vmem:[#allocation9 + $0x108] sm:$0xff]
    %v925 = vld [vmem:[#allocation9 + $0x110] sm:$0xff]
    %v926 = vld [vmem:[#allocation9 + $0x118] sm:$0xff]
    %v927 = vld [vmem:[#allocation9 + $0x120] sm:$0xff]
    %v928 = vld [vmem:[#allocation9 + $0x128] sm:$0xff]
    %v929 = vld [vmem:[#allocation9 + $0x130] sm:$0xff]
    %v930 = vld [vmem:[#allocation9 + $0x138] sm:$0xff]
    %v931 = vld [vmem:[#allocation9 + $0x140] sm:$0xff]
    %v932 = vld [vmem:[#allocation9 + $0x148] sm:$0xff]
    %v933 = vld [vmem:[#allocation9 + $0x150] sm:$0xff]
    %v934 = vld [vmem:[#allocation9 + $0x158] sm:$0xff]
    %v935 = vld [vmem:[#allocation9 + $0x160] sm:$0xff]
    %v936 = vld [vmem:[#allocation9 + $0x168] sm:$0xff]
    %v937 = vld [vmem:[#allocation9 + $0x170] sm:$0xff]
    %v938 = vld [vmem:[#allocation9 + $0x178] sm:$0xff]
    %v939 = vld [vmem:[#allocation9 + $0x180] sm:$0xff]
    %v940 = vld [vmem:[#allocation9 + $0x188] sm:$0xff]
    %v941 = vld [vmem:[#allocation9 + $0x190] sm:$0xff]
    %v942 = vld [vmem:[#allocation9 + $0x198] sm:$0xff]
    %v943 = vld [vmem:[#allocation9 + $0x1a0] sm:$0xff]
    %v944 = vld [vmem:[#allocation9 + $0x1a8] sm:$0xff]
    %v945 = vld [vmem:[#allocation9 + $0x1b0] sm:$0xff]
    %v946 = vld [vmem:[#allocation9 + $0x1b8] sm:$0xff]
    %v947 = vld [vmem:[#allocation9 + $0x1c0] sm:$0xff]
    %v948 = vld [vmem:[#allocation9 + $0x1c8] sm:$0xff]
    %v949 = vld [vmem:[#allocation9 + $0x1d0] sm:$0xff]
    %v950 = vld [vmem:[#allocation9 + $0x1d8] sm:$0xff]
    %v951 = vld [vmem:[#allocation9 + $0x1e0] sm:$0xff]
    %v952 = vld [vmem:[#allocation9 + $0x1e8] sm:$0xff]
    %v953 = vld [vmem:[#allocation9 + $0x1f0] sm:$0xff]
    %v954 = vld [vmem:[#allocation9 + $0x1f8] sm:$0xff]
    %955 = vmatpush.msra.mxu0 %v951
    %956 = vmatpush.msra.mxu0 %v947
    %957 = vmatpush.msra.mxu0 %v943
    %958 = vmatpush.msra.mxu0 %v939
    %959 = vmatpush.msra.mxu0 %v935
    %960 = vmatpush.msra.mxu0 %v931
    %961 = vmatpush.msra.mxu0 %v927
    %962 = vmatpush.msra.mxu0 %v923
    %963 = vmatpush.msra.mxu0 %v919
    %964 = vmatpush.msra.mxu0 %v915
    %965 = vmatpush.msra.mxu0 %v911
    %966 = vmatpush.msra.mxu0 %v907
    %967 = vmatpush.msra.mxu0 %v903
    %968 = vmatpush.msra.mxu0 %v899
    %969 = vmatpush.msra.mxu0 %v895
    %970 = vmatpush.msra.mxu0 %v891
    %971 = vmatmul.f32.gmra.mxu0 %v889
    %v972 = vpop.f32.mrf.mxu0
    %v973 = vadd.f32 0.0, %v972
    %974 = vdwg.mxu0
    %975 = vmatpush.msra.mxu0 %v952
    %976 = vmatpush.msra.mxu0 %v948
    %977 = vmatpush.msra.mxu0 %v944
    %978 = vmatpush.msra.mxu0 %v940
    %979 = vmatpush.msra.mxu0 %v936
    %980 = vmatpush.msra.mxu0 %v932
    %981 = vmatpush.msra.mxu0 %v928
    %982 = vmatpush.msra.mxu0 %v924
    %983 = vmatpush.msra.mxu0 %v920
    %984 = vmatpush.msra.mxu0 %v916
    %985 = vmatpush.msra.mxu0 %v912
    %986 = vmatpush.msra.mxu0 %v908
    %987 = vmatpush.msra.mxu0 %v904
    %988 = vmatpush.msra.mxu0 %v900
    %989 = vmatpush.msra.mxu0 %v896
    %990 = vmatpush.msra.mxu0 %v892
    %991 = vmatmul.f32.gmra.mxu0 %v889
    %v992 = vpop.f32.mrf.mxu0
    %v993 = vadd.f32 0.0, %v992
    %994 = vdwg.mxu0
    %995 = vmatpush.msra.mxu0 %v953
    %996 = vmatpush.msra.mxu0 %v949
    %997 = vmatpush.msra.mxu0 %v945
    %998 = vmatpush.msra.mxu0 %v941
    %999 = vmatpush.msra.mxu0 %v937
    %1000 = vmatpush.msra.mxu0 %v933
    %1001 = vmatpush.msra.mxu0 %v929
    %1002 = vmatpush.msra.mxu0 %v925
    %1003 = vmatpush.msra.mxu0 %v921
    %1004 = vmatpush.msra.mxu0 %v917
    %1005 = vmatpush.msra.mxu0 %v913
    %1006 = vmatpush.msra.mxu0 %v909
    %1007 = vmatpush.msra.mxu0 %v905
    %1008 = vmatpush.msra.mxu0 %v901
    %1009 = vmatpush.msra.mxu0 %v897
    %1010 = vmatpush.msra.mxu0 %v893
    %1011 = vmatmul.f32.gmra.mxu0 %v889
    %v1012 = vpop.f32.mrf.mxu0
    %v1013 = vadd.f32 0.0, %v1012
    %1014 = vdwg.mxu0
    %1015 = vmatpush.msra.mxu0 %v954
    %1016 = vmatpush.msra.mxu0 %v950
    %1017 = vmatpush.msra.mxu0 %v946
    %1018 = vmatpush.msra.mxu0 %v942
    %1019 = vmatpush.msra.mxu0 %v938
    %1020 = vmatpush.msra.mxu0 %v934
    %1021 = vmatpush.msra.mxu0 %v930
    %1022 = vmatpush.msra.mxu0 %v926
    %1023 = vmatpush.msra.mxu0 %v922
    %1024 = vmatpush.msra.mxu0 %v918
    %1025 = vmatpush.msra.mxu0 %v914
    %1026 = vmatpush.msra.mxu0 %v910
    %1027 = vmatpush.msra.mxu0 %v906
    %1028 = vmatpush.msra.mxu0 %v902
    %1029 = vmatpush.msra.mxu0 %v898
    %1030 = vmatpush.msra.mxu0 %v894
    %1031 = vmatmul.f32.gmra.mxu0 %v889
    %v1032 = vpop.f32.mrf.mxu0
    %v1033 = vadd.f32 0.0, %v1032
    %1034 = vdwg.mxu0
    %v1035 = vadd.f32 %v327, %v973
    %v1036 = vadd.f32 %v368, %v993
    %v1037 = vadd.f32 %v409, %v1013
    %v1038 = vadd.f32 %v450, %v1033
    %v1039 = vxor.u32 %v1035, 2147483648
    %v1040 = vmul.f32 %v1039, 1.442695
    %v1041 = vpow.pop %v1040
    %v1042 = vadd.f32 %v1041, 1.0
    %v1043 = vrcp.pop %v1042
    %v1044 = vmul.f32 %v1042, %v1043
    %v1045 = vsub.f32 1.0, %v1044
    %v1046 = vmul.f32 %v1043, %v1045
    %v1047 = vadd.f32 %v1043, %v1046
    %vm1048 = vweird.f32 %v1042
    %vm1049 = vweird.f32 %v1043
    %vm1050 = vmor %vm1048, %vm1049
    %v1051 = vsel %vm1050, %v1043, %v1047
    %v1052 = vand.u32 2147483647, %v1042
    %vm1053 = vcmp.eq.f32.partialorder %v1052, 8.507059e+37
    %v1054 = vand.u32 %v1042, 2147483648
    %v1055 = vor.u32 1.1754944e-38, %v1054
    %v1056 = vsel %vm1053, %v1055, %v1051
    %v1057 = vmul.f32 1.0, %v1056
    %v1058 = vxor.u32 %v1036, 2147483648
    %v1059 = vmul.f32 %v1058, 1.442695
    %v1060 = vpow.pop %v1059
    %v1061 = vadd.f32 %v1060, 1.0
    %v1062 = vrcp.pop %v1061
    %v1063 = vmul.f32 %v1061, %v1062
    %v1064 = vsub.f32 1.0, %v1063
    %v1065 = vmul.f32 %v1062, %v1064
    %v1066 = vadd.f32 %v1062, %v1065
    %vm1067 = vweird.f32 %v1061
    %vm1068 = vweird.f32 %v1062
    %vm1069 = vmor %vm1067, %vm1068
    %v1070 = vsel %vm1069, %v1062, %v1066
    %v1071 = vand.u32 2147483647, %v1061
    %vm1072 = vcmp.eq.f32.partialorder %v1071, 8.507059e+37
    %v1073 = vand.u32 %v1061, 2147483648
    %v1074 = vor.u32 1.1754944e-38, %v1073
    %v1075 = vsel %vm1072, %v1074, %v1070
    %v1076 = vmul.f32 1.0, %v1075
    %v1077 = vtanh.pop %v1037
    %v1078 = vxor.u32 %v1038, 2147483648
    %v1079 = vmul.f32 %v1078, 1.442695
    %v1080 = vpow.pop %v1079
    %v1081 = vadd.f32 %v1080, 1.0
    %v1082 = vrcp.pop %v1081
    %v1083 = vmul.f32 %v1081, %v1082
    %v1084 = vsub.f32 1.0, %v1083
    %v1085 = vmul.f32 %v1082, %v1084
    %v1086 = vadd.f32 %v1082, %v1085
    %vm1087 = vweird.f32 %v1081
    %vm1088 = vweird.f32 %v1082
    %vm1089 = vmor %vm1087, %vm1088
    %v1090 = vsel %vm1089, %v1082, %v1086
    %v1091 = vand.u32 2147483647, %v1081
    %vm1092 = vcmp.eq.f32.partialorder %v1091, 8.507059e+37
    %v1093 = vand.u32 %v1081, 2147483648
    %v1094 = vor.u32 1.1754944e-38, %v1093
    %v1095 = vsel %vm1092, %v1094, %v1090
    %v1096 = vmul.f32 1.0, %v1095
    %v1097 = vmul.f32 %v1076, %v887
    %v1098 = vmul.f32 %v1057, %v1077
    %v1099 = vadd.f32 %v1097, %v1098
    %v1100 = vtanh.pop %v1099
    %v1101 = vmul.f32 %v1096, %v1100
    %1102 = vst [vmem:[#allocation2 + $0x10] sm:$0xff] %v1101
    %v1103 = vld [vmem:[#allocation9] sm:$0xff]
    %v1104 = vld [vmem:[#allocation9 + $0x8] sm:$0xff]
    %v1105 = vld [vmem:[#allocation9 + $0x10] sm:$0xff]
    %v1106 = vld [vmem:[#allocation9 + $0x18] sm:$0xff]
    %v1107 = vld [vmem:[#allocation9 + $0x20] sm:$0xff]
    %v1108 = vld [vmem:[#allocation9 + $0x28] sm:$0xff]
    %v1109 = vld [vmem:[#allocation9 + $0x30] sm:$0xff]
    %v1110 = vld [vmem:[#allocation9 + $0x38] sm:$0xff]
    %v1111 = vld [vmem:[#allocation9 + $0x40] sm:$0xff]
    %v1112 = vld [vmem:[#allocation9 + $0x48] sm:$0xff]
    %v1113 = vld [vmem:[#allocation9 + $0x50] sm:$0xff]
    %v1114 = vld [vmem:[#allocation9 + $0x58] sm:$0xff]
    %v1115 = vld [vmem:[#allocation9 + $0x60] sm:$0xff]
    %v1116 = vld [vmem:[#allocation9 + $0x68] sm:$0xff]
    %v1117 = vld [vmem:[#allocation9 + $0x70] sm:$0xff]
    %v1118 = vld [vmem:[#allocation9 + $0x78] sm:$0xff]
    %v1119 = vld [vmem:[#allocation9 + $0x80] sm:$0xff]
    %v1120 = vld [vmem:[#allocation9 + $0x88] sm:$0xff]
    %v1121 = vld [vmem:[#allocation9 + $0x90] sm:$0xff]
    %v1122 = vld [vmem:[#allocation9 + $0x98] sm:$0xff]
    %v1123 = vld [vmem:[#allocation9 + $0xa0] sm:$0xff]
    %v1124 = vld [vmem:[#allocation9 + $0xa8] sm:$0xff]
    %v1125 = vld [vmem:[#allocation9 + $0xb0] sm:$0xff]
    %v1126 = vld [vmem:[#allocation9 + $0xb8] sm:$0xff]
    %v1127 = vld [vmem:[#allocation9 + $0xc0] sm:$0xff]
    %v1128 = vld [vmem:[#allocation9 + $0xc8] sm:$0xff]
    %v1129 = vld [vmem:[#allocation9 + $0xd0] sm:$0xff]
    %v1130 = vld [vmem:[#allocation9 + $0xd8] sm:$0xff]
    %v1131 = vld [vmem:[#allocation9 + $0xe0] sm:$0xff]
    %v1132 = vld [vmem:[#allocation9 + $0xe8] sm:$0xff]
    %v1133 = vld [vmem:[#allocation9 + $0xf0] sm:$0xff]
    %v1134 = vld [vmem:[#allocation9 + $0xf8] sm:$0xff]
    %v1135 = vld [vmem:[#allocation9 + $0x100] sm:$0xff]
    %v1136 = vld [vmem:[#allocation9 + $0x108] sm:$0xff]
    %v1137 = vld [vmem:[#allocation9 + $0x110] sm:$0xff]
    %v1138 = vld [vmem:[#allocation9 + $0x118] sm:$0xff]
    %v1139 = vld [vmem:[#allocation9 + $0x120] sm:$0xff]
    %v1140 = vld [vmem:[#allocation9 + $0x128] sm:$0xff]
    %v1141 = vld [vmem:[#allocation9 + $0x130] sm:$0xff]
    %v1142 = vld [vmem:[#allocation9 + $0x138] sm:$0xff]
    %v1143 = vld [vmem:[#allocation9 + $0x140] sm:$0xff]
    %v1144 = vld [vmem:[#allocation9 + $0x148] sm:$0xff]
    %v1145 = vld [vmem:[#allocation9 + $0x150] sm:$0xff]
    %v1146 = vld [vmem:[#allocation9 + $0x158] sm:$0xff]
    %v1147 = vld [vmem:[#allocation9 + $0x160] sm:$0xff]
    %v1148 = vld [vmem:[#allocation9 + $0x168] sm:$0xff]
    %v1149 = vld [vmem:[#allocation9 + $0x170] sm:$0xff]
    %v1150 = vld [vmem:[#allocation9 + $0x178] sm:$0xff]
    %v1151 = vld [vmem:[#allocation9 + $0x180] sm:$0xff]
    %v1152 = vld [vmem:[#allocation9 + $0x188] sm:$0xff]
    %v1153 = vld [vmem:[#allocation9 + $0x190] sm:$0xff]
    %v1154 = vld [vmem:[#allocation9 + $0x198] sm:$0xff]
    %v1155 = vld [vmem:[#allocation9 + $0x1a0] sm:$0xff]
    %v1156 = vld [vmem:[#allocation9 + $0x1a8] sm:$0xff]
    %v1157 = vld [vmem:[#allocation9 + $0x1b0] sm:$0xff]
    %v1158 = vld [vmem:[#allocation9 + $0x1b8] sm:$0xff]
    %v1159 = vld [vmem:[#allocation9 + $0x1c0] sm:$0xff]
    %v1160 = vld [vmem:[#allocation9 + $0x1c8] sm:$0xff]
    %v1161 = vld [vmem:[#allocation9 + $0x1d0] sm:$0xff]
    %v1162 = vld [vmem:[#allocation9 + $0x1d8] sm:$0xff]
    %v1163 = vld [vmem:[#allocation9 + $0x1e0] sm:$0xff]
    %v1164 = vld [vmem:[#allocation9 + $0x1e8] sm:$0xff]
    %v1165 = vld [vmem:[#allocation9 + $0x1f0] sm:$0xff]
    %v1166 = vld [vmem:[#allocation9 + $0x1f8] sm:$0xff]
    %1167 = vmatpush.msra.mxu0 %v1163
    %1168 = vmatpush.msra.mxu0 %v1159
    %1169 = vmatpush.msra.mxu0 %v1155
    %1170 = vmatpush.msra.mxu0 %v1151
    %1171 = vmatpush.msra.mxu0 %v1147
    %1172 = vmatpush.msra.mxu0 %v1143
    %1173 = vmatpush.msra.mxu0 %v1139
    %1174 = vmatpush.msra.mxu0 %v1135
    %1175 = vmatpush.msra.mxu0 %v1131
    %1176 = vmatpush.msra.mxu0 %v1127
    %1177 = vmatpush.msra.mxu0 %v1123
    %1178 = vmatpush.msra.mxu0 %v1119
    %1179 = vmatpush.msra.mxu0 %v1115
    %1180 = vmatpush.msra.mxu0 %v1111
    %1181 = vmatpush.msra.mxu0 %v1107
    %1182 = vmatpush.msra.mxu0 %v1103
    %1183 = vmatmul.f32.gmra.mxu0 %v1101
    %v1184 = vpop.f32.mrf.mxu0
    %v1185 = vadd.f32 0.0, %v1184
    %1186 = vdwg.mxu0
    %1187 = vmatpush.msra.mxu0 %v1164
    %1188 = vmatpush.msra.mxu0 %v1160
    %1189 = vmatpush.msra.mxu0 %v1156
    %1190 = vmatpush.msra.mxu0 %v1152
    %1191 = vmatpush.msra.mxu0 %v1148
    %1192 = vmatpush.msra.mxu0 %v1144
    %1193 = vmatpush.msra.mxu0 %v1140
    %1194 = vmatpush.msra.mxu0 %v1136
    %1195 = vmatpush.msra.mxu0 %v1132
    %1196 = vmatpush.msra.mxu0 %v1128
    %1197 = vmatpush.msra.mxu0 %v1124
    %1198 = vmatpush.msra.mxu0 %v1120
    %1199 = vmatpush.msra.mxu0 %v1116
    %1200 = vmatpush.msra.mxu0 %v1112
    %1201 = vmatpush.msra.mxu0 %v1108
    %1202 = vmatpush.msra.mxu0 %v1104
    %1203 = vmatmul.f32.gmra.mxu0 %v1101
    %v1204 = vpop.f32.mrf.mxu0
    %v1205 = vadd.f32 0.0, %v1204
    %1206 = vdwg.mxu0
    %1207 = vmatpush.msra.mxu0 %v1165
    %1208 = vmatpush.msra.mxu0 %v1161
    %1209 = vmatpush.msra.mxu0 %v1157
    %1210 = vmatpush.msra.mxu0 %v1153
    %1211 = vmatpush.msra.mxu0 %v1149
    %1212 = vmatpush.msra.mxu0 %v1145
    %1213 = vmatpush.msra.mxu0 %v1141
    %1214 = vmatpush.msra.mxu0 %v1137
    %1215 = vmatpush.msra.mxu0 %v1133
    %1216 = vmatpush.msra.mxu0 %v1129
    %1217 = vmatpush.msra.mxu0 %v1125
    %1218 = vmatpush.msra.mxu0 %v1121
    %1219 = vmatpush.msra.mxu0 %v1117
    %1220 = vmatpush.msra.mxu0 %v1113
    %1221 = vmatpush.msra.mxu0 %v1109
    %1222 = vmatpush.msra.mxu0 %v1105
    %1223 = vmatmul.f32.gmra.mxu0 %v1101
    %v1224 = vpop.f32.mrf.mxu0
    %v1225 = vadd.f32 0.0, %v1224
    %1226 = vdwg.mxu0
    %1227 = vmatpush.msra.mxu0 %v1166
    %1228 = vmatpush.msra.mxu0 %v1162
    %1229 = vmatpush.msra.mxu0 %v1158
    %1230 = vmatpush.msra.mxu0 %v1154
    %1231 = vmatpush.msra.mxu0 %v1150
    %1232 = vmatpush.msra.mxu0 %v1146
    %1233 = vmatpush.msra.mxu0 %v1142
    %1234 = vmatpush.msra.mxu0 %v1138
    %1235 = vmatpush.msra.mxu0 %v1134
    %1236 = vmatpush.msra.mxu0 %v1130
    %1237 = vmatpush.msra.mxu0 %v1126
    %1238 = vmatpush.msra.mxu0 %v1122
    %1239 = vmatpush.msra.mxu0 %v1118
    %1240 = vmatpush.msra.mxu0 %v1114
    %1241 = vmatpush.msra.mxu0 %v1110
    %1242 = vmatpush.msra.mxu0 %v1106
    %1243 = vmatmul.f32.gmra.mxu0 %v1101
    %v1244 = vpop.f32.mrf.mxu0
    %v1245 = vadd.f32 0.0, %v1244
    %1246 = vdwg.mxu0
    %v1247 = vadd.f32 %v330, %v1185
    %v1248 = vadd.f32 %v371, %v1205
    %v1249 = vadd.f32 %v412, %v1225
    %v1250 = vadd.f32 %v453, %v1245
    %v1251 = vxor.u32 %v1247, 2147483648
    %v1252 = vmul.f32 %v1251, 1.442695
    %v1253 = vpow.pop %v1252
    %v1254 = vadd.f32 %v1253, 1.0
    %v1255 = vrcp.pop %v1254
    %v1256 = vmul.f32 %v1254, %v1255
    %v1257 = vsub.f32 1.0, %v1256
    %v1258 = vmul.f32 %v1255, %v1257
    %v1259 = vadd.f32 %v1255, %v1258
    %vm1260 = vweird.f32 %v1254
    %vm1261 = vweird.f32 %v1255
    %vm1262 = vmor %vm1260, %vm1261
    %v1263 = vsel %vm1262, %v1255, %v1259
    %v1264 = vand.u32 2147483647, %v1254
    %vm1265 = vcmp.eq.f32.partialorder %v1264, 8.507059e+37
    %v1266 = vand.u32 %v1254, 2147483648
    %v1267 = vor.u32 1.1754944e-38, %v1266
    %v1268 = vsel %vm1265, %v1267, %v1263
    %v1269 = vmul.f32 1.0, %v1268
    %v1270 = vxor.u32 %v1248, 2147483648
    %v1271 = vmul.f32 %v1270, 1.442695
    %v1272 = vpow.pop %v1271
    %v1273 = vadd.f32 %v1272, 1.0
    %v1274 = vrcp.pop %v1273
    %v1275 = vmul.f32 %v1273, %v1274
    %v1276 = vsub.f32 1.0, %v1275
    %v1277 = vmul.f32 %v1274, %v1276
    %v1278 = vadd.f32 %v1274, %v1277
    %vm1279 = vweird.f32 %v1273
    %vm1280 = vweird.f32 %v1274
    %vm1281 = vmor %vm1279, %vm1280
    %v1282 = vsel %vm1281, %v1274, %v1278
    %v1283 = vand.u32 2147483647, %v1273
    %vm1284 = vcmp.eq.f32.partialorder %v1283, 8.507059e+37
    %v1285 = vand.u32 %v1273, 2147483648
    %v1286 = vor.u32 1.1754944e-38, %v1285
    %v1287 = vsel %vm1284, %v1286, %v1282
    %v1288 = vmul.f32 1.0, %v1287
    %v1289 = vtanh.pop %v1249
    %v1290 = vxor.u32 %v1250, 2147483648
    %v1291 = vmul.f32 %v1290, 1.442695
    %v1292 = vpow.pop %v1291
    %v1293 = vadd.f32 %v1292, 1.0
    %v1294 = vrcp.pop %v1293
    %v1295 = vmul.f32 %v1293, %v1294
    %v1296 = vsub.f32 1.0, %v1295
    %v1297 = vmul.f32 %v1294, %v1296
    %v1298 = vadd.f32 %v1294, %v1297
    %vm1299 = vweird.f32 %v1293
    %vm1300 = vweird.f32 %v1294
    %vm1301 = vmor %vm1299, %vm1300
    %v1302 = vsel %vm1301, %v1294, %v1298
    %v1303 = vand.u32 2147483647, %v1293
    %vm1304 = vcmp.eq.f32.partialorder %v1303, 8.507059e+37
    %v1305 = vand.u32 %v1293, 2147483648
    %v1306 = vor.u32 1.1754944e-38, %v1305
    %v1307 = vsel %vm1304, %v1306, %v1302
    %v1308 = vmul.f32 1.0, %v1307
    %v1309 = vmul.f32 %v1288, %v1099
    %v1310 = vmul.f32 %v1269, %v1289
    %v1311 = vadd.f32 %v1309, %v1310
    %v1312 = vtanh.pop %v1311
    %v1313 = vmul.f32 %v1308, %v1312
    %1314 = vst [vmem:[#allocation2 + $0x18] sm:$0xff] %v1313
    %v1315 = vld [vmem:[#allocation9] sm:$0xff]
    %v1316 = vld [vmem:[#allocation9 + $0x8] sm:$0xff]
    %v1317 = vld [vmem:[#allocation9 + $0x10] sm:$0xff]
    %v1318 = vld [vmem:[#allocation9 + $0x18] sm:$0xff]
    %v1319 = vld [vmem:[#allocation9 + $0x20] sm:$0xff]
    %v1320 = vld [vmem:[#allocation9 + $0x28] sm:$0xff]
    %v1321 = vld [vmem:[#allocation9 + $0x30] sm:$0xff]
    %v1322 = vld [vmem:[#allocation9 + $0x38] sm:$0xff]
    %v1323 = vld [vmem:[#allocation9 + $0x40] sm:$0xff]
    %v1324 = vld [vmem:[#allocation9 + $0x48] sm:$0xff]
    %v1325 = vld [vmem:[#allocation9 + $0x50] sm:$0xff]
    %v1326 = vld [vmem:[#allocation9 + $0x58] sm:$0xff]
    %v1327 = vld [vmem:[#allocation9 + $0x60] sm:$0xff]
    %v1328 = vld [vmem:[#allocation9 + $0x68] sm:$0xff]
    %v1329 = vld [vmem:[#allocation9 + $0x70] sm:$0xff]
    %v1330 = vld [vmem:[#allocation9 + $0x78] sm:$0xff]
    %v1331 = vld [vmem:[#allocation9 + $0x80] sm:$0xff]
    %v1332 = vld [vmem:[#allocation9 + $0x88] sm:$0xff]
    %v1333 = vld [vmem:[#allocation9 + $0x90] sm:$0xff]
    %v1334 = vld [vmem:[#allocation9 + $0x98] sm:$0xff]
    %v1335 = vld [vmem:[#allocation9 + $0xa0] sm:$0xff]
    %v1336 = vld [vmem:[#allocation9 + $0xa8] sm:$0xff]
    %v1337 = vld [vmem:[#allocation9 + $0xb0] sm:$0xff]
    %v1338 = vld [vmem:[#allocation9 + $0xb8] sm:$0xff]
    %v1339 = vld [vmem:[#allocation9 + $0xc0] sm:$0xff]
    %v1340 = vld [vmem:[#allocation9 + $0xc8] sm:$0xff]
    %v1341 = vld [vmem:[#allocation9 + $0xd0] sm:$0xff]
    %v1342 = vld [vmem:[#allocation9 + $0xd8] sm:$0xff]
    %v1343 = vld [vmem:[#allocation9 + $0xe0] sm:$0xff]
    %v1344 = vld [vmem:[#allocation9 + $0xe8] sm:$0xff]
    %v1345 = vld [vmem:[#allocation9 + $0xf0] sm:$0xff]
    %v1346 = vld [vmem:[#allocation9 + $0xf8] sm:$0xff]
    %v1347 = vld [vmem:[#allocation9 + $0x100] sm:$0xff]
    %v1348 = vld [vmem:[#allocation9 + $0x108] sm:$0xff]
    %v1349 = vld [vmem:[#allocation9 + $0x110] sm:$0xff]
    %v1350 = vld [vmem:[#allocation9 + $0x118] sm:$0xff]
    %v1351 = vld [vmem:[#allocation9 + $0x120] sm:$0xff]
    %v1352 = vld [vmem:[#allocation9 + $0x128] sm:$0xff]
    %v1353 = vld [vmem:[#allocation9 + $0x130] sm:$0xff]
    %v1354 = vld [vmem:[#allocation9 + $0x138] sm:$0xff]
    %v1355 = vld [vmem:[#allocation9 + $0x140] sm:$0xff]
    %v1356 = vld [vmem:[#allocation9 + $0x148] sm:$0xff]
    %v1357 = vld [vmem:[#allocation9 + $0x150] sm:$0xff]
    %v1358 = vld [vmem:[#allocation9 + $0x158] sm:$0xff]
    %v1359 = vld [vmem:[#allocation9 + $0x160] sm:$0xff]
    %v1360 = vld [vmem:[#allocation9 + $0x168] sm:$0xff]
    %v1361 = vld [vmem:[#allocation9 + $0x170] sm:$0xff]
    %v1362 = vld [vmem:[#allocation9 + $0x178] sm:$0xff]
    %v1363 = vld [vmem:[#allocation9 + $0x180] sm:$0xff]
    %v1364 = vld [vmem:[#allocation9 + $0x188] sm:$0xff]
    %v1365 = vld [vmem:[#allocation9 + $0x190] sm:$0xff]
    %v1366 = vld [vmem:[#allocation9 + $0x198] sm:$0xff]
    %v1367 = vld [vmem:[#allocation9 + $0x1a0] sm:$0xff]
    %v1368 = vld [vmem:[#allocation9 + $0x1a8] sm:$0xff]
    %v1369 = vld [vmem:[#allocation9 + $0x1b0] sm:$0xff]
    %v1370 = vld [vmem:[#allocation9 + $0x1b8] sm:$0xff]
    %v1371 = vld [vmem:[#allocation9 + $0x1c0] sm:$0xff]
    %v1372 = vld [vmem:[#allocation9 + $0x1c8] sm:$0xff]
    %v1373 = vld [vmem:[#allocation9 + $0x1d0] sm:$0xff]
    %v1374 = vld [vmem:[#allocation9 + $0x1d8] sm:$0xff]
    %v1375 = vld [vmem:[#allocation9 + $0x1e0] sm:$0xff]
    %v1376 = vld [vmem:[#allocation9 + $0x1e8] sm:$0xff]
    %v1377 = vld [vmem:[#allocation9 + $0x1f0] sm:$0xff]
    %v1378 = vld [vmem:[#allocation9 + $0x1f8] sm:$0xff]
    %1379 = vmatpush.msra.mxu0 %v1375
    %1380 = vmatpush.msra.mxu0 %v1371
    %1381 = vmatpush.msra.mxu0 %v1367
    %1382 = vmatpush.msra.mxu0 %v1363
    %1383 = vmatpush.msra.mxu0 %v1359
    %1384 = vmatpush.msra.mxu0 %v1355
    %1385 = vmatpush.msra.mxu0 %v1351
    %1386 = vmatpush.msra.mxu0 %v1347
    %1387 = vmatpush.msra.mxu0 %v1343
    %1388 = vmatpush.msra.mxu0 %v1339
    %1389 = vmatpush.msra.mxu0 %v1335
    %1390 = vmatpush.msra.mxu0 %v1331
    %1391 = vmatpush.msra.mxu0 %v1327
    %1392 = vmatpush.msra.mxu0 %v1323
    %1393 = vmatpush.msra.mxu0 %v1319
    %1394 = vmatpush.msra.mxu0 %v1315
    %1395 = vmatmul.f32.gmra.mxu0 %v1313
    %v1396 = vpop.f32.mrf.mxu0
    %v1397 = vadd.f32 0.0, %v1396
    %1398 = vdwg.mxu0
    %1399 = vmatpush.msra.mxu0 %v1376
    %1400 = vmatpush.msra.mxu0 %v1372
    %1401 = vmatpush.msra.mxu0 %v1368
    %1402 = vmatpush.msra.mxu0 %v1364
    %1403 = vmatpush.msra.mxu0 %v1360
    %1404 = vmatpush.msra.mxu0 %v1356
    %1405 = vmatpush.msra.mxu0 %v1352
    %1406 = vmatpush.msra.mxu0 %v1348
    %1407 = vmatpush.msra.mxu0 %v1344
    %1408 = vmatpush.msra.mxu0 %v1340
    %1409 = vmatpush.msra.mxu0 %v1336
    %1410 = vmatpush.msra.mxu0 %v1332
    %1411 = vmatpush.msra.mxu0 %v1328
    %1412 = vmatpush.msra.mxu0 %v1324
    %1413 = vmatpush.msra.mxu0 %v1320
    %1414 = vmatpush.msra.mxu0 %v1316
    %1415 = vmatmul.f32.gmra.mxu0 %v1313
    %v1416 = vpop.f32.mrf.mxu0
    %v1417 = vadd.f32 0.0, %v1416
    %1418 = vdwg.mxu0
    %1419 = vmatpush.msra.mxu0 %v1377
    %1420 = vmatpush.msra.mxu0 %v1373
    %1421 = vmatpush.msra.mxu0 %v1369
    %1422 = vmatpush.msra.mxu0 %v1365
    %1423 = vmatpush.msra.mxu0 %v1361
    %1424 = vmatpush.msra.mxu0 %v1357
    %1425 = vmatpush.msra.mxu0 %v1353
    %1426 = vmatpush.msra.mxu0 %v1349
    %1427 = vmatpush.msra.mxu0 %v1345
    %1428 = vmatpush.msra.mxu0 %v1341
    %1429 = vmatpush.msra.mxu0 %v1337
    %1430 = vmatpush.msra.mxu0 %v1333
    %1431 = vmatpush.msra.mxu0 %v1329
    %1432 = vmatpush.msra.mxu0 %v1325
    %1433 = vmatpush.msra.mxu0 %v1321
    %1434 = vmatpush.msra.mxu0 %v1317
    %1435 = vmatmul.f32.gmra.mxu0 %v1313
    %v1436 = vpop.f32.mrf.mxu0
    %v1437 = vadd.f32 0.0, %v1436
    %1438 = vdwg.mxu0
    %1439 = vmatpush.msra.mxu0 %v1378
    %1440 = vmatpush.msra.mxu0 %v1374
    %1441 = vmatpush.msra.mxu0 %v1370
    %1442 = vmatpush.msra.mxu0 %v1366
    %1443 = vmatpush.msra.mxu0 %v1362
    %1444 = vmatpush.msra.mxu0 %v1358
    %1445 = vmatpush.msra.mxu0 %v1354
    %1446 = vmatpush.msra.mxu0 %v1350
    %1447 = vmatpush.msra.mxu0 %v1346
    %1448 = vmatpush.msra.mxu0 %v1342
    %1449 = vmatpush.msra.mxu0 %v1338
    %1450 = vmatpush.msra.mxu0 %v1334
    %1451 = vmatpush.msra.mxu0 %v1330
    %1452 = vmatpush.msra.mxu0 %v1326
    %1453 = vmatpush.msra.mxu0 %v1322
    %1454 = vmatpush.msra.mxu0 %v1318
    %1455 = vmatmul.f32.gmra.mxu0 %v1313
    %v1456 = vpop.f32.mrf.mxu0
    %v1457 = vadd.f32 0.0, %v1456
    %1458 = vdwg.mxu0
    %v1459 = vadd.f32 %v333, %v1397
    %v1460 = vadd.f32 %v374, %v1417
    %v1461 = vadd.f32 %v415, %v1437
    %v1462 = vadd.f32 %v456, %v1457
    %v1463 = vxor.u32 %v1459, 2147483648
    %v1464 = vmul.f32 %v1463, 1.442695
    %v1465 = vpow.pop %v1464
    %v1466 = vadd.f32 %v1465, 1.0
    %v1467 = vrcp.pop %v1466
    %v1468 = vmul.f32 %v1466, %v1467
    %v1469 = vsub.f32 1.0, %v1468
    %v1470 = vmul.f32 %v1467, %v1469
    %v1471 = vadd.f32 %v1467, %v1470
    %vm1472 = vweird.f32 %v1466
    %vm1473 = vweird.f32 %v1467
    %vm1474 = vmor %vm1472, %vm1473
    %v1475 = vsel %vm1474, %v1467, %v1471
    %v1476 = vand.u32 2147483647, %v1466
    %vm1477 = vcmp.eq.f32.partialorder %v1476, 8.507059e+37
    %v1478 = vand.u32 %v1466, 2147483648
    %v1479 = vor.u32 1.1754944e-38, %v1478
    %v1480 = vsel %vm1477, %v1479, %v1475
    %v1481 = vmul.f32 1.0, %v1480
    %v1482 = vxor.u32 %v1460, 2147483648
    %v1483 = vmul.f32 %v1482, 1.442695
    %v1484 = vpow.pop %v1483
    %v1485 = vadd.f32 %v1484, 1.0
    %v1486 = vrcp.pop %v1485
    %v1487 = vmul.f32 %v1485, %v1486
    %v1488 = vsub.f32 1.0, %v1487
    %v1489 = vmul.f32 %v1486, %v1488
    %v1490 = vadd.f32 %v1486, %v1489
    %vm1491 = vweird.f32 %v1485
    %vm1492 = vweird.f32 %v1486
    %vm1493 = vmor %vm1491, %vm1492
    %v1494 = vsel %vm1493, %v1486, %v1490
    %v1495 = vand.u32 2147483647, %v1485
    %vm1496 = vcmp.eq.f32.partialorder %v1495, 8.507059e+37
    %v1497 = vand.u32 %v1485, 2147483648
    %v1498 = vor.u32 1.1754944e-38, %v1497
    %v1499 = vsel %vm1496, %v1498, %v1494
    %v1500 = vmul.f32 1.0, %v1499
    %v1501 = vtanh.pop %v1461
    %v1502 = vxor.u32 %v1462, 2147483648
    %v1503 = vmul.f32 %v1502, 1.442695
    %v1504 = vpow.pop %v1503
    %v1505 = vadd.f32 %v1504, 1.0
    %v1506 = vrcp.pop %v1505
    %v1507 = vmul.f32 %v1505, %v1506
    %v1508 = vsub.f32 1.0, %v1507
    %v1509 = vmul.f32 %v1506, %v1508
    %v1510 = vadd.f32 %v1506, %v1509
    %vm1511 = vweird.f32 %v1505
    %vm1512 = vweird.f32 %v1506
    %vm1513 = vmor %vm1511, %vm1512
    %v1514 = vsel %vm1513, %v1506, %v1510
    %v1515 = vand.u32 2147483647, %v1505
    %vm1516 = vcmp.eq.f32.partialorder %v1515, 8.507059e+37
    %v1517 = vand.u32 %v1505, 2147483648
    %v1518 = vor.u32 1.1754944e-38, %v1517
    %v1519 = vsel %vm1516, %v1518, %v1514
    %v1520 = vmul.f32 1.0, %v1519
    %v1521 = vmul.f32 %v1500, %v1311
    %v1522 = vmul.f32 %v1481, %v1501
    %v1523 = vadd.f32 %v1521, %v1522
    %v1524 = vtanh.pop %v1523
    %v1525 = vmul.f32 %v1520, %v1524
    %1526 = vst [vmem:[#allocation2 + $0x20] sm:$0xff] %v1525
    %v1527 = vld [vmem:[#allocation9] sm:$0xff]
    %v1528 = vld [vmem:[#allocation9 + $0x8] sm:$0xff]
    %v1529 = vld [vmem:[#allocation9 + $0x10] sm:$0xff]
    %v1530 = vld [vmem:[#allocation9 + $0x18] sm:$0xff]
    %v1531 = vld [vmem:[#allocation9 + $0x20] sm:$0xff]
    %v1532 = vld [vmem:[#allocation9 + $0x28] sm:$0xff]
    %v1533 = vld [vmem:[#allocation9 + $0x30] sm:$0xff]
    %v1534 = vld [vmem:[#allocation9 + $0x38] sm:$0xff]
    %v1535 = vld [vmem:[#allocation9 + $0x40] sm:$0xff]
    %v1536 = vld [vmem:[#allocation9 + $0x48] sm:$0xff]
    %v1537 = vld [vmem:[#allocation9 + $0x50] sm:$0xff]
    %v1538 = vld [vmem:[#allocation9 + $0x58] sm:$0xff]
    %v1539 = vld [vmem:[#allocation9 + $0x60] sm:$0xff]
    %v1540 = vld [vmem:[#allocation9 + $0x68] sm:$0xff]
    %v1541 = vld [vmem:[#allocation9 + $0x70] sm:$0xff]
    %v1542 = vld [vmem:[#allocation9 + $0x78] sm:$0xff]
    %v1543 = vld [vmem:[#allocation9 + $0x80] sm:$0xff]
    %v1544 = vld [vmem:[#allocation9 + $0x88] sm:$0xff]
    %v1545 = vld [vmem:[#allocation9 + $0x90] sm:$0xff]
    %v1546 = vld [vmem:[#allocation9 + $0x98] sm:$0xff]
    %v1547 = vld [vmem:[#allocation9 + $0xa0] sm:$0xff]
    %v1548 = vld [vmem:[#allocation9 + $0xa8] sm:$0xff]
    %v1549 = vld [vmem:[#allocation9 + $0xb0] sm:$0xff]
    %v1550 = vld [vmem:[#allocation9 + $0xb8] sm:$0xff]
    %v1551 = vld [vmem:[#allocation9 + $0xc0] sm:$0xff]
    %v1552 = vld [vmem:[#allocation9 + $0xc8] sm:$0xff]
    %v1553 = vld [vmem:[#allocation9 + $0xd0] sm:$0xff]
    %v1554 = vld [vmem:[#allocation9 + $0xd8] sm:$0xff]
    %v1555 = vld [vmem:[#allocation9 + $0xe0] sm:$0xff]
    %v1556 = vld [vmem:[#allocation9 + $0xe8] sm:$0xff]
    %v1557 = vld [vmem:[#allocation9 + $0xf0] sm:$0xff]
    %v1558 = vld [vmem:[#allocation9 + $0xf8] sm:$0xff]
    %v1559 = vld [vmem:[#allocation9 + $0x100] sm:$0xff]
    %v1560 = vld [vmem:[#allocation9 + $0x108] sm:$0xff]
    %v1561 = vld [vmem:[#allocation9 + $0x110] sm:$0xff]
    %v1562 = vld [vmem:[#allocation9 + $0x118] sm:$0xff]
    %v1563 = vld [vmem:[#allocation9 + $0x120] sm:$0xff]
    %v1564 = vld [vmem:[#allocation9 + $0x128] sm:$0xff]
    %v1565 = vld [vmem:[#allocation9 + $0x130] sm:$0xff]
    %v1566 = vld [vmem:[#allocation9 + $0x138] sm:$0xff]
    %v1567 = vld [vmem:[#allocation9 + $0x140] sm:$0xff]
    %v1568 = vld [vmem:[#allocation9 + $0x148] sm:$0xff]
    %v1569 = vld [vmem:[#allocation9 + $0x150] sm:$0xff]
    %v1570 = vld [vmem:[#allocation9 + $0x158] sm:$0xff]
    %v1571 = vld [vmem:[#allocation9 + $0x160] sm:$0xff]
    %v1572 = vld [vmem:[#allocation9 + $0x168] sm:$0xff]
    %v1573 = vld [vmem:[#allocation9 + $0x170] sm:$0xff]
    %v1574 = vld [vmem:[#allocation9 + $0x178] sm:$0xff]
    %v1575 = vld [vmem:[#allocation9 + $0x180] sm:$0xff]
    %v1576 = vld [vmem:[#allocation9 + $0x188] sm:$0xff]
    %v1577 = vld [vmem:[#allocation9 + $0x190] sm:$0xff]
    %v1578 = vld [vmem:[#allocation9 + $0x198] sm:$0xff]
    %v1579 = vld [vmem:[#allocation9 + $0x1a0] sm:$0xff]
    %v1580 = vld [vmem:[#allocation9 + $0x1a8] sm:$0xff]
    %v1581 = vld [vmem:[#allocation9 + $0x1b0] sm:$0xff]
    %v1582 = vld [vmem:[#allocation9 + $0x1b8] sm:$0xff]
    %v1583 = vld [vmem:[#allocation9 + $0x1c0] sm:$0xff]
    %v1584 = vld [vmem:[#allocation9 + $0x1c8] sm:$0xff]
    %v1585 = vld [vmem:[#allocation9 + $0x1d0] sm:$0xff]
    %v1586 = vld [vmem:[#allocation9 + $0x1d8] sm:$0xff]
    %v1587 = vld [vmem:[#allocation9 + $0x1e0] sm:$0xff]
    %v1588 = vld [vmem:[#allocation9 + $0x1e8] sm:$0xff]
    %v1589 = vld [vmem:[#allocation9 + $0x1f0] sm:$0xff]
    %v1590 = vld [vmem:[#allocation9 + $0x1f8] sm:$0xff]
    %1591 = vmatpush.msra.mxu0 %v1587
    %1592 = vmatpush.msra.mxu0 %v1583
    %1593 = vmatpush.msra.mxu0 %v1579
    %1594 = vmatpush.msra.mxu0 %v1575
    %1595 = vmatpush.msra.mxu0 %v1571
    %1596 = vmatpush.msra.mxu0 %v1567
    %1597 = vmatpush.msra.mxu0 %v1563
    %1598 = vmatpush.msra.mxu0 %v1559
    %1599 = vmatpush.msra.mxu0 %v1555
    %1600 = vmatpush.msra.mxu0 %v1551
    %1601 = vmatpush.msra.mxu0 %v1547
    %1602 = vmatpush.msra.mxu0 %v1543
    %1603 = vmatpush.msra.mxu0 %v1539
    %1604 = vmatpush.msra.mxu0 %v1535
    %1605 = vmatpush.msra.mxu0 %v1531
    %1606 = vmatpush.msra.mxu0 %v1527
    %1607 = vmatmul.f32.gmra.mxu0 %v1525
    %v1608 = vpop.f32.mrf.mxu0
    %v1609 = vadd.f32 0.0, %v1608
    %1610 = vdwg.mxu0
    %1611 = vmatpush.msra.mxu0 %v1588
    %1612 = vmatpush.msra.mxu0 %v1584
    %1613 = vmatpush.msra.mxu0 %v1580
    %1614 = vmatpush.msra.mxu0 %v1576
    %1615 = vmatpush.msra.mxu0 %v1572
    %1616 = vmatpush.msra.mxu0 %v1568
    %1617 = vmatpush.msra.mxu0 %v1564
    %1618 = vmatpush.msra.mxu0 %v1560
    %1619 = vmatpush.msra.mxu0 %v1556
    %1620 = vmatpush.msra.mxu0 %v1552
    %1621 = vmatpush.msra.mxu0 %v1548
    %1622 = vmatpush.msra.mxu0 %v1544
    %1623 = vmatpush.msra.mxu0 %v1540
    %1624 = vmatpush.msra.mxu0 %v1536
    %1625 = vmatpush.msra.mxu0 %v1532
    %1626 = vmatpush.msra.mxu0 %v1528
    %1627 = vmatmul.f32.gmra.mxu0 %v1525
    %v1628 = vpop.f32.mrf.mxu0
    %v1629 = vadd.f32 0.0, %v1628
    %1630 = vdwg.mxu0
    %1631 = vmatpush.msra.mxu0 %v1589
    %1632 = vmatpush.msra.mxu0 %v1585
    %1633 = vmatpush.msra.mxu0 %v1581
    %1634 = vmatpush.msra.mxu0 %v1577
    %1635 = vmatpush.msra.mxu0 %v1573
    %1636 = vmatpush.msra.mxu0 %v1569
    %1637 = vmatpush.msra.mxu0 %v1565
    %1638 = vmatpush.msra.mxu0 %v1561
    %1639 = vmatpush.msra.mxu0 %v1557
    %1640 = vmatpush.msra.mxu0 %v1553
    %1641 = vmatpush.msra.mxu0 %v1549
    %1642 = vmatpush.msra.mxu0 %v1545
    %1643 = vmatpush.msra.mxu0 %v1541
    %1644 = vmatpush.msra.mxu0 %v1537
    %1645 = vmatpush.msra.mxu0 %v1533
    %1646 = vmatpush.msra.mxu0 %v1529
    %1647 = vmatmul.f32.gmra.mxu0 %v1525
    %v1648 = vpop.f32.mrf.mxu0
    %v1649 = vadd.f32 0.0, %v1648
    %1650 = vdwg.mxu0
    %1651 = vmatpush.msra.mxu0 %v1590
    %1652 = vmatpush.msra.mxu0 %v1586
    %1653 = vmatpush.msra.mxu0 %v1582
    %1654 = vmatpush.msra.mxu0 %v1578
    %1655 = vmatpush.msra.mxu0 %v1574
    %1656 = vmatpush.msra.mxu0 %v1570
    %1657 = vmatpush.msra.mxu0 %v1566
    %1658 = vmatpush.msra.mxu0 %v1562
    %1659 = vmatpush.msra.mxu0 %v1558
    %1660 = vmatpush.msra.mxu0 %v1554
    %1661 = vmatpush.msra.mxu0 %v1550
    %1662 = vmatpush.msra.mxu0 %v1546
    %1663 = vmatpush.msra.mxu0 %v1542
    %1664 = vmatpush.msra.mxu0 %v1538
    %1665 = vmatpush.msra.mxu0 %v1534
    %1666 = vmatpush.msra.mxu0 %v1530
    %1667 = vmatmul.f32.gmra.mxu0 %v1525
    %v1668 = vpop.f32.mrf.mxu0
    %v1669 = vadd.f32 0.0, %v1668
    %1670 = vdwg.mxu0
    %v1671 = vadd.f32 %v336, %v1609
    %v1672 = vadd.f32 %v377, %v1629
    %v1673 = vadd.f32 %v418, %v1649
    %v1674 = vadd.f32 %v459, %v1669
    %v1675 = vxor.u32 %v1671, 2147483648
    %v1676 = vmul.f32 %v1675, 1.442695
    %v1677 = vpow.pop %v1676
    %v1678 = vadd.f32 %v1677, 1.0
    %v1679 = vrcp.pop %v1678
    %v1680 = vmul.f32 %v1678, %v1679
    %v1681 = vsub.f32 1.0, %v1680
    %v1682 = vmul.f32 %v1679, %v1681
    %v1683 = vadd.f32 %v1679, %v1682
    %vm1684 = vweird.f32 %v1678
    %vm1685 = vweird.f32 %v1679
    %vm1686 = vmor %vm1684, %vm1685
    %v1687 = vsel %vm1686, %v1679, %v1683
    %v1688 = vand.u32 2147483647, %v1678
    %vm1689 = vcmp.eq.f32.partialorder %v1688, 8.507059e+37
    %v1690 = vand.u32 %v1678, 2147483648
    %v1691 = vor.u32 1.1754944e-38, %v1690
    %v1692 = vsel %vm1689, %v1691, %v1687
    %v1693 = vmul.f32 1.0, %v1692
    %v1694 = vxor.u32 %v1672, 2147483648
    %v1695 = vmul.f32 %v1694, 1.442695
    %v1696 = vpow.pop %v1695
    %v1697 = vadd.f32 %v1696, 1.0
    %v1698 = vrcp.pop %v1697
    %v1699 = vmul.f32 %v1697, %v1698
    %v1700 = vsub.f32 1.0, %v1699
    %v1701 = vmul.f32 %v1698, %v1700
    %v1702 = vadd.f32 %v1698, %v1701
    %vm1703 = vweird.f32 %v1697
    %vm1704 = vweird.f32 %v1698
    %vm1705 = vmor %vm1703, %vm1704
    %v1706 = vsel %vm1705, %v1698, %v1702
    %v1707 = vand.u32 2147483647, %v1697
    %vm1708 = vcmp.eq.f32.partialorder %v1707, 8.507059e+37
    %v1709 = vand.u32 %v1697, 2147483648
    %v1710 = vor.u32 1.1754944e-38, %v1709
    %v1711 = vsel %vm1708, %v1710, %v1706
    %v1712 = vmul.f32 1.0, %v1711
    %v1713 = vtanh.pop %v1673
    %v1714 = vxor.u32 %v1674, 2147483648
    %v1715 = vmul.f32 %v1714, 1.442695
    %v1716 = vpow.pop %v1715
    %v1717 = vadd.f32 %v1716, 1.0
    %v1718 = vrcp.pop %v1717
    %v1719 = vmul.f32 %v1717, %v1718
    %v1720 = vsub.f32 1.0, %v1719
    %v1721 = vmul.f32 %v1718, %v1720
    %v1722 = vadd.f32 %v1718, %v1721
    %vm1723 = vweird.f32 %v1717
    %vm1724 = vweird.f32 %v1718
    %vm1725 = vmor %vm1723, %vm1724
    %v1726 = vsel %vm1725, %v1718, %v1722
    %v1727 = vand.u32 2147483647, %v1717
    %vm1728 = vcmp.eq.f32.partialorder %v1727, 8.507059e+37
    %v1729 = vand.u32 %v1717, 2147483648
    %v1730 = vor.u32 1.1754944e-38, %v1729
    %v1731 = vsel %vm1728, %v1730, %v1726
    %v1732 = vmul.f32 1.0, %v1731
    %v1733 = vmul.f32 %v1712, %v1523
    %v1734 = vmul.f32 %v1693, %v1713
    %v1735 = vadd.f32 %v1733, %v1734
    %v1736 = vtanh.pop %v1735
    %v1737 = vmul.f32 %v1732, %v1736
    %1738 = vst [vmem:[#allocation2 + $0x28] sm:$0xff] %v1737
    %v1739 = vld [vmem:[#allocation9] sm:$0xff]
    %v1740 = vld [vmem:[#allocation9 + $0x8] sm:$0xff]
    %v1741 = vld [vmem:[#allocation9 + $0x10] sm:$0xff]
    %v1742 = vld [vmem:[#allocation9 + $0x18] sm:$0xff]
    %v1743 = vld [vmem:[#allocation9 + $0x20] sm:$0xff]
    %v1744 = vld [vmem:[#allocation9 + $0x28] sm:$0xff]
    %v1745 = vld [vmem:[#allocation9 + $0x30] sm:$0xff]
    %v1746 = vld [vmem:[#allocation9 + $0x38] sm:$0xff]
    %v1747 = vld [vmem:[#allocation9 + $0x40] sm:$0xff]
    %v1748 = vld [vmem:[#allocation9 + $0x48] sm:$0xff]
    %v1749 = vld [vmem:[#allocation9 + $0x50] sm:$0xff]
    %v1750 = vld [vmem:[#allocation9 + $0x58] sm:$0xff]
    %v1751 = vld [vmem:[#allocation9 + $0x60] sm:$0xff]
    %v1752 = vld [vmem:[#allocation9 + $0x68] sm:$0xff]
    %v1753 = vld [vmem:[#allocation9 + $0x70] sm:$0xff]
    %v1754 = vld [vmem:[#allocation9 + $0x78] sm:$0xff]
    %v1755 = vld [vmem:[#allocation9 + $0x80] sm:$0xff]
    %v1756 = vld [vmem:[#allocation9 + $0x88] sm:$0xff]
    %v1757 = vld [vmem:[#allocation9 + $0x90] sm:$0xff]
    %v1758 = vld [vmem:[#allocation9 + $0x98] sm:$0xff]
    %v1759 = vld [vmem:[#allocation9 + $0xa0] sm:$0xff]
    %v1760 = vld [vmem:[#allocation9 + $0xa8] sm:$0xff]
    %v1761 = vld [vmem:[#allocation9 + $0xb0] sm:$0xff]
    %v1762 = vld [vmem:[#allocation9 + $0xb8] sm:$0xff]
    %v1763 = vld [vmem:[#allocation9 + $0xc0] sm:$0xff]
    %v1764 = vld [vmem:[#allocation9 + $0xc8] sm:$0xff]
    %v1765 = vld [vmem:[#allocation9 + $0xd0] sm:$0xff]
    %v1766 = vld [vmem:[#allocation9 + $0xd8] sm:$0xff]
    %v1767 = vld [vmem:[#allocation9 + $0xe0] sm:$0xff]
    %v1768 = vld [vmem:[#allocation9 + $0xe8] sm:$0xff]
    %v1769 = vld [vmem:[#allocation9 + $0xf0] sm:$0xff]
    %v1770 = vld [vmem:[#allocation9 + $0xf8] sm:$0xff]
    %v1771 = vld [vmem:[#allocation9 + $0x100] sm:$0xff]
    %v1772 = vld [vmem:[#allocation9 + $0x108] sm:$0xff]
    %v1773 = vld [vmem:[#allocation9 + $0x110] sm:$0xff]
    %v1774 = vld [vmem:[#allocation9 + $0x118] sm:$0xff]
    %v1775 = vld [vmem:[#allocation9 + $0x120] sm:$0xff]
    %v1776 = vld [vmem:[#allocation9 + $0x128] sm:$0xff]
    %v1777 = vld [vmem:[#allocation9 + $0x130] sm:$0xff]
    %v1778 = vld [vmem:[#allocation9 + $0x138] sm:$0xff]
    %v1779 = vld [vmem:[#allocation9 + $0x140] sm:$0xff]
    %v1780 = vld [vmem:[#allocation9 + $0x148] sm:$0xff]
    %v1781 = vld [vmem:[#allocation9 + $0x150] sm:$0xff]
    %v1782 = vld [vmem:[#allocation9 + $0x158] sm:$0xff]
    %v1783 = vld [vmem:[#allocation9 + $0x160] sm:$0xff]
    %v1784 = vld [vmem:[#allocation9 + $0x168] sm:$0xff]
    %v1785 = vld [vmem:[#allocation9 + $0x170] sm:$0xff]
    %v1786 = vld [vmem:[#allocation9 + $0x178] sm:$0xff]
    %v1787 = vld [vmem:[#allocation9 + $0x180] sm:$0xff]
    %v1788 = vld [vmem:[#allocation9 + $0x188] sm:$0xff]
    %v1789 = vld [vmem:[#allocation9 + $0x190] sm:$0xff]
    %v1790 = vld [vmem:[#allocation9 + $0x198] sm:$0xff]
    %v1791 = vld [vmem:[#allocation9 + $0x1a0] sm:$0xff]
    %v1792 = vld [vmem:[#allocation9 + $0x1a8] sm:$0xff]
    %v1793 = vld [vmem:[#allocation9 + $0x1b0] sm:$0xff]
    %v1794 = vld [vmem:[#allocation9 + $0x1b8] sm:$0xff]
    %v1795 = vld [vmem:[#allocation9 + $0x1c0] sm:$0xff]
    %v1796 = vld [vmem:[#allocation9 + $0x1c8] sm:$0xff]
    %v1797 = vld [vmem:[#allocation9 + $0x1d0] sm:$0xff]
    %v1798 = vld [vmem:[#allocation9 + $0x1d8] sm:$0xff]
    %v1799 = vld [vmem:[#allocation9 + $0x1e0] sm:$0xff]
    %v1800 = vld [vmem:[#allocation9 + $0x1e8] sm:$0xff]
    %v1801 = vld [vmem:[#allocation9 + $0x1f0] sm:$0xff]
    %v1802 = vld [vmem:[#allocation9 + $0x1f8] sm:$0xff]
    %1803 = vmatpush.msra.mxu0 %v1799
    %1804 = vmatpush.msra.mxu0 %v1795
    %1805 = vmatpush.msra.mxu0 %v1791
    %1806 = vmatpush.msra.mxu0 %v1787
    %1807 = vmatpush.msra.mxu0 %v1783
    %1808 = vmatpush.msra.mxu0 %v1779
    %1809 = vmatpush.msra.mxu0 %v1775
    %1810 = vmatpush.msra.mxu0 %v1771
    %1811 = vmatpush.msra.mxu0 %v1767
    %1812 = vmatpush.msra.mxu0 %v1763
    %1813 = vmatpush.msra.mxu0 %v1759
    %1814 = vmatpush.msra.mxu0 %v1755
    %1815 = vmatpush.msra.mxu0 %v1751
    %1816 = vmatpush.msra.mxu0 %v1747
    %1817 = vmatpush.msra.mxu0 %v1743
    %1818 = vmatpush.msra.mxu0 %v1739
    %1819 = vmatmul.f32.gmra.mxu0 %v1737
    %v1820 = vpop.f32.mrf.mxu0
    %v1821 = vadd.f32 0.0, %v1820
    %1822 = vdwg.mxu0
    %1823 = vmatpush.msra.mxu0 %v1800
    %1824 = vmatpush.msra.mxu0 %v1796
    %1825 = vmatpush.msra.mxu0 %v1792
    %1826 = vmatpush.msra.mxu0 %v1788
    %1827 = vmatpush.msra.mxu0 %v1784
    %1828 = vmatpush.msra.mxu0 %v1780
    %1829 = vmatpush.msra.mxu0 %v1776
    %1830 = vmatpush.msra.mxu0 %v1772
    %1831 = vmatpush.msra.mxu0 %v1768
    %1832 = vmatpush.msra.mxu0 %v1764
    %1833 = vmatpush.msra.mxu0 %v1760
    %1834 = vmatpush.msra.mxu0 %v1756
    %1835 = vmatpush.msra.mxu0 %v1752
    %1836 = vmatpush.msra.mxu0 %v1748
    %1837 = vmatpush.msra.mxu0 %v1744
    %1838 = vmatpush.msra.mxu0 %v1740
    %1839 = vmatmul.f32.gmra.mxu0 %v1737
    %v1840 = vpop.f32.mrf.mxu0
    %v1841 = vadd.f32 0.0, %v1840
    %1842 = vdwg.mxu0
    %1843 = vmatpush.msra.mxu0 %v1801
    %1844 = vmatpush.msra.mxu0 %v1797
    %1845 = vmatpush.msra.mxu0 %v1793
    %1846 = vmatpush.msra.mxu0 %v1789
    %1847 = vmatpush.msra.mxu0 %v1785
    %1848 = vmatpush.msra.mxu0 %v1781
    %1849 = vmatpush.msra.mxu0 %v1777
    %1850 = vmatpush.msra.mxu0 %v1773
    %1851 = vmatpush.msra.mxu0 %v1769
    %1852 = vmatpush.msra.mxu0 %v1765
    %1853 = vmatpush.msra.mxu0 %v1761
    %1854 = vmatpush.msra.mxu0 %v1757
    %1855 = vmatpush.msra.mxu0 %v1753
    %1856 = vmatpush.msra.mxu0 %v1749
    %1857 = vmatpush.msra.mxu0 %v1745
    %1858 = vmatpush.msra.mxu0 %v1741
    %1859 = vmatmul.f32.gmra.mxu0 %v1737
    %v1860 = vpop.f32.mrf.mxu0
    %v1861 = vadd.f32 0.0, %v1860
    %1862 = vdwg.mxu0
    %1863 = vmatpush.msra.mxu0 %v1802
    %1864 = vmatpush.msra.mxu0 %v1798
    %1865 = vmatpush.msra.mxu0 %v1794
    %1866 = vmatpush.msra.mxu0 %v1790
    %1867 = vmatpush.msra.mxu0 %v1786
    %1868 = vmatpush.msra.mxu0 %v1782
    %1869 = vmatpush.msra.mxu0 %v1778
    %1870 = vmatpush.msra.mxu0 %v1774
    %1871 = vmatpush.msra.mxu0 %v1770
    %1872 = vmatpush.msra.mxu0 %v1766
    %1873 = vmatpush.msra.mxu0 %v1762
    %1874 = vmatpush.msra.mxu0 %v1758
    %1875 = vmatpush.msra.mxu0 %v1754
    %1876 = vmatpush.msra.mxu0 %v1750
    %1877 = vmatpush.msra.mxu0 %v1746
    %1878 = vmatpush.msra.mxu0 %v1742
    %1879 = vmatmul.f32.gmra.mxu0 %v1737
    %v1880 = vpop.f32.mrf.mxu0
    %v1881 = vadd.f32 0.0, %v1880
    %1882 = vdwg.mxu0
    %v1883 = vadd.f32 %v339, %v1821
    %v1884 = vadd.f32 %v380, %v1841
    %v1885 = vadd.f32 %v421, %v1861
    %v1886 = vadd.f32 %v462, %v1881
    %v1887 = vxor.u32 %v1883, 2147483648
    %v1888 = vmul.f32 %v1887, 1.442695
    %v1889 = vpow.pop %v1888
    %v1890 = vadd.f32 %v1889, 1.0
    %v1891 = vrcp.pop %v1890
    %v1892 = vmul.f32 %v1890, %v1891
    %v1893 = vsub.f32 1.0, %v1892
    %v1894 = vmul.f32 %v1891, %v1893
    %v1895 = vadd.f32 %v1891, %v1894
    %vm1896 = vweird.f32 %v1890
    %vm1897 = vweird.f32 %v1891
    %vm1898 = vmor %vm1896, %vm1897
    %v1899 = vsel %vm1898, %v1891, %v1895
    %v1900 = vand.u32 2147483647, %v1890
    %vm1901 = vcmp.eq.f32.partialorder %v1900, 8.507059e+37
    %v1902 = vand.u32 %v1890, 2147483648
    %v1903 = vor.u32 1.1754944e-38, %v1902
    %v1904 = vsel %vm1901, %v1903, %v1899
    %v1905 = vmul.f32 1.0, %v1904
    %v1906 = vxor.u32 %v1884, 2147483648
    %v1907 = vmul.f32 %v1906, 1.442695
    %v1908 = vpow.pop %v1907
    %v1909 = vadd.f32 %v1908, 1.0
    %v1910 = vrcp.pop %v1909
    %v1911 = vmul.f32 %v1909, %v1910
    %v1912 = vsub.f32 1.0, %v1911
    %v1913 = vmul.f32 %v1910, %v1912
    %v1914 = vadd.f32 %v1910, %v1913
    %vm1915 = vweird.f32 %v1909
    %vm1916 = vweird.f32 %v1910
    %vm1917 = vmor %vm1915, %vm1916
    %v1918 = vsel %vm1917, %v1910, %v1914
    %v1919 = vand.u32 2147483647, %v1909
    %vm1920 = vcmp.eq.f32.partialorder %v1919, 8.507059e+37
    %v1921 = vand.u32 %v1909, 2147483648
    %v1922 = vor.u32 1.1754944e-38, %v1921
    %v1923 = vsel %vm1920, %v1922, %v1918
    %v1924 = vmul.f32 1.0, %v1923
    %v1925 = vtanh.pop %v1885
    %v1926 = vxor.u32 %v1886, 2147483648
    %v1927 = vmul.f32 %v1926, 1.442695
    %v1928 = vpow.pop %v1927
    %v1929 = vadd.f32 %v1928, 1.0
    %v1930 = vrcp.pop %v1929
    %v1931 = vmul.f32 %v1929, %v1930
    %v1932 = vsub.f32 1.0, %v1931
    %v1933 = vmul.f32 %v1930, %v1932
    %v1934 = vadd.f32 %v1930, %v1933
    %vm1935 = vweird.f32 %v1929
    %vm1936 = vweird.f32 %v1930
    %vm1937 = vmor %vm1935, %vm1936
    %v1938 = vsel %vm1937, %v1930, %v1934
    %v1939 = vand.u32 2147483647, %v1929
    %vm1940 = vcmp.eq.f32.partialorder %v1939, 8.507059e+37
    %v1941 = vand.u32 %v1929, 2147483648
    %v1942 = vor.u32 1.1754944e-38, %v1941
    %v1943 = vsel %vm1940, %v1942, %v1938
    %v1944 = vmul.f32 1.0, %v1943
    %v1945 = vmul.f32 %v1924, %v1735
    %v1946 = vmul.f32 %v1905, %v1925
    %v1947 = vadd.f32 %v1945, %v1946
    %v1948 = vtanh.pop %v1947
    %v1949 = vmul.f32 %v1944, %v1948
    %1950 = vst [vmem:[#allocation2 + $0x30] sm:$0xff] %v1949
    %v1951 = vld [vmem:[#allocation9] sm:$0xff]
    %v1952 = vld [vmem:[#allocation9 + $0x8] sm:$0xff]
    %v1953 = vld [vmem:[#allocation9 + $0x10] sm:$0xff]
    %v1954 = vld [vmem:[#allocation9 + $0x18] sm:$0xff]
    %v1955 = vld [vmem:[#allocation9 + $0x20] sm:$0xff]
    %v1956 = vld [vmem:[#allocation9 + $0x28] sm:$0xff]
    %v1957 = vld [vmem:[#allocation9 + $0x30] sm:$0xff]
    %v1958 = vld [vmem:[#allocation9 + $0x38] sm:$0xff]
    %v1959 = vld [vmem:[#allocation9 + $0x40] sm:$0xff]
    %v1960 = vld [vmem:[#allocation9 + $0x48] sm:$0xff]
    %v1961 = vld [vmem:[#allocation9 + $0x50] sm:$0xff]
    %v1962 = vld [vmem:[#allocation9 + $0x58] sm:$0xff]
    %v1963 = vld [vmem:[#allocation9 + $0x60] sm:$0xff]
    %v1964 = vld [vmem:[#allocation9 + $0x68] sm:$0xff]
    %v1965 = vld [vmem:[#allocation9 + $0x70] sm:$0xff]
    %v1966 = vld [vmem:[#allocation9 + $0x78] sm:$0xff]
    %v1967 = vld [vmem:[#allocation9 + $0x80] sm:$0xff]
    %v1968 = vld [vmem:[#allocation9 + $0x88] sm:$0xff]
    %v1969 = vld [vmem:[#allocation9 + $0x90] sm:$0xff]
    %v1970 = vld [vmem:[#allocation9 + $0x98] sm:$0xff]
    %v1971 = vld [vmem:[#allocation9 + $0xa0] sm:$0xff]
    %v1972 = vld [vmem:[#allocation9 + $0xa8] sm:$0xff]
    %v1973 = vld [vmem:[#allocation9 + $0xb0] sm:$0xff]
    %v1974 = vld [vmem:[#allocation9 + $0xb8] sm:$0xff]
    %v1975 = vld [vmem:[#allocation9 + $0xc0] sm:$0xff]
    %v1976 = vld [vmem:[#allocation9 + $0xc8] sm:$0xff]
    %v1977 = vld [vmem:[#allocation9 + $0xd0] sm:$0xff]
    %v1978 = vld [vmem:[#allocation9 + $0xd8] sm:$0xff]
    %v1979 = vld [vmem:[#allocation9 + $0xe0] sm:$0xff]
    %v1980 = vld [vmem:[#allocation9 + $0xe8] sm:$0xff]
    %v1981 = vld [vmem:[#allocation9 + $0xf0] sm:$0xff]
    %v1982 = vld [vmem:[#allocation9 + $0xf8] sm:$0xff]
    %v1983 = vld [vmem:[#allocation9 + $0x100] sm:$0xff]
    %v1984 = vld [vmem:[#allocation9 + $0x108] sm:$0xff]
    %v1985 = vld [vmem:[#allocation9 + $0x110] sm:$0xff]
    %v1986 = vld [vmem:[#allocation9 + $0x118] sm:$0xff]
    %v1987 = vld [vmem:[#allocation9 + $0x120] sm:$0xff]
    %v1988 = vld [vmem:[#allocation9 + $0x128] sm:$0xff]
    %v1989 = vld [vmem:[#allocation9 + $0x130] sm:$0xff]
    %v1990 = vld [vmem:[#allocation9 + $0x138] sm:$0xff]
    %v1991 = vld [vmem:[#allocation9 + $0x140] sm:$0xff]
    %v1992 = vld [vmem:[#allocation9 + $0x148] sm:$0xff]
    %v1993 = vld [vmem:[#allocation9 + $0x150] sm:$0xff]
    %v1994 = vld [vmem:[#allocation9 + $0x158] sm:$0xff]
    %v1995 = vld [vmem:[#allocation9 + $0x160] sm:$0xff]
    %v1996 = vld [vmem:[#allocation9 + $0x168] sm:$0xff]
    %v1997 = vld [vmem:[#allocation9 + $0x170] sm:$0xff]
    %v1998 = vld [vmem:[#allocation9 + $0x178] sm:$0xff]
    %v1999 = vld [vmem:[#allocation9 + $0x180] sm:$0xff]
    %v2000 = vld [vmem:[#allocation9 + $0x188] sm:$0xff]
    %v2001 = vld [vmem:[#allocation9 + $0x190] sm:$0xff]
    %v2002 = vld [vmem:[#allocation9 + $0x198] sm:$0xff]
    %v2003 = vld [vmem:[#allocation9 + $0x1a0] sm:$0xff]
    %v2004 = vld [vmem:[#allocation9 + $0x1a8] sm:$0xff]
    %v2005 = vld [vmem:[#allocation9 + $0x1b0] sm:$0xff]
    %v2006 = vld [vmem:[#allocation9 + $0x1b8] sm:$0xff]
    %v2007 = vld [vmem:[#allocation9 + $0x1c0] sm:$0xff]
    %v2008 = vld [vmem:[#allocation9 + $0x1c8] sm:$0xff]
    %v2009 = vld [vmem:[#allocation9 + $0x1d0] sm:$0xff]
    %v2010 = vld [vmem:[#allocation9 + $0x1d8] sm:$0xff]
    %v2011 = vld [vmem:[#allocation9 + $0x1e0] sm:$0xff]
    %v2012 = vld [vmem:[#allocation9 + $0x1e8] sm:$0xff]
    %v2013 = vld [vmem:[#allocation9 + $0x1f0] sm:$0xff]
    %v2014 = vld [vmem:[#allocation9 + $0x1f8] sm:$0xff]
    %2015 = vmatpush.msra.mxu0 %v2011
    %2016 = vmatpush.msra.mxu0 %v2007
    %2017 = vmatpush.msra.mxu0 %v2003
    %2018 = vmatpush.msra.mxu0 %v1999
    %2019 = vmatpush.msra.mxu0 %v1995
    %2020 = vmatpush.msra.mxu0 %v1991
    %2021 = vmatpush.msra.mxu0 %v1987
    %2022 = vmatpush.msra.mxu0 %v1983
    %2023 = vmatpush.msra.mxu0 %v1979
    %2024 = vmatpush.msra.mxu0 %v1975
    %2025 = vmatpush.msra.mxu0 %v1971
    %2026 = vmatpush.msra.mxu0 %v1967
    %2027 = vmatpush.msra.mxu0 %v1963
    %2028 = vmatpush.msra.mxu0 %v1959
    %2029 = vmatpush.msra.mxu0 %v1955
    %2030 = vmatpush.msra.mxu0 %v1951
    %2031 = vmatmul.f32.gmra.mxu0 %v1949
    %v2032 = vpop.f32.mrf.mxu0
    %v2033 = vadd.f32 0.0, %v2032
    %2034 = vdwg.mxu0
    %2035 = vmatpush.msra.mxu0 %v2012
    %2036 = vmatpush.msra.mxu0 %v2008
    %2037 = vmatpush.msra.mxu0 %v2004
    %2038 = vmatpush.msra.mxu0 %v2000
    %2039 = vmatpush.msra.mxu0 %v1996
    %2040 = vmatpush.msra.mxu0 %v1992
    %2041 = vmatpush.msra.mxu0 %v1988
    %2042 = vmatpush.msra.mxu0 %v1984
    %2043 = vmatpush.msra.mxu0 %v1980
    %2044 = vmatpush.msra.mxu0 %v1976
    %2045 = vmatpush.msra.mxu0 %v1972
    %2046 = vmatpush.msra.mxu0 %v1968
    %2047 = vmatpush.msra.mxu0 %v1964
    %2048 = vmatpush.msra.mxu0 %v1960
    %2049 = vmatpush.msra.mxu0 %v1956
    %2050 = vmatpush.msra.mxu0 %v1952
    %2051 = vmatmul.f32.gmra.mxu0 %v1949
    %v2052 = vpop.f32.mrf.mxu0
    %v2053 = vadd.f32 0.0, %v2052
    %2054 = vdwg.mxu0
    %2055 = vmatpush.msra.mxu0 %v2013
    %2056 = vmatpush.msra.mxu0 %v2009
    %2057 = vmatpush.msra.mxu0 %v2005
    %2058 = vmatpush.msra.mxu0 %v2001
    %2059 = vmatpush.msra.mxu0 %v1997
    %2060 = vmatpush.msra.mxu0 %v1993
    %2061 = vmatpush.msra.mxu0 %v1989
    %2062 = vmatpush.msra.mxu0 %v1985
    %2063 = vmatpush.msra.mxu0 %v1981
    %2064 = vmatpush.msra.mxu0 %v1977
    %2065 = vmatpush.msra.mxu0 %v1973
    %2066 = vmatpush.msra.mxu0 %v1969
    %2067 = vmatpush.msra.mxu0 %v1965
    %2068 = vmatpush.msra.mxu0 %v1961
    %2069 = vmatpush.msra.mxu0 %v1957
    %2070 = vmatpush.msra.mxu0 %v1953
    %2071 = vmatmul.f32.gmra.mxu0 %v1949
    %v2072 = vpop.f32.mrf.mxu0
    %v2073 = vadd.f32 0.0, %v2072
    %2074 = vdwg.mxu0
    %2075 = vmatpush.msra.mxu0 %v2014
    %2076 = vmatpush.msra.mxu0 %v2010
    %2077 = vmatpush.msra.mxu0 %v2006
    %2078 = vmatpush.msra.mxu0 %v2002
    %2079 = vmatpush.msra.mxu0 %v1998
    %2080 = vmatpush.msra.mxu0 %v1994
    %2081 = vmatpush.msra.mxu0 %v1990
    %2082 = vmatpush.msra.mxu0 %v1986
    %2083 = vmatpush.msra.mxu0 %v1982
    %2084 = vmatpush.msra.mxu0 %v1978
    %2085 = vmatpush.msra.mxu0 %v1974
    %2086 = vmatpush.msra.mxu0 %v1970
    %2087 = vmatpush.msra.mxu0 %v1966
    %2088 = vmatpush.msra.mxu0 %v1962
    %2089 = vmatpush.msra.mxu0 %v1958
    %2090 = vmatpush.msra.mxu0 %v1954
    %2091 = vmatmul.f32.gmra.mxu0 %v1949
    %v2092 = vpop.f32.mrf.mxu0
    %v2093 = vadd.f32 0.0, %v2092
    %2094 = vdwg.mxu0
    %v2095 = vadd.f32 %v342, %v2033
    %v2096 = vadd.f32 %v383, %v2053
    %v2097 = vadd.f32 %v424, %v2073
    %v2098 = vadd.f32 %v465, %v2093
    %v2099 = vxor.u32 %v2095, 2147483648
    %v2100 = vmul.f32 %v2099, 1.442695
    %v2101 = vpow.pop %v2100
    %v2102 = vadd.f32 %v2101, 1.0
    %v2103 = vrcp.pop %v2102
    %v2104 = vmul.f32 %v2102, %v2103
    %v2105 = vsub.f32 1.0, %v2104
    %v2106 = vmul.f32 %v2103, %v2105
    %v2107 = vadd.f32 %v2103, %v2106
    %vm2108 = vweird.f32 %v2102
    %vm2109 = vweird.f32 %v2103
    %vm2110 = vmor %vm2108, %vm2109
    %v2111 = vsel %vm2110, %v2103, %v2107
    %v2112 = vand.u32 2147483647, %v2102
    %vm2113 = vcmp.eq.f32.partialorder %v2112, 8.507059e+37
    %v2114 = vand.u32 %v2102, 2147483648
    %v2115 = vor.u32 1.1754944e-38, %v2114
    %v2116 = vsel %vm2113, %v2115, %v2111
    %v2117 = vmul.f32 1.0, %v2116
    %v2118 = vxor.u32 %v2096, 2147483648
    %v2119 = vmul.f32 %v2118, 1.442695
    %v2120 = vpow.pop %v2119
    %v2121 = vadd.f32 %v2120, 1.0
    %v2122 = vrcp.pop %v2121
    %v2123 = vmul.f32 %v2121, %v2122
    %v2124 = vsub.f32 1.0, %v2123
    %v2125 = vmul.f32 %v2122, %v2124
    %v2126 = vadd.f32 %v2122, %v2125
    %vm2127 = vweird.f32 %v2121
    %vm2128 = vweird.f32 %v2122
    %vm2129 = vmor %vm2127, %vm2128
    %v2130 = vsel %vm2129, %v2122, %v2126
    %v2131 = vand.u32 2147483647, %v2121
    %vm2132 = vcmp.eq.f32.partialorder %v2131, 8.507059e+37
    %v2133 = vand.u32 %v2121, 2147483648
    %v2134 = vor.u32 1.1754944e-38, %v2133
    %v2135 = vsel %vm2132, %v2134, %v2130
    %v2136 = vmul.f32 1.0, %v2135
    %v2137 = vtanh.pop %v2097
    %v2138 = vxor.u32 %v2098, 2147483648
    %v2139 = vmul.f32 %v2138, 1.442695
    %v2140 = vpow.pop %v2139
    %v2141 = vadd.f32 %v2140, 1.0
    %v2142 = vrcp.pop %v2141
    %v2143 = vmul.f32 %v2141, %v2142
    %v2144 = vsub.f32 1.0, %v2143
    %v2145 = vmul.f32 %v2142, %v2144
    %v2146 = vadd.f32 %v2142, %v2145
    %vm2147 = vweird.f32 %v2141
    %vm2148 = vweird.f32 %v2142
    %vm2149 = vmor %vm2147, %vm2148
    %v2150 = vsel %vm2149, %v2142, %v2146
    %v2151 = vand.u32 2147483647, %v2141
    %vm2152 = vcmp.eq.f32.partialorder %v2151, 8.507059e+37
    %v2153 = vand.u32 %v2141, 2147483648
    %v2154 = vor.u32 1.1754944e-38, %v2153
    %v2155 = vsel %vm2152, %v2154, %v2150
    %v2156 = vmul.f32 1.0, %v2155
    %v2157 = vmul.f32 %v2136, %v1947
    %v2158 = vmul.f32 %v2117, %v2137
    %v2159 = vadd.f32 %v2157, %v2158
    %v2160 = vtanh.pop %v2159
    %v2161 = vmul.f32 %v2156, %v2160
    %2162 = vst [vmem:[#allocation2 + $0x38] sm:$0xff] %v2161
    %2163 = vst [vmem:[#allocation3] sm:$0xff] %v2161
    %2164 = vst [vmem:[#allocation3 + $0x8] sm:$0xff] %v2159
    %v2165 = vld [vmem:[#allocation2] sm:$0xff]
    %v2166 = vld [vmem:[#allocation2 + $0x8] sm:$0xff]
    %v2167 = vld [vmem:[#allocation2 + $0x10] sm:$0xff]
    %v2168 = vld [vmem:[#allocation2 + $0x18] sm:$0xff]
    %v2169 = vld [vmem:[#allocation2 + $0x20] sm:$0xff]
    %v2170 = vld [vmem:[#allocation2 + $0x28] sm:$0xff]
    %v2171 = vld [vmem:[#allocation2 + $0x30] sm:$0xff]
    %v2172 = vld [vmem:[#allocation2 + $0x38] sm:$0xff]
    %s2173 = scalar_lea.vmem [#allocation7], 512
    %v2174 = vld [vmem:[%s2173] sm:$0xff]
    %v2175 = vld [vmem:[%s2173 + $0x8] sm:$0xff]
    %v2176 = vld [vmem:[%s2173 + $0x10] sm:$0xff]
    %v2177 = vld [vmem:[%s2173 + $0x18] sm:$0xff]
    %v2178 = vld [vmem:[%s2173 + $0x20] sm:$0xff]
    %v2179 = vld [vmem:[%s2173 + $0x28] sm:$0xff]
    %v2180 = vld [vmem:[%s2173 + $0x30] sm:$0xff]
    %v2181 = vld [vmem:[%s2173 + $0x38] sm:$0xff]
    %v2182 = vld [vmem:[%s2173 + $0x40] sm:$0xff]
    %v2183 = vld [vmem:[%s2173 + $0x48] sm:$0xff]
    %v2184 = vld [vmem:[%s2173 + $0x50] sm:$0xff]
    %v2185 = vld [vmem:[%s2173 + $0x58] sm:$0xff]
    %v2186 = vld [vmem:[%s2173 + $0x60] sm:$0xff]
    %v2187 = vld [vmem:[%s2173 + $0x68] sm:$0xff]
    %v2188 = vld [vmem:[%s2173 + $0x70] sm:$0xff]
    %v2189 = vld [vmem:[%s2173 + $0x78] sm:$0xff]
    %v2190 = vld [vmem:[%s2173 + $0x80] sm:$0xff]
    %v2191 = vld [vmem:[%s2173 + $0x88] sm:$0xff]
    %v2192 = vld [vmem:[%s2173 + $0x90] sm:$0xff]
    %v2193 = vld [vmem:[%s2173 + $0x98] sm:$0xff]
    %v2194 = vld [vmem:[%s2173 + $0xa0] sm:$0xff]
    %v2195 = vld [vmem:[%s2173 + $0xa8] sm:$0xff]
    %v2196 = vld [vmem:[%s2173 + $0xb0] sm:$0xff]
    %v2197 = vld [vmem:[%s2173 + $0xb8] sm:$0xff]
    %v2198 = vld [vmem:[%s2173 + $0xc0] sm:$0xff]
    %v2199 = vld [vmem:[%s2173 + $0xc8] sm:$0xff]
    %v2200 = vld [vmem:[%s2173 + $0xd0] sm:$0xff]
    %v2201 = vld [vmem:[%s2173 + $0xd8] sm:$0xff]
    %v2202 = vld [vmem:[%s2173 + $0xe0] sm:$0xff]
    %v2203 = vld [vmem:[%s2173 + $0xe8] sm:$0xff]
    %v2204 = vld [vmem:[%s2173 + $0xf0] sm:$0xff]
    %v2205 = vld [vmem:[%s2173 + $0xf8] sm:$0xff]
    %v2206 = vld [vmem:[%s2173 + $0x100] sm:$0xff]
    %v2207 = vld [vmem:[%s2173 + $0x108] sm:$0xff]
    %v2208 = vld [vmem:[%s2173 + $0x110] sm:$0xff]
    %v2209 = vld [vmem:[%s2173 + $0x118] sm:$0xff]
    %v2210 = vld [vmem:[%s2173 + $0x120] sm:$0xff]
    %v2211 = vld [vmem:[%s2173 + $0x128] sm:$0xff]
    %v2212 = vld [vmem:[%s2173 + $0x130] sm:$0xff]
    %v2213 = vld [vmem:[%s2173 + $0x138] sm:$0xff]
    %v2214 = vld [vmem:[%s2173 + $0x140] sm:$0xff]
    %v2215 = vld [vmem:[%s2173 + $0x148] sm:$0xff]
    %v2216 = vld [vmem:[%s2173 + $0x150] sm:$0xff]
    %v2217 = vld [vmem:[%s2173 + $0x158] sm:$0xff]
    %v2218 = vld [vmem:[%s2173 + $0x160] sm:$0xff]
    %v2219 = vld [vmem:[%s2173 + $0x168] sm:$0xff]
    %v2220 = vld [vmem:[%s2173 + $0x170] sm:$0xff]
    %v2221 = vld [vmem:[%s2173 + $0x178] sm:$0xff]
    %v2222 = vld [vmem:[%s2173 + $0x180] sm:$0xff]
    %v2223 = vld [vmem:[%s2173 + $0x188] sm:$0xff]
    %v2224 = vld [vmem:[%s2173 + $0x190] sm:$0xff]
    %v2225 = vld [vmem:[%s2173 + $0x198] sm:$0xff]
    %v2226 = vld [vmem:[%s2173 + $0x1a0] sm:$0xff]
    %v2227 = vld [vmem:[%s2173 + $0x1a8] sm:$0xff]
    %v2228 = vld [vmem:[%s2173 + $0x1b0] sm:$0xff]
    %v2229 = vld [vmem:[%s2173 + $0x1b8] sm:$0xff]
    %v2230 = vld [vmem:[%s2173 + $0x1c0] sm:$0xff]
    %v2231 = vld [vmem:[%s2173 + $0x1c8] sm:$0xff]
    %v2232 = vld [vmem:[%s2173 + $0x1d0] sm:$0xff]
    %v2233 = vld [vmem:[%s2173 + $0x1d8] sm:$0xff]
    %v2234 = vld [vmem:[%s2173 + $0x1e0] sm:$0xff]
    %v2235 = vld [vmem:[%s2173 + $0x1e8] sm:$0xff]
    %v2236 = vld [vmem:[%s2173 + $0x1f0] sm:$0xff]
    %v2237 = vld [vmem:[%s2173 + $0x1f8] sm:$0xff]
    %s2238 = scalar_lea.vmem %s4, 4
    %v2239 = vld [vmem:[%s2238] sm:$0xf]
    %v2241 = vperm.slane %v2239, 0
    %v2242 = vperm.slane %v2239, 1
    %v2243 = vperm.slane %v2239, 2
    %v2244 = vperm.slane %v2239, 3
    %2249 = vmatpush.msra.mxu0 %v2234
    %2250 = vmatpush.msra.mxu0 %v2230
    %2251 = vmatpush.msra.mxu0 %v2226
    %2252 = vmatpush.msra.mxu0 %v2222
    %2253 = vmatpush.msra.mxu0 %v2218
    %2254 = vmatpush.msra.mxu0 %v2214
    %2255 = vmatpush.msra.mxu0 %v2210
    %2256 = vmatpush.msra.mxu0 %v2206
    %2257 = vmatpush.msra.mxu0 %v2202
    %2258 = vmatpush.msra.mxu0 %v2198
    %2259 = vmatpush.msra.mxu0 %v2194
    %2260 = vmatpush.msra.mxu0 %v2190
    %2261 = vmatpush.msra.mxu0 %v2186
    %2262 = vmatpush.msra.mxu0 %v2182
    %2263 = vmatpush.msra.mxu0 %v2178
    %2264 = vmatpush.msra.mxu0 %v2174
    %2265 = vmatmul.f32.gmra.mxu0 %v2165
    %v2266 = vpop.f32.mrf.mxu0
    %v2267 = vadd.f32 %v2241, %v2266
    %2268 = vmatmul.f32.gmra.mxu0 %v2166
    %v2269 = vpop.f32.mrf.mxu0
    %v2270 = vadd.f32 %v2241, %v2269
    %2271 = vmatmul.f32.gmra.mxu0 %v2167
    %v2272 = vpop.f32.mrf.mxu0
    %v2273 = vadd.f32 %v2241, %v2272
    %2274 = vmatmul.f32.gmra.mxu0 %v2168
    %v2275 = vpop.f32.mrf.mxu0
    %v2276 = vadd.f32 %v2241, %v2275
    %2277 = vmatmul.f32.gmra.mxu0 %v2169
    %v2278 = vpop.f32.mrf.mxu0
    %v2279 = vadd.f32 %v2241, %v2278
    %2280 = vmatmul.f32.gmra.mxu0 %v2170
    %v2281 = vpop.f32.mrf.mxu0
    %v2282 = vadd.f32 %v2241, %v2281
    %2283 = vmatmul.f32.gmra.mxu0 %v2171
    %v2284 = vpop.f32.mrf.mxu0
    %v2285 = vadd.f32 %v2241, %v2284
    %2286 = vmatmul.f32.gmra.mxu0 %v2172
    %v2287 = vpop.f32.mrf.mxu0
    %v2288 = vadd.f32 %v2241, %v2287
    %2289 = vdwg.mxu0
    %2290 = vmatpush.msra.mxu0 %v2235
    %2291 = vmatpush.msra.mxu0 %v2231
    %2292 = vmatpush.msra.mxu0 %v2227
    %2293 = vmatpush.msra.mxu0 %v2223
    %2294 = vmatpush.msra.mxu0 %v2219
    %2295 = vmatpush.msra.mxu0 %v2215
    %2296 = vmatpush.msra.mxu0 %v2211
    %2297 = vmatpush.msra.mxu0 %v2207
    %2298 = vmatpush.msra.mxu0 %v2203
    %2299 = vmatpush.msra.mxu0 %v2199
    %2300 = vmatpush.msra.mxu0 %v2195
    %2301 = vmatpush.msra.mxu0 %v2191
    %2302 = vmatpush.msra.mxu0 %v2187
    %2303 = vmatpush.msra.mxu0 %v2183
    %2304 = vmatpush.msra.mxu0 %v2179
    %2305 = vmatpush.msra.mxu0 %v2175
    %2306 = vmatmul.f32.gmra.mxu0 %v2165
    %v2307 = vpop.f32.mrf.mxu0
    %v2308 = vadd.f32 %v2242, %v2307
    %2309 = vmatmul.f32.gmra.mxu0 %v2166
    %v2310 = vpop.f32.mrf.mxu0
    %v2311 = vadd.f32 %v2242, %v2310
    %2312 = vmatmul.f32.gmra.mxu0 %v2167
    %v2313 = vpop.f32.mrf.mxu0
    %v2314 = vadd.f32 %v2242, %v2313
    %2315 = vmatmul.f32.gmra.mxu0 %v2168
    %v2316 = vpop.f32.mrf.mxu0
    %v2317 = vadd.f32 %v2242, %v2316
    %2318 = vmatmul.f32.gmra.mxu0 %v2169
    %v2319 = vpop.f32.mrf.mxu0
    %v2320 = vadd.f32 %v2242, %v2319
    %2321 = vmatmul.f32.gmra.mxu0 %v2170
    %v2322 = vpop.f32.mrf.mxu0
    %v2323 = vadd.f32 %v2242, %v2322
    %2324 = vmatmul.f32.gmra.mxu0 %v2171
    %v2325 = vpop.f32.mrf.mxu0
    %v2326 = vadd.f32 %v2242, %v2325
    %2327 = vmatmul.f32.gmra.mxu0 %v2172
    %v2328 = vpop.f32.mrf.mxu0
    %v2329 = vadd.f32 %v2242, %v2328
    %2330 = vdwg.mxu0
    %2331 = vmatpush.msra.mxu0 %v2236
    %2332 = vmatpush.msra.mxu0 %v2232
    %2333 = vmatpush.msra.mxu0 %v2228
    %2334 = vmatpush.msra.mxu0 %v2224
    %2335 = vmatpush.msra.mxu0 %v2220
    %2336 = vmatpush.msra.mxu0 %v2216
    %2337 = vmatpush.msra.mxu0 %v2212
    %2338 = vmatpush.msra.mxu0 %v2208
    %2339 = vmatpush.msra.mxu0 %v2204
    %2340 = vmatpush.msra.mxu0 %v2200
    %2341 = vmatpush.msra.mxu0 %v2196
    %2342 = vmatpush.msra.mxu0 %v2192
    %2343 = vmatpush.msra.mxu0 %v2188
    %2344 = vmatpush.msra.mxu0 %v2184
    %2345 = vmatpush.msra.mxu0 %v2180
    %2346 = vmatpush.msra.mxu0 %v2176
    %2347 = vmatmul.f32.gmra.mxu0 %v2165
    %v2348 = vpop.f32.mrf.mxu0
    %v2349 = vadd.f32 %v2243, %v2348
    %2350 = vmatmul.f32.gmra.mxu0 %v2166
    %v2351 = vpop.f32.mrf.mxu0
    %v2352 = vadd.f32 %v2243, %v2351
    %2353 = vmatmul.f32.gmra.mxu0 %v2167
    %v2354 = vpop.f32.mrf.mxu0
    %v2355 = vadd.f32 %v2243, %v2354
    %2356 = vmatmul.f32.gmra.mxu0 %v2168
    %v2357 = vpop.f32.mrf.mxu0
    %v2358 = vadd.f32 %v2243, %v2357
    %2359 = vmatmul.f32.gmra.mxu0 %v2169
    %v2360 = vpop.f32.mrf.mxu0
    %v2361 = vadd.f32 %v2243, %v2360
    %2362 = vmatmul.f32.gmra.mxu0 %v2170
    %v2363 = vpop.f32.mrf.mxu0
    %v2364 = vadd.f32 %v2243, %v2363
    %2365 = vmatmul.f32.gmra.mxu0 %v2171
    %v2366 = vpop.f32.mrf.mxu0
    %v2367 = vadd.f32 %v2243, %v2366
    %2368 = vmatmul.f32.gmra.mxu0 %v2172
    %v2369 = vpop.f32.mrf.mxu0
    %v2370 = vadd.f32 %v2243, %v2369
    %2371 = vdwg.mxu0
    %2372 = vmatpush.msra.mxu0 %v2237
    %2373 = vmatpush.msra.mxu0 %v2233
    %2374 = vmatpush.msra.mxu0 %v2229
    %2375 = vmatpush.msra.mxu0 %v2225
    %2376 = vmatpush.msra.mxu0 %v2221
    %2377 = vmatpush.msra.mxu0 %v2217
    %2378 = vmatpush.msra.mxu0 %v2213
    %2379 = vmatpush.msra.mxu0 %v2209
    %2380 = vmatpush.msra.mxu0 %v2205
    %2381 = vmatpush.msra.mxu0 %v2201
    %2382 = vmatpush.msra.mxu0 %v2197
    %2383 = vmatpush.msra.mxu0 %v2193
    %2384 = vmatpush.msra.mxu0 %v2189
    %2385 = vmatpush.msra.mxu0 %v2185
    %2386 = vmatpush.msra.mxu0 %v2181
    %2387 = vmatpush.msra.mxu0 %v2177
    %2388 = vmatmul.f32.gmra.mxu0 %v2165
    %v2389 = vpop.f32.mrf.mxu0
    %v2390 = vadd.f32 %v2244, %v2389
    %2391 = vmatmul.f32.gmra.mxu0 %v2166
    %v2392 = vpop.f32.mrf.mxu0
    %v2393 = vadd.f32 %v2244, %v2392
    %2394 = vmatmul.f32.gmra.mxu0 %v2167
    %v2395 = vpop.f32.mrf.mxu0
    %v2396 = vadd.f32 %v2244, %v2395
    %2397 = vmatmul.f32.gmra.mxu0 %v2168
    %v2398 = vpop.f32.mrf.mxu0
    %v2399 = vadd.f32 %v2244, %v2398
    %2400 = vmatmul.f32.gmra.mxu0 %v2169
    %v2401 = vpop.f32.mrf.mxu0
    %v2402 = vadd.f32 %v2244, %v2401
    %2403 = vmatmul.f32.gmra.mxu0 %v2170
    %v2404 = vpop.f32.mrf.mxu0
    %v2405 = vadd.f32 %v2244, %v2404
    %2406 = vmatmul.f32.gmra.mxu0 %v2171
    %v2407 = vpop.f32.mrf.mxu0
    %v2408 = vadd.f32 %v2244, %v2407
    %2409 = vmatmul.f32.gmra.mxu0 %v2172
    %v2410 = vpop.f32.mrf.mxu0
    %v2411 = vadd.f32 %v2244, %v2410
    %2412 = vdwg.mxu0
    %s2413 = scalar_lea.vmem [#allocation9], 512
    %v2414 = vld [vmem:[%s2413] sm:$0xff]
    %v2415 = vld [vmem:[%s2413 + $0x8] sm:$0xff]
    %v2416 = vld [vmem:[%s2413 + $0x10] sm:$0xff]
    %v2417 = vld [vmem:[%s2413 + $0x18] sm:$0xff]
    %v2418 = vld [vmem:[%s2413 + $0x20] sm:$0xff]
    %v2419 = vld [vmem:[%s2413 + $0x28] sm:$0xff]
    %v2420 = vld [vmem:[%s2413 + $0x30] sm:$0xff]
    %v2421 = vld [vmem:[%s2413 + $0x38] sm:$0xff]
    %v2422 = vld [vmem:[%s2413 + $0x40] sm:$0xff]
    %v2423 = vld [vmem:[%s2413 + $0x48] sm:$0xff]
    %v2424 = vld [vmem:[%s2413 + $0x50] sm:$0xff]
    %v2425 = vld [vmem:[%s2413 + $0x58] sm:$0xff]
    %v2426 = vld [vmem:[%s2413 + $0x60] sm:$0xff]
    %v2427 = vld [vmem:[%s2413 + $0x68] sm:$0xff]
    %v2428 = vld [vmem:[%s2413 + $0x70] sm:$0xff]
    %v2429 = vld [vmem:[%s2413 + $0x78] sm:$0xff]
    %v2430 = vld [vmem:[%s2413 + $0x80] sm:$0xff]
    %v2431 = vld [vmem:[%s2413 + $0x88] sm:$0xff]
    %v2432 = vld [vmem:[%s2413 + $0x90] sm:$0xff]
    %v2433 = vld [vmem:[%s2413 + $0x98] sm:$0xff]
    %v2434 = vld [vmem:[%s2413 + $0xa0] sm:$0xff]
    %v2435 = vld [vmem:[%s2413 + $0xa8] sm:$0xff]
    %v2436 = vld [vmem:[%s2413 + $0xb0] sm:$0xff]
    %v2437 = vld [vmem:[%s2413 + $0xb8] sm:$0xff]
    %v2438 = vld [vmem:[%s2413 + $0xc0] sm:$0xff]
    %v2439 = vld [vmem:[%s2413 + $0xc8] sm:$0xff]
    %v2440 = vld [vmem:[%s2413 + $0xd0] sm:$0xff]
    %v2441 = vld [vmem:[%s2413 + $0xd8] sm:$0xff]
    %v2442 = vld [vmem:[%s2413 + $0xe0] sm:$0xff]
    %v2443 = vld [vmem:[%s2413 + $0xe8] sm:$0xff]
    %v2444 = vld [vmem:[%s2413 + $0xf0] sm:$0xff]
    %v2445 = vld [vmem:[%s2413 + $0xf8] sm:$0xff]
    %v2446 = vld [vmem:[%s2413 + $0x100] sm:$0xff]
    %v2447 = vld [vmem:[%s2413 + $0x108] sm:$0xff]
    %v2448 = vld [vmem:[%s2413 + $0x110] sm:$0xff]
    %v2449 = vld [vmem:[%s2413 + $0x118] sm:$0xff]
    %v2450 = vld [vmem:[%s2413 + $0x120] sm:$0xff]
    %v2451 = vld [vmem:[%s2413 + $0x128] sm:$0xff]
    %v2452 = vld [vmem:[%s2413 + $0x130] sm:$0xff]
    %v2453 = vld [vmem:[%s2413 + $0x138] sm:$0xff]
    %v2454 = vld [vmem:[%s2413 + $0x140] sm:$0xff]
    %v2455 = vld [vmem:[%s2413 + $0x148] sm:$0xff]
    %v2456 = vld [vmem:[%s2413 + $0x150] sm:$0xff]
    %v2457 = vld [vmem:[%s2413 + $0x158] sm:$0xff]
    %v2458 = vld [vmem:[%s2413 + $0x160] sm:$0xff]
    %v2459 = vld [vmem:[%s2413 + $0x168] sm:$0xff]
    %v2460 = vld [vmem:[%s2413 + $0x170] sm:$0xff]
    %v2461 = vld [vmem:[%s2413 + $0x178] sm:$0xff]
    %v2462 = vld [vmem:[%s2413 + $0x180] sm:$0xff]
    %v2463 = vld [vmem:[%s2413 + $0x188] sm:$0xff]
    %v2464 = vld [vmem:[%s2413 + $0x190] sm:$0xff]
    %v2465 = vld [vmem:[%s2413 + $0x198] sm:$0xff]
    %v2466 = vld [vmem:[%s2413 + $0x1a0] sm:$0xff]
    %v2467 = vld [vmem:[%s2413 + $0x1a8] sm:$0xff]
    %v2468 = vld [vmem:[%s2413 + $0x1b0] sm:$0xff]
    %v2469 = vld [vmem:[%s2413 + $0x1b8] sm:$0xff]
    %v2470 = vld [vmem:[%s2413 + $0x1c0] sm:$0xff]
    %v2471 = vld [vmem:[%s2413 + $0x1c8] sm:$0xff]
    %v2472 = vld [vmem:[%s2413 + $0x1d0] sm:$0xff]
    %v2473 = vld [vmem:[%s2413 + $0x1d8] sm:$0xff]
    %v2474 = vld [vmem:[%s2413 + $0x1e0] sm:$0xff]
    %v2475 = vld [vmem:[%s2413 + $0x1e8] sm:$0xff]
    %v2476 = vld [vmem:[%s2413 + $0x1f0] sm:$0xff]
    %v2477 = vld [vmem:[%s2413 + $0x1f8] sm:$0xff]
    %2478 = vmatpush.msra.mxu0 %v2474
    %2479 = vmatpush.msra.mxu0 %v2470
    %2480 = vmatpush.msra.mxu0 %v2466
    %2481 = vmatpush.msra.mxu0 %v2462
    %2482 = vmatpush.msra.mxu0 %v2458
    %2483 = vmatpush.msra.mxu0 %v2454
    %2484 = vmatpush.msra.mxu0 %v2450
    %2485 = vmatpush.msra.mxu0 %v2446
    %2486 = vmatpush.msra.mxu0 %v2442
    %2487 = vmatpush.msra.mxu0 %v2438
    %2488 = vmatpush.msra.mxu0 %v2434
    %2489 = vmatpush.msra.mxu0 %v2430
    %2490 = vmatpush.msra.mxu0 %v2426
    %2491 = vmatpush.msra.mxu0 %v2422
    %2492 = vmatpush.msra.mxu0 %v2418
    %2493 = vmatpush.msra.mxu0 %v2414
    %2494 = vmatmul.f32.gmra.mxu0 0.0
    %v2495 = vpop.f32.mrf.mxu0
    %v2496 = vadd.f32 0.0, %v2495
    %2497 = vdwg.mxu0
    %2498 = vmatpush.msra.mxu0 %v2475
    %2499 = vmatpush.msra.mxu0 %v2471
    %2500 = vmatpush.msra.mxu0 %v2467
    %2501 = vmatpush.msra.mxu0 %v2463
    %2502 = vmatpush.msra.mxu0 %v2459
    %2503 = vmatpush.msra.mxu0 %v2455
    %2504 = vmatpush.msra.mxu0 %v2451
    %2505 = vmatpush.msra.mxu0 %v2447
    %2506 = vmatpush.msra.mxu0 %v2443
    %2507 = vmatpush.msra.mxu0 %v2439
    %2508 = vmatpush.msra.mxu0 %v2435
    %2509 = vmatpush.msra.mxu0 %v2431
    %2510 = vmatpush.msra.mxu0 %v2427
    %2511 = vmatpush.msra.mxu0 %v2423
    %2512 = vmatpush.msra.mxu0 %v2419
    %2513 = vmatpush.msra.mxu0 %v2415
    %2514 = vmatmul.f32.gmra.mxu0 0.0
    %v2515 = vpop.f32.mrf.mxu0
    %v2516 = vadd.f32 0.0, %v2515
    %2517 = vdwg.mxu0
    %2518 = vmatpush.msra.mxu0 %v2476
    %2519 = vmatpush.msra.mxu0 %v2472
    %2520 = vmatpush.msra.mxu0 %v2468
    %2521 = vmatpush.msra.mxu0 %v2464
    %2522 = vmatpush.msra.mxu0 %v2460
    %2523 = vmatpush.msra.mxu0 %v2456
    %2524 = vmatpush.msra.mxu0 %v2452
    %2525 = vmatpush.msra.mxu0 %v2448
    %2526 = vmatpush.msra.mxu0 %v2444
    %2527 = vmatpush.msra.mxu0 %v2440
    %2528 = vmatpush.msra.mxu0 %v2436
    %2529 = vmatpush.msra.mxu0 %v2432
    %2530 = vmatpush.msra.mxu0 %v2428
    %2531 = vmatpush.msra.mxu0 %v2424
    %2532 = vmatpush.msra.mxu0 %v2420
    %2533 = vmatpush.msra.mxu0 %v2416
    %2534 = vmatmul.f32.gmra.mxu0 0.0
    %v2535 = vpop.f32.mrf.mxu0
    %v2536 = vadd.f32 0.0, %v2535
    %2537 = vdwg.mxu0
    %2538 = vmatpush.msra.mxu0 %v2477
    %2539 = vmatpush.msra.mxu0 %v2473
    %2540 = vmatpush.msra.mxu0 %v2469
    %2541 = vmatpush.msra.mxu0 %v2465
    %2542 = vmatpush.msra.mxu0 %v2461
    %2543 = vmatpush.msra.mxu0 %v2457
    %2544 = vmatpush.msra.mxu0 %v2453
    %2545 = vmatpush.msra.mxu0 %v2449
    %2546 = vmatpush.msra.mxu0 %v2445
    %2547 = vmatpush.msra.mxu0 %v2441
    %2548 = vmatpush.msra.mxu0 %v2437
    %2549 = vmatpush.msra.mxu0 %v2433
    %2550 = vmatpush.msra.mxu0 %v2429
    %2551 = vmatpush.msra.mxu0 %v2425
    %2552 = vmatpush.msra.mxu0 %v2421
    %2553 = vmatpush.msra.mxu0 %v2417
    %2554 = vmatmul.f32.gmra.mxu0 0.0
    %v2555 = vpop.f32.mrf.mxu0
    %v2556 = vadd.f32 0.0, %v2555
    %2557 = vdwg.mxu0
    %v2558 = vadd.f32 %v2267, %v2496
    %v2559 = vadd.f32 %v2308, %v2516
    %v2560 = vadd.f32 %v2349, %v2536
    %v2561 = vadd.f32 %v2390, %v2556
    %v2562 = vxor.u32 %v2558, 2147483648
    %v2563 = vmul.f32 %v2562, 1.442695
    %v2564 = vpow.pop %v2563
    %v2565 = vadd.f32 %v2564, 1.0
    %v2566 = vrcp.pop %v2565
    %v2567 = vmul.f32 %v2565, %v2566
    %v2568 = vsub.f32 1.0, %v2567
    %v2569 = vmul.f32 %v2566, %v2568
    %v2570 = vadd.f32 %v2566, %v2569
    %vm2571 = vweird.f32 %v2565
    %vm2572 = vweird.f32 %v2566
    %vm2573 = vmor %vm2571, %vm2572
    %v2574 = vsel %vm2573, %v2566, %v2570
    %v2575 = vand.u32 2147483647, %v2565
    %vm2576 = vcmp.eq.f32.partialorder %v2575, 8.507059e+37
    %v2577 = vand.u32 %v2565, 2147483648
    %v2578 = vor.u32 1.1754944e-38, %v2577
    %v2579 = vsel %vm2576, %v2578, %v2574
    %v2580 = vmul.f32 1.0, %v2579
    %v2581 = vxor.u32 %v2559, 2147483648
    %v2582 = vmul.f32 %v2581, 1.442695
    %v2583 = vpow.pop %v2582
    %v2584 = vadd.f32 %v2583, 1.0
    %v2585 = vrcp.pop %v2584
    %v2586 = vmul.f32 %v2584, %v2585
    %v2587 = vsub.f32 1.0, %v2586
    %v2588 = vmul.f32 %v2585, %v2587
    %v2589 = vadd.f32 %v2585, %v2588
    %vm2590 = vweird.f32 %v2584
    %vm2591 = vweird.f32 %v2585
    %vm2592 = vmor %vm2590, %vm2591
    %v2593 = vsel %vm2592, %v2585, %v2589
    %v2594 = vand.u32 2147483647, %v2584
    %vm2595 = vcmp.eq.f32.partialorder %v2594, 8.507059e+37
    %v2596 = vand.u32 %v2584, 2147483648
    %v2597 = vor.u32 1.1754944e-38, %v2596
    %v2598 = vsel %vm2595, %v2597, %v2593
    %v2599 = vmul.f32 1.0, %v2598
    %v2600 = vtanh.pop %v2560
    %v2601 = vxor.u32 %v2561, 2147483648
    %v2602 = vmul.f32 %v2601, 1.442695
    %v2603 = vpow.pop %v2602
    %v2604 = vadd.f32 %v2603, 1.0
    %v2605 = vrcp.pop %v2604
    %v2606 = vmul.f32 %v2604, %v2605
    %v2607 = vsub.f32 1.0, %v2606
    %v2608 = vmul.f32 %v2605, %v2607
    %v2609 = vadd.f32 %v2605, %v2608
    %vm2610 = vweird.f32 %v2604
    %vm2611 = vweird.f32 %v2605
    %vm2612 = vmor %vm2610, %vm2611
    %v2613 = vsel %vm2612, %v2605, %v2609
    %v2614 = vand.u32 2147483647, %v2604
    %vm2615 = vcmp.eq.f32.partialorder %v2614, 8.507059e+37
    %v2616 = vand.u32 %v2604, 2147483648
    %v2617 = vor.u32 1.1754944e-38, %v2616
    %v2618 = vsel %vm2615, %v2617, %v2613
    %v2619 = vmul.f32 1.0, %v2618
    %v2620 = vmul.f32 %v2599, 0.0
    %v2621 = vmul.f32 %v2580, %v2600
    %v2622 = vadd.f32 %v2620, %v2621
    %v2623 = vtanh.pop %v2622
    %v2624 = vmul.f32 %v2619, %v2623
    %2625 = vst [vmem:[#allocation2] sm:$0xff] %v2624
    %v2626 = vld [vmem:[%s2413] sm:$0xff]
    %v2627 = vld [vmem:[%s2413 + $0x8] sm:$0xff]
    %v2628 = vld [vmem:[%s2413 + $0x10] sm:$0xff]
    %v2629 = vld [vmem:[%s2413 + $0x18] sm:$0xff]
    %v2630 = vld [vmem:[%s2413 + $0x20] sm:$0xff]
    %v2631 = vld [vmem:[%s2413 + $0x28] sm:$0xff]
    %v2632 = vld [vmem:[%s2413 + $0x30] sm:$0xff]
    %v2633 = vld [vmem:[%s2413 + $0x38] sm:$0xff]
    %v2634 = vld [vmem:[%s2413 + $0x40] sm:$0xff]
    %v2635 = vld [vmem:[%s2413 + $0x48] sm:$0xff]
    %v2636 = vld [vmem:[%s2413 + $0x50] sm:$0xff]
    %v2637 = vld [vmem:[%s2413 + $0x58] sm:$0xff]
    %v2638 = vld [vmem:[%s2413 + $0x60] sm:$0xff]
    %v2639 = vld [vmem:[%s2413 + $0x68] sm:$0xff]
    %v2640 = vld [vmem:[%s2413 + $0x70] sm:$0xff]
    %v2641 = vld [vmem:[%s2413 + $0x78] sm:$0xff]
    %v2642 = vld [vmem:[%s2413 + $0x80] sm:$0xff]
    %v2643 = vld [vmem:[%s2413 + $0x88] sm:$0xff]
    %v2644 = vld [vmem:[%s2413 + $0x90] sm:$0xff]
    %v2645 = vld [vmem:[%s2413 + $0x98] sm:$0xff]
    %v2646 = vld [vmem:[%s2413 + $0xa0] sm:$0xff]
    %v2647 = vld [vmem:[%s2413 + $0xa8] sm:$0xff]
    %v2648 = vld [vmem:[%s2413 + $0xb0] sm:$0xff]
    %v2649 = vld [vmem:[%s2413 + $0xb8] sm:$0xff]
    %v2650 = vld [vmem:[%s2413 + $0xc0] sm:$0xff]
    %v2651 = vld [vmem:[%s2413 + $0xc8] sm:$0xff]
    %v2652 = vld [vmem:[%s2413 + $0xd0] sm:$0xff]
    %v2653 = vld [vmem:[%s2413 + $0xd8] sm:$0xff]
    %v2654 = vld [vmem:[%s2413 + $0xe0] sm:$0xff]
    %v2655 = vld [vmem:[%s2413 + $0xe8] sm:$0xff]
    %v2656 = vld [vmem:[%s2413 + $0xf0] sm:$0xff]
    %v2657 = vld [vmem:[%s2413 + $0xf8] sm:$0xff]
    %v2658 = vld [vmem:[%s2413 + $0x100] sm:$0xff]
    %v2659 = vld [vmem:[%s2413 + $0x108] sm:$0xff]
    %v2660 = vld [vmem:[%s2413 + $0x110] sm:$0xff]
    %v2661 = vld [vmem:[%s2413 + $0x118] sm:$0xff]
    %v2662 = vld [vmem:[%s2413 + $0x120] sm:$0xff]
    %v2663 = vld [vmem:[%s2413 + $0x128] sm:$0xff]
    %v2664 = vld [vmem:[%s2413 + $0x130] sm:$0xff]
    %v2665 = vld [vmem:[%s2413 + $0x138] sm:$0xff]
    %v2666 = vld [vmem:[%s2413 + $0x140] sm:$0xff]
    %v2667 = vld [vmem:[%s2413 + $0x148] sm:$0xff]
    %v2668 = vld [vmem:[%s2413 + $0x150] sm:$0xff]
    %v2669 = vld [vmem:[%s2413 + $0x158] sm:$0xff]
    %v2670 = vld [vmem:[%s2413 + $0x160] sm:$0xff]
    %v2671 = vld [vmem:[%s2413 + $0x168] sm:$0xff]
    %v2672 = vld [vmem:[%s2413 + $0x170] sm:$0xff]
    %v2673 = vld [vmem:[%s2413 + $0x178] sm:$0xff]
    %v2674 = vld [vmem:[%s2413 + $0x180] sm:$0xff]
    %v2675 = vld [vmem:[%s2413 + $0x188] sm:$0xff]
    %v2676 = vld [vmem:[%s2413 + $0x190] sm:$0xff]
    %v2677 = vld [vmem:[%s2413 + $0x198] sm:$0xff]
    %v2678 = vld [vmem:[%s2413 + $0x1a0] sm:$0xff]
    %v2679 = vld [vmem:[%s2413 + $0x1a8] sm:$0xff]
    %v2680 = vld [vmem:[%s2413 + $0x1b0] sm:$0xff]
    %v2681 = vld [vmem:[%s2413 + $0x1b8] sm:$0xff]
    %v2682 = vld [vmem:[%s2413 + $0x1c0] sm:$0xff]
    %v2683 = vld [vmem:[%s2413 + $0x1c8] sm:$0xff]
    %v2684 = vld [vmem:[%s2413 + $0x1d0] sm:$0xff]
    %v2685 = vld [vmem:[%s2413 + $0x1d8] sm:$0xff]
    %v2686 = vld [vmem:[%s2413 + $0x1e0] sm:$0xff]
    %v2687 = vld [vmem:[%s2413 + $0x1e8] sm:$0xff]
    %v2688 = vld [vmem:[%s2413 + $0x1f0] sm:$0xff]
    %v2689 = vld [vmem:[%s2413 + $0x1f8] sm:$0xff]
    %2690 = vmatpush.msra.mxu0 %v2686
    %2691 = vmatpush.msra.mxu0 %v2682
    %2692 = vmatpush.msra.mxu0 %v2678
    %2693 = vmatpush.msra.mxu0 %v2674
    %2694 = vmatpush.msra.mxu0 %v2670
    %2695 = vmatpush.msra.mxu0 %v2666
    %2696 = vmatpush.msra.mxu0 %v2662
    %2697 = vmatpush.msra.mxu0 %v2658
    %2698 = vmatpush.msra.mxu0 %v2654
    %2699 = vmatpush.msra.mxu0 %v2650
    %2700 = vmatpush.msra.mxu0 %v2646
    %2701 = vmatpush.msra.mxu0 %v2642
    %2702 = vmatpush.msra.mxu0 %v2638
    %2703 = vmatpush.msra.mxu0 %v2634
    %2704 = vmatpush.msra.mxu0 %v2630
    %2705 = vmatpush.msra.mxu0 %v2626
    %2706 = vmatmul.f32.gmra.mxu0 %v2624
    %v2707 = vpop.f32.mrf.mxu0
    %v2708 = vadd.f32 0.0, %v2707
    %2709 = vdwg.mxu0
    %2710 = vmatpush.msra.mxu0 %v2687
    %2711 = vmatpush.msra.mxu0 %v2683
    %2712 = vmatpush.msra.mxu0 %v2679
    %2713 = vmatpush.msra.mxu0 %v2675
    %2714 = vmatpush.msra.mxu0 %v2671
    %2715 = vmatpush.msra.mxu0 %v2667
    %2716 = vmatpush.msra.mxu0 %v2663
    %2717 = vmatpush.msra.mxu0 %v2659
    %2718 = vmatpush.msra.mxu0 %v2655
    %2719 = vmatpush.msra.mxu0 %v2651
    %2720 = vmatpush.msra.mxu0 %v2647
    %2721 = vmatpush.msra.mxu0 %v2643
    %2722 = vmatpush.msra.mxu0 %v2639
    %2723 = vmatpush.msra.mxu0 %v2635
    %2724 = vmatpush.msra.mxu0 %v2631
    %2725 = vmatpush.msra.mxu0 %v2627
    %2726 = vmatmul.f32.gmra.mxu0 %v2624
    %v2727 = vpop.f32.mrf.mxu0
    %v2728 = vadd.f32 0.0, %v2727
    %2729 = vdwg.mxu0
    %2730 = vmatpush.msra.mxu0 %v2688
    %2731 = vmatpush.msra.mxu0 %v2684
    %2732 = vmatpush.msra.mxu0 %v2680
    %2733 = vmatpush.msra.mxu0 %v2676
    %2734 = vmatpush.msra.mxu0 %v2672
    %2735 = vmatpush.msra.mxu0 %v2668
    %2736 = vmatpush.msra.mxu0 %v2664
    %2737 = vmatpush.msra.mxu0 %v2660
    %2738 = vmatpush.msra.mxu0 %v2656
    %2739 = vmatpush.msra.mxu0 %v2652
    %2740 = vmatpush.msra.mxu0 %v2648
    %2741 = vmatpush.msra.mxu0 %v2644
    %2742 = vmatpush.msra.mxu0 %v2640
    %2743 = vmatpush.msra.mxu0 %v2636
    %2744 = vmatpush.msra.mxu0 %v2632
    %2745 = vmatpush.msra.mxu0 %v2628
    %2746 = vmatmul.f32.gmra.mxu0 %v2624
    %v2747 = vpop.f32.mrf.mxu0
    %v2748 = vadd.f32 0.0, %v2747
    %2749 = vdwg.mxu0
    %2750 = vmatpush.msra.mxu0 %v2689
    %2751 = vmatpush.msra.mxu0 %v2685
    %2752 = vmatpush.msra.mxu0 %v2681
    %2753 = vmatpush.msra.mxu0 %v2677
    %2754 = vmatpush.msra.mxu0 %v2673
    %2755 = vmatpush.msra.mxu0 %v2669
    %2756 = vmatpush.msra.mxu0 %v2665
    %2757 = vmatpush.msra.mxu0 %v2661
    %2758 = vmatpush.msra.mxu0 %v2657
    %2759 = vmatpush.msra.mxu0 %v2653
    %2760 = vmatpush.msra.mxu0 %v2649
    %2761 = vmatpush.msra.mxu0 %v2645
    %2762 = vmatpush.msra.mxu0 %v2641
    %2763 = vmatpush.msra.mxu0 %v2637
    %2764 = vmatpush.msra.mxu0 %v2633
    %2765 = vmatpush.msra.mxu0 %v2629
    %2766 = vmatmul.f32.gmra.mxu0 %v2624
    %v2767 = vpop.f32.mrf.mxu0
    %v2768 = vadd.f32 0.0, %v2767
    %2769 = vdwg.mxu0
    %v2770 = vadd.f32 %v2270, %v2708
    %v2771 = vadd.f32 %v2311, %v2728
    %v2772 = vadd.f32 %v2352, %v2748
    %v2773 = vadd.f32 %v2393, %v2768
    %v2774 = vxor.u32 %v2770, 2147483648
    %v2775 = vmul.f32 %v2774, 1.442695
    %v2776 = vpow.pop %v2775
    %v2777 = vadd.f32 %v2776, 1.0
    %v2778 = vrcp.pop %v2777
    %v2779 = vmul.f32 %v2777, %v2778
    %v2780 = vsub.f32 1.0, %v2779
    %v2781 = vmul.f32 %v2778, %v2780
    %v2782 = vadd.f32 %v2778, %v2781
    %vm2783 = vweird.f32 %v2777
    %vm2784 = vweird.f32 %v2778
    %vm2785 = vmor %vm2783, %vm2784
    %v2786 = vsel %vm2785, %v2778, %v2782
    %v2787 = vand.u32 2147483647, %v2777
    %vm2788 = vcmp.eq.f32.partialorder %v2787, 8.507059e+37
    %v2789 = vand.u32 %v2777, 2147483648
    %v2790 = vor.u32 1.1754944e-38, %v2789
    %v2791 = vsel %vm2788, %v2790, %v2786
    %v2792 = vmul.f32 1.0, %v2791
    %v2793 = vxor.u32 %v2771, 2147483648
    %v2794 = vmul.f32 %v2793, 1.442695
    %v2795 = vpow.pop %v2794
    %v2796 = vadd.f32 %v2795, 1.0
    %v2797 = vrcp.pop %v2796
    %v2798 = vmul.f32 %v2796, %v2797
    %v2799 = vsub.f32 1.0, %v2798
    %v2800 = vmul.f32 %v2797, %v2799
    %v2801 = vadd.f32 %v2797, %v2800
    %vm2802 = vweird.f32 %v2796
    %vm2803 = vweird.f32 %v2797
    %vm2804 = vmor %vm2802, %vm2803
    %v2805 = vsel %vm2804, %v2797, %v2801
    %v2806 = vand.u32 2147483647, %v2796
    %vm2807 = vcmp.eq.f32.partialorder %v2806, 8.507059e+37
    %v2808 = vand.u32 %v2796, 2147483648
    %v2809 = vor.u32 1.1754944e-38, %v2808
    %v2810 = vsel %vm2807, %v2809, %v2805
    %v2811 = vmul.f32 1.0, %v2810
    %v2812 = vtanh.pop %v2772
    %v2813 = vxor.u32 %v2773, 2147483648
    %v2814 = vmul.f32 %v2813, 1.442695
    %v2815 = vpow.pop %v2814
    %v2816 = vadd.f32 %v2815, 1.0
    %v2817 = vrcp.pop %v2816
    %v2818 = vmul.f32 %v2816, %v2817
    %v2819 = vsub.f32 1.0, %v2818
    %v2820 = vmul.f32 %v2817, %v2819
    %v2821 = vadd.f32 %v2817, %v2820
    %vm2822 = vweird.f32 %v2816
    %vm2823 = vweird.f32 %v2817
    %vm2824 = vmor %vm2822, %vm2823
    %v2825 = vsel %vm2824, %v2817, %v2821
    %v2826 = vand.u32 2147483647, %v2816
    %vm2827 = vcmp.eq.f32.partialorder %v2826, 8.507059e+37
    %v2828 = vand.u32 %v2816, 2147483648
    %v2829 = vor.u32 1.1754944e-38, %v2828
    %v2830 = vsel %vm2827, %v2829, %v2825
    %v2831 = vmul.f32 1.0, %v2830
    %v2832 = vmul.f32 %v2811, %v2622
    %v2833 = vmul.f32 %v2792, %v2812
    %v2834 = vadd.f32 %v2832, %v2833
    %v2835 = vtanh.pop %v2834
    %v2836 = vmul.f32 %v2831, %v2835
    %2837 = vst [vmem:[#allocation2 + $0x8] sm:$0xff] %v2836
    %v2838 = vld [vmem:[%s2413] sm:$0xff]
    %v2839 = vld [vmem:[%s2413 + $0x8] sm:$0xff]
    %v2840 = vld [vmem:[%s2413 + $0x10] sm:$0xff]
    %v2841 = vld [vmem:[%s2413 + $0x18] sm:$0xff]
    %v2842 = vld [vmem:[%s2413 + $0x20] sm:$0xff]
    %v2843 = vld [vmem:[%s2413 + $0x28] sm:$0xff]
    %v2844 = vld [vmem:[%s2413 + $0x30] sm:$0xff]
    %v2845 = vld [vmem:[%s2413 + $0x38] sm:$0xff]
    %v2846 = vld [vmem:[%s2413 + $0x40] sm:$0xff]
    %v2847 = vld [vmem:[%s2413 + $0x48] sm:$0xff]
    %v2848 = vld [vmem:[%s2413 + $0x50] sm:$0xff]
    %v2849 = vld [vmem:[%s2413 + $0x58] sm:$0xff]
    %v2850 = vld [vmem:[%s2413 + $0x60] sm:$0xff]
    %v2851 = vld [vmem:[%s2413 + $0x68] sm:$0xff]
    %v2852 = vld [vmem:[%s2413 + $0x70] sm:$0xff]
    %v2853 = vld [vmem:[%s2413 + $0x78] sm:$0xff]
    %v2854 = vld [vmem:[%s2413 + $0x80] sm:$0xff]
    %v2855 = vld [vmem:[%s2413 + $0x88] sm:$0xff]
    %v2856 = vld [vmem:[%s2413 + $0x90] sm:$0xff]
    %v2857 = vld [vmem:[%s2413 + $0x98] sm:$0xff]
    %v2858 = vld [vmem:[%s2413 + $0xa0] sm:$0xff]
    %v2859 = vld [vmem:[%s2413 + $0xa8] sm:$0xff]
    %v2860 = vld [vmem:[%s2413 + $0xb0] sm:$0xff]
    %v2861 = vld [vmem:[%s2413 + $0xb8] sm:$0xff]
    %v2862 = vld [vmem:[%s2413 + $0xc0] sm:$0xff]
    %v2863 = vld [vmem:[%s2413 + $0xc8] sm:$0xff]
    %v2864 = vld [vmem:[%s2413 + $0xd0] sm:$0xff]
    %v2865 = vld [vmem:[%s2413 + $0xd8] sm:$0xff]
    %v2866 = vld [vmem:[%s2413 + $0xe0] sm:$0xff]
    %v2867 = vld [vmem:[%s2413 + $0xe8] sm:$0xff]
    %v2868 = vld [vmem:[%s2413 + $0xf0] sm:$0xff]
    %v2869 = vld [vmem:[%s2413 + $0xf8] sm:$0xff]
    %v2870 = vld [vmem:[%s2413 + $0x100] sm:$0xff]
    %v2871 = vld [vmem:[%s2413 + $0x108] sm:$0xff]
    %v2872 = vld [vmem:[%s2413 + $0x110] sm:$0xff]
    %v2873 = vld [vmem:[%s2413 + $0x118] sm:$0xff]
    %v2874 = vld [vmem:[%s2413 + $0x120] sm:$0xff]
    %v2875 = vld [vmem:[%s2413 + $0x128] sm:$0xff]
    %v2876 = vld [vmem:[%s2413 + $0x130] sm:$0xff]
    %v2877 = vld [vmem:[%s2413 + $0x138] sm:$0xff]
    %v2878 = vld [vmem:[%s2413 + $0x140] sm:$0xff]
    %v2879 = vld [vmem:[%s2413 + $0x148] sm:$0xff]
    %v2880 = vld [vmem:[%s2413 + $0x150] sm:$0xff]
    %v2881 = vld [vmem:[%s2413 + $0x158] sm:$0xff]
    %v2882 = vld [vmem:[%s2413 + $0x160] sm:$0xff]
    %v2883 = vld [vmem:[%s2413 + $0x168] sm:$0xff]
    %v2884 = vld [vmem:[%s2413 + $0x170] sm:$0xff]
    %v2885 = vld [vmem:[%s2413 + $0x178] sm:$0xff]
    %v2886 = vld [vmem:[%s2413 + $0x180] sm:$0xff]
    %v2887 = vld [vmem:[%s2413 + $0x188] sm:$0xff]
    %v2888 = vld [vmem:[%s2413 + $0x190] sm:$0xff]
    %v2889 = vld [vmem:[%s2413 + $0x198] sm:$0xff]
    %v2890 = vld [vmem:[%s2413 + $0x1a0] sm:$0xff]
    %v2891 = vld [vmem:[%s2413 + $0x1a8] sm:$0xff]
    %v2892 = vld [vmem:[%s2413 + $0x1b0] sm:$0xff]
    %v2893 = vld [vmem:[%s2413 + $0x1b8] sm:$0xff]
    %v2894 = vld [vmem:[%s2413 + $0x1c0] sm:$0xff]
    %v2895 = vld [vmem:[%s2413 + $0x1c8] sm:$0xff]
    %v2896 = vld [vmem:[%s2413 + $0x1d0] sm:$0xff]
    %v2897 = vld [vmem:[%s2413 + $0x1d8] sm:$0xff]
    %v2898 = vld [vmem:[%s2413 + $0x1e0] sm:$0xff]
    %v2899 = vld [vmem:[%s2413 + $0x1e8] sm:$0xff]
    %v2900 = vld [vmem:[%s2413 + $0x1f0] sm:$0xff]
    %v2901 = vld [vmem:[%s2413 + $0x1f8] sm:$0xff]
    %2902 = vmatpush.msra.mxu0 %v2898
    %2903 = vmatpush.msra.mxu0 %v2894
    %2904 = vmatpush.msra.mxu0 %v2890
    %2905 = vmatpush.msra.mxu0 %v2886
    %2906 = vmatpush.msra.mxu0 %v2882
    %2907 = vmatpush.msra.mxu0 %v2878
    %2908 = vmatpush.msra.mxu0 %v2874
    %2909 = vmatpush.msra.mxu0 %v2870
    %2910 = vmatpush.msra.mxu0 %v2866
    %2911 = vmatpush.msra.mxu0 %v2862
    %2912 = vmatpush.msra.mxu0 %v2858
    %2913 = vmatpush.msra.mxu0 %v2854
    %2914 = vmatpush.msra.mxu0 %v2850
    %2915 = vmatpush.msra.mxu0 %v2846
    %2916 = vmatpush.msra.mxu0 %v2842
    %2917 = vmatpush.msra.mxu0 %v2838
    %2918 = vmatmul.f32.gmra.mxu0 %v2836
    %v2919 = vpop.f32.mrf.mxu0
    %v2920 = vadd.f32 0.0, %v2919
    %2921 = vdwg.mxu0
    %2922 = vmatpush.msra.mxu0 %v2899
    %2923 = vmatpush.msra.mxu0 %v2895
    %2924 = vmatpush.msra.mxu0 %v2891
    %2925 = vmatpush.msra.mxu0 %v2887
    %2926 = vmatpush.msra.mxu0 %v2883
    %2927 = vmatpush.msra.mxu0 %v2879
    %2928 = vmatpush.msra.mxu0 %v2875
    %2929 = vmatpush.msra.mxu0 %v2871
    %2930 = vmatpush.msra.mxu0 %v2867
    %2931 = vmatpush.msra.mxu0 %v2863
    %2932 = vmatpush.msra.mxu0 %v2859
    %2933 = vmatpush.msra.mxu0 %v2855
    %2934 = vmatpush.msra.mxu0 %v2851
    %2935 = vmatpush.msra.mxu0 %v2847
    %2936 = vmatpush.msra.mxu0 %v2843
    %2937 = vmatpush.msra.mxu0 %v2839
    %2938 = vmatmul.f32.gmra.mxu0 %v2836
    %v2939 = vpop.f32.mrf.mxu0
    %v2940 = vadd.f32 0.0, %v2939
    %2941 = vdwg.mxu0
    %2942 = vmatpush.msra.mxu0 %v2900
    %2943 = vmatpush.msra.mxu0 %v2896
    %2944 = vmatpush.msra.mxu0 %v2892
    %2945 = vmatpush.msra.mxu0 %v2888
    %2946 = vmatpush.msra.mxu0 %v2884
    %2947 = vmatpush.msra.mxu0 %v2880
    %2948 = vmatpush.msra.mxu0 %v2876
    %2949 = vmatpush.msra.mxu0 %v2872
    %2950 = vmatpush.msra.mxu0 %v2868
    %2951 = vmatpush.msra.mxu0 %v2864
    %2952 = vmatpush.msra.mxu0 %v2860
    %2953 = vmatpush.msra.mxu0 %v2856
    %2954 = vmatpush.msra.mxu0 %v2852
    %2955 = vmatpush.msra.mxu0 %v2848
    %2956 = vmatpush.msra.mxu0 %v2844
    %2957 = vmatpush.msra.mxu0 %v2840
    %2958 = vmatmul.f32.gmra.mxu0 %v2836
    %v2959 = vpop.f32.mrf.mxu0
    %v2960 = vadd.f32 0.0, %v2959
    %2961 = vdwg.mxu0
    %2962 = vmatpush.msra.mxu0 %v2901
    %2963 = vmatpush.msra.mxu0 %v2897
    %2964 = vmatpush.msra.mxu0 %v2893
    %2965 = vmatpush.msra.mxu0 %v2889
    %2966 = vmatpush.msra.mxu0 %v2885
    %2967 = vmatpush.msra.mxu0 %v2881
    %2968 = vmatpush.msra.mxu0 %v2877
    %2969 = vmatpush.msra.mxu0 %v2873
    %2970 = vmatpush.msra.mxu0 %v2869
    %2971 = vmatpush.msra.mxu0 %v2865
    %2972 = vmatpush.msra.mxu0 %v2861
    %2973 = vmatpush.msra.mxu0 %v2857
    %2974 = vmatpush.msra.mxu0 %v2853
    %2975 = vmatpush.msra.mxu0 %v2849
    %2976 = vmatpush.msra.mxu0 %v2845
    %2977 = vmatpush.msra.mxu0 %v2841
    %2978 = vmatmul.f32.gmra.mxu0 %v2836
    %v2979 = vpop.f32.mrf.mxu0
    %v2980 = vadd.f32 0.0, %v2979
    %2981 = vdwg.mxu0
    %v2982 = vadd.f32 %v2273, %v2920
    %v2983 = vadd.f32 %v2314, %v2940
    %v2984 = vadd.f32 %v2355, %v2960
    %v2985 = vadd.f32 %v2396, %v2980
    %v2986 = vxor.u32 %v2982, 2147483648
    %v2987 = vmul.f32 %v2986, 1.442695
    %v2988 = vpow.pop %v2987
    %v2989 = vadd.f32 %v2988, 1.0
    %v2990 = vrcp.pop %v2989
    %v2991 = vmul.f32 %v2989, %v2990
    %v2992 = vsub.f32 1.0, %v2991
    %v2993 = vmul.f32 %v2990, %v2992
    %v2994 = vadd.f32 %v2990, %v2993
    %vm2995 = vweird.f32 %v2989
    %vm2996 = vweird.f32 %v2990
    %vm2997 = vmor %vm2995, %vm2996
    %v2998 = vsel %vm2997, %v2990, %v2994
    %v2999 = vand.u32 2147483647, %v2989
    %vm3000 = vcmp.eq.f32.partialorder %v2999, 8.507059e+37
    %v3001 = vand.u32 %v2989, 2147483648
    %v3002 = vor.u32 1.1754944e-38, %v3001
    %v3003 = vsel %vm3000, %v3002, %v2998
    %v3004 = vmul.f32 1.0, %v3003
    %v3005 = vxor.u32 %v2983, 2147483648
    %v3006 = vmul.f32 %v3005, 1.442695
    %v3007 = vpow.pop %v3006
    %v3008 = vadd.f32 %v3007, 1.0
    %v3009 = vrcp.pop %v3008
    %v3010 = vmul.f32 %v3008, %v3009
    %v3011 = vsub.f32 1.0, %v3010
    %v3012 = vmul.f32 %v3009, %v3011
    %v3013 = vadd.f32 %v3009, %v3012
    %vm3014 = vweird.f32 %v3008
    %vm3015 = vweird.f32 %v3009
    %vm3016 = vmor %vm3014, %vm3015
    %v3017 = vsel %vm3016, %v3009, %v3013
    %v3018 = vand.u32 2147483647, %v3008
    %vm3019 = vcmp.eq.f32.partialorder %v3018, 8.507059e+37
    %v3020 = vand.u32 %v3008, 2147483648
    %v3021 = vor.u32 1.1754944e-38, %v3020
    %v3022 = vsel %vm3019, %v3021, %v3017
    %v3023 = vmul.f32 1.0, %v3022
    %v3024 = vtanh.pop %v2984
    %v3025 = vxor.u32 %v2985, 2147483648
    %v3026 = vmul.f32 %v3025, 1.442695
    %v3027 = vpow.pop %v3026
    %v3028 = vadd.f32 %v3027, 1.0
    %v3029 = vrcp.pop %v3028
    %v3030 = vmul.f32 %v3028, %v3029
    %v3031 = vsub.f32 1.0, %v3030
    %v3032 = vmul.f32 %v3029, %v3031
    %v3033 = vadd.f32 %v3029, %v3032
    %vm3034 = vweird.f32 %v3028
    %vm3035 = vweird.f32 %v3029
    %vm3036 = vmor %vm3034, %vm3035
    %v3037 = vsel %vm3036, %v3029, %v3033
    %v3038 = vand.u32 2147483647, %v3028
    %vm3039 = vcmp.eq.f32.partialorder %v3038, 8.507059e+37
    %v3040 = vand.u32 %v3028, 2147483648
    %v3041 = vor.u32 1.1754944e-38, %v3040
    %v3042 = vsel %vm3039, %v3041, %v3037
    %v3043 = vmul.f32 1.0, %v3042
    %v3044 = vmul.f32 %v3023, %v2834
    %v3045 = vmul.f32 %v3004, %v3024
    %v3046 = vadd.f32 %v3044, %v3045
    %v3047 = vtanh.pop %v3046
    %v3048 = vmul.f32 %v3043, %v3047
    %3049 = vst [vmem:[#allocation2 + $0x10] sm:$0xff] %v3048
    %v3050 = vld [vmem:[%s2413] sm:$0xff]
    %v3051 = vld [vmem:[%s2413 + $0x8] sm:$0xff]
    %v3052 = vld [vmem:[%s2413 + $0x10] sm:$0xff]
    %v3053 = vld [vmem:[%s2413 + $0x18] sm:$0xff]
    %v3054 = vld [vmem:[%s2413 + $0x20] sm:$0xff]
    %v3055 = vld [vmem:[%s2413 + $0x28] sm:$0xff]
    %v3056 = vld [vmem:[%s2413 + $0x30] sm:$0xff]
    %v3057 = vld [vmem:[%s2413 + $0x38] sm:$0xff]
    %v3058 = vld [vmem:[%s2413 + $0x40] sm:$0xff]
    %v3059 = vld [vmem:[%s2413 + $0x48] sm:$0xff]
    %v3060 = vld [vmem:[%s2413 + $0x50] sm:$0xff]
    %v3061 = vld [vmem:[%s2413 + $0x58] sm:$0xff]
    %v3062 = vld [vmem:[%s2413 + $0x60] sm:$0xff]
    %v3063 = vld [vmem:[%s2413 + $0x68] sm:$0xff]
    %v3064 = vld [vmem:[%s2413 + $0x70] sm:$0xff]
    %v3065 = vld [vmem:[%s2413 + $0x78] sm:$0xff]
    %v3066 = vld [vmem:[%s2413 + $0x80] sm:$0xff]
    %v3067 = vld [vmem:[%s2413 + $0x88] sm:$0xff]
    %v3068 = vld [vmem:[%s2413 + $0x90] sm:$0xff]
    %v3069 = vld [vmem:[%s2413 + $0x98] sm:$0xff]
    %v3070 = vld [vmem:[%s2413 + $0xa0] sm:$0xff]
    %v3071 = vld [vmem:[%s2413 + $0xa8] sm:$0xff]
    %v3072 = vld [vmem:[%s2413 + $0xb0] sm:$0xff]
    %v3073 = vld [vmem:[%s2413 + $0xb8] sm:$0xff]
    %v3074 = vld [vmem:[%s2413 + $0xc0] sm:$0xff]
    %v3075 = vld [vmem:[%s2413 + $0xc8] sm:$0xff]
    %v3076 = vld [vmem:[%s2413 + $0xd0] sm:$0xff]
    %v3077 = vld [vmem:[%s2413 + $0xd8] sm:$0xff]
    %v3078 = vld [vmem:[%s2413 + $0xe0] sm:$0xff]
    %v3079 = vld [vmem:[%s2413 + $0xe8] sm:$0xff]
    %v3080 = vld [vmem:[%s2413 + $0xf0] sm:$0xff]
    %v3081 = vld [vmem:[%s2413 + $0xf8] sm:$0xff]
    %v3082 = vld [vmem:[%s2413 + $0x100] sm:$0xff]
    %v3083 = vld [vmem:[%s2413 + $0x108] sm:$0xff]
    %v3084 = vld [vmem:[%s2413 + $0x110] sm:$0xff]
    %v3085 = vld [vmem:[%s2413 + $0x118] sm:$0xff]
    %v3086 = vld [vmem:[%s2413 + $0x120] sm:$0xff]
    %v3087 = vld [vmem:[%s2413 + $0x128] sm:$0xff]
    %v3088 = vld [vmem:[%s2413 + $0x130] sm:$0xff]
    %v3089 = vld [vmem:[%s2413 + $0x138] sm:$0xff]
    %v3090 = vld [vmem:[%s2413 + $0x140] sm:$0xff]
    %v3091 = vld [vmem:[%s2413 + $0x148] sm:$0xff]
    %v3092 = vld [vmem:[%s2413 + $0x150] sm:$0xff]
    %v3093 = vld [vmem:[%s2413 + $0x158] sm:$0xff]
    %v3094 = vld [vmem:[%s2413 + $0x160] sm:$0xff]
    %v3095 = vld [vmem:[%s2413 + $0x168] sm:$0xff]
    %v3096 = vld [vmem:[%s2413 + $0x170] sm:$0xff]
    %v3097 = vld [vmem:[%s2413 + $0x178] sm:$0xff]
    %v3098 = vld [vmem:[%s2413 + $0x180] sm:$0xff]
    %v3099 = vld [vmem:[%s2413 + $0x188] sm:$0xff]
    %v3100 = vld [vmem:[%s2413 + $0x190] sm:$0xff]
    %v3101 = vld [vmem:[%s2413 + $0x198] sm:$0xff]
    %v3102 = vld [vmem:[%s2413 + $0x1a0] sm:$0xff]
    %v3103 = vld [vmem:[%s2413 + $0x1a8] sm:$0xff]
    %v3104 = vld [vmem:[%s2413 + $0x1b0] sm:$0xff]
    %v3105 = vld [vmem:[%s2413 + $0x1b8] sm:$0xff]
    %v3106 = vld [vmem:[%s2413 + $0x1c0] sm:$0xff]
    %v3107 = vld [vmem:[%s2413 + $0x1c8] sm:$0xff]
    %v3108 = vld [vmem:[%s2413 + $0x1d0] sm:$0xff]
    %v3109 = vld [vmem:[%s2413 + $0x1d8] sm:$0xff]
    %v3110 = vld [vmem:[%s2413 + $0x1e0] sm:$0xff]
    %v3111 = vld [vmem:[%s2413 + $0x1e8] sm:$0xff]
    %v3112 = vld [vmem:[%s2413 + $0x1f0] sm:$0xff]
    %v3113 = vld [vmem:[%s2413 + $0x1f8] sm:$0xff]
    %3114 = vmatpush.msra.mxu0 %v3110
    %3115 = vmatpush.msra.mxu0 %v3106
    %3116 = vmatpush.msra.mxu0 %v3102
    %3117 = vmatpush.msra.mxu0 %v3098
    %3118 = vmatpush.msra.mxu0 %v3094
    %3119 = vmatpush.msra.mxu0 %v3090
    %3120 = vmatpush.msra.mxu0 %v3086
    %3121 = vmatpush.msra.mxu0 %v3082
    %3122 = vmatpush.msra.mxu0 %v3078
    %3123 = vmatpush.msra.mxu0 %v3074
    %3124 = vmatpush.msra.mxu0 %v3070
    %3125 = vmatpush.msra.mxu0 %v3066
    %3126 = vmatpush.msra.mxu0 %v3062
    %3127 = vmatpush.msra.mxu0 %v3058
    %3128 = vmatpush.msra.mxu0 %v3054
    %3129 = vmatpush.msra.mxu0 %v3050
    %3130 = vmatmul.f32.gmra.mxu0 %v3048
    %v3131 = vpop.f32.mrf.mxu0
    %v3132 = vadd.f32 0.0, %v3131
    %3133 = vdwg.mxu0
    %3134 = vmatpush.msra.mxu0 %v3111
    %3135 = vmatpush.msra.mxu0 %v3107
    %3136 = vmatpush.msra.mxu0 %v3103
    %3137 = vmatpush.msra.mxu0 %v3099
    %3138 = vmatpush.msra.mxu0 %v3095
    %3139 = vmatpush.msra.mxu0 %v3091
    %3140 = vmatpush.msra.mxu0 %v3087
    %3141 = vmatpush.msra.mxu0 %v3083
    %3142 = vmatpush.msra.mxu0 %v3079
    %3143 = vmatpush.msra.mxu0 %v3075
    %3144 = vmatpush.msra.mxu0 %v3071
    %3145 = vmatpush.msra.mxu0 %v3067
    %3146 = vmatpush.msra.mxu0 %v3063
    %3147 = vmatpush.msra.mxu0 %v3059
    %3148 = vmatpush.msra.mxu0 %v3055
    %3149 = vmatpush.msra.mxu0 %v3051
    %3150 = vmatmul.f32.gmra.mxu0 %v3048
    %v3151 = vpop.f32.mrf.mxu0
    %v3152 = vadd.f32 0.0, %v3151
    %3153 = vdwg.mxu0
    %3154 = vmatpush.msra.mxu0 %v3112
    %3155 = vmatpush.msra.mxu0 %v3108
    %3156 = vmatpush.msra.mxu0 %v3104
    %3157 = vmatpush.msra.mxu0 %v3100
    %3158 = vmatpush.msra.mxu0 %v3096
    %3159 = vmatpush.msra.mxu0 %v3092
    %3160 = vmatpush.msra.mxu0 %v3088
    %3161 = vmatpush.msra.mxu0 %v3084
    %3162 = vmatpush.msra.mxu0 %v3080
    %3163 = vmatpush.msra.mxu0 %v3076
    %3164 = vmatpush.msra.mxu0 %v3072
    %3165 = vmatpush.msra.mxu0 %v3068
    %3166 = vmatpush.msra.mxu0 %v3064
    %3167 = vmatpush.msra.mxu0 %v3060
    %3168 = vmatpush.msra.mxu0 %v3056
    %3169 = vmatpush.msra.mxu0 %v3052
    %3170 = vmatmul.f32.gmra.mxu0 %v3048
    %v3171 = vpop.f32.mrf.mxu0
    %v3172 = vadd.f32 0.0, %v3171
    %3173 = vdwg.mxu0
    %3174 = vmatpush.msra.mxu0 %v3113
    %3175 = vmatpush.msra.mxu0 %v3109
    %3176 = vmatpush.msra.mxu0 %v3105
    %3177 = vmatpush.msra.mxu0 %v3101
    %3178 = vmatpush.msra.mxu0 %v3097
    %3179 = vmatpush.msra.mxu0 %v3093
    %3180 = vmatpush.msra.mxu0 %v3089
    %3181 = vmatpush.msra.mxu0 %v3085
    %3182 = vmatpush.msra.mxu0 %v3081
    %3183 = vmatpush.msra.mxu0 %v3077
    %3184 = vmatpush.msra.mxu0 %v3073
    %3185 = vmatpush.msra.mxu0 %v3069
    %3186 = vmatpush.msra.mxu0 %v3065
    %3187 = vmatpush.msra.mxu0 %v3061
    %3188 = vmatpush.msra.mxu0 %v3057
    %3189 = vmatpush.msra.mxu0 %v3053
    %3190 = vmatmul.f32.gmra.mxu0 %v3048
    %v3191 = vpop.f32.mrf.mxu0
    %v3192 = vadd.f32 0.0, %v3191
    %3193 = vdwg.mxu0
    %v3194 = vadd.f32 %v2276, %v3132
    %v3195 = vadd.f32 %v2317, %v3152
    %v3196 = vadd.f32 %v2358, %v3172
    %v3197 = vadd.f32 %v2399, %v3192
    %v3198 = vxor.u32 %v3194, 2147483648
    %v3199 = vmul.f32 %v3198, 1.442695
    %v3200 = vpow.pop %v3199
    %v3201 = vadd.f32 %v3200, 1.0
    %v3202 = vrcp.pop %v3201
    %v3203 = vmul.f32 %v3201, %v3202
    %v3204 = vsub.f32 1.0, %v3203
    %v3205 = vmul.f32 %v3202, %v3204
    %v3206 = vadd.f32 %v3202, %v3205
    %vm3207 = vweird.f32 %v3201
    %vm3208 = vweird.f32 %v3202
    %vm3209 = vmor %vm3207, %vm3208
    %v3210 = vsel %vm3209, %v3202, %v3206
    %v3211 = vand.u32 2147483647, %v3201
    %vm3212 = vcmp.eq.f32.partialorder %v3211, 8.507059e+37
    %v3213 = vand.u32 %v3201, 2147483648
    %v3214 = vor.u32 1.1754944e-38, %v3213
    %v3215 = vsel %vm3212, %v3214, %v3210
    %v3216 = vmul.f32 1.0, %v3215
    %v3217 = vxor.u32 %v3195, 2147483648
    %v3218 = vmul.f32 %v3217, 1.442695
    %v3219 = vpow.pop %v3218
    %v3220 = vadd.f32 %v3219, 1.0
    %v3221 = vrcp.pop %v3220
    %v3222 = vmul.f32 %v3220, %v3221
    %v3223 = vsub.f32 1.0, %v3222
    %v3224 = vmul.f32 %v3221, %v3223
    %v3225 = vadd.f32 %v3221, %v3224
    %vm3226 = vweird.f32 %v3220
    %vm3227 = vweird.f32 %v3221
    %vm3228 = vmor %vm3226, %vm3227
    %v3229 = vsel %vm3228, %v3221, %v3225
    %v3230 = vand.u32 2147483647, %v3220
    %vm3231 = vcmp.eq.f32.partialorder %v3230, 8.507059e+37
    %v3232 = vand.u32 %v3220, 2147483648
    %v3233 = vor.u32 1.1754944e-38, %v3232
    %v3234 = vsel %vm3231, %v3233, %v3229
    %v3235 = vmul.f32 1.0, %v3234
    %v3236 = vtanh.pop %v3196
    %v3237 = vxor.u32 %v3197, 2147483648
    %v3238 = vmul.f32 %v3237, 1.442695
    %v3239 = vpow.pop %v3238
    %v3240 = vadd.f32 %v3239, 1.0
    %v3241 = vrcp.pop %v3240
    %v3242 = vmul.f32 %v3240, %v3241
    %v3243 = vsub.f32 1.0, %v3242
    %v3244 = vmul.f32 %v3241, %v3243
    %v3245 = vadd.f32 %v3241, %v3244
    %vm3246 = vweird.f32 %v3240
    %vm3247 = vweird.f32 %v3241
    %vm3248 = vmor %vm3246, %vm3247
    %v3249 = vsel %vm3248, %v3241, %v3245
    %v3250 = vand.u32 2147483647, %v3240
    %vm3251 = vcmp.eq.f32.partialorder %v3250, 8.507059e+37
    %v3252 = vand.u32 %v3240, 2147483648
    %v3253 = vor.u32 1.1754944e-38, %v3252
    %v3254 = vsel %vm3251, %v3253, %v3249
    %v3255 = vmul.f32 1.0, %v3254
    %v3256 = vmul.f32 %v3235, %v3046
    %v3257 = vmul.f32 %v3216, %v3236
    %v3258 = vadd.f32 %v3256, %v3257
    %v3259 = vtanh.pop %v3258
    %v3260 = vmul.f32 %v3255, %v3259
    %3261 = vst [vmem:[#allocation2 + $0x18] sm:$0xff] %v3260
    %v3262 = vld [vmem:[%s2413] sm:$0xff]
    %v3263 = vld [vmem:[%s2413 + $0x8] sm:$0xff]
    %v3264 = vld [vmem:[%s2413 + $0x10] sm:$0xff]
    %v3265 = vld [vmem:[%s2413 + $0x18] sm:$0xff]
    %v3266 = vld [vmem:[%s2413 + $0x20] sm:$0xff]
    %v3267 = vld [vmem:[%s2413 + $0x28] sm:$0xff]
    %v3268 = vld [vmem:[%s2413 + $0x30] sm:$0xff]
    %v3269 = vld [vmem:[%s2413 + $0x38] sm:$0xff]
    %v3270 = vld [vmem:[%s2413 + $0x40] sm:$0xff]
    %v3271 = vld [vmem:[%s2413 + $0x48] sm:$0xff]
    %v3272 = vld [vmem:[%s2413 + $0x50] sm:$0xff]
    %v3273 = vld [vmem:[%s2413 + $0x58] sm:$0xff]
    %v3274 = vld [vmem:[%s2413 + $0x60] sm:$0xff]
    %v3275 = vld [vmem:[%s2413 + $0x68] sm:$0xff]
    %v3276 = vld [vmem:[%s2413 + $0x70] sm:$0xff]
    %v3277 = vld [vmem:[%s2413 + $0x78] sm:$0xff]
    %v3278 = vld [vmem:[%s2413 + $0x80] sm:$0xff]
    %v3279 = vld [vmem:[%s2413 + $0x88] sm:$0xff]
    %v3280 = vld [vmem:[%s2413 + $0x90] sm:$0xff]
    %v3281 = vld [vmem:[%s2413 + $0x98] sm:$0xff]
    %v3282 = vld [vmem:[%s2413 + $0xa0] sm:$0xff]
    %v3283 = vld [vmem:[%s2413 + $0xa8] sm:$0xff]
    %v3284 = vld [vmem:[%s2413 + $0xb0] sm:$0xff]
    %v3285 = vld [vmem:[%s2413 + $0xb8] sm:$0xff]
    %v3286 = vld [vmem:[%s2413 + $0xc0] sm:$0xff]
    %v3287 = vld [vmem:[%s2413 + $0xc8] sm:$0xff]
    %v3288 = vld [vmem:[%s2413 + $0xd0] sm:$0xff]
    %v3289 = vld [vmem:[%s2413 + $0xd8] sm:$0xff]
    %v3290 = vld [vmem:[%s2413 + $0xe0] sm:$0xff]
    %v3291 = vld [vmem:[%s2413 + $0xe8] sm:$0xff]
    %v3292 = vld [vmem:[%s2413 + $0xf0] sm:$0xff]
    %v3293 = vld [vmem:[%s2413 + $0xf8] sm:$0xff]
    %v3294 = vld [vmem:[%s2413 + $0x100] sm:$0xff]
    %v3295 = vld [vmem:[%s2413 + $0x108] sm:$0xff]
    %v3296 = vld [vmem:[%s2413 + $0x110] sm:$0xff]
    %v3297 = vld [vmem:[%s2413 + $0x118] sm:$0xff]
    %v3298 = vld [vmem:[%s2413 + $0x120] sm:$0xff]
    %v3299 = vld [vmem:[%s2413 + $0x128] sm:$0xff]
    %v3300 = vld [vmem:[%s2413 + $0x130] sm:$0xff]
    %v3301 = vld [vmem:[%s2413 + $0x138] sm:$0xff]
    %v3302 = vld [vmem:[%s2413 + $0x140] sm:$0xff]
    %v3303 = vld [vmem:[%s2413 + $0x148] sm:$0xff]
    %v3304 = vld [vmem:[%s2413 + $0x150] sm:$0xff]
    %v3305 = vld [vmem:[%s2413 + $0x158] sm:$0xff]
    %v3306 = vld [vmem:[%s2413 + $0x160] sm:$0xff]
    %v3307 = vld [vmem:[%s2413 + $0x168] sm:$0xff]
    %v3308 = vld [vmem:[%s2413 + $0x170] sm:$0xff]
    %v3309 = vld [vmem:[%s2413 + $0x178] sm:$0xff]
    %v3310 = vld [vmem:[%s2413 + $0x180] sm:$0xff]
    %v3311 = vld [vmem:[%s2413 + $0x188] sm:$0xff]
    %v3312 = vld [vmem:[%s2413 + $0x190] sm:$0xff]
    %v3313 = vld [vmem:[%s2413 + $0x198] sm:$0xff]
    %v3314 = vld [vmem:[%s2413 + $0x1a0] sm:$0xff]
    %v3315 = vld [vmem:[%s2413 + $0x1a8] sm:$0xff]
    %v3316 = vld [vmem:[%s2413 + $0x1b0] sm:$0xff]
    %v3317 = vld [vmem:[%s2413 + $0x1b8] sm:$0xff]
    %v3318 = vld [vmem:[%s2413 + $0x1c0] sm:$0xff]
    %v3319 = vld [vmem:[%s2413 + $0x1c8] sm:$0xff]
    %v3320 = vld [vmem:[%s2413 + $0x1d0] sm:$0xff]
    %v3321 = vld [vmem:[%s2413 + $0x1d8] sm:$0xff]
    %v3322 = vld [vmem:[%s2413 + $0x1e0] sm:$0xff]
    %v3323 = vld [vmem:[%s2413 + $0x1e8] sm:$0xff]
    %v3324 = vld [vmem:[%s2413 + $0x1f0] sm:$0xff]
    %v3325 = vld [vmem:[%s2413 + $0x1f8] sm:$0xff]
    %3326 = vmatpush.msra.mxu0 %v3322
    %3327 = vmatpush.msra.mxu0 %v3318
    %3328 = vmatpush.msra.mxu0 %v3314
    %3329 = vmatpush.msra.mxu0 %v3310
    %3330 = vmatpush.msra.mxu0 %v3306
    %3331 = vmatpush.msra.mxu0 %v3302
    %3332 = vmatpush.msra.mxu0 %v3298
    %3333 = vmatpush.msra.mxu0 %v3294
    %3334 = vmatpush.msra.mxu0 %v3290
    %3335 = vmatpush.msra.mxu0 %v3286
    %3336 = vmatpush.msra.mxu0 %v3282
    %3337 = vmatpush.msra.mxu0 %v3278
    %3338 = vmatpush.msra.mxu0 %v3274
    %3339 = vmatpush.msra.mxu0 %v3270
    %3340 = vmatpush.msra.mxu0 %v3266
    %3341 = vmatpush.msra.mxu0 %v3262
    %3342 = vmatmul.f32.gmra.mxu0 %v3260
    %v3343 = vpop.f32.mrf.mxu0
    %v3344 = vadd.f32 0.0, %v3343
    %3345 = vdwg.mxu0
    %3346 = vmatpush.msra.mxu0 %v3323
    %3347 = vmatpush.msra.mxu0 %v3319
    %3348 = vmatpush.msra.mxu0 %v3315
    %3349 = vmatpush.msra.mxu0 %v3311
    %3350 = vmatpush.msra.mxu0 %v3307
    %3351 = vmatpush.msra.mxu0 %v3303
    %3352 = vmatpush.msra.mxu0 %v3299
    %3353 = vmatpush.msra.mxu0 %v3295
    %3354 = vmatpush.msra.mxu0 %v3291
    %3355 = vmatpush.msra.mxu0 %v3287
    %3356 = vmatpush.msra.mxu0 %v3283
    %3357 = vmatpush.msra.mxu0 %v3279
    %3358 = vmatpush.msra.mxu0 %v3275
    %3359 = vmatpush.msra.mxu0 %v3271
    %3360 = vmatpush.msra.mxu0 %v3267
    %3361 = vmatpush.msra.mxu0 %v3263
    %3362 = vmatmul.f32.gmra.mxu0 %v3260
    %v3363 = vpop.f32.mrf.mxu0
    %v3364 = vadd.f32 0.0, %v3363
    %3365 = vdwg.mxu0
    %3366 = vmatpush.msra.mxu0 %v3324
    %3367 = vmatpush.msra.mxu0 %v3320
    %3368 = vmatpush.msra.mxu0 %v3316
    %3369 = vmatpush.msra.mxu0 %v3312
    %3370 = vmatpush.msra.mxu0 %v3308
    %3371 = vmatpush.msra.mxu0 %v3304
    %3372 = vmatpush.msra.mxu0 %v3300
    %3373 = vmatpush.msra.mxu0 %v3296
    %3374 = vmatpush.msra.mxu0 %v3292
    %3375 = vmatpush.msra.mxu0 %v3288
    %3376 = vmatpush.msra.mxu0 %v3284
    %3377 = vmatpush.msra.mxu0 %v3280
    %3378 = vmatpush.msra.mxu0 %v3276
    %3379 = vmatpush.msra.mxu0 %v3272
    %3380 = vmatpush.msra.mxu0 %v3268
    %3381 = vmatpush.msra.mxu0 %v3264
    %3382 = vmatmul.f32.gmra.mxu0 %v3260
    %v3383 = vpop.f32.mrf.mxu0
    %v3384 = vadd.f32 0.0, %v3383
    %3385 = vdwg.mxu0
    %3386 = vmatpush.msra.mxu0 %v3325
    %3387 = vmatpush.msra.mxu0 %v3321
    %3388 = vmatpush.msra.mxu0 %v3317
    %3389 = vmatpush.msra.mxu0 %v3313
    %3390 = vmatpush.msra.mxu0 %v3309
    %3391 = vmatpush.msra.mxu0 %v3305
    %3392 = vmatpush.msra.mxu0 %v3301
    %3393 = vmatpush.msra.mxu0 %v3297
    %3394 = vmatpush.msra.mxu0 %v3293
    %3395 = vmatpush.msra.mxu0 %v3289
    %3396 = vmatpush.msra.mxu0 %v3285
    %3397 = vmatpush.msra.mxu0 %v3281
    %3398 = vmatpush.msra.mxu0 %v3277
    %3399 = vmatpush.msra.mxu0 %v3273
    %3400 = vmatpush.msra.mxu0 %v3269
    %3401 = vmatpush.msra.mxu0 %v3265
    %3402 = vmatmul.f32.gmra.mxu0 %v3260
    %v3403 = vpop.f32.mrf.mxu0
    %v3404 = vadd.f32 0.0, %v3403
    %3405 = vdwg.mxu0
    %v3406 = vadd.f32 %v2279, %v3344
    %v3407 = vadd.f32 %v2320, %v3364
    %v3408 = vadd.f32 %v2361, %v3384
    %v3409 = vadd.f32 %v2402, %v3404
    %v3410 = vxor.u32 %v3406, 2147483648
    %v3411 = vmul.f32 %v3410, 1.442695
    %v3412 = vpow.pop %v3411
    %v3413 = vadd.f32 %v3412, 1.0
    %v3414 = vrcp.pop %v3413
    %v3415 = vmul.f32 %v3413, %v3414
    %v3416 = vsub.f32 1.0, %v3415
    %v3417 = vmul.f32 %v3414, %v3416
    %v3418 = vadd.f32 %v3414, %v3417
    %vm3419 = vweird.f32 %v3413
    %vm3420 = vweird.f32 %v3414
    %vm3421 = vmor %vm3419, %vm3420
    %v3422 = vsel %vm3421, %v3414, %v3418
    %v3423 = vand.u32 2147483647, %v3413
    %vm3424 = vcmp.eq.f32.partialorder %v3423, 8.507059e+37
    %v3425 = vand.u32 %v3413, 2147483648
    %v3426 = vor.u32 1.1754944e-38, %v3425
    %v3427 = vsel %vm3424, %v3426, %v3422
    %v3428 = vmul.f32 1.0, %v3427
    %v3429 = vxor.u32 %v3407, 2147483648
    %v3430 = vmul.f32 %v3429, 1.442695
    %v3431 = vpow.pop %v3430
    %v3432 = vadd.f32 %v3431, 1.0
    %v3433 = vrcp.pop %v3432
    %v3434 = vmul.f32 %v3432, %v3433
    %v3435 = vsub.f32 1.0, %v3434
    %v3436 = vmul.f32 %v3433, %v3435
    %v3437 = vadd.f32 %v3433, %v3436
    %vm3438 = vweird.f32 %v3432
    %vm3439 = vweird.f32 %v3433
    %vm3440 = vmor %vm3438, %vm3439
    %v3441 = vsel %vm3440, %v3433, %v3437
    %v3442 = vand.u32 2147483647, %v3432
    %vm3443 = vcmp.eq.f32.partialorder %v3442, 8.507059e+37
    %v3444 = vand.u32 %v3432, 2147483648
    %v3445 = vor.u32 1.1754944e-38, %v3444
    %v3446 = vsel %vm3443, %v3445, %v3441
    %v3447 = vmul.f32 1.0, %v3446
    %v3448 = vtanh.pop %v3408
    %v3449 = vxor.u32 %v3409, 2147483648
    %v3450 = vmul.f32 %v3449, 1.442695
    %v3451 = vpow.pop %v3450
    %v3452 = vadd.f32 %v3451, 1.0
    %v3453 = vrcp.pop %v3452
    %v3454 = vmul.f32 %v3452, %v3453
    %v3455 = vsub.f32 1.0, %v3454
    %v3456 = vmul.f32 %v3453, %v3455
    %v3457 = vadd.f32 %v3453, %v3456
    %vm3458 = vweird.f32 %v3452
    %vm3459 = vweird.f32 %v3453
    %vm3460 = vmor %vm3458, %vm3459
    %v3461 = vsel %vm3460, %v3453, %v3457
    %v3462 = vand.u32 2147483647, %v3452
    %vm3463 = vcmp.eq.f32.partialorder %v3462, 8.507059e+37
    %v3464 = vand.u32 %v3452, 2147483648
    %v3465 = vor.u32 1.1754944e-38, %v3464
    %v3466 = vsel %vm3463, %v3465, %v3461
    %v3467 = vmul.f32 1.0, %v3466
    %v3468 = vmul.f32 %v3447, %v3258
    %v3469 = vmul.f32 %v3428, %v3448
    %v3470 = vadd.f32 %v3468, %v3469
    %v3471 = vtanh.pop %v3470
    %v3472 = vmul.f32 %v3467, %v3471
    %3473 = vst [vmem:[#allocation2 + $0x20] sm:$0xff] %v3472
    %v3474 = vld [vmem:[%s2413] sm:$0xff]
    %v3475 = vld [vmem:[%s2413 + $0x8] sm:$0xff]
    %v3476 = vld [vmem:[%s2413 + $0x10] sm:$0xff]
    %v3477 = vld [vmem:[%s2413 + $0x18] sm:$0xff]
    %v3478 = vld [vmem:[%s2413 + $0x20] sm:$0xff]
    %v3479 = vld [vmem:[%s2413 + $0x28] sm:$0xff]
    %v3480 = vld [vmem:[%s2413 + $0x30] sm:$0xff]
    %v3481 = vld [vmem:[%s2413 + $0x38] sm:$0xff]
    %v3482 = vld [vmem:[%s2413 + $0x40] sm:$0xff]
    %v3483 = vld [vmem:[%s2413 + $0x48] sm:$0xff]
    %v3484 = vld [vmem:[%s2413 + $0x50] sm:$0xff]
    %v3485 = vld [vmem:[%s2413 + $0x58] sm:$0xff]
    %v3486 = vld [vmem:[%s2413 + $0x60] sm:$0xff]
    %v3487 = vld [vmem:[%s2413 + $0x68] sm:$0xff]
    %v3488 = vld [vmem:[%s2413 + $0x70] sm:$0xff]
    %v3489 = vld [vmem:[%s2413 + $0x78] sm:$0xff]
    %v3490 = vld [vmem:[%s2413 + $0x80] sm:$0xff]
    %v3491 = vld [vmem:[%s2413 + $0x88] sm:$0xff]
    %v3492 = vld [vmem:[%s2413 + $0x90] sm:$0xff]
    %v3493 = vld [vmem:[%s2413 + $0x98] sm:$0xff]
    %v3494 = vld [vmem:[%s2413 + $0xa0] sm:$0xff]
    %v3495 = vld [vmem:[%s2413 + $0xa8] sm:$0xff]
    %v3496 = vld [vmem:[%s2413 + $0xb0] sm:$0xff]
    %v3497 = vld [vmem:[%s2413 + $0xb8] sm:$0xff]
    %v3498 = vld [vmem:[%s2413 + $0xc0] sm:$0xff]
    %v3499 = vld [vmem:[%s2413 + $0xc8] sm:$0xff]
    %v3500 = vld [vmem:[%s2413 + $0xd0] sm:$0xff]
    %v3501 = vld [vmem:[%s2413 + $0xd8] sm:$0xff]
    %v3502 = vld [vmem:[%s2413 + $0xe0] sm:$0xff]
    %v3503 = vld [vmem:[%s2413 + $0xe8] sm:$0xff]
    %v3504 = vld [vmem:[%s2413 + $0xf0] sm:$0xff]
    %v3505 = vld [vmem:[%s2413 + $0xf8] sm:$0xff]
    %v3506 = vld [vmem:[%s2413 + $0x100] sm:$0xff]
    %v3507 = vld [vmem:[%s2413 + $0x108] sm:$0xff]
    %v3508 = vld [vmem:[%s2413 + $0x110] sm:$0xff]
    %v3509 = vld [vmem:[%s2413 + $0x118] sm:$0xff]
    %v3510 = vld [vmem:[%s2413 + $0x120] sm:$0xff]
    %v3511 = vld [vmem:[%s2413 + $0x128] sm:$0xff]
    %v3512 = vld [vmem:[%s2413 + $0x130] sm:$0xff]
    %v3513 = vld [vmem:[%s2413 + $0x138] sm:$0xff]
    %v3514 = vld [vmem:[%s2413 + $0x140] sm:$0xff]
    %v3515 = vld [vmem:[%s2413 + $0x148] sm:$0xff]
    %v3516 = vld [vmem:[%s2413 + $0x150] sm:$0xff]
    %v3517 = vld [vmem:[%s2413 + $0x158] sm:$0xff]
    %v3518 = vld [vmem:[%s2413 + $0x160] sm:$0xff]
    %v3519 = vld [vmem:[%s2413 + $0x168] sm:$0xff]
    %v3520 = vld [vmem:[%s2413 + $0x170] sm:$0xff]
    %v3521 = vld [vmem:[%s2413 + $0x178] sm:$0xff]
    %v3522 = vld [vmem:[%s2413 + $0x180] sm:$0xff]
    %v3523 = vld [vmem:[%s2413 + $0x188] sm:$0xff]
    %v3524 = vld [vmem:[%s2413 + $0x190] sm:$0xff]
    %v3525 = vld [vmem:[%s2413 + $0x198] sm:$0xff]
    %v3526 = vld [vmem:[%s2413 + $0x1a0] sm:$0xff]
    %v3527 = vld [vmem:[%s2413 + $0x1a8] sm:$0xff]
    %v3528 = vld [vmem:[%s2413 + $0x1b0] sm:$0xff]
    %v3529 = vld [vmem:[%s2413 + $0x1b8] sm:$0xff]
    %v3530 = vld [vmem:[%s2413 + $0x1c0] sm:$0xff]
    %v3531 = vld [vmem:[%s2413 + $0x1c8] sm:$0xff]
    %v3532 = vld [vmem:[%s2413 + $0x1d0] sm:$0xff]
    %v3533 = vld [vmem:[%s2413 + $0x1d8] sm:$0xff]
    %v3534 = vld [vmem:[%s2413 + $0x1e0] sm:$0xff]
    %v3535 = vld [vmem:[%s2413 + $0x1e8] sm:$0xff]
    %v3536 = vld [vmem:[%s2413 + $0x1f0] sm:$0xff]
    %v3537 = vld [vmem:[%s2413 + $0x1f8] sm:$0xff]
    %3538 = vmatpush.msra.mxu0 %v3534
    %3539 = vmatpush.msra.mxu0 %v3530
    %3540 = vmatpush.msra.mxu0 %v3526
    %3541 = vmatpush.msra.mxu0 %v3522
    %3542 = vmatpush.msra.mxu0 %v3518
    %3543 = vmatpush.msra.mxu0 %v3514
    %3544 = vmatpush.msra.mxu0 %v3510
    %3545 = vmatpush.msra.mxu0 %v3506
    %3546 = vmatpush.msra.mxu0 %v3502
    %3547 = vmatpush.msra.mxu0 %v3498
    %3548 = vmatpush.msra.mxu0 %v3494
    %3549 = vmatpush.msra.mxu0 %v3490
    %3550 = vmatpush.msra.mxu0 %v3486
    %3551 = vmatpush.msra.mxu0 %v3482
    %3552 = vmatpush.msra.mxu0 %v3478
    %3553 = vmatpush.msra.mxu0 %v3474
    %3554 = vmatmul.f32.gmra.mxu0 %v3472
    %v3555 = vpop.f32.mrf.mxu0
    %v3556 = vadd.f32 0.0, %v3555
    %3557 = vdwg.mxu0
    %3558 = vmatpush.msra.mxu0 %v3535
    %3559 = vmatpush.msra.mxu0 %v3531
    %3560 = vmatpush.msra.mxu0 %v3527
    %3561 = vmatpush.msra.mxu0 %v3523
    %3562 = vmatpush.msra.mxu0 %v3519
    %3563 = vmatpush.msra.mxu0 %v3515
    %3564 = vmatpush.msra.mxu0 %v3511
    %3565 = vmatpush.msra.mxu0 %v3507
    %3566 = vmatpush.msra.mxu0 %v3503
    %3567 = vmatpush.msra.mxu0 %v3499
    %3568 = vmatpush.msra.mxu0 %v3495
    %3569 = vmatpush.msra.mxu0 %v3491
    %3570 = vmatpush.msra.mxu0 %v3487
    %3571 = vmatpush.msra.mxu0 %v3483
    %3572 = vmatpush.msra.mxu0 %v3479
    %3573 = vmatpush.msra.mxu0 %v3475
    %3574 = vmatmul.f32.gmra.mxu0 %v3472
    %v3575 = vpop.f32.mrf.mxu0
    %v3576 = vadd.f32 0.0, %v3575
    %3577 = vdwg.mxu0
    %3578 = vmatpush.msra.mxu0 %v3536
    %3579 = vmatpush.msra.mxu0 %v3532
    %3580 = vmatpush.msra.mxu0 %v3528
    %3581 = vmatpush.msra.mxu0 %v3524
    %3582 = vmatpush.msra.mxu0 %v3520
    %3583 = vmatpush.msra.mxu0 %v3516
    %3584 = vmatpush.msra.mxu0 %v3512
    %3585 = vmatpush.msra.mxu0 %v3508
    %3586 = vmatpush.msra.mxu0 %v3504
    %3587 = vmatpush.msra.mxu0 %v3500
    %3588 = vmatpush.msra.mxu0 %v3496
    %3589 = vmatpush.msra.mxu0 %v3492
    %3590 = vmatpush.msra.mxu0 %v3488
    %3591 = vmatpush.msra.mxu0 %v3484
    %3592 = vmatpush.msra.mxu0 %v3480
    %3593 = vmatpush.msra.mxu0 %v3476
    %3594 = vmatmul.f32.gmra.mxu0 %v3472
    %v3595 = vpop.f32.mrf.mxu0
    %v3596 = vadd.f32 0.0, %v3595
    %3597 = vdwg.mxu0
    %3598 = vmatpush.msra.mxu0 %v3537
    %3599 = vmatpush.msra.mxu0 %v3533
    %3600 = vmatpush.msra.mxu0 %v3529
    %3601 = vmatpush.msra.mxu0 %v3525
    %3602 = vmatpush.msra.mxu0 %v3521
    %3603 = vmatpush.msra.mxu0 %v3517
    %3604 = vmatpush.msra.mxu0 %v3513
    %3605 = vmatpush.msra.mxu0 %v3509
    %3606 = vmatpush.msra.mxu0 %v3505
    %3607 = vmatpush.msra.mxu0 %v3501
    %3608 = vmatpush.msra.mxu0 %v3497
    %3609 = vmatpush.msra.mxu0 %v3493
    %3610 = vmatpush.msra.mxu0 %v3489
    %3611 = vmatpush.msra.mxu0 %v3485
    %3612 = vmatpush.msra.mxu0 %v3481
    %3613 = vmatpush.msra.mxu0 %v3477
    %3614 = vmatmul.f32.gmra.mxu0 %v3472
    %v3615 = vpop.f32.mrf.mxu0
    %v3616 = vadd.f32 0.0, %v3615
    %3617 = vdwg.mxu0
    %v3618 = vadd.f32 %v2282, %v3556
    %v3619 = vadd.f32 %v2323, %v3576
    %v3620 = vadd.f32 %v2364, %v3596
    %v3621 = vadd.f32 %v2405, %v3616
    %v3622 = vxor.u32 %v3618, 2147483648
    %v3623 = vmul.f32 %v3622, 1.442695
    %v3624 = vpow.pop %v3623
    %v3625 = vadd.f32 %v3624, 1.0
    %v3626 = vrcp.pop %v3625
    %v3627 = vmul.f32 %v3625, %v3626
    %v3628 = vsub.f32 1.0, %v3627
    %v3629 = vmul.f32 %v3626, %v3628
    %v3630 = vadd.f32 %v3626, %v3629
    %vm3631 = vweird.f32 %v3625
    %vm3632 = vweird.f32 %v3626
    %vm3633 = vmor %vm3631, %vm3632
    %v3634 = vsel %vm3633, %v3626, %v3630
    %v3635 = vand.u32 2147483647, %v3625
    %vm3636 = vcmp.eq.f32.partialorder %v3635, 8.507059e+37
    %v3637 = vand.u32 %v3625, 2147483648
    %v3638 = vor.u32 1.1754944e-38, %v3637
    %v3639 = vsel %vm3636, %v3638, %v3634
    %v3640 = vmul.f32 1.0, %v3639
    %v3641 = vxor.u32 %v3619, 2147483648
    %v3642 = vmul.f32 %v3641, 1.442695
    %v3643 = vpow.pop %v3642
    %v3644 = vadd.f32 %v3643, 1.0
    %v3645 = vrcp.pop %v3644
    %v3646 = vmul.f32 %v3644, %v3645
    %v3647 = vsub.f32 1.0, %v3646
    %v3648 = vmul.f32 %v3645, %v3647
    %v3649 = vadd.f32 %v3645, %v3648
    %vm3650 = vweird.f32 %v3644
    %vm3651 = vweird.f32 %v3645
    %vm3652 = vmor %vm3650, %vm3651
    %v3653 = vsel %vm3652, %v3645, %v3649
    %v3654 = vand.u32 2147483647, %v3644
    %vm3655 = vcmp.eq.f32.partialorder %v3654, 8.507059e+37
    %v3656 = vand.u32 %v3644, 2147483648
    %v3657 = vor.u32 1.1754944e-38, %v3656
    %v3658 = vsel %vm3655, %v3657, %v3653
    %v3659 = vmul.f32 1.0, %v3658
    %v3660 = vtanh.pop %v3620
    %v3661 = vxor.u32 %v3621, 2147483648
    %v3662 = vmul.f32 %v3661, 1.442695
    %v3663 = vpow.pop %v3662
    %v3664 = vadd.f32 %v3663, 1.0
    %v3665 = vrcp.pop %v3664
    %v3666 = vmul.f32 %v3664, %v3665
    %v3667 = vsub.f32 1.0, %v3666
    %v3668 = vmul.f32 %v3665, %v3667
    %v3669 = vadd.f32 %v3665, %v3668
    %vm3670 = vweird.f32 %v3664
    %vm3671 = vweird.f32 %v3665
    %vm3672 = vmor %vm3670, %vm3671
    %v3673 = vsel %vm3672, %v3665, %v3669
    %v3674 = vand.u32 2147483647, %v3664
    %vm3675 = vcmp.eq.f32.partialorder %v3674, 8.507059e+37
    %v3676 = vand.u32 %v3664, 2147483648
    %v3677 = vor.u32 1.1754944e-38, %v3676
    %v3678 = vsel %vm3675, %v3677, %v3673
    %v3679 = vmul.f32 1.0, %v3678
    %v3680 = vmul.f32 %v3659, %v3470
    %v3681 = vmul.f32 %v3640, %v3660
    %v3682 = vadd.f32 %v3680, %v3681
    %v3683 = vtanh.pop %v3682
    %v3684 = vmul.f32 %v3679, %v3683
    %3685 = vst [vmem:[#allocation2 + $0x28] sm:$0xff] %v3684
    %v3686 = vld [vmem:[%s2413] sm:$0xff]
    %v3687 = vld [vmem:[%s2413 + $0x8] sm:$0xff]
    %v3688 = vld [vmem:[%s2413 + $0x10] sm:$0xff]
    %v3689 = vld [vmem:[%s2413 + $0x18] sm:$0xff]
    %v3690 = vld [vmem:[%s2413 + $0x20] sm:$0xff]
    %v3691 = vld [vmem:[%s2413 + $0x28] sm:$0xff]
    %v3692 = vld [vmem:[%s2413 + $0x30] sm:$0xff]
    %v3693 = vld [vmem:[%s2413 + $0x38] sm:$0xff]
    %v3694 = vld [vmem:[%s2413 + $0x40] sm:$0xff]
    %v3695 = vld [vmem:[%s2413 + $0x48] sm:$0xff]
    %v3696 = vld [vmem:[%s2413 + $0x50] sm:$0xff]
    %v3697 = vld [vmem:[%s2413 + $0x58] sm:$0xff]
    %v3698 = vld [vmem:[%s2413 + $0x60] sm:$0xff]
    %v3699 = vld [vmem:[%s2413 + $0x68] sm:$0xff]
    %v3700 = vld [vmem:[%s2413 + $0x70] sm:$0xff]
    %v3701 = vld [vmem:[%s2413 + $0x78] sm:$0xff]
    %v3702 = vld [vmem:[%s2413 + $0x80] sm:$0xff]
    %v3703 = vld [vmem:[%s2413 + $0x88] sm:$0xff]
    %v3704 = vld [vmem:[%s2413 + $0x90] sm:$0xff]
    %v3705 = vld [vmem:[%s2413 + $0x98] sm:$0xff]
    %v3706 = vld [vmem:[%s2413 + $0xa0] sm:$0xff]
    %v3707 = vld [vmem:[%s2413 + $0xa8] sm:$0xff]
    %v3708 = vld [vmem:[%s2413 + $0xb0] sm:$0xff]
    %v3709 = vld [vmem:[%s2413 + $0xb8] sm:$0xff]
    %v3710 = vld [vmem:[%s2413 + $0xc0] sm:$0xff]
    %v3711 = vld [vmem:[%s2413 + $0xc8] sm:$0xff]
    %v3712 = vld [vmem:[%s2413 + $0xd0] sm:$0xff]
    %v3713 = vld [vmem:[%s2413 + $0xd8] sm:$0xff]
    %v3714 = vld [vmem:[%s2413 + $0xe0] sm:$0xff]
    %v3715 = vld [vmem:[%s2413 + $0xe8] sm:$0xff]
    %v3716 = vld [vmem:[%s2413 + $0xf0] sm:$0xff]
    %v3717 = vld [vmem:[%s2413 + $0xf8] sm:$0xff]
    %v3718 = vld [vmem:[%s2413 + $0x100] sm:$0xff]
    %v3719 = vld [vmem:[%s2413 + $0x108] sm:$0xff]
    %v3720 = vld [vmem:[%s2413 + $0x110] sm:$0xff]
    %v3721 = vld [vmem:[%s2413 + $0x118] sm:$0xff]
    %v3722 = vld [vmem:[%s2413 + $0x120] sm:$0xff]
    %v3723 = vld [vmem:[%s2413 + $0x128] sm:$0xff]
    %v3724 = vld [vmem:[%s2413 + $0x130] sm:$0xff]
    %v3725 = vld [vmem:[%s2413 + $0x138] sm:$0xff]
    %v3726 = vld [vmem:[%s2413 + $0x140] sm:$0xff]
    %v3727 = vld [vmem:[%s2413 + $0x148] sm:$0xff]
    %v3728 = vld [vmem:[%s2413 + $0x150] sm:$0xff]
    %v3729 = vld [vmem:[%s2413 + $0x158] sm:$0xff]
    %v3730 = vld [vmem:[%s2413 + $0x160] sm:$0xff]
    %v3731 = vld [vmem:[%s2413 + $0x168] sm:$0xff]
    %v3732 = vld [vmem:[%s2413 + $0x170] sm:$0xff]
    %v3733 = vld [vmem:[%s2413 + $0x178] sm:$0xff]
    %v3734 = vld [vmem:[%s2413 + $0x180] sm:$0xff]
    %v3735 = vld [vmem:[%s2413 + $0x188] sm:$0xff]
    %v3736 = vld [vmem:[%s2413 + $0x190] sm:$0xff]
    %v3737 = vld [vmem:[%s2413 + $0x198] sm:$0xff]
    %v3738 = vld [vmem:[%s2413 + $0x1a0] sm:$0xff]
    %v3739 = vld [vmem:[%s2413 + $0x1a8] sm:$0xff]
    %v3740 = vld [vmem:[%s2413 + $0x1b0] sm:$0xff]
    %v3741 = vld [vmem:[%s2413 + $0x1b8] sm:$0xff]
    %v3742 = vld [vmem:[%s2413 + $0x1c0] sm:$0xff]
    %v3743 = vld [vmem:[%s2413 + $0x1c8] sm:$0xff]
    %v3744 = vld [vmem:[%s2413 + $0x1d0] sm:$0xff]
    %v3745 = vld [vmem:[%s2413 + $0x1d8] sm:$0xff]
    %v3746 = vld [vmem:[%s2413 + $0x1e0] sm:$0xff]
    %v3747 = vld [vmem:[%s2413 + $0x1e8] sm:$0xff]
    %v3748 = vld [vmem:[%s2413 + $0x1f0] sm:$0xff]
    %v3749 = vld [vmem:[%s2413 + $0x1f8] sm:$0xff]
    %3750 = vmatpush.msra.mxu0 %v3746
    %3751 = vmatpush.msra.mxu0 %v3742
    %3752 = vmatpush.msra.mxu0 %v3738
    %3753 = vmatpush.msra.mxu0 %v3734
    %3754 = vmatpush.msra.mxu0 %v3730
    %3755 = vmatpush.msra.mxu0 %v3726
    %3756 = vmatpush.msra.mxu0 %v3722
    %3757 = vmatpush.msra.mxu0 %v3718
    %3758 = vmatpush.msra.mxu0 %v3714
    %3759 = vmatpush.msra.mxu0 %v3710
    %3760 = vmatpush.msra.mxu0 %v3706
    %3761 = vmatpush.msra.mxu0 %v3702
    %3762 = vmatpush.msra.mxu0 %v3698
    %3763 = vmatpush.msra.mxu0 %v3694
    %3764 = vmatpush.msra.mxu0 %v3690
    %3765 = vmatpush.msra.mxu0 %v3686
    %3766 = vmatmul.f32.gmra.mxu0 %v3684
    %v3767 = vpop.f32.mrf.mxu0
    %v3768 = vadd.f32 0.0, %v3767
    %3769 = vdwg.mxu0
    %3770 = vmatpush.msra.mxu0 %v3747
    %3771 = vmatpush.msra.mxu0 %v3743
    %3772 = vmatpush.msra.mxu0 %v3739
    %3773 = vmatpush.msra.mxu0 %v3735
    %3774 = vmatpush.msra.mxu0 %v3731
    %3775 = vmatpush.msra.mxu0 %v3727
    %3776 = vmatpush.msra.mxu0 %v3723
    %3777 = vmatpush.msra.mxu0 %v3719
    %3778 = vmatpush.msra.mxu0 %v3715
    %3779 = vmatpush.msra.mxu0 %v3711
    %3780 = vmatpush.msra.mxu0 %v3707
    %3781 = vmatpush.msra.mxu0 %v3703
    %3782 = vmatpush.msra.mxu0 %v3699
    %3783 = vmatpush.msra.mxu0 %v3695
    %3784 = vmatpush.msra.mxu0 %v3691
    %3785 = vmatpush.msra.mxu0 %v3687
    %3786 = vmatmul.f32.gmra.mxu0 %v3684
    %v3787 = vpop.f32.mrf.mxu0
    %v3788 = vadd.f32 0.0, %v3787
    %3789 = vdwg.mxu0
    %3790 = vmatpush.msra.mxu0 %v3748
    %3791 = vmatpush.msra.mxu0 %v3744
    %3792 = vmatpush.msra.mxu0 %v3740
    %3793 = vmatpush.msra.mxu0 %v3736
    %3794 = vmatpush.msra.mxu0 %v3732
    %3795 = vmatpush.msra.mxu0 %v3728
    %3796 = vmatpush.msra.mxu0 %v3724
    %3797 = vmatpush.msra.mxu0 %v3720
    %3798 = vmatpush.msra.mxu0 %v3716
    %3799 = vmatpush.msra.mxu0 %v3712
    %3800 = vmatpush.msra.mxu0 %v3708
    %3801 = vmatpush.msra.mxu0 %v3704
    %3802 = vmatpush.msra.mxu0 %v3700
    %3803 = vmatpush.msra.mxu0 %v3696
    %3804 = vmatpush.msra.mxu0 %v3692
    %3805 = vmatpush.msra.mxu0 %v3688
    %3806 = vmatmul.f32.gmra.mxu0 %v3684
    %v3807 = vpop.f32.mrf.mxu0
    %v3808 = vadd.f32 0.0, %v3807
    %3809 = vdwg.mxu0
    %3810 = vmatpush.msra.mxu0 %v3749
    %3811 = vmatpush.msra.mxu0 %v3745
    %3812 = vmatpush.msra.mxu0 %v3741
    %3813 = vmatpush.msra.mxu0 %v3737
    %3814 = vmatpush.msra.mxu0 %v3733
    %3815 = vmatpush.msra.mxu0 %v3729
    %3816 = vmatpush.msra.mxu0 %v3725
    %3817 = vmatpush.msra.mxu0 %v3721
    %3818 = vmatpush.msra.mxu0 %v3717
    %3819 = vmatpush.msra.mxu0 %v3713
    %3820 = vmatpush.msra.mxu0 %v3709
    %3821 = vmatpush.msra.mxu0 %v3705
    %3822 = vmatpush.msra.mxu0 %v3701
    %3823 = vmatpush.msra.mxu0 %v3697
    %3824 = vmatpush.msra.mxu0 %v3693
    %3825 = vmatpush.msra.mxu0 %v3689
    %3826 = vmatmul.f32.gmra.mxu0 %v3684
    %v3827 = vpop.f32.mrf.mxu0
    %v3828 = vadd.f32 0.0, %v3827
    %3829 = vdwg.mxu0
    %v3830 = vadd.f32 %v2285, %v3768
    %v3831 = vadd.f32 %v2326, %v3788
    %v3832 = vadd.f32 %v2367, %v3808
    %v3833 = vadd.f32 %v2408, %v3828
    %v3834 = vxor.u32 %v3830, 2147483648
    %v3835 = vmul.f32 %v3834, 1.442695
    %v3836 = vpow.pop %v3835
    %v3837 = vadd.f32 %v3836, 1.0
    %v3838 = vrcp.pop %v3837
    %v3839 = vmul.f32 %v3837, %v3838
    %v3840 = vsub.f32 1.0, %v3839
    %v3841 = vmul.f32 %v3838, %v3840
    %v3842 = vadd.f32 %v3838, %v3841
    %vm3843 = vweird.f32 %v3837
    %vm3844 = vweird.f32 %v3838
    %vm3845 = vmor %vm3843, %vm3844
    %v3846 = vsel %vm3845, %v3838, %v3842
    %v3847 = vand.u32 2147483647, %v3837
    %vm3848 = vcmp.eq.f32.partialorder %v3847, 8.507059e+37
    %v3849 = vand.u32 %v3837, 2147483648
    %v3850 = vor.u32 1.1754944e-38, %v3849
    %v3851 = vsel %vm3848, %v3850, %v3846
    %v3852 = vmul.f32 1.0, %v3851
    %v3853 = vxor.u32 %v3831, 2147483648
    %v3854 = vmul.f32 %v3853, 1.442695
    %v3855 = vpow.pop %v3854
    %v3856 = vadd.f32 %v3855, 1.0
    %v3857 = vrcp.pop %v3856
    %v3858 = vmul.f32 %v3856, %v3857
    %v3859 = vsub.f32 1.0, %v3858
    %v3860 = vmul.f32 %v3857, %v3859
    %v3861 = vadd.f32 %v3857, %v3860
    %vm3862 = vweird.f32 %v3856
    %vm3863 = vweird.f32 %v3857
    %vm3864 = vmor %vm3862, %vm3863
    %v3865 = vsel %vm3864, %v3857, %v3861
    %v3866 = vand.u32 2147483647, %v3856
    %vm3867 = vcmp.eq.f32.partialorder %v3866, 8.507059e+37
    %v3868 = vand.u32 %v3856, 2147483648
    %v3869 = vor.u32 1.1754944e-38, %v3868
    %v3870 = vsel %vm3867, %v3869, %v3865
    %v3871 = vmul.f32 1.0, %v3870
    %v3872 = vtanh.pop %v3832
    %v3873 = vxor.u32 %v3833, 2147483648
    %v3874 = vmul.f32 %v3873, 1.442695
    %v3875 = vpow.pop %v3874
    %v3876 = vadd.f32 %v3875, 1.0
    %v3877 = vrcp.pop %v3876
    %v3878 = vmul.f32 %v3876, %v3877
    %v3879 = vsub.f32 1.0, %v3878
    %v3880 = vmul.f32 %v3877, %v3879
    %v3881 = vadd.f32 %v3877, %v3880
    %vm3882 = vweird.f32 %v3876
    %vm3883 = vweird.f32 %v3877
    %vm3884 = vmor %vm3882, %vm3883
    %v3885 = vsel %vm3884, %v3877, %v3881
    %v3886 = vand.u32 2147483647, %v3876
    %vm3887 = vcmp.eq.f32.partialorder %v3886, 8.507059e+37
    %v3888 = vand.u32 %v3876, 2147483648
    %v3889 = vor.u32 1.1754944e-38, %v3888
    %v3890 = vsel %vm3887, %v3889, %v3885
    %v3891 = vmul.f32 1.0, %v3890
    %v3892 = vmul.f32 %v3871, %v3682
    %v3893 = vmul.f32 %v3852, %v3872
    %v3894 = vadd.f32 %v3892, %v3893
    %v3895 = vtanh.pop %v3894
    %v3896 = vmul.f32 %v3891, %v3895
    %3897 = vst [vmem:[#allocation2 + $0x30] sm:$0xff] %v3896
    %v3898 = vld [vmem:[%s2413] sm:$0xff]
    %v3899 = vld [vmem:[%s2413 + $0x8] sm:$0xff]
    %v3900 = vld [vmem:[%s2413 + $0x10] sm:$0xff]
    %v3901 = vld [vmem:[%s2413 + $0x18] sm:$0xff]
    %v3902 = vld [vmem:[%s2413 + $0x20] sm:$0xff]
    %v3903 = vld [vmem:[%s2413 + $0x28] sm:$0xff]
    %v3904 = vld [vmem:[%s2413 + $0x30] sm:$0xff]
    %v3905 = vld [vmem:[%s2413 + $0x38] sm:$0xff]
    %v3906 = vld [vmem:[%s2413 + $0x40] sm:$0xff]
    %v3907 = vld [vmem:[%s2413 + $0x48] sm:$0xff]
    %v3908 = vld [vmem:[%s2413 + $0x50] sm:$0xff]
    %v3909 = vld [vmem:[%s2413 + $0x58] sm:$0xff]
    %v3910 = vld [vmem:[%s2413 + $0x60] sm:$0xff]
    %v3911 = vld [vmem:[%s2413 + $0x68] sm:$0xff]
    %v3912 = vld [vmem:[%s2413 + $0x70] sm:$0xff]
    %v3913 = vld [vmem:[%s2413 + $0x78] sm:$0xff]
    %v3914 = vld [vmem:[%s2413 + $0x80] sm:$0xff]
    %v3915 = vld [vmem:[%s2413 + $0x88] sm:$0xff]
    %v3916 = vld [vmem:[%s2413 + $0x90] sm:$0xff]
    %v3917 = vld [vmem:[%s2413 + $0x98] sm:$0xff]
    %v3918 = vld [vmem:[%s2413 + $0xa0] sm:$0xff]
    %v3919 = vld [vmem:[%s2413 + $0xa8] sm:$0xff]
    %v3920 = vld [vmem:[%s2413 + $0xb0] sm:$0xff]
    %v3921 = vld [vmem:[%s2413 + $0xb8] sm:$0xff]
    %v3922 = vld [vmem:[%s2413 + $0xc0] sm:$0xff]
    %v3923 = vld [vmem:[%s2413 + $0xc8] sm:$0xff]
    %v3924 = vld [vmem:[%s2413 + $0xd0] sm:$0xff]
    %v3925 = vld [vmem:[%s2413 + $0xd8] sm:$0xff]
    %v3926 = vld [vmem:[%s2413 + $0xe0] sm:$0xff]
    %v3927 = vld [vmem:[%s2413 + $0xe8] sm:$0xff]
    %v3928 = vld [vmem:[%s2413 + $0xf0] sm:$0xff]
    %v3929 = vld [vmem:[%s2413 + $0xf8] sm:$0xff]
    %v3930 = vld [vmem:[%s2413 + $0x100] sm:$0xff]
    %v3931 = vld [vmem:[%s2413 + $0x108] sm:$0xff]
    %v3932 = vld [vmem:[%s2413 + $0x110] sm:$0xff]
    %v3933 = vld [vmem:[%s2413 + $0x118] sm:$0xff]
    %v3934 = vld [vmem:[%s2413 + $0x120] sm:$0xff]
    %v3935 = vld [vmem:[%s2413 + $0x128] sm:$0xff]
    %v3936 = vld [vmem:[%s2413 + $0x130] sm:$0xff]
    %v3937 = vld [vmem:[%s2413 + $0x138] sm:$0xff]
    %v3938 = vld [vmem:[%s2413 + $0x140] sm:$0xff]
    %v3939 = vld [vmem:[%s2413 + $0x148] sm:$0xff]
    %v3940 = vld [vmem:[%s2413 + $0x150] sm:$0xff]
    %v3941 = vld [vmem:[%s2413 + $0x158] sm:$0xff]
    %v3942 = vld [vmem:[%s2413 + $0x160] sm:$0xff]
    %v3943 = vld [vmem:[%s2413 + $0x168] sm:$0xff]
    %v3944 = vld [vmem:[%s2413 + $0x170] sm:$0xff]
    %v3945 = vld [vmem:[%s2413 + $0x178] sm:$0xff]
    %v3946 = vld [vmem:[%s2413 + $0x180] sm:$0xff]
    %v3947 = vld [vmem:[%s2413 + $0x188] sm:$0xff]
    %v3948 = vld [vmem:[%s2413 + $0x190] sm:$0xff]
    %v3949 = vld [vmem:[%s2413 + $0x198] sm:$0xff]
    %v3950 = vld [vmem:[%s2413 + $0x1a0] sm:$0xff]
    %v3951 = vld [vmem:[%s2413 + $0x1a8] sm:$0xff]
    %v3952 = vld [vmem:[%s2413 + $0x1b0] sm:$0xff]
    %v3953 = vld [vmem:[%s2413 + $0x1b8] sm:$0xff]
    %v3954 = vld [vmem:[%s2413 + $0x1c0] sm:$0xff]
    %v3955 = vld [vmem:[%s2413 + $0x1c8] sm:$0xff]
    %v3956 = vld [vmem:[%s2413 + $0x1d0] sm:$0xff]
    %v3957 = vld [vmem:[%s2413 + $0x1d8] sm:$0xff]
    %v3958 = vld [vmem:[%s2413 + $0x1e0] sm:$0xff]
    %v3959 = vld [vmem:[%s2413 + $0x1e8] sm:$0xff]
    %v3960 = vld [vmem:[%s2413 + $0x1f0] sm:$0xff]
    %v3961 = vld [vmem:[%s2413 + $0x1f8] sm:$0xff]
    %3962 = vmatpush.msra.mxu0 %v3958
    %3963 = vmatpush.msra.mxu0 %v3954
    %3964 = vmatpush.msra.mxu0 %v3950
    %3965 = vmatpush.msra.mxu0 %v3946
    %3966 = vmatpush.msra.mxu0 %v3942
    %3967 = vmatpush.msra.mxu0 %v3938
    %3968 = vmatpush.msra.mxu0 %v3934
    %3969 = vmatpush.msra.mxu0 %v3930
    %3970 = vmatpush.msra.mxu0 %v3926
    %3971 = vmatpush.msra.mxu0 %v3922
    %3972 = vmatpush.msra.mxu0 %v3918
    %3973 = vmatpush.msra.mxu0 %v3914
    %3974 = vmatpush.msra.mxu0 %v3910
    %3975 = vmatpush.msra.mxu0 %v3906
    %3976 = vmatpush.msra.mxu0 %v3902
    %3977 = vmatpush.msra.mxu0 %v3898
    %3978 = vmatmul.f32.gmra.mxu0 %v3896
    %v3979 = vpop.f32.mrf.mxu0
    %v3980 = vadd.f32 0.0, %v3979
    %3981 = vdwg.mxu0
    %3982 = vmatpush.msra.mxu0 %v3959
    %3983 = vmatpush.msra.mxu0 %v3955
    %3984 = vmatpush.msra.mxu0 %v3951
    %3985 = vmatpush.msra.mxu0 %v3947
    %3986 = vmatpush.msra.mxu0 %v3943
    %3987 = vmatpush.msra.mxu0 %v3939
    %3988 = vmatpush.msra.mxu0 %v3935
    %3989 = vmatpush.msra.mxu0 %v3931
    %3990 = vmatpush.msra.mxu0 %v3927
    %3991 = vmatpush.msra.mxu0 %v3923
    %3992 = vmatpush.msra.mxu0 %v3919
    %3993 = vmatpush.msra.mxu0 %v3915
    %3994 = vmatpush.msra.mxu0 %v3911
    %3995 = vmatpush.msra.mxu0 %v3907
    %3996 = vmatpush.msra.mxu0 %v3903
    %3997 = vmatpush.msra.mxu0 %v3899
    %3998 = vmatmul.f32.gmra.mxu0 %v3896
    %v3999 = vpop.f32.mrf.mxu0
    %v4000 = vadd.f32 0.0, %v3999
    %4001 = vdwg.mxu0
    %4002 = vmatpush.msra.mxu0 %v3960
    %4003 = vmatpush.msra.mxu0 %v3956
    %4004 = vmatpush.msra.mxu0 %v3952
    %4005 = vmatpush.msra.mxu0 %v3948
    %4006 = vmatpush.msra.mxu0 %v3944
    %4007 = vmatpush.msra.mxu0 %v3940
    %4008 = vmatpush.msra.mxu0 %v3936
    %4009 = vmatpush.msra.mxu0 %v3932
    %4010 = vmatpush.msra.mxu0 %v3928
    %4011 = vmatpush.msra.mxu0 %v3924
    %4012 = vmatpush.msra.mxu0 %v3920
    %4013 = vmatpush.msra.mxu0 %v3916
    %4014 = vmatpush.msra.mxu0 %v3912
    %4015 = vmatpush.msra.mxu0 %v3908
    %4016 = vmatpush.msra.mxu0 %v3904
    %4017 = vmatpush.msra.mxu0 %v3900
    %4018 = vmatmul.f32.gmra.mxu0 %v3896
    %v4019 = vpop.f32.mrf.mxu0
    %v4020 = vadd.f32 0.0, %v4019
    %4021 = vdwg.mxu0
    %4022 = vmatpush.msra.mxu0 %v3961
    %4023 = vmatpush.msra.mxu0 %v3957
    %4024 = vmatpush.msra.mxu0 %v3953
    %4025 = vmatpush.msra.mxu0 %v3949
    %4026 = vmatpush.msra.mxu0 %v3945
    %4027 = vmatpush.msra.mxu0 %v3941
    %4028 = vmatpush.msra.mxu0 %v3937
    %4029 = vmatpush.msra.mxu0 %v3933
    %4030 = vmatpush.msra.mxu0 %v3929
    %4031 = vmatpush.msra.mxu0 %v3925
    %4032 = vmatpush.msra.mxu0 %v3921
    %4033 = vmatpush.msra.mxu0 %v3917
    %4034 = vmatpush.msra.mxu0 %v3913
    %4035 = vmatpush.msra.mxu0 %v3909
    %4036 = vmatpush.msra.mxu0 %v3905
    %4037 = vmatpush.msra.mxu0 %v3901
    %4038 = vmatmul.f32.gmra.mxu0 %v3896
    %v4039 = vpop.f32.mrf.mxu0
    %v4040 = vadd.f32 0.0, %v4039
    %4041 = vdwg.mxu0
    %v4042 = vadd.f32 %v2288, %v3980
    %v4043 = vadd.f32 %v2329, %v4000
    %v4044 = vadd.f32 %v2370, %v4020
    %v4045 = vadd.f32 %v2411, %v4040
    %v4046 = vxor.u32 %v4042, 2147483648
    %v4047 = vmul.f32 %v4046, 1.442695
    %v4048 = vpow.pop %v4047
    %v4049 = vadd.f32 %v4048, 1.0
    %v4050 = vrcp.pop %v4049
    %v4051 = vmul.f32 %v4049, %v4050
    %v4052 = vsub.f32 1.0, %v4051
    %v4053 = vmul.f32 %v4050, %v4052
    %v4054 = vadd.f32 %v4050, %v4053
    %vm4055 = vweird.f32 %v4049
    %vm4056 = vweird.f32 %v4050
    %vm4057 = vmor %vm4055, %vm4056
    %v4058 = vsel %vm4057, %v4050, %v4054
    %v4059 = vand.u32 2147483647, %v4049
    %vm4060 = vcmp.eq.f32.partialorder %v4059, 8.507059e+37
    %v4061 = vand.u32 %v4049, 2147483648
    %v4062 = vor.u32 1.1754944e-38, %v4061
    %v4063 = vsel %vm4060, %v4062, %v4058
    %v4064 = vmul.f32 1.0, %v4063
    %v4065 = vxor.u32 %v4043, 2147483648
    %v4066 = vmul.f32 %v4065, 1.442695
    %v4067 = vpow.pop %v4066
    %v4068 = vadd.f32 %v4067, 1.0
    %v4069 = vrcp.pop %v4068
    %v4070 = vmul.f32 %v4068, %v4069
    %v4071 = vsub.f32 1.0, %v4070
    %v4072 = vmul.f32 %v4069, %v4071
    %v4073 = vadd.f32 %v4069, %v4072
    %vm4074 = vweird.f32 %v4068
    %vm4075 = vweird.f32 %v4069
    %vm4076 = vmor %vm4074, %vm4075
    %v4077 = vsel %vm4076, %v4069, %v4073
    %v4078 = vand.u32 2147483647, %v4068
    %vm4079 = vcmp.eq.f32.partialorder %v4078, 8.507059e+37
    %v4080 = vand.u32 %v4068, 2147483648
    %v4081 = vor.u32 1.1754944e-38, %v4080
    %v4082 = vsel %vm4079, %v4081, %v4077
    %v4083 = vmul.f32 1.0, %v4082
    %v4084 = vtanh.pop %v4044
    %v4085 = vxor.u32 %v4045, 2147483648
    %v4086 = vmul.f32 %v4085, 1.442695
    %v4087 = vpow.pop %v4086
    %v4088 = vadd.f32 %v4087, 1.0
    %v4089 = vrcp.pop %v4088
    %v4090 = vmul.f32 %v4088, %v4089
    %v4091 = vsub.f32 1.0, %v4090
    %v4092 = vmul.f32 %v4089, %v4091
    %v4093 = vadd.f32 %v4089, %v4092
    %vm4094 = vweird.f32 %v4088
    %vm4095 = vweird.f32 %v4089
    %vm4096 = vmor %vm4094, %vm4095
    %v4097 = vsel %vm4096, %v4089, %v4093
    %v4098 = vand.u32 2147483647, %v4088
    %vm4099 = vcmp.eq.f32.partialorder %v4098, 8.507059e+37
    %v4100 = vand.u32 %v4088, 2147483648
    %v4101 = vor.u32 1.1754944e-38, %v4100
    %v4102 = vsel %vm4099, %v4101, %v4097
    %v4103 = vmul.f32 1.0, %v4102
    %v4104 = vmul.f32 %v4083, %v3894
    %v4105 = vmul.f32 %v4064, %v4084
    %v4106 = vadd.f32 %v4104, %v4105
    %v4107 = vtanh.pop %v4106
    %v4108 = vmul.f32 %v4103, %v4107
    %4109 = vst [vmem:[#allocation2 + $0x38] sm:$0xff] %v4108
    %4110 = vst [vmem:[#allocation3 + $0x10] sm:$0xff] %v4108
    %4111 = vst [vmem:[#allocation3 + $0x18] sm:$0xff] %v4106
    %v4112 = vld [vmem:[#allocation2] sm:$0xff]
    %v4113 = vld [vmem:[#allocation2 + $0x8] sm:$0xff]
    %v4114 = vld [vmem:[#allocation2 + $0x10] sm:$0xff]
    %v4115 = vld [vmem:[#allocation2 + $0x18] sm:$0xff]
    %v4116 = vld [vmem:[#allocation2 + $0x20] sm:$0xff]
    %v4117 = vld [vmem:[#allocation2 + $0x28] sm:$0xff]
    %v4118 = vld [vmem:[#allocation2 + $0x30] sm:$0xff]
    %v4119 = vld [vmem:[#allocation2 + $0x38] sm:$0xff]
    %s4120 = scalar_lea.vmem [#allocation7], 1024
    %v4121 = vld [vmem:[%s4120] sm:$0xff]
    %v4122 = vld [vmem:[%s4120 + $0x8] sm:$0xff]
    %v4123 = vld [vmem:[%s4120 + $0x10] sm:$0xff]
    %v4124 = vld [vmem:[%s4120 + $0x18] sm:$0xff]
    %v4125 = vld [vmem:[%s4120 + $0x20] sm:$0xff]
    %v4126 = vld [vmem:[%s4120 + $0x28] sm:$0xff]
    %v4127 = vld [vmem:[%s4120 + $0x30] sm:$0xff]
    %v4128 = vld [vmem:[%s4120 + $0x38] sm:$0xff]
    %v4129 = vld [vmem:[%s4120 + $0x40] sm:$0xff]
    %v4130 = vld [vmem:[%s4120 + $0x48] sm:$0xff]
    %v4131 = vld [vmem:[%s4120 + $0x50] sm:$0xff]
    %v4132 = vld [vmem:[%s4120 + $0x58] sm:$0xff]
    %v4133 = vld [vmem:[%s4120 + $0x60] sm:$0xff]
    %v4134 = vld [vmem:[%s4120 + $0x68] sm:$0xff]
    %v4135 = vld [vmem:[%s4120 + $0x70] sm:$0xff]
    %v4136 = vld [vmem:[%s4120 + $0x78] sm:$0xff]
    %v4137 = vld [vmem:[%s4120 + $0x80] sm:$0xff]
    %v4138 = vld [vmem:[%s4120 + $0x88] sm:$0xff]
    %v4139 = vld [vmem:[%s4120 + $0x90] sm:$0xff]
    %v4140 = vld [vmem:[%s4120 + $0x98] sm:$0xff]
    %v4141 = vld [vmem:[%s4120 + $0xa0] sm:$0xff]
    %v4142 = vld [vmem:[%s4120 + $0xa8] sm:$0xff]
    %v4143 = vld [vmem:[%s4120 + $0xb0] sm:$0xff]
    %v4144 = vld [vmem:[%s4120 + $0xb8] sm:$0xff]
    %v4145 = vld [vmem:[%s4120 + $0xc0] sm:$0xff]
    %v4146 = vld [vmem:[%s4120 + $0xc8] sm:$0xff]
    %v4147 = vld [vmem:[%s4120 + $0xd0] sm:$0xff]
    %v4148 = vld [vmem:[%s4120 + $0xd8] sm:$0xff]
    %v4149 = vld [vmem:[%s4120 + $0xe0] sm:$0xff]
    %v4150 = vld [vmem:[%s4120 + $0xe8] sm:$0xff]
    %v4151 = vld [vmem:[%s4120 + $0xf0] sm:$0xff]
    %v4152 = vld [vmem:[%s4120 + $0xf8] sm:$0xff]
    %v4153 = vld [vmem:[%s4120 + $0x100] sm:$0xff]
    %v4154 = vld [vmem:[%s4120 + $0x108] sm:$0xff]
    %v4155 = vld [vmem:[%s4120 + $0x110] sm:$0xff]
    %v4156 = vld [vmem:[%s4120 + $0x118] sm:$0xff]
    %v4157 = vld [vmem:[%s4120 + $0x120] sm:$0xff]
    %v4158 = vld [vmem:[%s4120 + $0x128] sm:$0xff]
    %v4159 = vld [vmem:[%s4120 + $0x130] sm:$0xff]
    %v4160 = vld [vmem:[%s4120 + $0x138] sm:$0xff]
    %v4161 = vld [vmem:[%s4120 + $0x140] sm:$0xff]
    %v4162 = vld [vmem:[%s4120 + $0x148] sm:$0xff]
    %v4163 = vld [vmem:[%s4120 + $0x150] sm:$0xff]
    %v4164 = vld [vmem:[%s4120 + $0x158] sm:$0xff]
    %v4165 = vld [vmem:[%s4120 + $0x160] sm:$0xff]
    %v4166 = vld [vmem:[%s4120 + $0x168] sm:$0xff]
    %v4167 = vld [vmem:[%s4120 + $0x170] sm:$0xff]
    %v4168 = vld [vmem:[%s4120 + $0x178] sm:$0xff]
    %v4169 = vld [vmem:[%s4120 + $0x180] sm:$0xff]
    %v4170 = vld [vmem:[%s4120 + $0x188] sm:$0xff]
    %v4171 = vld [vmem:[%s4120 + $0x190] sm:$0xff]
    %v4172 = vld [vmem:[%s4120 + $0x198] sm:$0xff]
    %v4173 = vld [vmem:[%s4120 + $0x1a0] sm:$0xff]
    %v4174 = vld [vmem:[%s4120 + $0x1a8] sm:$0xff]
    %v4175 = vld [vmem:[%s4120 + $0x1b0] sm:$0xff]
    %v4176 = vld [vmem:[%s4120 + $0x1b8] sm:$0xff]
    %v4177 = vld [vmem:[%s4120 + $0x1c0] sm:$0xff]
    %v4178 = vld [vmem:[%s4120 + $0x1c8] sm:$0xff]
    %v4179 = vld [vmem:[%s4120 + $0x1d0] sm:$0xff]
    %v4180 = vld [vmem:[%s4120 + $0x1d8] sm:$0xff]
    %v4181 = vld [vmem:[%s4120 + $0x1e0] sm:$0xff]
    %v4182 = vld [vmem:[%s4120 + $0x1e8] sm:$0xff]
    %v4183 = vld [vmem:[%s4120 + $0x1f0] sm:$0xff]
    %v4184 = vld [vmem:[%s4120 + $0x1f8] sm:$0xff]
    %s4185 = scalar_lea.vmem %s4, 8
    %v4186 = vld [vmem:[%s4185] sm:$0xf]
    %v4188 = vperm.slane %v4186, 0
    %v4189 = vperm.slane %v4186, 1
    %v4190 = vperm.slane %v4186, 2
    %v4191 = vperm.slane %v4186, 3
    %4196 = vmatpush.msra.mxu0 %v4181
    %4197 = vmatpush.msra.mxu0 %v4177
    %4198 = vmatpush.msra.mxu0 %v4173
    %4199 = vmatpush.msra.mxu0 %v4169
    %4200 = vmatpush.msra.mxu0 %v4165
    %4201 = vmatpush.msra.mxu0 %v4161
    %4202 = vmatpush.msra.mxu0 %v4157
    %4203 = vmatpush.msra.mxu0 %v4153
    %4204 = vmatpush.msra.mxu0 %v4149
    %4205 = vmatpush.msra.mxu0 %v4145
    %4206 = vmatpush.msra.mxu0 %v4141
    %4207 = vmatpush.msra.mxu0 %v4137
    %4208 = vmatpush.msra.mxu0 %v4133
    %4209 = vmatpush.msra.mxu0 %v4129
    %4210 = vmatpush.msra.mxu0 %v4125
    %4211 = vmatpush.msra.mxu0 %v4121
    %4212 = vmatmul.f32.gmra.mxu0 %v4112
    %v4213 = vpop.f32.mrf.mxu0
    %v4214 = vadd.f32 %v4188, %v4213
    %4215 = vmatmul.f32.gmra.mxu0 %v4113
    %v4216 = vpop.f32.mrf.mxu0
    %v4217 = vadd.f32 %v4188, %v4216
    %4218 = vmatmul.f32.gmra.mxu0 %v4114
    %v4219 = vpop.f32.mrf.mxu0
    %v4220 = vadd.f32 %v4188, %v4219
    %4221 = vmatmul.f32.gmra.mxu0 %v4115
    %v4222 = vpop.f32.mrf.mxu0
    %v4223 = vadd.f32 %v4188, %v4222
    %4224 = vmatmul.f32.gmra.mxu0 %v4116
    %v4225 = vpop.f32.mrf.mxu0
    %v4226 = vadd.f32 %v4188, %v4225
    %4227 = vmatmul.f32.gmra.mxu0 %v4117
    %v4228 = vpop.f32.mrf.mxu0
    %v4229 = vadd.f32 %v4188, %v4228
    %4230 = vmatmul.f32.gmra.mxu0 %v4118
    %v4231 = vpop.f32.mrf.mxu0
    %v4232 = vadd.f32 %v4188, %v4231
    %4233 = vmatmul.f32.gmra.mxu0 %v4119
    %v4234 = vpop.f32.mrf.mxu0
    %v4235 = vadd.f32 %v4188, %v4234
    %4236 = vdwg.mxu0
    %4237 = vmatpush.msra.mxu0 %v4182
    %4238 = vmatpush.msra.mxu0 %v4178
    %4239 = vmatpush.msra.mxu0 %v4174
    %4240 = vmatpush.msra.mxu0 %v4170
    %4241 = vmatpush.msra.mxu0 %v4166
    %4242 = vmatpush.msra.mxu0 %v4162
    %4243 = vmatpush.msra.mxu0 %v4158
    %4244 = vmatpush.msra.mxu0 %v4154
    %4245 = vmatpush.msra.mxu0 %v4150
    %4246 = vmatpush.msra.mxu0 %v4146
    %4247 = vmatpush.msra.mxu0 %v4142
    %4248 = vmatpush.msra.mxu0 %v4138
    %4249 = vmatpush.msra.mxu0 %v4134
    %4250 = vmatpush.msra.mxu0 %v4130
    %4251 = vmatpush.msra.mxu0 %v4126
    %4252 = vmatpush.msra.mxu0 %v4122
    %4253 = vmatmul.f32.gmra.mxu0 %v4112
    %v4254 = vpop.f32.mrf.mxu0
    %v4255 = vadd.f32 %v4189, %v4254
    %4256 = vmatmul.f32.gmra.mxu0 %v4113
    %v4257 = vpop.f32.mrf.mxu0
    %v4258 = vadd.f32 %v4189, %v4257
    %4259 = vmatmul.f32.gmra.mxu0 %v4114
    %v4260 = vpop.f32.mrf.mxu0
    %v4261 = vadd.f32 %v4189, %v4260
    %4262 = vmatmul.f32.gmra.mxu0 %v4115
    %v4263 = vpop.f32.mrf.mxu0
    %v4264 = vadd.f32 %v4189, %v4263
    %4265 = vmatmul.f32.gmra.mxu0 %v4116
    %v4266 = vpop.f32.mrf.mxu0
    %v4267 = vadd.f32 %v4189, %v4266
    %4268 = vmatmul.f32.gmra.mxu0 %v4117
    %v4269 = vpop.f32.mrf.mxu0
    %v4270 = vadd.f32 %v4189, %v4269
    %4271 = vmatmul.f32.gmra.mxu0 %v4118
    %v4272 = vpop.f32.mrf.mxu0
    %v4273 = vadd.f32 %v4189, %v4272
    %4274 = vmatmul.f32.gmra.mxu0 %v4119
    %v4275 = vpop.f32.mrf.mxu0
    %v4276 = vadd.f32 %v4189, %v4275
    %4277 = vdwg.mxu0
    %4278 = vmatpush.msra.mxu0 %v4183
    %4279 = vmatpush.msra.mxu0 %v4179
    %4280 = vmatpush.msra.mxu0 %v4175
    %4281 = vmatpush.msra.mxu0 %v4171
    %4282 = vmatpush.msra.mxu0 %v4167
    %4283 = vmatpush.msra.mxu0 %v4163
    %4284 = vmatpush.msra.mxu0 %v4159
    %4285 = vmatpush.msra.mxu0 %v4155
    %4286 = vmatpush.msra.mxu0 %v4151
    %4287 = vmatpush.msra.mxu0 %v4147
    %4288 = vmatpush.msra.mxu0 %v4143
    %4289 = vmatpush.msra.mxu0 %v4139
    %4290 = vmatpush.msra.mxu0 %v4135
    %4291 = vmatpush.msra.mxu0 %v4131
    %4292 = vmatpush.msra.mxu0 %v4127
    %4293 = vmatpush.msra.mxu0 %v4123
    %4294 = vmatmul.f32.gmra.mxu0 %v4112
    %v4295 = vpop.f32.mrf.mxu0
    %v4296 = vadd.f32 %v4190, %v4295
    %4297 = vmatmul.f32.gmra.mxu0 %v4113
    %v4298 = vpop.f32.mrf.mxu0
    %v4299 = vadd.f32 %v4190, %v4298
    %4300 = vmatmul.f32.gmra.mxu0 %v4114
    %v4301 = vpop.f32.mrf.mxu0
    %v4302 = vadd.f32 %v4190, %v4301
    %4303 = vmatmul.f32.gmra.mxu0 %v4115
    %v4304 = vpop.f32.mrf.mxu0
    %v4305 = vadd.f32 %v4190, %v4304
    %4306 = vmatmul.f32.gmra.mxu0 %v4116
    %v4307 = vpop.f32.mrf.mxu0
    %v4308 = vadd.f32 %v4190, %v4307
    %4309 = vmatmul.f32.gmra.mxu0 %v4117
    %v4310 = vpop.f32.mrf.mxu0
    %v4311 = vadd.f32 %v4190, %v4310
    %4312 = vmatmul.f32.gmra.mxu0 %v4118
    %v4313 = vpop.f32.mrf.mxu0
    %v4314 = vadd.f32 %v4190, %v4313
    %4315 = vmatmul.f32.gmra.mxu0 %v4119
    %v4316 = vpop.f32.mrf.mxu0
    %v4317 = vadd.f32 %v4190, %v4316
    %4318 = vdwg.mxu0
    %4319 = vmatpush.msra.mxu0 %v4184
    %4320 = vmatpush.msra.mxu0 %v4180
    %4321 = vmatpush.msra.mxu0 %v4176
    %4322 = vmatpush.msra.mxu0 %v4172
    %4323 = vmatpush.msra.mxu0 %v4168
    %4324 = vmatpush.msra.mxu0 %v4164
    %4325 = vmatpush.msra.mxu0 %v4160
    %4326 = vmatpush.msra.mxu0 %v4156
    %4327 = vmatpush.msra.mxu0 %v4152
    %4328 = vmatpush.msra.mxu0 %v4148
    %4329 = vmatpush.msra.mxu0 %v4144
    %4330 = vmatpush.msra.mxu0 %v4140
    %4331 = vmatpush.msra.mxu0 %v4136
    %4332 = vmatpush.msra.mxu0 %v4132
    %4333 = vmatpush.msra.mxu0 %v4128
    %4334 = vmatpush.msra.mxu0 %v4124
    %4335 = vmatmul.f32.gmra.mxu0 %v4112
    %v4336 = vpop.f32.mrf.mxu0
    %v4337 = vadd.f32 %v4191, %v4336
    %4338 = vmatmul.f32.gmra.mxu0 %v4113
    %v4339 = vpop.f32.mrf.mxu0
    %v4340 = vadd.f32 %v4191, %v4339
    %4341 = vmatmul.f32.gmra.mxu0 %v4114
    %v4342 = vpop.f32.mrf.mxu0
    %v4343 = vadd.f32 %v4191, %v4342
    %4344 = vmatmul.f32.gmra.mxu0 %v4115
    %v4345 = vpop.f32.mrf.mxu0
    %v4346 = vadd.f32 %v4191, %v4345
    %4347 = vmatmul.f32.gmra.mxu0 %v4116
    %v4348 = vpop.f32.mrf.mxu0
    %v4349 = vadd.f32 %v4191, %v4348
    %4350 = vmatmul.f32.gmra.mxu0 %v4117
    %v4351 = vpop.f32.mrf.mxu0
    %v4352 = vadd.f32 %v4191, %v4351
    %4353 = vmatmul.f32.gmra.mxu0 %v4118
    %v4354 = vpop.f32.mrf.mxu0
    %v4355 = vadd.f32 %v4191, %v4354
    %4356 = vmatmul.f32.gmra.mxu0 %v4119
    %v4357 = vpop.f32.mrf.mxu0
    %v4358 = vadd.f32 %v4191, %v4357
    %4359 = vdwg.mxu0
    %s4360 = scalar_lea.vmem [#allocation9], 1024
    %v4361 = vld [vmem:[%s4360] sm:$0xff]
    %v4362 = vld [vmem:[%s4360 + $0x8] sm:$0xff]
    %v4363 = vld [vmem:[%s4360 + $0x10] sm:$0xff]
    %v4364 = vld [vmem:[%s4360 + $0x18] sm:$0xff]
    %v4365 = vld [vmem:[%s4360 + $0x20] sm:$0xff]
    %v4366 = vld [vmem:[%s4360 + $0x28] sm:$0xff]
    %v4367 = vld [vmem:[%s4360 + $0x30] sm:$0xff]
    %v4368 = vld [vmem:[%s4360 + $0x38] sm:$0xff]
    %v4369 = vld [vmem:[%s4360 + $0x40] sm:$0xff]
    %v4370 = vld [vmem:[%s4360 + $0x48] sm:$0xff]
    %v4371 = vld [vmem:[%s4360 + $0x50] sm:$0xff]
    %v4372 = vld [vmem:[%s4360 + $0x58] sm:$0xff]
    %v4373 = vld [vmem:[%s4360 + $0x60] sm:$0xff]
    %v4374 = vld [vmem:[%s4360 + $0x68] sm:$0xff]
    %v4375 = vld [vmem:[%s4360 + $0x70] sm:$0xff]
    %v4376 = vld [vmem:[%s4360 + $0x78] sm:$0xff]
    %v4377 = vld [vmem:[%s4360 + $0x80] sm:$0xff]
    %v4378 = vld [vmem:[%s4360 + $0x88] sm:$0xff]
    %v4379 = vld [vmem:[%s4360 + $0x90] sm:$0xff]
    %v4380 = vld [vmem:[%s4360 + $0x98] sm:$0xff]
    %v4381 = vld [vmem:[%s4360 + $0xa0] sm:$0xff]
    %v4382 = vld [vmem:[%s4360 + $0xa8] sm:$0xff]
    %v4383 = vld [vmem:[%s4360 + $0xb0] sm:$0xff]
    %v4384 = vld [vmem:[%s4360 + $0xb8] sm:$0xff]
    %v4385 = vld [vmem:[%s4360 + $0xc0] sm:$0xff]
    %v4386 = vld [vmem:[%s4360 + $0xc8] sm:$0xff]
    %v4387 = vld [vmem:[%s4360 + $0xd0] sm:$0xff]
    %v4388 = vld [vmem:[%s4360 + $0xd8] sm:$0xff]
    %v4389 = vld [vmem:[%s4360 + $0xe0] sm:$0xff]
    %v4390 = vld [vmem:[%s4360 + $0xe8] sm:$0xff]
    %v4391 = vld [vmem:[%s4360 + $0xf0] sm:$0xff]
    %v4392 = vld [vmem:[%s4360 + $0xf8] sm:$0xff]
    %v4393 = vld [vmem:[%s4360 + $0x100] sm:$0xff]
    %v4394 = vld [vmem:[%s4360 + $0x108] sm:$0xff]
    %v4395 = vld [vmem:[%s4360 + $0x110] sm:$0xff]
    %v4396 = vld [vmem:[%s4360 + $0x118] sm:$0xff]
    %v4397 = vld [vmem:[%s4360 + $0x120] sm:$0xff]
    %v4398 = vld [vmem:[%s4360 + $0x128] sm:$0xff]
    %v4399 = vld [vmem:[%s4360 + $0x130] sm:$0xff]
    %v4400 = vld [vmem:[%s4360 + $0x138] sm:$0xff]
    %v4401 = vld [vmem:[%s4360 + $0x140] sm:$0xff]
    %v4402 = vld [vmem:[%s4360 + $0x148] sm:$0xff]
    %v4403 = vld [vmem:[%s4360 + $0x150] sm:$0xff]
    %v4404 = vld [vmem:[%s4360 + $0x158] sm:$0xff]
    %v4405 = vld [vmem:[%s4360 + $0x160] sm:$0xff]
    %v4406 = vld [vmem:[%s4360 + $0x168] sm:$0xff]
    %v4407 = vld [vmem:[%s4360 + $0x170] sm:$0xff]
    %v4408 = vld [vmem:[%s4360 + $0x178] sm:$0xff]
    %v4409 = vld [vmem:[%s4360 + $0x180] sm:$0xff]
    %v4410 = vld [vmem:[%s4360 + $0x188] sm:$0xff]
    %v4411 = vld [vmem:[%s4360 + $0x190] sm:$0xff]
    %v4412 = vld [vmem:[%s4360 + $0x198] sm:$0xff]
    %v4413 = vld [vmem:[%s4360 + $0x1a0] sm:$0xff]
    %v4414 = vld [vmem:[%s4360 + $0x1a8] sm:$0xff]
    %v4415 = vld [vmem:[%s4360 + $0x1b0] sm:$0xff]
    %v4416 = vld [vmem:[%s4360 + $0x1b8] sm:$0xff]
    %v4417 = vld [vmem:[%s4360 + $0x1c0] sm:$0xff]
    %v4418 = vld [vmem:[%s4360 + $0x1c8] sm:$0xff]
    %v4419 = vld [vmem:[%s4360 + $0x1d0] sm:$0xff]
    %v4420 = vld [vmem:[%s4360 + $0x1d8] sm:$0xff]
    %v4421 = vld [vmem:[%s4360 + $0x1e0] sm:$0xff]
    %v4422 = vld [vmem:[%s4360 + $0x1e8] sm:$0xff]
    %v4423 = vld [vmem:[%s4360 + $0x1f0] sm:$0xff]
    %v4424 = vld [vmem:[%s4360 + $0x1f8] sm:$0xff]
    %4425 = vmatpush.msra.mxu0 %v4421
    %4426 = vmatpush.msra.mxu0 %v4417
    %4427 = vmatpush.msra.mxu0 %v4413
    %4428 = vmatpush.msra.mxu0 %v4409
    %4429 = vmatpush.msra.mxu0 %v4405
    %4430 = vmatpush.msra.mxu0 %v4401
    %4431 = vmatpush.msra.mxu0 %v4397
    %4432 = vmatpush.msra.mxu0 %v4393
    %4433 = vmatpush.msra.mxu0 %v4389
    %4434 = vmatpush.msra.mxu0 %v4385
    %4435 = vmatpush.msra.mxu0 %v4381
    %4436 = vmatpush.msra.mxu0 %v4377
    %4437 = vmatpush.msra.mxu0 %v4373
    %4438 = vmatpush.msra.mxu0 %v4369
    %4439 = vmatpush.msra.mxu0 %v4365
    %4440 = vmatpush.msra.mxu0 %v4361
    %4441 = vmatmul.f32.gmra.mxu0 0.0
    %v4442 = vpop.f32.mrf.mxu0
    %v4443 = vadd.f32 0.0, %v4442
    %4444 = vdwg.mxu0
    %4445 = vmatpush.msra.mxu0 %v4422
    %4446 = vmatpush.msra.mxu0 %v4418
    %4447 = vmatpush.msra.mxu0 %v4414
    %4448 = vmatpush.msra.mxu0 %v4410
    %4449 = vmatpush.msra.mxu0 %v4406
    %4450 = vmatpush.msra.mxu0 %v4402
    %4451 = vmatpush.msra.mxu0 %v4398
    %4452 = vmatpush.msra.mxu0 %v4394
    %4453 = vmatpush.msra.mxu0 %v4390
    %4454 = vmatpush.msra.mxu0 %v4386
    %4455 = vmatpush.msra.mxu0 %v4382
    %4456 = vmatpush.msra.mxu0 %v4378
    %4457 = vmatpush.msra.mxu0 %v4374
    %4458 = vmatpush.msra.mxu0 %v4370
    %4459 = vmatpush.msra.mxu0 %v4366
    %4460 = vmatpush.msra.mxu0 %v4362
    %4461 = vmatmul.f32.gmra.mxu0 0.0
    %v4462 = vpop.f32.mrf.mxu0
    %v4463 = vadd.f32 0.0, %v4462
    %4464 = vdwg.mxu0
    %4465 = vmatpush.msra.mxu0 %v4423
    %4466 = vmatpush.msra.mxu0 %v4419
    %4467 = vmatpush.msra.mxu0 %v4415
    %4468 = vmatpush.msra.mxu0 %v4411
    %4469 = vmatpush.msra.mxu0 %v4407
    %4470 = vmatpush.msra.mxu0 %v4403
    %4471 = vmatpush.msra.mxu0 %v4399
    %4472 = vmatpush.msra.mxu0 %v4395
    %4473 = vmatpush.msra.mxu0 %v4391
    %4474 = vmatpush.msra.mxu0 %v4387
    %4475 = vmatpush.msra.mxu0 %v4383
    %4476 = vmatpush.msra.mxu0 %v4379
    %4477 = vmatpush.msra.mxu0 %v4375
    %4478 = vmatpush.msra.mxu0 %v4371
    %4479 = vmatpush.msra.mxu0 %v4367
    %4480 = vmatpush.msra.mxu0 %v4363
    %4481 = vmatmul.f32.gmra.mxu0 0.0
    %v4482 = vpop.f32.mrf.mxu0
    %v4483 = vadd.f32 0.0, %v4482
    %4484 = vdwg.mxu0
    %4485 = vmatpush.msra.mxu0 %v4424
    %4486 = vmatpush.msra.mxu0 %v4420
    %4487 = vmatpush.msra.mxu0 %v4416
    %4488 = vmatpush.msra.mxu0 %v4412
    %4489 = vmatpush.msra.mxu0 %v4408
    %4490 = vmatpush.msra.mxu0 %v4404
    %4491 = vmatpush.msra.mxu0 %v4400
    %4492 = vmatpush.msra.mxu0 %v4396
    %4493 = vmatpush.msra.mxu0 %v4392
    %4494 = vmatpush.msra.mxu0 %v4388
    %4495 = vmatpush.msra.mxu0 %v4384
    %4496 = vmatpush.msra.mxu0 %v4380
    %4497 = vmatpush.msra.mxu0 %v4376
    %4498 = vmatpush.msra.mxu0 %v4372
    %4499 = vmatpush.msra.mxu0 %v4368
    %4500 = vmatpush.msra.mxu0 %v4364
    %4501 = vmatmul.f32.gmra.mxu0 0.0
    %v4502 = vpop.f32.mrf.mxu0
    %v4503 = vadd.f32 0.0, %v4502
    %4504 = vdwg.mxu0
    %v4505 = vadd.f32 %v4214, %v4443
    %v4506 = vadd.f32 %v4255, %v4463
    %v4507 = vadd.f32 %v4296, %v4483
    %v4508 = vadd.f32 %v4337, %v4503
    %v4509 = vxor.u32 %v4505, 2147483648
    %v4510 = vmul.f32 %v4509, 1.442695
    %v4511 = vpow.pop %v4510
    %v4512 = vadd.f32 %v4511, 1.0
    %v4513 = vrcp.pop %v4512
    %v4514 = vmul.f32 %v4512, %v4513
    %v4515 = vsub.f32 1.0, %v4514
    %v4516 = vmul.f32 %v4513, %v4515
    %v4517 = vadd.f32 %v4513, %v4516
    %vm4518 = vweird.f32 %v4512
    %vm4519 = vweird.f32 %v4513
    %vm4520 = vmor %vm4518, %vm4519
    %v4521 = vsel %vm4520, %v4513, %v4517
    %v4522 = vand.u32 2147483647, %v4512
    %vm4523 = vcmp.eq.f32.partialorder %v4522, 8.507059e+37
    %v4524 = vand.u32 %v4512, 2147483648
    %v4525 = vor.u32 1.1754944e-38, %v4524
    %v4526 = vsel %vm4523, %v4525, %v4521
    %v4527 = vmul.f32 1.0, %v4526
    %v4528 = vxor.u32 %v4506, 2147483648
    %v4529 = vmul.f32 %v4528, 1.442695
    %v4530 = vpow.pop %v4529
    %v4531 = vadd.f32 %v4530, 1.0
    %v4532 = vrcp.pop %v4531
    %v4533 = vmul.f32 %v4531, %v4532
    %v4534 = vsub.f32 1.0, %v4533
    %v4535 = vmul.f32 %v4532, %v4534
    %v4536 = vadd.f32 %v4532, %v4535
    %vm4537 = vweird.f32 %v4531
    %vm4538 = vweird.f32 %v4532
    %vm4539 = vmor %vm4537, %vm4538
    %v4540 = vsel %vm4539, %v4532, %v4536
    %v4541 = vand.u32 2147483647, %v4531
    %vm4542 = vcmp.eq.f32.partialorder %v4541, 8.507059e+37
    %v4543 = vand.u32 %v4531, 2147483648
    %v4544 = vor.u32 1.1754944e-38, %v4543
    %v4545 = vsel %vm4542, %v4544, %v4540
    %v4546 = vmul.f32 1.0, %v4545
    %v4547 = vtanh.pop %v4507
    %v4548 = vxor.u32 %v4508, 2147483648
    %v4549 = vmul.f32 %v4548, 1.442695
    %v4550 = vpow.pop %v4549
    %v4551 = vadd.f32 %v4550, 1.0
    %v4552 = vrcp.pop %v4551
    %v4553 = vmul.f32 %v4551, %v4552
    %v4554 = vsub.f32 1.0, %v4553
    %v4555 = vmul.f32 %v4552, %v4554
    %v4556 = vadd.f32 %v4552, %v4555
    %vm4557 = vweird.f32 %v4551
    %vm4558 = vweird.f32 %v4552
    %vm4559 = vmor %vm4557, %vm4558
    %v4560 = vsel %vm4559, %v4552, %v4556
    %v4561 = vand.u32 2147483647, %v4551
    %vm4562 = vcmp.eq.f32.partialorder %v4561, 8.507059e+37
    %v4563 = vand.u32 %v4551, 2147483648
    %v4564 = vor.u32 1.1754944e-38, %v4563
    %v4565 = vsel %vm4562, %v4564, %v4560
    %v4566 = vmul.f32 1.0, %v4565
    %v4567 = vmul.f32 %v4546, 0.0
    %v4568 = vmul.f32 %v4527, %v4547
    %v4569 = vadd.f32 %v4567, %v4568
    %v4570 = vtanh.pop %v4569
    %v4571 = vmul.f32 %v4566, %v4570
    %4572 = vst [vmem:[#allocation2] sm:$0xff] %v4571
    %v4573 = vld [vmem:[%s4360] sm:$0xff]
    %v4574 = vld [vmem:[%s4360 + $0x8] sm:$0xff]
    %v4575 = vld [vmem:[%s4360 + $0x10] sm:$0xff]
    %v4576 = vld [vmem:[%s4360 + $0x18] sm:$0xff]
    %v4577 = vld [vmem:[%s4360 + $0x20] sm:$0xff]
    %v4578 = vld [vmem:[%s4360 + $0x28] sm:$0xff]
    %v4579 = vld [vmem:[%s4360 + $0x30] sm:$0xff]
    %v4580 = vld [vmem:[%s4360 + $0x38] sm:$0xff]
    %v4581 = vld [vmem:[%s4360 + $0x40] sm:$0xff]
    %v4582 = vld [vmem:[%s4360 + $0x48] sm:$0xff]
    %v4583 = vld [vmem:[%s4360 + $0x50] sm:$0xff]
    %v4584 = vld [vmem:[%s4360 + $0x58] sm:$0xff]
    %v4585 = vld [vmem:[%s4360 + $0x60] sm:$0xff]
    %v4586 = vld [vmem:[%s4360 + $0x68] sm:$0xff]
    %v4587 = vld [vmem:[%s4360 + $0x70] sm:$0xff]
    %v4588 = vld [vmem:[%s4360 + $0x78] sm:$0xff]
    %v4589 = vld [vmem:[%s4360 + $0x80] sm:$0xff]
    %v4590 = vld [vmem:[%s4360 + $0x88] sm:$0xff]
    %v4591 = vld [vmem:[%s4360 + $0x90] sm:$0xff]
    %v4592 = vld [vmem:[%s4360 + $0x98] sm:$0xff]
    %v4593 = vld [vmem:[%s4360 + $0xa0] sm:$0xff]
    %v4594 = vld [vmem:[%s4360 + $0xa8] sm:$0xff]
    %v4595 = vld [vmem:[%s4360 + $0xb0] sm:$0xff]
    %v4596 = vld [vmem:[%s4360 + $0xb8] sm:$0xff]
    %v4597 = vld [vmem:[%s4360 + $0xc0] sm:$0xff]
    %v4598 = vld [vmem:[%s4360 + $0xc8] sm:$0xff]
    %v4599 = vld [vmem:[%s4360 + $0xd0] sm:$0xff]
    %v4600 = vld [vmem:[%s4360 + $0xd8] sm:$0xff]
    %v4601 = vld [vmem:[%s4360 + $0xe0] sm:$0xff]
    %v4602 = vld [vmem:[%s4360 + $0xe8] sm:$0xff]
    %v4603 = vld [vmem:[%s4360 + $0xf0] sm:$0xff]
    %v4604 = vld [vmem:[%s4360 + $0xf8] sm:$0xff]
    %v4605 = vld [vmem:[%s4360 + $0x100] sm:$0xff]
    %v4606 = vld [vmem:[%s4360 + $0x108] sm:$0xff]
    %v4607 = vld [vmem:[%s4360 + $0x110] sm:$0xff]
    %v4608 = vld [vmem:[%s4360 + $0x118] sm:$0xff]
    %v4609 = vld [vmem:[%s4360 + $0x120] sm:$0xff]
    %v4610 = vld [vmem:[%s4360 + $0x128] sm:$0xff]
    %v4611 = vld [vmem:[%s4360 + $0x130] sm:$0xff]
    %v4612 = vld [vmem:[%s4360 + $0x138] sm:$0xff]
    %v4613 = vld [vmem:[%s4360 + $0x140] sm:$0xff]
    %v4614 = vld [vmem:[%s4360 + $0x148] sm:$0xff]
    %v4615 = vld [vmem:[%s4360 + $0x150] sm:$0xff]
    %v4616 = vld [vmem:[%s4360 + $0x158] sm:$0xff]
    %v4617 = vld [vmem:[%s4360 + $0x160] sm:$0xff]
    %v4618 = vld [vmem:[%s4360 + $0x168] sm:$0xff]
    %v4619 = vld [vmem:[%s4360 + $0x170] sm:$0xff]
    %v4620 = vld [vmem:[%s4360 + $0x178] sm:$0xff]
    %v4621 = vld [vmem:[%s4360 + $0x180] sm:$0xff]
    %v4622 = vld [vmem:[%s4360 + $0x188] sm:$0xff]
    %v4623 = vld [vmem:[%s4360 + $0x190] sm:$0xff]
    %v4624 = vld [vmem:[%s4360 + $0x198] sm:$0xff]
    %v4625 = vld [vmem:[%s4360 + $0x1a0] sm:$0xff]
    %v4626 = vld [vmem:[%s4360 + $0x1a8] sm:$0xff]
    %v4627 = vld [vmem:[%s4360 + $0x1b0] sm:$0xff]
    %v4628 = vld [vmem:[%s4360 + $0x1b8] sm:$0xff]
    %v4629 = vld [vmem:[%s4360 + $0x1c0] sm:$0xff]
    %v4630 = vld [vmem:[%s4360 + $0x1c8] sm:$0xff]
    %v4631 = vld [vmem:[%s4360 + $0x1d0] sm:$0xff]
    %v4632 = vld [vmem:[%s4360 + $0x1d8] sm:$0xff]
    %v4633 = vld [vmem:[%s4360 + $0x1e0] sm:$0xff]
    %v4634 = vld [vmem:[%s4360 + $0x1e8] sm:$0xff]
    %v4635 = vld [vmem:[%s4360 + $0x1f0] sm:$0xff]
    %v4636 = vld [vmem:[%s4360 + $0x1f8] sm:$0xff]
    %4637 = vmatpush.msra.mxu0 %v4633
    %4638 = vmatpush.msra.mxu0 %v4629
    %4639 = vmatpush.msra.mxu0 %v4625
    %4640 = vmatpush.msra.mxu0 %v4621
    %4641 = vmatpush.msra.mxu0 %v4617
    %4642 = vmatpush.msra.mxu0 %v4613
    %4643 = vmatpush.msra.mxu0 %v4609
    %4644 = vmatpush.msra.mxu0 %v4605
    %4645 = vmatpush.msra.mxu0 %v4601
    %4646 = vmatpush.msra.mxu0 %v4597
    %4647 = vmatpush.msra.mxu0 %v4593
    %4648 = vmatpush.msra.mxu0 %v4589
    %4649 = vmatpush.msra.mxu0 %v4585
    %4650 = vmatpush.msra.mxu0 %v4581
    %4651 = vmatpush.msra.mxu0 %v4577
    %4652 = vmatpush.msra.mxu0 %v4573
    %4653 = vmatmul.f32.gmra.mxu0 %v4571
    %v4654 = vpop.f32.mrf.mxu0
    %v4655 = vadd.f32 0.0, %v4654
    %4656 = vdwg.mxu0
    %4657 = vmatpush.msra.mxu0 %v4634
    %4658 = vmatpush.msra.mxu0 %v4630
    %4659 = vmatpush.msra.mxu0 %v4626
    %4660 = vmatpush.msra.mxu0 %v4622
    %4661 = vmatpush.msra.mxu0 %v4618
    %4662 = vmatpush.msra.mxu0 %v4614
    %4663 = vmatpush.msra.mxu0 %v4610
    %4664 = vmatpush.msra.mxu0 %v4606
    %4665 = vmatpush.msra.mxu0 %v4602
    %4666 = vmatpush.msra.mxu0 %v4598
    %4667 = vmatpush.msra.mxu0 %v4594
    %4668 = vmatpush.msra.mxu0 %v4590
    %4669 = vmatpush.msra.mxu0 %v4586
    %4670 = vmatpush.msra.mxu0 %v4582
    %4671 = vmatpush.msra.mxu0 %v4578
    %4672 = vmatpush.msra.mxu0 %v4574
    %4673 = vmatmul.f32.gmra.mxu0 %v4571
    %v4674 = vpop.f32.mrf.mxu0
    %v4675 = vadd.f32 0.0, %v4674
    %4676 = vdwg.mxu0
    %4677 = vmatpush.msra.mxu0 %v4635
    %4678 = vmatpush.msra.mxu0 %v4631
    %4679 = vmatpush.msra.mxu0 %v4627
    %4680 = vmatpush.msra.mxu0 %v4623
    %4681 = vmatpush.msra.mxu0 %v4619
    %4682 = vmatpush.msra.mxu0 %v4615
    %4683 = vmatpush.msra.mxu0 %v4611
    %4684 = vmatpush.msra.mxu0 %v4607
    %4685 = vmatpush.msra.mxu0 %v4603
    %4686 = vmatpush.msra.mxu0 %v4599
    %4687 = vmatpush.msra.mxu0 %v4595
    %4688 = vmatpush.msra.mxu0 %v4591
    %4689 = vmatpush.msra.mxu0 %v4587
    %4690 = vmatpush.msra.mxu0 %v4583
    %4691 = vmatpush.msra.mxu0 %v4579
    %4692 = vmatpush.msra.mxu0 %v4575
    %4693 = vmatmul.f32.gmra.mxu0 %v4571
    %v4694 = vpop.f32.mrf.mxu0
    %v4695 = vadd.f32 0.0, %v4694
    %4696 = vdwg.mxu0
    %4697 = vmatpush.msra.mxu0 %v4636
    %4698 = vmatpush.msra.mxu0 %v4632
    %4699 = vmatpush.msra.mxu0 %v4628
    %4700 = vmatpush.msra.mxu0 %v4624
    %4701 = vmatpush.msra.mxu0 %v4620
    %4702 = vmatpush.msra.mxu0 %v4616
    %4703 = vmatpush.msra.mxu0 %v4612
    %4704 = vmatpush.msra.mxu0 %v4608
    %4705 = vmatpush.msra.mxu0 %v4604
    %4706 = vmatpush.msra.mxu0 %v4600
    %4707 = vmatpush.msra.mxu0 %v4596
    %4708 = vmatpush.msra.mxu0 %v4592
    %4709 = vmatpush.msra.mxu0 %v4588
    %4710 = vmatpush.msra.mxu0 %v4584
    %4711 = vmatpush.msra.mxu0 %v4580
    %4712 = vmatpush.msra.mxu0 %v4576
    %4713 = vmatmul.f32.gmra.mxu0 %v4571
    %v4714 = vpop.f32.mrf.mxu0
    %v4715 = vadd.f32 0.0, %v4714
    %4716 = vdwg.mxu0
    %v4717 = vadd.f32 %v4217, %v4655
    %v4718 = vadd.f32 %v4258, %v4675
    %v4719 = vadd.f32 %v4299, %v4695
    %v4720 = vadd.f32 %v4340, %v4715
    %v4721 = vxor.u32 %v4717, 2147483648
    %v4722 = vmul.f32 %v4721, 1.442695
    %v4723 = vpow.pop %v4722
    %v4724 = vadd.f32 %v4723, 1.0
    %v4725 = vrcp.pop %v4724
    %v4726 = vmul.f32 %v4724, %v4725
    %v4727 = vsub.f32 1.0, %v4726
    %v4728 = vmul.f32 %v4725, %v4727
    %v4729 = vadd.f32 %v4725, %v4728
    %vm4730 = vweird.f32 %v4724
    %vm4731 = vweird.f32 %v4725
    %vm4732 = vmor %vm4730, %vm4731
    %v4733 = vsel %vm4732, %v4725, %v4729
    %v4734 = vand.u32 2147483647, %v4724
    %vm4735 = vcmp.eq.f32.partialorder %v4734, 8.507059e+37
    %v4736 = vand.u32 %v4724, 2147483648
    %v4737 = vor.u32 1.1754944e-38, %v4736
    %v4738 = vsel %vm4735, %v4737, %v4733
    %v4739 = vmul.f32 1.0, %v4738
    %v4740 = vxor.u32 %v4718, 2147483648
    %v4741 = vmul.f32 %v4740, 1.442695
    %v4742 = vpow.pop %v4741
    %v4743 = vadd.f32 %v4742, 1.0
    %v4744 = vrcp.pop %v4743
    %v4745 = vmul.f32 %v4743, %v4744
    %v4746 = vsub.f32 1.0, %v4745
    %v4747 = vmul.f32 %v4744, %v4746
    %v4748 = vadd.f32 %v4744, %v4747
    %vm4749 = vweird.f32 %v4743
    %vm4750 = vweird.f32 %v4744
    %vm4751 = vmor %vm4749, %vm4750
    %v4752 = vsel %vm4751, %v4744, %v4748
    %v4753 = vand.u32 2147483647, %v4743
    %vm4754 = vcmp.eq.f32.partialorder %v4753, 8.507059e+37
    %v4755 = vand.u32 %v4743, 2147483648
    %v4756 = vor.u32 1.1754944e-38, %v4755
    %v4757 = vsel %vm4754, %v4756, %v4752
    %v4758 = vmul.f32 1.0, %v4757
    %v4759 = vtanh.pop %v4719
    %v4760 = vxor.u32 %v4720, 2147483648
    %v4761 = vmul.f32 %v4760, 1.442695
    %v4762 = vpow.pop %v4761
    %v4763 = vadd.f32 %v4762, 1.0
    %v4764 = vrcp.pop %v4763
    %v4765 = vmul.f32 %v4763, %v4764
    %v4766 = vsub.f32 1.0, %v4765
    %v4767 = vmul.f32 %v4764, %v4766
    %v4768 = vadd.f32 %v4764, %v4767
    %vm4769 = vweird.f32 %v4763
    %vm4770 = vweird.f32 %v4764
    %vm4771 = vmor %vm4769, %vm4770
    %v4772 = vsel %vm4771, %v4764, %v4768
    %v4773 = vand.u32 2147483647, %v4763
    %vm4774 = vcmp.eq.f32.partialorder %v4773, 8.507059e+37
    %v4775 = vand.u32 %v4763, 2147483648
    %v4776 = vor.u32 1.1754944e-38, %v4775
    %v4777 = vsel %vm4774, %v4776, %v4772
    %v4778 = vmul.f32 1.0, %v4777
    %v4779 = vmul.f32 %v4758, %v4569
    %v4780 = vmul.f32 %v4739, %v4759
    %v4781 = vadd.f32 %v4779, %v4780
    %v4782 = vtanh.pop %v4781
    %v4783 = vmul.f32 %v4778, %v4782
    %4784 = vst [vmem:[#allocation2 + $0x8] sm:$0xff] %v4783
    %v4785 = vld [vmem:[%s4360] sm:$0xff]
    %v4786 = vld [vmem:[%s4360 + $0x8] sm:$0xff]
    %v4787 = vld [vmem:[%s4360 + $0x10] sm:$0xff]
    %v4788 = vld [vmem:[%s4360 + $0x18] sm:$0xff]
    %v4789 = vld [vmem:[%s4360 + $0x20] sm:$0xff]
    %v4790 = vld [vmem:[%s4360 + $0x28] sm:$0xff]
    %v4791 = vld [vmem:[%s4360 + $0x30] sm:$0xff]
    %v4792 = vld [vmem:[%s4360 + $0x38] sm:$0xff]
    %v4793 = vld [vmem:[%s4360 + $0x40] sm:$0xff]
    %v4794 = vld [vmem:[%s4360 + $0x48] sm:$0xff]
    %v4795 = vld [vmem:[%s4360 + $0x50] sm:$0xff]
    %v4796 = vld [vmem:[%s4360 + $0x58] sm:$0xff]
    %v4797 = vld [vmem:[%s4360 + $0x60] sm:$0xff]
    %v4798 = vld [vmem:[%s4360 + $0x68] sm:$0xff]
    %v4799 = vld [vmem:[%s4360 + $0x70] sm:$0xff]
    %v4800 = vld [vmem:[%s4360 + $0x78] sm:$0xff]
    %v4801 = vld [vmem:[%s4360 + $0x80] sm:$0xff]
    %v4802 = vld [vmem:[%s4360 + $0x88] sm:$0xff]
    %v4803 = vld [vmem:[%s4360 + $0x90] sm:$0xff]
    %v4804 = vld [vmem:[%s4360 + $0x98] sm:$0xff]
    %v4805 = vld [vmem:[%s4360 + $0xa0] sm:$0xff]
    %v4806 = vld [vmem:[%s4360 + $0xa8] sm:$0xff]
    %v4807 = vld [vmem:[%s4360 + $0xb0] sm:$0xff]
    %v4808 = vld [vmem:[%s4360 + $0xb8] sm:$0xff]
    %v4809 = vld [vmem:[%s4360 + $0xc0] sm:$0xff]
    %v4810 = vld [vmem:[%s4360 + $0xc8] sm:$0xff]
    %v4811 = vld [vmem:[%s4360 + $0xd0] sm:$0xff]
    %v4812 = vld [vmem:[%s4360 + $0xd8] sm:$0xff]
    %v4813 = vld [vmem:[%s4360 + $0xe0] sm:$0xff]
    %v4814 = vld [vmem:[%s4360 + $0xe8] sm:$0xff]
    %v4815 = vld [vmem:[%s4360 + $0xf0] sm:$0xff]
    %v4816 = vld [vmem:[%s4360 + $0xf8] sm:$0xff]
    %v4817 = vld [vmem:[%s4360 + $0x100] sm:$0xff]
    %v4818 = vld [vmem:[%s4360 + $0x108] sm:$0xff]
    %v4819 = vld [vmem:[%s4360 + $0x110] sm:$0xff]
    %v4820 = vld [vmem:[%s4360 + $0x118] sm:$0xff]
    %v4821 = vld [vmem:[%s4360 + $0x120] sm:$0xff]
    %v4822 = vld [vmem:[%s4360 + $0x128] sm:$0xff]
    %v4823 = vld [vmem:[%s4360 + $0x130] sm:$0xff]
    %v4824 = vld [vmem:[%s4360 + $0x138] sm:$0xff]
    %v4825 = vld [vmem:[%s4360 + $0x140] sm:$0xff]
    %v4826 = vld [vmem:[%s4360 + $0x148] sm:$0xff]
    %v4827 = vld [vmem:[%s4360 + $0x150] sm:$0xff]
    %v4828 = vld [vmem:[%s4360 + $0x158] sm:$0xff]
    %v4829 = vld [vmem:[%s4360 + $0x160] sm:$0xff]
    %v4830 = vld [vmem:[%s4360 + $0x168] sm:$0xff]
    %v4831 = vld [vmem:[%s4360 + $0x170] sm:$0xff]
    %v4832 = vld [vmem:[%s4360 + $0x178] sm:$0xff]
    %v4833 = vld [vmem:[%s4360 + $0x180] sm:$0xff]
    %v4834 = vld [vmem:[%s4360 + $0x188] sm:$0xff]
    %v4835 = vld [vmem:[%s4360 + $0x190] sm:$0xff]
    %v4836 = vld [vmem:[%s4360 + $0x198] sm:$0xff]
    %v4837 = vld [vmem:[%s4360 + $0x1a0] sm:$0xff]
    %v4838 = vld [vmem:[%s4360 + $0x1a8] sm:$0xff]
    %v4839 = vld [vmem:[%s4360 + $0x1b0] sm:$0xff]
    %v4840 = vld [vmem:[%s4360 + $0x1b8] sm:$0xff]
    %v4841 = vld [vmem:[%s4360 + $0x1c0] sm:$0xff]
    %v4842 = vld [vmem:[%s4360 + $0x1c8] sm:$0xff]
    %v4843 = vld [vmem:[%s4360 + $0x1d0] sm:$0xff]
    %v4844 = vld [vmem:[%s4360 + $0x1d8] sm:$0xff]
    %v4845 = vld [vmem:[%s4360 + $0x1e0] sm:$0xff]
    %v4846 = vld [vmem:[%s4360 + $0x1e8] sm:$0xff]
    %v4847 = vld [vmem:[%s4360 + $0x1f0] sm:$0xff]
    %v4848 = vld [vmem:[%s4360 + $0x1f8] sm:$0xff]
    %4849 = vmatpush.msra.mxu0 %v4845
    %4850 = vmatpush.msra.mxu0 %v4841
    %4851 = vmatpush.msra.mxu0 %v4837
    %4852 = vmatpush.msra.mxu0 %v4833
    %4853 = vmatpush.msra.mxu0 %v4829
    %4854 = vmatpush.msra.mxu0 %v4825
    %4855 = vmatpush.msra.mxu0 %v4821
    %4856 = vmatpush.msra.mxu0 %v4817
    %4857 = vmatpush.msra.mxu0 %v4813
    %4858 = vmatpush.msra.mxu0 %v4809
    %4859 = vmatpush.msra.mxu0 %v4805
    %4860 = vmatpush.msra.mxu0 %v4801
    %4861 = vmatpush.msra.mxu0 %v4797
    %4862 = vmatpush.msra.mxu0 %v4793
    %4863 = vmatpush.msra.mxu0 %v4789
    %4864 = vmatpush.msra.mxu0 %v4785
    %4865 = vmatmul.f32.gmra.mxu0 %v4783
    %v4866 = vpop.f32.mrf.mxu0
    %v4867 = vadd.f32 0.0, %v4866
    %4868 = vdwg.mxu0
    %4869 = vmatpush.msra.mxu0 %v4846
    %4870 = vmatpush.msra.mxu0 %v4842
    %4871 = vmatpush.msra.mxu0 %v4838
    %4872 = vmatpush.msra.mxu0 %v4834
    %4873 = vmatpush.msra.mxu0 %v4830
    %4874 = vmatpush.msra.mxu0 %v4826
    %4875 = vmatpush.msra.mxu0 %v4822
    %4876 = vmatpush.msra.mxu0 %v4818
    %4877 = vmatpush.msra.mxu0 %v4814
    %4878 = vmatpush.msra.mxu0 %v4810
    %4879 = vmatpush.msra.mxu0 %v4806
    %4880 = vmatpush.msra.mxu0 %v4802
    %4881 = vmatpush.msra.mxu0 %v4798
    %4882 = vmatpush.msra.mxu0 %v4794
    %4883 = vmatpush.msra.mxu0 %v4790
    %4884 = vmatpush.msra.mxu0 %v4786
    %4885 = vmatmul.f32.gmra.mxu0 %v4783
    %v4886 = vpop.f32.mrf.mxu0
    %v4887 = vadd.f32 0.0, %v4886
    %4888 = vdwg.mxu0
    %4889 = vmatpush.msra.mxu0 %v4847
    %4890 = vmatpush.msra.mxu0 %v4843
    %4891 = vmatpush.msra.mxu0 %v4839
    %4892 = vmatpush.msra.mxu0 %v4835
    %4893 = vmatpush.msra.mxu0 %v4831
    %4894 = vmatpush.msra.mxu0 %v4827
    %4895 = vmatpush.msra.mxu0 %v4823
    %4896 = vmatpush.msra.mxu0 %v4819
    %4897 = vmatpush.msra.mxu0 %v4815
    %4898 = vmatpush.msra.mxu0 %v4811
    %4899 = vmatpush.msra.mxu0 %v4807
    %4900 = vmatpush.msra.mxu0 %v4803
    %4901 = vmatpush.msra.mxu0 %v4799
    %4902 = vmatpush.msra.mxu0 %v4795
    %4903 = vmatpush.msra.mxu0 %v4791
    %4904 = vmatpush.msra.mxu0 %v4787
    %4905 = vmatmul.f32.gmra.mxu0 %v4783
    %v4906 = vpop.f32.mrf.mxu0
    %v4907 = vadd.f32 0.0, %v4906
    %4908 = vdwg.mxu0
    %4909 = vmatpush.msra.mxu0 %v4848
    %4910 = vmatpush.msra.mxu0 %v4844
    %4911 = vmatpush.msra.mxu0 %v4840
    %4912 = vmatpush.msra.mxu0 %v4836
    %4913 = vmatpush.msra.mxu0 %v4832
    %4914 = vmatpush.msra.mxu0 %v4828
    %4915 = vmatpush.msra.mxu0 %v4824
    %4916 = vmatpush.msra.mxu0 %v4820
    %4917 = vmatpush.msra.mxu0 %v4816
    %4918 = vmatpush.msra.mxu0 %v4812
    %4919 = vmatpush.msra.mxu0 %v4808
    %4920 = vmatpush.msra.mxu0 %v4804
    %4921 = vmatpush.msra.mxu0 %v4800
    %4922 = vmatpush.msra.mxu0 %v4796
    %4923 = vmatpush.msra.mxu0 %v4792
    %4924 = vmatpush.msra.mxu0 %v4788
    %4925 = vmatmul.f32.gmra.mxu0 %v4783
    %v4926 = vpop.f32.mrf.mxu0
    %v4927 = vadd.f32 0.0, %v4926
    %4928 = vdwg.mxu0
    %v4929 = vadd.f32 %v4220, %v4867
    %v4930 = vadd.f32 %v4261, %v4887
    %v4931 = vadd.f32 %v4302, %v4907
    %v4932 = vadd.f32 %v4343, %v4927
    %v4933 = vxor.u32 %v4929, 2147483648
    %v4934 = vmul.f32 %v4933, 1.442695
    %v4935 = vpow.pop %v4934
    %v4936 = vadd.f32 %v4935, 1.0
    %v4937 = vrcp.pop %v4936
    %v4938 = vmul.f32 %v4936, %v4937
    %v4939 = vsub.f32 1.0, %v4938
    %v4940 = vmul.f32 %v4937, %v4939
    %v4941 = vadd.f32 %v4937, %v4940
    %vm4942 = vweird.f32 %v4936
    %vm4943 = vweird.f32 %v4937
    %vm4944 = vmor %vm4942, %vm4943
    %v4945 = vsel %vm4944, %v4937, %v4941
    %v4946 = vand.u32 2147483647, %v4936
    %vm4947 = vcmp.eq.f32.partialorder %v4946, 8.507059e+37
    %v4948 = vand.u32 %v4936, 2147483648
    %v4949 = vor.u32 1.1754944e-38, %v4948
    %v4950 = vsel %vm4947, %v4949, %v4945
    %v4951 = vmul.f32 1.0, %v4950
    %v4952 = vxor.u32 %v4930, 2147483648
    %v4953 = vmul.f32 %v4952, 1.442695
    %v4954 = vpow.pop %v4953
    %v4955 = vadd.f32 %v4954, 1.0
    %v4956 = vrcp.pop %v4955
    %v4957 = vmul.f32 %v4955, %v4956
    %v4958 = vsub.f32 1.0, %v4957
    %v4959 = vmul.f32 %v4956, %v4958
    %v4960 = vadd.f32 %v4956, %v4959
    %vm4961 = vweird.f32 %v4955
    %vm4962 = vweird.f32 %v4956
    %vm4963 = vmor %vm4961, %vm4962
    %v4964 = vsel %vm4963, %v4956, %v4960
    %v4965 = vand.u32 2147483647, %v4955
    %vm4966 = vcmp.eq.f32.partialorder %v4965, 8.507059e+37
    %v4967 = vand.u32 %v4955, 2147483648
    %v4968 = vor.u32 1.1754944e-38, %v4967
    %v4969 = vsel %vm4966, %v4968, %v4964
    %v4970 = vmul.f32 1.0, %v4969
    %v4971 = vtanh.pop %v4931
    %v4972 = vxor.u32 %v4932, 2147483648
    %v4973 = vmul.f32 %v4972, 1.442695
    %v4974 = vpow.pop %v4973
    %v4975 = vadd.f32 %v4974, 1.0
    %v4976 = vrcp.pop %v4975
    %v4977 = vmul.f32 %v4975, %v4976
    %v4978 = vsub.f32 1.0, %v4977
    %v4979 = vmul.f32 %v4976, %v4978
    %v4980 = vadd.f32 %v4976, %v4979
    %vm4981 = vweird.f32 %v4975
    %vm4982 = vweird.f32 %v4976
    %vm4983 = vmor %vm4981, %vm4982
    %v4984 = vsel %vm4983, %v4976, %v4980
    %v4985 = vand.u32 2147483647, %v4975
    %vm4986 = vcmp.eq.f32.partialorder %v4985, 8.507059e+37
    %v4987 = vand.u32 %v4975, 2147483648
    %v4988 = vor.u32 1.1754944e-38, %v4987
    %v4989 = vsel %vm4986, %v4988, %v4984
    %v4990 = vmul.f32 1.0, %v4989
    %v4991 = vmul.f32 %v4970, %v4781
    %v4992 = vmul.f32 %v4951, %v4971
    %v4993 = vadd.f32 %v4991, %v4992
    %v4994 = vtanh.pop %v4993
    %v4995 = vmul.f32 %v4990, %v4994
    %4996 = vst [vmem:[#allocation2 + $0x10] sm:$0xff] %v4995
    %v4997 = vld [vmem:[%s4360] sm:$0xff]
    %v4998 = vld [vmem:[%s4360 + $0x8] sm:$0xff]
    %v4999 = vld [vmem:[%s4360 + $0x10] sm:$0xff]
    %v5000 = vld [vmem:[%s4360 + $0x18] sm:$0xff]
    %v5001 = vld [vmem:[%s4360 + $0x20] sm:$0xff]
    %v5002 = vld [vmem:[%s4360 + $0x28] sm:$0xff]
    %v5003 = vld [vmem:[%s4360 + $0x30] sm:$0xff]
    %v5004 = vld [vmem:[%s4360 + $0x38] sm:$0xff]
    %v5005 = vld [vmem:[%s4360 + $0x40] sm:$0xff]
    %v5006 = vld [vmem:[%s4360 + $0x48] sm:$0xff]
    %v5007 = vld [vmem:[%s4360 + $0x50] sm:$0xff]
    %v5008 = vld [vmem:[%s4360 + $0x58] sm:$0xff]
    %v5009 = vld [vmem:[%s4360 + $0x60] sm:$0xff]
    %v5010 = vld [vmem:[%s4360 + $0x68] sm:$0xff]
    %v5011 = vld [vmem:[%s4360 + $0x70] sm:$0xff]
    %v5012 = vld [vmem:[%s4360 + $0x78] sm:$0xff]
    %v5013 = vld [vmem:[%s4360 + $0x80] sm:$0xff]
    %v5014 = vld [vmem:[%s4360 + $0x88] sm:$0xff]
    %v5015 = vld [vmem:[%s4360 + $0x90] sm:$0xff]
    %v5016 = vld [vmem:[%s4360 + $0x98] sm:$0xff]
    %v5017 = vld [vmem:[%s4360 + $0xa0] sm:$0xff]
    %v5018 = vld [vmem:[%s4360 + $0xa8] sm:$0xff]
    %v5019 = vld [vmem:[%s4360 + $0xb0] sm:$0xff]
    %v5020 = vld [vmem:[%s4360 + $0xb8] sm:$0xff]
    %v5021 = vld [vmem:[%s4360 + $0xc0] sm:$0xff]
    %v5022 = vld [vmem:[%s4360 + $0xc8] sm:$0xff]
    %v5023 = vld [vmem:[%s4360 + $0xd0] sm:$0xff]
    %v5024 = vld [vmem:[%s4360 + $0xd8] sm:$0xff]
    %v5025 = vld [vmem:[%s4360 + $0xe0] sm:$0xff]
    %v5026 = vld [vmem:[%s4360 + $0xe8] sm:$0xff]
    %v5027 = vld [vmem:[%s4360 + $0xf0] sm:$0xff]
    %v5028 = vld [vmem:[%s4360 + $0xf8] sm:$0xff]
    %v5029 = vld [vmem:[%s4360 + $0x100] sm:$0xff]
    %v5030 = vld [vmem:[%s4360 + $0x108] sm:$0xff]
    %v5031 = vld [vmem:[%s4360 + $0x110] sm:$0xff]
    %v5032 = vld [vmem:[%s4360 + $0x118] sm:$0xff]
    %v5033 = vld [vmem:[%s4360 + $0x120] sm:$0xff]
    %v5034 = vld [vmem:[%s4360 + $0x128] sm:$0xff]
    %v5035 = vld [vmem:[%s4360 + $0x130] sm:$0xff]
    %v5036 = vld [vmem:[%s4360 + $0x138] sm:$0xff]
    %v5037 = vld [vmem:[%s4360 + $0x140] sm:$0xff]
    %v5038 = vld [vmem:[%s4360 + $0x148] sm:$0xff]
    %v5039 = vld [vmem:[%s4360 + $0x150] sm:$0xff]
    %v5040 = vld [vmem:[%s4360 + $0x158] sm:$0xff]
    %v5041 = vld [vmem:[%s4360 + $0x160] sm:$0xff]
    %v5042 = vld [vmem:[%s4360 + $0x168] sm:$0xff]
    %v5043 = vld [vmem:[%s4360 + $0x170] sm:$0xff]
    %v5044 = vld [vmem:[%s4360 + $0x178] sm:$0xff]
    %v5045 = vld [vmem:[%s4360 + $0x180] sm:$0xff]
    %v5046 = vld [vmem:[%s4360 + $0x188] sm:$0xff]
    %v5047 = vld [vmem:[%s4360 + $0x190] sm:$0xff]
    %v5048 = vld [vmem:[%s4360 + $0x198] sm:$0xff]
    %v5049 = vld [vmem:[%s4360 + $0x1a0] sm:$0xff]
    %v5050 = vld [vmem:[%s4360 + $0x1a8] sm:$0xff]
    %v5051 = vld [vmem:[%s4360 + $0x1b0] sm:$0xff]
    %v5052 = vld [vmem:[%s4360 + $0x1b8] sm:$0xff]
    %v5053 = vld [vmem:[%s4360 + $0x1c0] sm:$0xff]
    %v5054 = vld [vmem:[%s4360 + $0x1c8] sm:$0xff]
    %v5055 = vld [vmem:[%s4360 + $0x1d0] sm:$0xff]
    %v5056 = vld [vmem:[%s4360 + $0x1d8] sm:$0xff]
    %v5057 = vld [vmem:[%s4360 + $0x1e0] sm:$0xff]
    %v5058 = vld [vmem:[%s4360 + $0x1e8] sm:$0xff]
    %v5059 = vld [vmem:[%s4360 + $0x1f0] sm:$0xff]
    %v5060 = vld [vmem:[%s4360 + $0x1f8] sm:$0xff]
    %5061 = vmatpush.msra.mxu0 %v5057
    %5062 = vmatpush.msra.mxu0 %v5053
    %5063 = vmatpush.msra.mxu0 %v5049
    %5064 = vmatpush.msra.mxu0 %v5045
    %5065 = vmatpush.msra.mxu0 %v5041
    %5066 = vmatpush.msra.mxu0 %v5037
    %5067 = vmatpush.msra.mxu0 %v5033
    %5068 = vmatpush.msra.mxu0 %v5029
    %5069 = vmatpush.msra.mxu0 %v5025
    %5070 = vmatpush.msra.mxu0 %v5021
    %5071 = vmatpush.msra.mxu0 %v5017
    %5072 = vmatpush.msra.mxu0 %v5013
    %5073 = vmatpush.msra.mxu0 %v5009
    %5074 = vmatpush.msra.mxu0 %v5005
    %5075 = vmatpush.msra.mxu0 %v5001
    %5076 = vmatpush.msra.mxu0 %v4997
    %5077 = vmatmul.f32.gmra.mxu0 %v4995
    %v5078 = vpop.f32.mrf.mxu0
    %v5079 = vadd.f32 0.0, %v5078
    %5080 = vdwg.mxu0
    %5081 = vmatpush.msra.mxu0 %v5058
    %5082 = vmatpush.msra.mxu0 %v5054
    %5083 = vmatpush.msra.mxu0 %v5050
    %5084 = vmatpush.msra.mxu0 %v5046
    %5085 = vmatpush.msra.mxu0 %v5042
    %5086 = vmatpush.msra.mxu0 %v5038
    %5087 = vmatpush.msra.mxu0 %v5034
    %5088 = vmatpush.msra.mxu0 %v5030
    %5089 = vmatpush.msra.mxu0 %v5026
    %5090 = vmatpush.msra.mxu0 %v5022
    %5091 = vmatpush.msra.mxu0 %v5018
    %5092 = vmatpush.msra.mxu0 %v5014
    %5093 = vmatpush.msra.mxu0 %v5010
    %5094 = vmatpush.msra.mxu0 %v5006
    %5095 = vmatpush.msra.mxu0 %v5002
    %5096 = vmatpush.msra.mxu0 %v4998
    %5097 = vmatmul.f32.gmra.mxu0 %v4995
    %v5098 = vpop.f32.mrf.mxu0
    %v5099 = vadd.f32 0.0, %v5098
    %5100 = vdwg.mxu0
    %5101 = vmatpush.msra.mxu0 %v5059
    %5102 = vmatpush.msra.mxu0 %v5055
    %5103 = vmatpush.msra.mxu0 %v5051
    %5104 = vmatpush.msra.mxu0 %v5047
    %5105 = vmatpush.msra.mxu0 %v5043
    %5106 = vmatpush.msra.mxu0 %v5039
    %5107 = vmatpush.msra.mxu0 %v5035
    %5108 = vmatpush.msra.mxu0 %v5031
    %5109 = vmatpush.msra.mxu0 %v5027
    %5110 = vmatpush.msra.mxu0 %v5023
    %5111 = vmatpush.msra.mxu0 %v5019
    %5112 = vmatpush.msra.mxu0 %v5015
    %5113 = vmatpush.msra.mxu0 %v5011
    %5114 = vmatpush.msra.mxu0 %v5007
    %5115 = vmatpush.msra.mxu0 %v5003
    %5116 = vmatpush.msra.mxu0 %v4999
    %5117 = vmatmul.f32.gmra.mxu0 %v4995
    %v5118 = vpop.f32.mrf.mxu0
    %v5119 = vadd.f32 0.0, %v5118
    %5120 = vdwg.mxu0
    %5121 = vmatpush.msra.mxu0 %v5060
    %5122 = vmatpush.msra.mxu0 %v5056
    %5123 = vmatpush.msra.mxu0 %v5052
    %5124 = vmatpush.msra.mxu0 %v5048
    %5125 = vmatpush.msra.mxu0 %v5044
    %5126 = vmatpush.msra.mxu0 %v5040
    %5127 = vmatpush.msra.mxu0 %v5036
    %5128 = vmatpush.msra.mxu0 %v5032
    %5129 = vmatpush.msra.mxu0 %v5028
    %5130 = vmatpush.msra.mxu0 %v5024
    %5131 = vmatpush.msra.mxu0 %v5020
    %5132 = vmatpush.msra.mxu0 %v5016
    %5133 = vmatpush.msra.mxu0 %v5012
    %5134 = vmatpush.msra.mxu0 %v5008
    %5135 = vmatpush.msra.mxu0 %v5004
    %5136 = vmatpush.msra.mxu0 %v5000
    %5137 = vmatmul.f32.gmra.mxu0 %v4995
    %v5138 = vpop.f32.mrf.mxu0
    %v5139 = vadd.f32 0.0, %v5138
    %5140 = vdwg.mxu0
    %v5141 = vadd.f32 %v4223, %v5079
    %v5142 = vadd.f32 %v4264, %v5099
    %v5143 = vadd.f32 %v4305, %v5119
    %v5144 = vadd.f32 %v4346, %v5139
    %v5145 = vxor.u32 %v5141, 2147483648
    %v5146 = vmul.f32 %v5145, 1.442695
    %v5147 = vpow.pop %v5146
    %v5148 = vadd.f32 %v5147, 1.0
    %v5149 = vrcp.pop %v5148
    %v5150 = vmul.f32 %v5148, %v5149
    %v5151 = vsub.f32 1.0, %v5150
    %v5152 = vmul.f32 %v5149, %v5151
    %v5153 = vadd.f32 %v5149, %v5152
    %vm5154 = vweird.f32 %v5148
    %vm5155 = vweird.f32 %v5149
    %vm5156 = vmor %vm5154, %vm5155
    %v5157 = vsel %vm5156, %v5149, %v5153
    %v5158 = vand.u32 2147483647, %v5148
    %vm5159 = vcmp.eq.f32.partialorder %v5158, 8.507059e+37
    %v5160 = vand.u32 %v5148, 2147483648
    %v5161 = vor.u32 1.1754944e-38, %v5160
    %v5162 = vsel %vm5159, %v5161, %v5157
    %v5163 = vmul.f32 1.0, %v5162
    %v5164 = vxor.u32 %v5142, 2147483648
    %v5165 = vmul.f32 %v5164, 1.442695
    %v5166 = vpow.pop %v5165
    %v5167 = vadd.f32 %v5166, 1.0
    %v5168 = vrcp.pop %v5167
    %v5169 = vmul.f32 %v5167, %v5168
    %v5170 = vsub.f32 1.0, %v5169
    %v5171 = vmul.f32 %v5168, %v5170
    %v5172 = vadd.f32 %v5168, %v5171
    %vm5173 = vweird.f32 %v5167
    %vm5174 = vweird.f32 %v5168
    %vm5175 = vmor %vm5173, %vm5174
    %v5176 = vsel %vm5175, %v5168, %v5172
    %v5177 = vand.u32 2147483647, %v5167
    %vm5178 = vcmp.eq.f32.partialorder %v5177, 8.507059e+37
    %v5179 = vand.u32 %v5167, 2147483648
    %v5180 = vor.u32 1.1754944e-38, %v5179
    %v5181 = vsel %vm5178, %v5180, %v5176
    %v5182 = vmul.f32 1.0, %v5181
    %v5183 = vtanh.pop %v5143
    %v5184 = vxor.u32 %v5144, 2147483648
    %v5185 = vmul.f32 %v5184, 1.442695
    %v5186 = vpow.pop %v5185
    %v5187 = vadd.f32 %v5186, 1.0
    %v5188 = vrcp.pop %v5187
    %v5189 = vmul.f32 %v5187, %v5188
    %v5190 = vsub.f32 1.0, %v5189
    %v5191 = vmul.f32 %v5188, %v5190
    %v5192 = vadd.f32 %v5188, %v5191
    %vm5193 = vweird.f32 %v5187
    %vm5194 = vweird.f32 %v5188
    %vm5195 = vmor %vm5193, %vm5194
    %v5196 = vsel %vm5195, %v5188, %v5192
    %v5197 = vand.u32 2147483647, %v5187
    %vm5198 = vcmp.eq.f32.partialorder %v5197, 8.507059e+37
    %v5199 = vand.u32 %v5187, 2147483648
    %v5200 = vor.u32 1.1754944e-38, %v5199
    %v5201 = vsel %vm5198, %v5200, %v5196
    %v5202 = vmul.f32 1.0, %v5201
    %v5203 = vmul.f32 %v5182, %v4993
    %v5204 = vmul.f32 %v5163, %v5183
    %v5205 = vadd.f32 %v5203, %v5204
    %v5206 = vtanh.pop %v5205
    %v5207 = vmul.f32 %v5202, %v5206
    %5208 = vst [vmem:[#allocation2 + $0x18] sm:$0xff] %v5207
    %v5209 = vld [vmem:[%s4360] sm:$0xff]
    %v5210 = vld [vmem:[%s4360 + $0x8] sm:$0xff]
    %v5211 = vld [vmem:[%s4360 + $0x10] sm:$0xff]
    %v5212 = vld [vmem:[%s4360 + $0x18] sm:$0xff]
    %v5213 = vld [vmem:[%s4360 + $0x20] sm:$0xff]
    %v5214 = vld [vmem:[%s4360 + $0x28] sm:$0xff]
    %v5215 = vld [vmem:[%s4360 + $0x30] sm:$0xff]
    %v5216 = vld [vmem:[%s4360 + $0x38] sm:$0xff]
    %v5217 = vld [vmem:[%s4360 + $0x40] sm:$0xff]
    %v5218 = vld [vmem:[%s4360 + $0x48] sm:$0xff]
    %v5219 = vld [vmem:[%s4360 + $0x50] sm:$0xff]
    %v5220 = vld [vmem:[%s4360 + $0x58] sm:$0xff]
    %v5221 = vld [vmem:[%s4360 + $0x60] sm:$0xff]
    %v5222 = vld [vmem:[%s4360 + $0x68] sm:$0xff]
    %v5223 = vld [vmem:[%s4360 + $0x70] sm:$0xff]
    %v5224 = vld [vmem:[%s4360 + $0x78] sm:$0xff]
    %v5225 = vld [vmem:[%s4360 + $0x80] sm:$0xff]
    %v5226 = vld [vmem:[%s4360 + $0x88] sm:$0xff]
    %v5227 = vld [vmem:[%s4360 + $0x90] sm:$0xff]
    %v5228 = vld [vmem:[%s4360 + $0x98] sm:$0xff]
    %v5229 = vld [vmem:[%s4360 + $0xa0] sm:$0xff]
    %v5230 = vld [vmem:[%s4360 + $0xa8] sm:$0xff]
    %v5231 = vld [vmem:[%s4360 + $0xb0] sm:$0xff]
    %v5232 = vld [vmem:[%s4360 + $0xb8] sm:$0xff]
    %v5233 = vld [vmem:[%s4360 + $0xc0] sm:$0xff]
    %v5234 = vld [vmem:[%s4360 + $0xc8] sm:$0xff]
    %v5235 = vld [vmem:[%s4360 + $0xd0] sm:$0xff]
    %v5236 = vld [vmem:[%s4360 + $0xd8] sm:$0xff]
    %v5237 = vld [vmem:[%s4360 + $0xe0] sm:$0xff]
    %v5238 = vld [vmem:[%s4360 + $0xe8] sm:$0xff]
    %v5239 = vld [vmem:[%s4360 + $0xf0] sm:$0xff]
    %v5240 = vld [vmem:[%s4360 + $0xf8] sm:$0xff]
    %v5241 = vld [vmem:[%s4360 + $0x100] sm:$0xff]
    %v5242 = vld [vmem:[%s4360 + $0x108] sm:$0xff]
    %v5243 = vld [vmem:[%s4360 + $0x110] sm:$0xff]
    %v5244 = vld [vmem:[%s4360 + $0x118] sm:$0xff]
    %v5245 = vld [vmem:[%s4360 + $0x120] sm:$0xff]
    %v5246 = vld [vmem:[%s4360 + $0x128] sm:$0xff]
    %v5247 = vld [vmem:[%s4360 + $0x130] sm:$0xff]
    %v5248 = vld [vmem:[%s4360 + $0x138] sm:$0xff]
    %v5249 = vld [vmem:[%s4360 + $0x140] sm:$0xff]
    %v5250 = vld [vmem:[%s4360 + $0x148] sm:$0xff]
    %v5251 = vld [vmem:[%s4360 + $0x150] sm:$0xff]
    %v5252 = vld [vmem:[%s4360 + $0x158] sm:$0xff]
    %v5253 = vld [vmem:[%s4360 + $0x160] sm:$0xff]
    %v5254 = vld [vmem:[%s4360 + $0x168] sm:$0xff]
    %v5255 = vld [vmem:[%s4360 + $0x170] sm:$0xff]
    %v5256 = vld [vmem:[%s4360 + $0x178] sm:$0xff]
    %v5257 = vld [vmem:[%s4360 + $0x180] sm:$0xff]
    %v5258 = vld [vmem:[%s4360 + $0x188] sm:$0xff]
    %v5259 = vld [vmem:[%s4360 + $0x190] sm:$0xff]
    %v5260 = vld [vmem:[%s4360 + $0x198] sm:$0xff]
    %v5261 = vld [vmem:[%s4360 + $0x1a0] sm:$0xff]
    %v5262 = vld [vmem:[%s4360 + $0x1a8] sm:$0xff]
    %v5263 = vld [vmem:[%s4360 + $0x1b0] sm:$0xff]
    %v5264 = vld [vmem:[%s4360 + $0x1b8] sm:$0xff]
    %v5265 = vld [vmem:[%s4360 + $0x1c0] sm:$0xff]
    %v5266 = vld [vmem:[%s4360 + $0x1c8] sm:$0xff]
    %v5267 = vld [vmem:[%s4360 + $0x1d0] sm:$0xff]
    %v5268 = vld [vmem:[%s4360 + $0x1d8] sm:$0xff]
    %v5269 = vld [vmem:[%s4360 + $0x1e0] sm:$0xff]
    %v5270 = vld [vmem:[%s4360 + $0x1e8] sm:$0xff]
    %v5271 = vld [vmem:[%s4360 + $0x1f0] sm:$0xff]
    %v5272 = vld [vmem:[%s4360 + $0x1f8] sm:$0xff]
    %5273 = vmatpush.msra.mxu0 %v5269
    %5274 = vmatpush.msra.mxu0 %v5265
    %5275 = vmatpush.msra.mxu0 %v5261
    %5276 = vmatpush.msra.mxu0 %v5257
    %5277 = vmatpush.msra.mxu0 %v5253
    %5278 = vmatpush.msra.mxu0 %v5249
    %5279 = vmatpush.msra.mxu0 %v5245
    %5280 = vmatpush.msra.mxu0 %v5241
    %5281 = vmatpush.msra.mxu0 %v5237
    %5282 = vmatpush.msra.mxu0 %v5233
    %5283 = vmatpush.msra.mxu0 %v5229
    %5284 = vmatpush.msra.mxu0 %v5225
    %5285 = vmatpush.msra.mxu0 %v5221
    %5286 = vmatpush.msra.mxu0 %v5217
    %5287 = vmatpush.msra.mxu0 %v5213
    %5288 = vmatpush.msra.mxu0 %v5209
    %5289 = vmatmul.f32.gmra.mxu0 %v5207
    %v5290 = vpop.f32.mrf.mxu0
    %v5291 = vadd.f32 0.0, %v5290
    %5292 = vdwg.mxu0
    %5293 = vmatpush.msra.mxu0 %v5270
    %5294 = vmatpush.msra.mxu0 %v5266
    %5295 = vmatpush.msra.mxu0 %v5262
    %5296 = vmatpush.msra.mxu0 %v5258
    %5297 = vmatpush.msra.mxu0 %v5254
    %5298 = vmatpush.msra.mxu0 %v5250
    %5299 = vmatpush.msra.mxu0 %v5246
    %5300 = vmatpush.msra.mxu0 %v5242
    %5301 = vmatpush.msra.mxu0 %v5238
    %5302 = vmatpush.msra.mxu0 %v5234
    %5303 = vmatpush.msra.mxu0 %v5230
    %5304 = vmatpush.msra.mxu0 %v5226
    %5305 = vmatpush.msra.mxu0 %v5222
    %5306 = vmatpush.msra.mxu0 %v5218
    %5307 = vmatpush.msra.mxu0 %v5214
    %5308 = vmatpush.msra.mxu0 %v5210
    %5309 = vmatmul.f32.gmra.mxu0 %v5207
    %v5310 = vpop.f32.mrf.mxu0
    %v5311 = vadd.f32 0.0, %v5310
    %5312 = vdwg.mxu0
    %5313 = vmatpush.msra.mxu0 %v5271
    %5314 = vmatpush.msra.mxu0 %v5267
    %5315 = vmatpush.msra.mxu0 %v5263
    %5316 = vmatpush.msra.mxu0 %v5259
    %5317 = vmatpush.msra.mxu0 %v5255
    %5318 = vmatpush.msra.mxu0 %v5251
    %5319 = vmatpush.msra.mxu0 %v5247
    %5320 = vmatpush.msra.mxu0 %v5243
    %5321 = vmatpush.msra.mxu0 %v5239
    %5322 = vmatpush.msra.mxu0 %v5235
    %5323 = vmatpush.msra.mxu0 %v5231
    %5324 = vmatpush.msra.mxu0 %v5227
    %5325 = vmatpush.msra.mxu0 %v5223
    %5326 = vmatpush.msra.mxu0 %v5219
    %5327 = vmatpush.msra.mxu0 %v5215
    %5328 = vmatpush.msra.mxu0 %v5211
    %5329 = vmatmul.f32.gmra.mxu0 %v5207
    %v5330 = vpop.f32.mrf.mxu0
    %v5331 = vadd.f32 0.0, %v5330
    %5332 = vdwg.mxu0
    %5333 = vmatpush.msra.mxu0 %v5272
    %5334 = vmatpush.msra.mxu0 %v5268
    %5335 = vmatpush.msra.mxu0 %v5264
    %5336 = vmatpush.msra.mxu0 %v5260
    %5337 = vmatpush.msra.mxu0 %v5256
    %5338 = vmatpush.msra.mxu0 %v5252
    %5339 = vmatpush.msra.mxu0 %v5248
    %5340 = vmatpush.msra.mxu0 %v5244
    %5341 = vmatpush.msra.mxu0 %v5240
    %5342 = vmatpush.msra.mxu0 %v5236
    %5343 = vmatpush.msra.mxu0 %v5232
    %5344 = vmatpush.msra.mxu0 %v5228
    %5345 = vmatpush.msra.mxu0 %v5224
    %5346 = vmatpush.msra.mxu0 %v5220
    %5347 = vmatpush.msra.mxu0 %v5216
    %5348 = vmatpush.msra.mxu0 %v5212
    %5349 = vmatmul.f32.gmra.mxu0 %v5207
    %v5350 = vpop.f32.mrf.mxu0
    %v5351 = vadd.f32 0.0, %v5350
    %5352 = vdwg.mxu0
    %v5353 = vadd.f32 %v4226, %v5291
    %v5354 = vadd.f32 %v4267, %v5311
    %v5355 = vadd.f32 %v4308, %v5331
    %v5356 = vadd.f32 %v4349, %v5351
    %v5357 = vxor.u32 %v5353, 2147483648
    %v5358 = vmul.f32 %v5357, 1.442695
    %v5359 = vpow.pop %v5358
    %v5360 = vadd.f32 %v5359, 1.0
    %v5361 = vrcp.pop %v5360
    %v5362 = vmul.f32 %v5360, %v5361
    %v5363 = vsub.f32 1.0, %v5362
    %v5364 = vmul.f32 %v5361, %v5363
    %v5365 = vadd.f32 %v5361, %v5364
    %vm5366 = vweird.f32 %v5360
    %vm5367 = vweird.f32 %v5361
    %vm5368 = vmor %vm5366, %vm5367
    %v5369 = vsel %vm5368, %v5361, %v5365
    %v5370 = vand.u32 2147483647, %v5360
    %vm5371 = vcmp.eq.f32.partialorder %v5370, 8.507059e+37
    %v5372 = vand.u32 %v5360, 2147483648
    %v5373 = vor.u32 1.1754944e-38, %v5372
    %v5374 = vsel %vm5371, %v5373, %v5369
    %v5375 = vmul.f32 1.0, %v5374
    %v5376 = vxor.u32 %v5354, 2147483648
    %v5377 = vmul.f32 %v5376, 1.442695
    %v5378 = vpow.pop %v5377
    %v5379 = vadd.f32 %v5378, 1.0
    %v5380 = vrcp.pop %v5379
    %v5381 = vmul.f32 %v5379, %v5380
    %v5382 = vsub.f32 1.0, %v5381
    %v5383 = vmul.f32 %v5380, %v5382
    %v5384 = vadd.f32 %v5380, %v5383
    %vm5385 = vweird.f32 %v5379
    %vm5386 = vweird.f32 %v5380
    %vm5387 = vmor %vm5385, %vm5386
    %v5388 = vsel %vm5387, %v5380, %v5384
    %v5389 = vand.u32 2147483647, %v5379
    %vm5390 = vcmp.eq.f32.partialorder %v5389, 8.507059e+37
    %v5391 = vand.u32 %v5379, 2147483648
    %v5392 = vor.u32 1.1754944e-38, %v5391
    %v5393 = vsel %vm5390, %v5392, %v5388
    %v5394 = vmul.f32 1.0, %v5393
    %v5395 = vtanh.pop %v5355
    %v5396 = vxor.u32 %v5356, 2147483648
    %v5397 = vmul.f32 %v5396, 1.442695
    %v5398 = vpow.pop %v5397
    %v5399 = vadd.f32 %v5398, 1.0
    %v5400 = vrcp.pop %v5399
    %v5401 = vmul.f32 %v5399, %v5400
    %v5402 = vsub.f32 1.0, %v5401
    %v5403 = vmul.f32 %v5400, %v5402
    %v5404 = vadd.f32 %v5400, %v5403
    %vm5405 = vweird.f32 %v5399
    %vm5406 = vweird.f32 %v5400
    %vm5407 = vmor %vm5405, %vm5406
    %v5408 = vsel %vm5407, %v5400, %v5404
    %v5409 = vand.u32 2147483647, %v5399
    %vm5410 = vcmp.eq.f32.partialorder %v5409, 8.507059e+37
    %v5411 = vand.u32 %v5399, 2147483648
    %v5412 = vor.u32 1.1754944e-38, %v5411
    %v5413 = vsel %vm5410, %v5412, %v5408
    %v5414 = vmul.f32 1.0, %v5413
    %v5415 = vmul.f32 %v5394, %v5205
    %v5416 = vmul.f32 %v5375, %v5395
    %v5417 = vadd.f32 %v5415, %v5416
    %v5418 = vtanh.pop %v5417
    %v5419 = vmul.f32 %v5414, %v5418
    %5420 = vst [vmem:[#allocation2 + $0x20] sm:$0xff] %v5419
    %v5421 = vld [vmem:[%s4360] sm:$0xff]
    %v5422 = vld [vmem:[%s4360 + $0x8] sm:$0xff]
    %v5423 = vld [vmem:[%s4360 + $0x10] sm:$0xff]
    %v5424 = vld [vmem:[%s4360 + $0x18] sm:$0xff]
    %v5425 = vld [vmem:[%s4360 + $0x20] sm:$0xff]
    %v5426 = vld [vmem:[%s4360 + $0x28] sm:$0xff]
    %v5427 = vld [vmem:[%s4360 + $0x30] sm:$0xff]
    %v5428 = vld [vmem:[%s4360 + $0x38] sm:$0xff]
    %v5429 = vld [vmem:[%s4360 + $0x40] sm:$0xff]
    %v5430 = vld [vmem:[%s4360 + $0x48] sm:$0xff]
    %v5431 = vld [vmem:[%s4360 + $0x50] sm:$0xff]
    %v5432 = vld [vmem:[%s4360 + $0x58] sm:$0xff]
    %v5433 = vld [vmem:[%s4360 + $0x60] sm:$0xff]
    %v5434 = vld [vmem:[%s4360 + $0x68] sm:$0xff]
    %v5435 = vld [vmem:[%s4360 + $0x70] sm:$0xff]
    %v5436 = vld [vmem:[%s4360 + $0x78] sm:$0xff]
    %v5437 = vld [vmem:[%s4360 + $0x80] sm:$0xff]
    %v5438 = vld [vmem:[%s4360 + $0x88] sm:$0xff]
    %v5439 = vld [vmem:[%s4360 + $0x90] sm:$0xff]
    %v5440 = vld [vmem:[%s4360 + $0x98] sm:$0xff]
    %v5441 = vld [vmem:[%s4360 + $0xa0] sm:$0xff]
    %v5442 = vld [vmem:[%s4360 + $0xa8] sm:$0xff]
    %v5443 = vld [vmem:[%s4360 + $0xb0] sm:$0xff]
    %v5444 = vld [vmem:[%s4360 + $0xb8] sm:$0xff]
    %v5445 = vld [vmem:[%s4360 + $0xc0] sm:$0xff]
    %v5446 = vld [vmem:[%s4360 + $0xc8] sm:$0xff]
    %v5447 = vld [vmem:[%s4360 + $0xd0] sm:$0xff]
    %v5448 = vld [vmem:[%s4360 + $0xd8] sm:$0xff]
    %v5449 = vld [vmem:[%s4360 + $0xe0] sm:$0xff]
    %v5450 = vld [vmem:[%s4360 + $0xe8] sm:$0xff]
    %v5451 = vld [vmem:[%s4360 + $0xf0] sm:$0xff]
    %v5452 = vld [vmem:[%s4360 + $0xf8] sm:$0xff]
    %v5453 = vld [vmem:[%s4360 + $0x100] sm:$0xff]
    %v5454 = vld [vmem:[%s4360 + $0x108] sm:$0xff]
    %v5455 = vld [vmem:[%s4360 + $0x110] sm:$0xff]
    %v5456 = vld [vmem:[%s4360 + $0x118] sm:$0xff]
    %v5457 = vld [vmem:[%s4360 + $0x120] sm:$0xff]
    %v5458 = vld [vmem:[%s4360 + $0x128] sm:$0xff]
    %v5459 = vld [vmem:[%s4360 + $0x130] sm:$0xff]
    %v5460 = vld [vmem:[%s4360 + $0x138] sm:$0xff]
    %v5461 = vld [vmem:[%s4360 + $0x140] sm:$0xff]
    %v5462 = vld [vmem:[%s4360 + $0x148] sm:$0xff]
    %v5463 = vld [vmem:[%s4360 + $0x150] sm:$0xff]
    %v5464 = vld [vmem:[%s4360 + $0x158] sm:$0xff]
    %v5465 = vld [vmem:[%s4360 + $0x160] sm:$0xff]
    %v5466 = vld [vmem:[%s4360 + $0x168] sm:$0xff]
    %v5467 = vld [vmem:[%s4360 + $0x170] sm:$0xff]
    %v5468 = vld [vmem:[%s4360 + $0x178] sm:$0xff]
    %v5469 = vld [vmem:[%s4360 + $0x180] sm:$0xff]
    %v5470 = vld [vmem:[%s4360 + $0x188] sm:$0xff]
    %v5471 = vld [vmem:[%s4360 + $0x190] sm:$0xff]
    %v5472 = vld [vmem:[%s4360 + $0x198] sm:$0xff]
    %v5473 = vld [vmem:[%s4360 + $0x1a0] sm:$0xff]
    %v5474 = vld [vmem:[%s4360 + $0x1a8] sm:$0xff]
    %v5475 = vld [vmem:[%s4360 + $0x1b0] sm:$0xff]
    %v5476 = vld [vmem:[%s4360 + $0x1b8] sm:$0xff]
    %v5477 = vld [vmem:[%s4360 + $0x1c0] sm:$0xff]
    %v5478 = vld [vmem:[%s4360 + $0x1c8] sm:$0xff]
    %v5479 = vld [vmem:[%s4360 + $0x1d0] sm:$0xff]
    %v5480 = vld [vmem:[%s4360 + $0x1d8] sm:$0xff]
    %v5481 = vld [vmem:[%s4360 + $0x1e0] sm:$0xff]
    %v5482 = vld [vmem:[%s4360 + $0x1e8] sm:$0xff]
    %v5483 = vld [vmem:[%s4360 + $0x1f0] sm:$0xff]
    %v5484 = vld [vmem:[%s4360 + $0x1f8] sm:$0xff]
    %5485 = vmatpush.msra.mxu0 %v5481
    %5486 = vmatpush.msra.mxu0 %v5477
    %5487 = vmatpush.msra.mxu0 %v5473
    %5488 = vmatpush.msra.mxu0 %v5469
    %5489 = vmatpush.msra.mxu0 %v5465
    %5490 = vmatpush.msra.mxu0 %v5461
    %5491 = vmatpush.msra.mxu0 %v5457
    %5492 = vmatpush.msra.mxu0 %v5453
    %5493 = vmatpush.msra.mxu0 %v5449
    %5494 = vmatpush.msra.mxu0 %v5445
    %5495 = vmatpush.msra.mxu0 %v5441
    %5496 = vmatpush.msra.mxu0 %v5437
    %5497 = vmatpush.msra.mxu0 %v5433
    %5498 = vmatpush.msra.mxu0 %v5429
    %5499 = vmatpush.msra.mxu0 %v5425
    %5500 = vmatpush.msra.mxu0 %v5421
    %5501 = vmatmul.f32.gmra.mxu0 %v5419
    %v5502 = vpop.f32.mrf.mxu0
    %v5503 = vadd.f32 0.0, %v5502
    %5504 = vdwg.mxu0
    %5505 = vmatpush.msra.mxu0 %v5482
    %5506 = vmatpush.msra.mxu0 %v5478
    %5507 = vmatpush.msra.mxu0 %v5474
    %5508 = vmatpush.msra.mxu0 %v5470
    %5509 = vmatpush.msra.mxu0 %v5466
    %5510 = vmatpush.msra.mxu0 %v5462
    %5511 = vmatpush.msra.mxu0 %v5458
    %5512 = vmatpush.msra.mxu0 %v5454
    %5513 = vmatpush.msra.mxu0 %v5450
    %5514 = vmatpush.msra.mxu0 %v5446
    %5515 = vmatpush.msra.mxu0 %v5442
    %5516 = vmatpush.msra.mxu0 %v5438
    %5517 = vmatpush.msra.mxu0 %v5434
    %5518 = vmatpush.msra.mxu0 %v5430
    %5519 = vmatpush.msra.mxu0 %v5426
    %5520 = vmatpush.msra.mxu0 %v5422
    %5521 = vmatmul.f32.gmra.mxu0 %v5419
    %v5522 = vpop.f32.mrf.mxu0
    %v5523 = vadd.f32 0.0, %v5522
    %5524 = vdwg.mxu0
    %5525 = vmatpush.msra.mxu0 %v5483
    %5526 = vmatpush.msra.mxu0 %v5479
    %5527 = vmatpush.msra.mxu0 %v5475
    %5528 = vmatpush.msra.mxu0 %v5471
    %5529 = vmatpush.msra.mxu0 %v5467
    %5530 = vmatpush.msra.mxu0 %v5463
    %5531 = vmatpush.msra.mxu0 %v5459
    %5532 = vmatpush.msra.mxu0 %v5455
    %5533 = vmatpush.msra.mxu0 %v5451
    %5534 = vmatpush.msra.mxu0 %v5447
    %5535 = vmatpush.msra.mxu0 %v5443
    %5536 = vmatpush.msra.mxu0 %v5439
    %5537 = vmatpush.msra.mxu0 %v5435
    %5538 = vmatpush.msra.mxu0 %v5431
    %5539 = vmatpush.msra.mxu0 %v5427
    %5540 = vmatpush.msra.mxu0 %v5423
    %5541 = vmatmul.f32.gmra.mxu0 %v5419
    %v5542 = vpop.f32.mrf.mxu0
    %v5543 = vadd.f32 0.0, %v5542
    %5544 = vdwg.mxu0
    %5545 = vmatpush.msra.mxu0 %v5484
    %5546 = vmatpush.msra.mxu0 %v5480
    %5547 = vmatpush.msra.mxu0 %v5476
    %5548 = vmatpush.msra.mxu0 %v5472
    %5549 = vmatpush.msra.mxu0 %v5468
    %5550 = vmatpush.msra.mxu0 %v5464
    %5551 = vmatpush.msra.mxu0 %v5460
    %5552 = vmatpush.msra.mxu0 %v5456
    %5553 = vmatpush.msra.mxu0 %v5452
    %5554 = vmatpush.msra.mxu0 %v5448
    %5555 = vmatpush.msra.mxu0 %v5444
    %5556 = vmatpush.msra.mxu0 %v5440
    %5557 = vmatpush.msra.mxu0 %v5436
    %5558 = vmatpush.msra.mxu0 %v5432
    %5559 = vmatpush.msra.mxu0 %v5428
    %5560 = vmatpush.msra.mxu0 %v5424
    %5561 = vmatmul.f32.gmra.mxu0 %v5419
    %v5562 = vpop.f32.mrf.mxu0
    %v5563 = vadd.f32 0.0, %v5562
    %5564 = vdwg.mxu0
    %v5565 = vadd.f32 %v4229, %v5503
    %v5566 = vadd.f32 %v4270, %v5523
    %v5567 = vadd.f32 %v4311, %v5543
    %v5568 = vadd.f32 %v4352, %v5563
    %v5569 = vxor.u32 %v5565, 2147483648
    %v5570 = vmul.f32 %v5569, 1.442695
    %v5571 = vpow.pop %v5570
    %v5572 = vadd.f32 %v5571, 1.0
    %v5573 = vrcp.pop %v5572
    %v5574 = vmul.f32 %v5572, %v5573
    %v5575 = vsub.f32 1.0, %v5574
    %v5576 = vmul.f32 %v5573, %v5575
    %v5577 = vadd.f32 %v5573, %v5576
    %vm5578 = vweird.f32 %v5572
    %vm5579 = vweird.f32 %v5573
    %vm5580 = vmor %vm5578, %vm5579
    %v5581 = vsel %vm5580, %v5573, %v5577
    %v5582 = vand.u32 2147483647, %v5572
    %vm5583 = vcmp.eq.f32.partialorder %v5582, 8.507059e+37
    %v5584 = vand.u32 %v5572, 2147483648
    %v5585 = vor.u32 1.1754944e-38, %v5584
    %v5586 = vsel %vm5583, %v5585, %v5581
    %v5587 = vmul.f32 1.0, %v5586
    %v5588 = vxor.u32 %v5566, 2147483648
    %v5589 = vmul.f32 %v5588, 1.442695
    %v5590 = vpow.pop %v5589
    %v5591 = vadd.f32 %v5590, 1.0
    %v5592 = vrcp.pop %v5591
    %v5593 = vmul.f32 %v5591, %v5592
    %v5594 = vsub.f32 1.0, %v5593
    %v5595 = vmul.f32 %v5592, %v5594
    %v5596 = vadd.f32 %v5592, %v5595
    %vm5597 = vweird.f32 %v5591
    %vm5598 = vweird.f32 %v5592
    %vm5599 = vmor %vm5597, %vm5598
    %v5600 = vsel %vm5599, %v5592, %v5596
    %v5601 = vand.u32 2147483647, %v5591
    %vm5602 = vcmp.eq.f32.partialorder %v5601, 8.507059e+37
    %v5603 = vand.u32 %v5591, 2147483648
    %v5604 = vor.u32 1.1754944e-38, %v5603
    %v5605 = vsel %vm5602, %v5604, %v5600
    %v5606 = vmul.f32 1.0, %v5605
    %v5607 = vtanh.pop %v5567
    %v5608 = vxor.u32 %v5568, 2147483648
    %v5609 = vmul.f32 %v5608, 1.442695
    %v5610 = vpow.pop %v5609
    %v5611 = vadd.f32 %v5610, 1.0
    %v5612 = vrcp.pop %v5611
    %v5613 = vmul.f32 %v5611, %v5612
    %v5614 = vsub.f32 1.0, %v5613
    %v5615 = vmul.f32 %v5612, %v5614
    %v5616 = vadd.f32 %v5612, %v5615
    %vm5617 = vweird.f32 %v5611
    %vm5618 = vweird.f32 %v5612
    %vm5619 = vmor %vm5617, %vm5618
    %v5620 = vsel %vm5619, %v5612, %v5616
    %v5621 = vand.u32 2147483647, %v5611
    %vm5622 = vcmp.eq.f32.partialorder %v5621, 8.507059e+37
    %v5623 = vand.u32 %v5611, 2147483648
    %v5624 = vor.u32 1.1754944e-38, %v5623
    %v5625 = vsel %vm5622, %v5624, %v5620
    %v5626 = vmul.f32 1.0, %v5625
    %v5627 = vmul.f32 %v5606, %v5417
    %v5628 = vmul.f32 %v5587, %v5607
    %v5629 = vadd.f32 %v5627, %v5628
    %v5630 = vtanh.pop %v5629
    %v5631 = vmul.f32 %v5626, %v5630
    %5632 = vst [vmem:[#allocation2 + $0x28] sm:$0xff] %v5631
    %v5633 = vld [vmem:[%s4360] sm:$0xff]
    %v5634 = vld [vmem:[%s4360 + $0x8] sm:$0xff]
    %v5635 = vld [vmem:[%s4360 + $0x10] sm:$0xff]
    %v5636 = vld [vmem:[%s4360 + $0x18] sm:$0xff]
    %v5637 = vld [vmem:[%s4360 + $0x20] sm:$0xff]
    %v5638 = vld [vmem:[%s4360 + $0x28] sm:$0xff]
    %v5639 = vld [vmem:[%s4360 + $0x30] sm:$0xff]
    %v5640 = vld [vmem:[%s4360 + $0x38] sm:$0xff]
    %v5641 = vld [vmem:[%s4360 + $0x40] sm:$0xff]
    %v5642 = vld [vmem:[%s4360 + $0x48] sm:$0xff]
    %v5643 = vld [vmem:[%s4360 + $0x50] sm:$0xff]
    %v5644 = vld [vmem:[%s4360 + $0x58] sm:$0xff]
    %v5645 = vld [vmem:[%s4360 + $0x60] sm:$0xff]
    %v5646 = vld [vmem:[%s4360 + $0x68] sm:$0xff]
    %v5647 = vld [vmem:[%s4360 + $0x70] sm:$0xff]
    %v5648 = vld [vmem:[%s4360 + $0x78] sm:$0xff]
    %v5649 = vld [vmem:[%s4360 + $0x80] sm:$0xff]
    %v5650 = vld [vmem:[%s4360 + $0x88] sm:$0xff]
    %v5651 = vld [vmem:[%s4360 + $0x90] sm:$0xff]
    %v5652 = vld [vmem:[%s4360 + $0x98] sm:$0xff]
    %v5653 = vld [vmem:[%s4360 + $0xa0] sm:$0xff]
    %v5654 = vld [vmem:[%s4360 + $0xa8] sm:$0xff]
    %v5655 = vld [vmem:[%s4360 + $0xb0] sm:$0xff]
    %v5656 = vld [vmem:[%s4360 + $0xb8] sm:$0xff]
    %v5657 = vld [vmem:[%s4360 + $0xc0] sm:$0xff]
    %v5658 = vld [vmem:[%s4360 + $0xc8] sm:$0xff]
    %v5659 = vld [vmem:[%s4360 + $0xd0] sm:$0xff]
    %v5660 = vld [vmem:[%s4360 + $0xd8] sm:$0xff]
    %v5661 = vld [vmem:[%s4360 + $0xe0] sm:$0xff]
    %v5662 = vld [vmem:[%s4360 + $0xe8] sm:$0xff]
    %v5663 = vld [vmem:[%s4360 + $0xf0] sm:$0xff]
    %v5664 = vld [vmem:[%s4360 + $0xf8] sm:$0xff]
    %v5665 = vld [vmem:[%s4360 + $0x100] sm:$0xff]
    %v5666 = vld [vmem:[%s4360 + $0x108] sm:$0xff]
    %v5667 = vld [vmem:[%s4360 + $0x110] sm:$0xff]
    %v5668 = vld [vmem:[%s4360 + $0x118] sm:$0xff]
    %v5669 = vld [vmem:[%s4360 + $0x120] sm:$0xff]
    %v5670 = vld [vmem:[%s4360 + $0x128] sm:$0xff]
    %v5671 = vld [vmem:[%s4360 + $0x130] sm:$0xff]
    %v5672 = vld [vmem:[%s4360 + $0x138] sm:$0xff]
    %v5673 = vld [vmem:[%s4360 + $0x140] sm:$0xff]
    %v5674 = vld [vmem:[%s4360 + $0x148] sm:$0xff]
    %v5675 = vld [vmem:[%s4360 + $0x150] sm:$0xff]
    %v5676 = vld [vmem:[%s4360 + $0x158] sm:$0xff]
    %v5677 = vld [vmem:[%s4360 + $0x160] sm:$0xff]
    %v5678 = vld [vmem:[%s4360 + $0x168] sm:$0xff]
    %v5679 = vld [vmem:[%s4360 + $0x170] sm:$0xff]
    %v5680 = vld [vmem:[%s4360 + $0x178] sm:$0xff]
    %v5681 = vld [vmem:[%s4360 + $0x180] sm:$0xff]
    %v5682 = vld [vmem:[%s4360 + $0x188] sm:$0xff]
    %v5683 = vld [vmem:[%s4360 + $0x190] sm:$0xff]
    %v5684 = vld [vmem:[%s4360 + $0x198] sm:$0xff]
    %v5685 = vld [vmem:[%s4360 + $0x1a0] sm:$0xff]
    %v5686 = vld [vmem:[%s4360 + $0x1a8] sm:$0xff]
    %v5687 = vld [vmem:[%s4360 + $0x1b0] sm:$0xff]
    %v5688 = vld [vmem:[%s4360 + $0x1b8] sm:$0xff]
    %v5689 = vld [vmem:[%s4360 + $0x1c0] sm:$0xff]
    %v5690 = vld [vmem:[%s4360 + $0x1c8] sm:$0xff]
    %v5691 = vld [vmem:[%s4360 + $0x1d0] sm:$0xff]
    %v5692 = vld [vmem:[%s4360 + $0x1d8] sm:$0xff]
    %v5693 = vld [vmem:[%s4360 + $0x1e0] sm:$0xff]
    %v5694 = vld [vmem:[%s4360 + $0x1e8] sm:$0xff]
    %v5695 = vld [vmem:[%s4360 + $0x1f0] sm:$0xff]
    %v5696 = vld [vmem:[%s4360 + $0x1f8] sm:$0xff]
    %5697 = vmatpush.msra.mxu0 %v5693
    %5698 = vmatpush.msra.mxu0 %v5689
    %5699 = vmatpush.msra.mxu0 %v5685
    %5700 = vmatpush.msra.mxu0 %v5681
    %5701 = vmatpush.msra.mxu0 %v5677
    %5702 = vmatpush.msra.mxu0 %v5673
    %5703 = vmatpush.msra.mxu0 %v5669
    %5704 = vmatpush.msra.mxu0 %v5665
    %5705 = vmatpush.msra.mxu0 %v5661
    %5706 = vmatpush.msra.mxu0 %v5657
    %5707 = vmatpush.msra.mxu0 %v5653
    %5708 = vmatpush.msra.mxu0 %v5649
    %5709 = vmatpush.msra.mxu0 %v5645
    %5710 = vmatpush.msra.mxu0 %v5641
    %5711 = vmatpush.msra.mxu0 %v5637
    %5712 = vmatpush.msra.mxu0 %v5633
    %5713 = vmatmul.f32.gmra.mxu0 %v5631
    %v5714 = vpop.f32.mrf.mxu0
    %v5715 = vadd.f32 0.0, %v5714
    %5716 = vdwg.mxu0
    %5717 = vmatpush.msra.mxu0 %v5694
    %5718 = vmatpush.msra.mxu0 %v5690
    %5719 = vmatpush.msra.mxu0 %v5686
    %5720 = vmatpush.msra.mxu0 %v5682
    %5721 = vmatpush.msra.mxu0 %v5678
    %5722 = vmatpush.msra.mxu0 %v5674
    %5723 = vmatpush.msra.mxu0 %v5670
    %5724 = vmatpush.msra.mxu0 %v5666
    %5725 = vmatpush.msra.mxu0 %v5662
    %5726 = vmatpush.msra.mxu0 %v5658
    %5727 = vmatpush.msra.mxu0 %v5654
    %5728 = vmatpush.msra.mxu0 %v5650
    %5729 = vmatpush.msra.mxu0 %v5646
    %5730 = vmatpush.msra.mxu0 %v5642
    %5731 = vmatpush.msra.mxu0 %v5638
    %5732 = vmatpush.msra.mxu0 %v5634
    %5733 = vmatmul.f32.gmra.mxu0 %v5631
    %v5734 = vpop.f32.mrf.mxu0
    %v5735 = vadd.f32 0.0, %v5734
    %5736 = vdwg.mxu0
    %5737 = vmatpush.msra.mxu0 %v5695
    %5738 = vmatpush.msra.mxu0 %v5691
    %5739 = vmatpush.msra.mxu0 %v5687
    %5740 = vmatpush.msra.mxu0 %v5683
    %5741 = vmatpush.msra.mxu0 %v5679
    %5742 = vmatpush.msra.mxu0 %v5675
    %5743 = vmatpush.msra.mxu0 %v5671
    %5744 = vmatpush.msra.mxu0 %v5667
    %5745 = vmatpush.msra.mxu0 %v5663
    %5746 = vmatpush.msra.mxu0 %v5659
    %5747 = vmatpush.msra.mxu0 %v5655
    %5748 = vmatpush.msra.mxu0 %v5651
    %5749 = vmatpush.msra.mxu0 %v5647
    %5750 = vmatpush.msra.mxu0 %v5643
    %5751 = vmatpush.msra.mxu0 %v5639
    %5752 = vmatpush.msra.mxu0 %v5635
    %5753 = vmatmul.f32.gmra.mxu0 %v5631
    %v5754 = vpop.f32.mrf.mxu0
    %v5755 = vadd.f32 0.0, %v5754
    %5756 = vdwg.mxu0
    %5757 = vmatpush.msra.mxu0 %v5696
    %5758 = vmatpush.msra.mxu0 %v5692
    %5759 = vmatpush.msra.mxu0 %v5688
    %5760 = vmatpush.msra.mxu0 %v5684
    %5761 = vmatpush.msra.mxu0 %v5680
    %5762 = vmatpush.msra.mxu0 %v5676
    %5763 = vmatpush.msra.mxu0 %v5672
    %5764 = vmatpush.msra.mxu0 %v5668
    %5765 = vmatpush.msra.mxu0 %v5664
    %5766 = vmatpush.msra.mxu0 %v5660
    %5767 = vmatpush.msra.mxu0 %v5656
    %5768 = vmatpush.msra.mxu0 %v5652
    %5769 = vmatpush.msra.mxu0 %v5648
    %5770 = vmatpush.msra.mxu0 %v5644
    %5771 = vmatpush.msra.mxu0 %v5640
    %5772 = vmatpush.msra.mxu0 %v5636
    %5773 = vmatmul.f32.gmra.mxu0 %v5631
    %v5774 = vpop.f32.mrf.mxu0
    %v5775 = vadd.f32 0.0, %v5774
    %5776 = vdwg.mxu0
    %v5777 = vadd.f32 %v4232, %v5715
    %v5778 = vadd.f32 %v4273, %v5735
    %v5779 = vadd.f32 %v4314, %v5755
    %v5780 = vadd.f32 %v4355, %v5775
    %v5781 = vxor.u32 %v5777, 2147483648
    %v5782 = vmul.f32 %v5781, 1.442695
    %v5783 = vpow.pop %v5782
    %v5784 = vadd.f32 %v5783, 1.0
    %v5785 = vrcp.pop %v5784
    %v5786 = vmul.f32 %v5784, %v5785
    %v5787 = vsub.f32 1.0, %v5786
    %v5788 = vmul.f32 %v5785, %v5787
    %v5789 = vadd.f32 %v5785, %v5788
    %vm5790 = vweird.f32 %v5784
    %vm5791 = vweird.f32 %v5785
    %vm5792 = vmor %vm5790, %vm5791
    %v5793 = vsel %vm5792, %v5785, %v5789
    %v5794 = vand.u32 2147483647, %v5784
    %vm5795 = vcmp.eq.f32.partialorder %v5794, 8.507059e+37
    %v5796 = vand.u32 %v5784, 2147483648
    %v5797 = vor.u32 1.1754944e-38, %v5796
    %v5798 = vsel %vm5795, %v5797, %v5793
    %v5799 = vmul.f32 1.0, %v5798
    %v5800 = vxor.u32 %v5778, 2147483648
    %v5801 = vmul.f32 %v5800, 1.442695
    %v5802 = vpow.pop %v5801
    %v5803 = vadd.f32 %v5802, 1.0
    %v5804 = vrcp.pop %v5803
    %v5805 = vmul.f32 %v5803, %v5804
    %v5806 = vsub.f32 1.0, %v5805
    %v5807 = vmul.f32 %v5804, %v5806
    %v5808 = vadd.f32 %v5804, %v5807
    %vm5809 = vweird.f32 %v5803
    %vm5810 = vweird.f32 %v5804
    %vm5811 = vmor %vm5809, %vm5810
    %v5812 = vsel %vm5811, %v5804, %v5808
    %v5813 = vand.u32 2147483647, %v5803
    %vm5814 = vcmp.eq.f32.partialorder %v5813, 8.507059e+37
    %v5815 = vand.u32 %v5803, 2147483648
    %v5816 = vor.u32 1.1754944e-38, %v5815
    %v5817 = vsel %vm5814, %v5816, %v5812
    %v5818 = vmul.f32 1.0, %v5817
    %v5819 = vtanh.pop %v5779
    %v5820 = vxor.u32 %v5780, 2147483648
    %v5821 = vmul.f32 %v5820, 1.442695
    %v5822 = vpow.pop %v5821
    %v5823 = vadd.f32 %v5822, 1.0
    %v5824 = vrcp.pop %v5823
    %v5825 = vmul.f32 %v5823, %v5824
    %v5826 = vsub.f32 1.0, %v5825
    %v5827 = vmul.f32 %v5824, %v5826
    %v5828 = vadd.f32 %v5824, %v5827
    %vm5829 = vweird.f32 %v5823
    %vm5830 = vweird.f32 %v5824
    %vm5831 = vmor %vm5829, %vm5830
    %v5832 = vsel %vm5831, %v5824, %v5828
    %v5833 = vand.u32 2147483647, %v5823
    %vm5834 = vcmp.eq.f32.partialorder %v5833, 8.507059e+37
    %v5835 = vand.u32 %v5823, 2147483648
    %v5836 = vor.u32 1.1754944e-38, %v5835
    %v5837 = vsel %vm5834, %v5836, %v5832
    %v5838 = vmul.f32 1.0, %v5837
    %v5839 = vmul.f32 %v5818, %v5629
    %v5840 = vmul.f32 %v5799, %v5819
    %v5841 = vadd.f32 %v5839, %v5840
    %v5842 = vtanh.pop %v5841
    %v5843 = vmul.f32 %v5838, %v5842
    %5844 = vst [vmem:[#allocation2 + $0x30] sm:$0xff] %v5843
    %v5845 = vld [vmem:[%s4360] sm:$0xff]
    %v5846 = vld [vmem:[%s4360 + $0x8] sm:$0xff]
    %v5847 = vld [vmem:[%s4360 + $0x10] sm:$0xff]
    %v5848 = vld [vmem:[%s4360 + $0x18] sm:$0xff]
    %v5849 = vld [vmem:[%s4360 + $0x20] sm:$0xff]
    %v5850 = vld [vmem:[%s4360 + $0x28] sm:$0xff]
    %v5851 = vld [vmem:[%s4360 + $0x30] sm:$0xff]
    %v5852 = vld [vmem:[%s4360 + $0x38] sm:$0xff]
    %v5853 = vld [vmem:[%s4360 + $0x40] sm:$0xff]
    %v5854 = vld [vmem:[%s4360 + $0x48] sm:$0xff]
    %v5855 = vld [vmem:[%s4360 + $0x50] sm:$0xff]
    %v5856 = vld [vmem:[%s4360 + $0x58] sm:$0xff]
    %v5857 = vld [vmem:[%s4360 + $0x60] sm:$0xff]
    %v5858 = vld [vmem:[%s4360 + $0x68] sm:$0xff]
    %v5859 = vld [vmem:[%s4360 + $0x70] sm:$0xff]
    %v5860 = vld [vmem:[%s4360 + $0x78] sm:$0xff]
    %v5861 = vld [vmem:[%s4360 + $0x80] sm:$0xff]
    %v5862 = vld [vmem:[%s4360 + $0x88] sm:$0xff]
    %v5863 = vld [vmem:[%s4360 + $0x90] sm:$0xff]
    %v5864 = vld [vmem:[%s4360 + $0x98] sm:$0xff]
    %v5865 = vld [vmem:[%s4360 + $0xa0] sm:$0xff]
    %v5866 = vld [vmem:[%s4360 + $0xa8] sm:$0xff]
    %v5867 = vld [vmem:[%s4360 + $0xb0] sm:$0xff]
    %v5868 = vld [vmem:[%s4360 + $0xb8] sm:$0xff]
    %v5869 = vld [vmem:[%s4360 + $0xc0] sm:$0xff]
    %v5870 = vld [vmem:[%s4360 + $0xc8] sm:$0xff]
    %v5871 = vld [vmem:[%s4360 + $0xd0] sm:$0xff]
    %v5872 = vld [vmem:[%s4360 + $0xd8] sm:$0xff]
    %v5873 = vld [vmem:[%s4360 + $0xe0] sm:$0xff]
    %v5874 = vld [vmem:[%s4360 + $0xe8] sm:$0xff]
    %v5875 = vld [vmem:[%s4360 + $0xf0] sm:$0xff]
    %v5876 = vld [vmem:[%s4360 + $0xf8] sm:$0xff]
    %v5877 = vld [vmem:[%s4360 + $0x100] sm:$0xff]
    %v5878 = vld [vmem:[%s4360 + $0x108] sm:$0xff]
    %v5879 = vld [vmem:[%s4360 + $0x110] sm:$0xff]
    %v5880 = vld [vmem:[%s4360 + $0x118] sm:$0xff]
    %v5881 = vld [vmem:[%s4360 + $0x120] sm:$0xff]
    %v5882 = vld [vmem:[%s4360 + $0x128] sm:$0xff]
    %v5883 = vld [vmem:[%s4360 + $0x130] sm:$0xff]
    %v5884 = vld [vmem:[%s4360 + $0x138] sm:$0xff]
    %v5885 = vld [vmem:[%s4360 + $0x140] sm:$0xff]
    %v5886 = vld [vmem:[%s4360 + $0x148] sm:$0xff]
    %v5887 = vld [vmem:[%s4360 + $0x150] sm:$0xff]
    %v5888 = vld [vmem:[%s4360 + $0x158] sm:$0xff]
    %v5889 = vld [vmem:[%s4360 + $0x160] sm:$0xff]
    %v5890 = vld [vmem:[%s4360 + $0x168] sm:$0xff]
    %v5891 = vld [vmem:[%s4360 + $0x170] sm:$0xff]
    %v5892 = vld [vmem:[%s4360 + $0x178] sm:$0xff]
    %v5893 = vld [vmem:[%s4360 + $0x180] sm:$0xff]
    %v5894 = vld [vmem:[%s4360 + $0x188] sm:$0xff]
    %v5895 = vld [vmem:[%s4360 + $0x190] sm:$0xff]
    %v5896 = vld [vmem:[%s4360 + $0x198] sm:$0xff]
    %v5897 = vld [vmem:[%s4360 + $0x1a0] sm:$0xff]
    %v5898 = vld [vmem:[%s4360 + $0x1a8] sm:$0xff]
    %v5899 = vld [vmem:[%s4360 + $0x1b0] sm:$0xff]
    %v5900 = vld [vmem:[%s4360 + $0x1b8] sm:$0xff]
    %v5901 = vld [vmem:[%s4360 + $0x1c0] sm:$0xff]
    %v5902 = vld [vmem:[%s4360 + $0x1c8] sm:$0xff]
    %v5903 = vld [vmem:[%s4360 + $0x1d0] sm:$0xff]
    %v5904 = vld [vmem:[%s4360 + $0x1d8] sm:$0xff]
    %v5905 = vld [vmem:[%s4360 + $0x1e0] sm:$0xff]
    %v5906 = vld [vmem:[%s4360 + $0x1e8] sm:$0xff]
    %v5907 = vld [vmem:[%s4360 + $0x1f0] sm:$0xff]
    %v5908 = vld [vmem:[%s4360 + $0x1f8] sm:$0xff]
    %5909 = vmatpush.msra.mxu0 %v5905
    %5910 = vmatpush.msra.mxu0 %v5901
    %5911 = vmatpush.msra.mxu0 %v5897
    %5912 = vmatpush.msra.mxu0 %v5893
    %5913 = vmatpush.msra.mxu0 %v5889
    %5914 = vmatpush.msra.mxu0 %v5885
    %5915 = vmatpush.msra.mxu0 %v5881
    %5916 = vmatpush.msra.mxu0 %v5877
    %5917 = vmatpush.msra.mxu0 %v5873
    %5918 = vmatpush.msra.mxu0 %v5869
    %5919 = vmatpush.msra.mxu0 %v5865
    %5920 = vmatpush.msra.mxu0 %v5861
    %5921 = vmatpush.msra.mxu0 %v5857
    %5922 = vmatpush.msra.mxu0 %v5853
    %5923 = vmatpush.msra.mxu0 %v5849
    %5924 = vmatpush.msra.mxu0 %v5845
    %5925 = vmatmul.f32.gmra.mxu0 %v5843
    %v5926 = vpop.f32.mrf.mxu0
    %v5927 = vadd.f32 0.0, %v5926
    %5928 = vdwg.mxu0
    %5929 = vmatpush.msra.mxu0 %v5906
    %5930 = vmatpush.msra.mxu0 %v5902
    %5931 = vmatpush.msra.mxu0 %v5898
    %5932 = vmatpush.msra.mxu0 %v5894
    %5933 = vmatpush.msra.mxu0 %v5890
    %5934 = vmatpush.msra.mxu0 %v5886
    %5935 = vmatpush.msra.mxu0 %v5882
    %5936 = vmatpush.msra.mxu0 %v5878
    %5937 = vmatpush.msra.mxu0 %v5874
    %5938 = vmatpush.msra.mxu0 %v5870
    %5939 = vmatpush.msra.mxu0 %v5866
    %5940 = vmatpush.msra.mxu0 %v5862
    %5941 = vmatpush.msra.mxu0 %v5858
    %5942 = vmatpush.msra.mxu0 %v5854
    %5943 = vmatpush.msra.mxu0 %v5850
    %5944 = vmatpush.msra.mxu0 %v5846
    %5945 = vmatmul.f32.gmra.mxu0 %v5843
    %v5946 = vpop.f32.mrf.mxu0
    %v5947 = vadd.f32 0.0, %v5946
    %5948 = vdwg.mxu0
    %5949 = vmatpush.msra.mxu0 %v5907
    %5950 = vmatpush.msra.mxu0 %v5903
    %5951 = vmatpush.msra.mxu0 %v5899
    %5952 = vmatpush.msra.mxu0 %v5895
    %5953 = vmatpush.msra.mxu0 %v5891
    %5954 = vmatpush.msra.mxu0 %v5887
    %5955 = vmatpush.msra.mxu0 %v5883
    %5956 = vmatpush.msra.mxu0 %v5879
    %5957 = vmatpush.msra.mxu0 %v5875
    %5958 = vmatpush.msra.mxu0 %v5871
    %5959 = vmatpush.msra.mxu0 %v5867
    %5960 = vmatpush.msra.mxu0 %v5863
    %5961 = vmatpush.msra.mxu0 %v5859
    %5962 = vmatpush.msra.mxu0 %v5855
    %5963 = vmatpush.msra.mxu0 %v5851
    %5964 = vmatpush.msra.mxu0 %v5847
    %5965 = vmatmul.f32.gmra.mxu0 %v5843
    %v5966 = vpop.f32.mrf.mxu0
    %v5967 = vadd.f32 0.0, %v5966
    %5968 = vdwg.mxu0
    %5969 = vmatpush.msra.mxu0 %v5908
    %5970 = vmatpush.msra.mxu0 %v5904
    %5971 = vmatpush.msra.mxu0 %v5900
    %5972 = vmatpush.msra.mxu0 %v5896
    %5973 = vmatpush.msra.mxu0 %v5892
    %5974 = vmatpush.msra.mxu0 %v5888
    %5975 = vmatpush.msra.mxu0 %v5884
    %5976 = vmatpush.msra.mxu0 %v5880
    %5977 = vmatpush.msra.mxu0 %v5876
    %5978 = vmatpush.msra.mxu0 %v5872
    %5979 = vmatpush.msra.mxu0 %v5868
    %5980 = vmatpush.msra.mxu0 %v5864
    %5981 = vmatpush.msra.mxu0 %v5860
    %5982 = vmatpush.msra.mxu0 %v5856
    %5983 = vmatpush.msra.mxu0 %v5852
    %5984 = vmatpush.msra.mxu0 %v5848
    %5985 = vmatmul.f32.gmra.mxu0 %v5843
    %v5986 = vpop.f32.mrf.mxu0
    %v5987 = vadd.f32 0.0, %v5986
    %5988 = vdwg.mxu0
    %v5989 = vadd.f32 %v4235, %v5927
    %v5990 = vadd.f32 %v4276, %v5947
    %v5991 = vadd.f32 %v4317, %v5967
    %v5992 = vadd.f32 %v4358, %v5987
    %v5993 = vxor.u32 %v5989, 2147483648
    %v5994 = vmul.f32 %v5993, 1.442695
    %v5995 = vpow.pop %v5994
    %v5996 = vadd.f32 %v5995, 1.0
    %v5997 = vrcp.pop %v5996
    %v5998 = vmul.f32 %v5996, %v5997
    %v5999 = vsub.f32 1.0, %v5998
    %v6000 = vmul.f32 %v5997, %v5999
    %v6001 = vadd.f32 %v5997, %v6000
    %vm6002 = vweird.f32 %v5996
    %vm6003 = vweird.f32 %v5997
    %vm6004 = vmor %vm6002, %vm6003
    %v6005 = vsel %vm6004, %v5997, %v6001
    %v6006 = vand.u32 2147483647, %v5996
    %vm6007 = vcmp.eq.f32.partialorder %v6006, 8.507059e+37
    %v6008 = vand.u32 %v5996, 2147483648
    %v6009 = vor.u32 1.1754944e-38, %v6008
    %v6010 = vsel %vm6007, %v6009, %v6005
    %v6011 = vmul.f32 1.0, %v6010
    %v6012 = vxor.u32 %v5990, 2147483648
    %v6013 = vmul.f32 %v6012, 1.442695
    %v6014 = vpow.pop %v6013
    %v6015 = vadd.f32 %v6014, 1.0
    %v6016 = vrcp.pop %v6015
    %v6017 = vmul.f32 %v6015, %v6016
    %v6018 = vsub.f32 1.0, %v6017
    %v6019 = vmul.f32 %v6016, %v6018
    %v6020 = vadd.f32 %v6016, %v6019
    %vm6021 = vweird.f32 %v6015
    %vm6022 = vweird.f32 %v6016
    %vm6023 = vmor %vm6021, %vm6022
    %v6024 = vsel %vm6023, %v6016, %v6020
    %v6025 = vand.u32 2147483647, %v6015
    %vm6026 = vcmp.eq.f32.partialorder %v6025, 8.507059e+37
    %v6027 = vand.u32 %v6015, 2147483648
    %v6028 = vor.u32 1.1754944e-38, %v6027
    %v6029 = vsel %vm6026, %v6028, %v6024
    %v6030 = vmul.f32 1.0, %v6029
    %v6031 = vtanh.pop %v5991
    %v6032 = vxor.u32 %v5992, 2147483648
    %v6033 = vmul.f32 %v6032, 1.442695
    %v6034 = vpow.pop %v6033
    %v6035 = vadd.f32 %v6034, 1.0
    %v6036 = vrcp.pop %v6035
    %v6037 = vmul.f32 %v6035, %v6036
    %v6038 = vsub.f32 1.0, %v6037
    %v6039 = vmul.f32 %v6036, %v6038
    %v6040 = vadd.f32 %v6036, %v6039
    %vm6041 = vweird.f32 %v6035
    %vm6042 = vweird.f32 %v6036
    %vm6043 = vmor %vm6041, %vm6042
    %v6044 = vsel %vm6043, %v6036, %v6040
    %v6045 = vand.u32 2147483647, %v6035
    %vm6046 = vcmp.eq.f32.partialorder %v6045, 8.507059e+37
    %v6047 = vand.u32 %v6035, 2147483648
    %v6048 = vor.u32 1.1754944e-38, %v6047
    %v6049 = vsel %vm6046, %v6048, %v6044
    %v6050 = vmul.f32 1.0, %v6049
    %v6051 = vmul.f32 %v6030, %v5841
    %v6052 = vmul.f32 %v6011, %v6031
    %v6053 = vadd.f32 %v6051, %v6052
    %v6054 = vtanh.pop %v6053
    %v6055 = vmul.f32 %v6050, %v6054
    %6056 = vst [vmem:[#allocation2 + $0x38] sm:$0xff] %v6055
    %6057 = vst [vmem:[#allocation3 + $0x20] sm:$0xff] %v6055
    %6058 = vst [vmem:[#allocation3 + $0x28] sm:$0xff] %v6053
    %v6059 = vld [vmem:[#allocation3] sm:$0xff]
    %v6060 = vld [vmem:[#allocation3 + $0x8] sm:$0xff]
    %v6061 = vld [vmem:[#allocation3 + $0x10] sm:$0xff]
    %v6062 = vld [vmem:[#allocation3 + $0x18] sm:$0xff]
    %v6063 = vld [vmem:[#allocation3 + $0x20] sm:$0xff]
    %v6064 = vld [vmem:[#allocation3 + $0x28] sm:$0xff]
    %v6065 = vtanh.pop %v6059
    %v6066 = vtanh.pop %v6060
    %v6067 = vtanh.pop %v6061
    %v6068 = vtanh.pop %v6062
    %v6069 = vtanh.pop %v6063
    %v6070 = vtanh.pop %v6064
    %v6071 = vld [vmem:[#allocation10] sm:$0xff]
    %v6072 = vld [vmem:[#allocation10 + $0x8] sm:$0xff]
    %v6073 = vld [vmem:[#allocation10 + $0x10] sm:$0xff]
    %v6074 = vld [vmem:[#allocation10 + $0x18] sm:$0xff]
    %v6075 = vld [vmem:[#allocation10 + $0x20] sm:$0xff]
    %v6076 = vld [vmem:[#allocation10 + $0x28] sm:$0xff]
    %v6077 = vld [vmem:[#allocation10 + $0x30] sm:$0xff]
    %v6078 = vld [vmem:[#allocation10 + $0x38] sm:$0xff]
    %v6079 = vld [vmem:[#allocation10 + $0x40] sm:$0xff]
    %v6080 = vld [vmem:[#allocation10 + $0x48] sm:$0xff]
    %v6081 = vld [vmem:[#allocation10 + $0x50] sm:$0xff]
    %v6082 = vld [vmem:[#allocation10 + $0x58] sm:$0xff]
    %v6083 = vld [vmem:[#allocation10 + $0x60] sm:$0xff]
    %v6084 = vld [vmem:[#allocation10 + $0x68] sm:$0xff]
    %v6085 = vld [vmem:[#allocation10 + $0x70] sm:$0xff]
    %v6086 = vld [vmem:[#allocation10 + $0x78] sm:$0xff]
    %v6087 = vld [vmem:[#allocation10 + $0x80] sm:$0xff]
    %v6088 = vld [vmem:[#allocation10 + $0x88] sm:$0xff]
    %v6089 = vld [vmem:[#allocation10 + $0x90] sm:$0xff]
    %v6090 = vld [vmem:[#allocation10 + $0x98] sm:$0xff]
    %v6091 = vld [vmem:[#allocation10 + $0xa0] sm:$0xff]
    %v6092 = vld [vmem:[#allocation10 + $0xa8] sm:$0xff]
    %v6093 = vld [vmem:[#allocation10 + $0xb0] sm:$0xff]
    %v6094 = vld [vmem:[#allocation10 + $0xb8] sm:$0xff]
    %v6095 = vld [vmem:[#allocation10 + $0xc0] sm:$0xff]
    %v6096 = vld [vmem:[#allocation10 + $0xc8] sm:$0xff]
    %v6097 = vld [vmem:[#allocation10 + $0xd0] sm:$0xff]
    %v6098 = vld [vmem:[#allocation10 + $0xd8] sm:$0xff]
    %v6099 = vld [vmem:[#allocation10 + $0xe0] sm:$0xff]
    %v6100 = vld [vmem:[#allocation10 + $0xe8] sm:$0xff]
    %v6101 = vld [vmem:[#allocation10 + $0xf0] sm:$0xff]
    %v6102 = vld [vmem:[#allocation10 + $0xf8] sm:$0xff]
    %v6103 = vld [vmem:[#allocation10 + $0x100] sm:$0xff]
    %v6104 = vld [vmem:[#allocation10 + $0x108] sm:$0xff]
    %v6105 = vld [vmem:[#allocation10 + $0x110] sm:$0xff]
    %v6106 = vld [vmem:[#allocation10 + $0x118] sm:$0xff]
    %v6107 = vld [vmem:[#allocation10 + $0x120] sm:$0xff]
    %v6108 = vld [vmem:[#allocation10 + $0x128] sm:$0xff]
    %v6109 = vld [vmem:[#allocation10 + $0x130] sm:$0xff]
    %v6110 = vld [vmem:[#allocation10 + $0x138] sm:$0xff]
    %v6111 = vld [vmem:[#allocation10 + $0x140] sm:$0xff]
    %v6112 = vld [vmem:[#allocation10 + $0x148] sm:$0xff]
    %v6113 = vld [vmem:[#allocation10 + $0x150] sm:$0xff]
    %v6114 = vld [vmem:[#allocation10 + $0x158] sm:$0xff]
    %v6115 = vld [vmem:[#allocation10 + $0x160] sm:$0xff]
    %v6116 = vld [vmem:[#allocation10 + $0x168] sm:$0xff]
    %v6117 = vld [vmem:[#allocation10 + $0x170] sm:$0xff]
    %v6118 = vld [vmem:[#allocation10 + $0x178] sm:$0xff]
    %v6119 = vld [vmem:[#allocation10 + $0x180] sm:$0xff]
    %v6120 = vld [vmem:[#allocation10 + $0x188] sm:$0xff]
    %v6121 = vld [vmem:[#allocation10 + $0x190] sm:$0xff]
    %v6122 = vld [vmem:[#allocation10 + $0x198] sm:$0xff]
    %v6123 = vld [vmem:[#allocation10 + $0x1a0] sm:$0xff]
    %v6124 = vld [vmem:[#allocation10 + $0x1a8] sm:$0xff]
    %v6125 = vld [vmem:[#allocation10 + $0x1b0] sm:$0xff]
    %v6126 = vld [vmem:[#allocation10 + $0x1b8] sm:$0xff]
    %v6127 = vld [vmem:[#allocation10 + $0x1c0] sm:$0xff]
    %v6128 = vld [vmem:[#allocation10 + $0x1c8] sm:$0xff]
    %v6129 = vld [vmem:[#allocation10 + $0x1d0] sm:$0xff]
    %v6130 = vld [vmem:[#allocation10 + $0x1d8] sm:$0xff]
    %v6131 = vld [vmem:[#allocation10 + $0x1e0] sm:$0xff]
    %v6132 = vld [vmem:[#allocation10 + $0x1e8] sm:$0xff]
    %v6133 = vld [vmem:[#allocation10 + $0x1f0] sm:$0xff]
    %v6134 = vld [vmem:[#allocation10 + $0x1f8] sm:$0xff]
    %v6135 = vld [vmem:[#allocation10 + $0x200] sm:$0xff]
    %v6136 = vld [vmem:[#allocation10 + $0x208] sm:$0xff]
    %v6137 = vld [vmem:[#allocation10 + $0x210] sm:$0xff]
    %v6138 = vld [vmem:[#allocation10 + $0x218] sm:$0xff]
    %v6139 = vld [vmem:[#allocation10 + $0x220] sm:$0xff]
    %v6140 = vld [vmem:[#allocation10 + $0x228] sm:$0xff]
    %v6141 = vld [vmem:[#allocation10 + $0x230] sm:$0xff]
    %v6142 = vld [vmem:[#allocation10 + $0x238] sm:$0xff]
    %v6143 = vld [vmem:[#allocation10 + $0x240] sm:$0xff]
    %v6144 = vld [vmem:[#allocation10 + $0x248] sm:$0xff]
    %v6145 = vld [vmem:[#allocation10 + $0x250] sm:$0xff]
    %v6146 = vld [vmem:[#allocation10 + $0x258] sm:$0xff]
    %v6147 = vld [vmem:[#allocation10 + $0x260] sm:$0xff]
    %v6148 = vld [vmem:[#allocation10 + $0x268] sm:$0xff]
    %v6149 = vld [vmem:[#allocation10 + $0x270] sm:$0xff]
    %v6150 = vld [vmem:[#allocation10 + $0x278] sm:$0xff]
    %v6151 = vld [vmem:[#allocation10 + $0x280] sm:$0xff]
    %v6152 = vld [vmem:[#allocation10 + $0x288] sm:$0xff]
    %v6153 = vld [vmem:[#allocation10 + $0x290] sm:$0xff]
    %v6154 = vld [vmem:[#allocation10 + $0x298] sm:$0xff]
    %v6155 = vld [vmem:[#allocation10 + $0x2a0] sm:$0xff]
    %v6156 = vld [vmem:[#allocation10 + $0x2a8] sm:$0xff]
    %v6157 = vld [vmem:[#allocation10 + $0x2b0] sm:$0xff]
    %v6158 = vld [vmem:[#allocation10 + $0x2b8] sm:$0xff]
    %v6159 = vld [vmem:[#allocation10 + $0x2c0] sm:$0xff]
    %v6160 = vld [vmem:[#allocation10 + $0x2c8] sm:$0xff]
    %v6161 = vld [vmem:[#allocation10 + $0x2d0] sm:$0xff]
    %v6162 = vld [vmem:[#allocation10 + $0x2d8] sm:$0xff]
    %v6163 = vld [vmem:[#allocation10 + $0x2e0] sm:$0xff]
    %v6164 = vld [vmem:[#allocation10 + $0x2e8] sm:$0xff]
    %v6165 = vld [vmem:[#allocation10 + $0x2f0] sm:$0xff]
    %v6166 = vld [vmem:[#allocation10 + $0x2f8] sm:$0xff]
    %v6167 = vld [vmem:[%s6] sm:$0x1]
    %v6169 = vperm.slane %v6167, 0
    %6171 = vmatpush.msra.mxu0 %v6086
    %6172 = vmatpush.msra.mxu0 %v6085
    %6173 = vmatpush.msra.mxu0 %v6084
    %6174 = vmatpush.msra.mxu0 %v6083
    %6175 = vmatpush.msra.mxu0 %v6082
    %6176 = vmatpush.msra.mxu0 %v6081
    %6177 = vmatpush.msra.mxu0 %v6080
    %6178 = vmatpush.msra.mxu0 %v6079
    %6179 = vmatpush.msra.mxu0 %v6078
    %6180 = vmatpush.msra.mxu0 %v6077
    %6181 = vmatpush.msra.mxu0 %v6076
    %6182 = vmatpush.msra.mxu0 %v6075
    %6183 = vmatpush.msra.mxu0 %v6074
    %6184 = vmatpush.msra.mxu0 %v6073
    %6185 = vmatpush.msra.mxu0 %v6072
    %6186 = vmatpush.msra.mxu0 %v6071
    %6187 = vmatmul.f32.gmra.mxu0 %v6065
    %v6188 = vpop.f32.mrf.mxu0
    %v6189 = vadd.f32 %v6169, %v6188
    %6190 = vdwg.mxu0
    %6191 = vmatpush.msra.mxu0 %v6102
    %6192 = vmatpush.msra.mxu0 %v6101
    %6193 = vmatpush.msra.mxu0 %v6100
    %6194 = vmatpush.msra.mxu0 %v6099
    %6195 = vmatpush.msra.mxu0 %v6098
    %6196 = vmatpush.msra.mxu0 %v6097
    %6197 = vmatpush.msra.mxu0 %v6096
    %6198 = vmatpush.msra.mxu0 %v6095
    %6199 = vmatpush.msra.mxu0 %v6094
    %6200 = vmatpush.msra.mxu0 %v6093
    %6201 = vmatpush.msra.mxu0 %v6092
    %6202 = vmatpush.msra.mxu0 %v6091
    %6203 = vmatpush.msra.mxu0 %v6090
    %6204 = vmatpush.msra.mxu0 %v6089
    %6205 = vmatpush.msra.mxu0 %v6088
    %6206 = vmatpush.msra.mxu0 %v6087
    %6207 = vmatmul.f32.gmra.mxu0 %v6066
    %v6208 = vpop.f32.mrf.mxu0
    %v6209 = vadd.f32 %v6189, %v6208
    %6210 = vdwg.mxu0
    %6211 = vmatpush.msra.mxu0 %v6118
    %6212 = vmatpush.msra.mxu0 %v6117
    %6213 = vmatpush.msra.mxu0 %v6116
    %6214 = vmatpush.msra.mxu0 %v6115
    %6215 = vmatpush.msra.mxu0 %v6114
    %6216 = vmatpush.msra.mxu0 %v6113
    %6217 = vmatpush.msra.mxu0 %v6112
    %6218 = vmatpush.msra.mxu0 %v6111
    %6219 = vmatpush.msra.mxu0 %v6110
    %6220 = vmatpush.msra.mxu0 %v6109
    %6221 = vmatpush.msra.mxu0 %v6108
    %6222 = vmatpush.msra.mxu0 %v6107
    %6223 = vmatpush.msra.mxu0 %v6106
    %6224 = vmatpush.msra.mxu0 %v6105
    %6225 = vmatpush.msra.mxu0 %v6104
    %6226 = vmatpush.msra.mxu0 %v6103
    %6227 = vmatmul.f32.gmra.mxu0 %v6067
    %v6228 = vpop.f32.mrf.mxu0
    %v6229 = vadd.f32 %v6209, %v6228
    %6230 = vdwg.mxu0
    %6231 = vmatpush.msra.mxu0 %v6134
    %6232 = vmatpush.msra.mxu0 %v6133
    %6233 = vmatpush.msra.mxu0 %v6132
    %6234 = vmatpush.msra.mxu0 %v6131
    %6235 = vmatpush.msra.mxu0 %v6130
    %6236 = vmatpush.msra.mxu0 %v6129
    %6237 = vmatpush.msra.mxu0 %v6128
    %6238 = vmatpush.msra.mxu0 %v6127
    %6239 = vmatpush.msra.mxu0 %v6126
    %6240 = vmatpush.msra.mxu0 %v6125
    %6241 = vmatpush.msra.mxu0 %v6124
    %6242 = vmatpush.msra.mxu0 %v6123
    %6243 = vmatpush.msra.mxu0 %v6122
    %6244 = vmatpush.msra.mxu0 %v6121
    %6245 = vmatpush.msra.mxu0 %v6120
    %6246 = vmatpush.msra.mxu0 %v6119
    %6247 = vmatmul.f32.gmra.mxu0 %v6068
    %v6248 = vpop.f32.mrf.mxu0
    %v6249 = vadd.f32 %v6229, %v6248
    %6250 = vdwg.mxu0
    %6251 = vmatpush.msra.mxu0 %v6150
    %6252 = vmatpush.msra.mxu0 %v6149
    %6253 = vmatpush.msra.mxu0 %v6148
    %6254 = vmatpush.msra.mxu0 %v6147
    %6255 = vmatpush.msra.mxu0 %v6146
    %6256 = vmatpush.msra.mxu0 %v6145
    %6257 = vmatpush.msra.mxu0 %v6144
    %6258 = vmatpush.msra.mxu0 %v6143
    %6259 = vmatpush.msra.mxu0 %v6142
    %6260 = vmatpush.msra.mxu0 %v6141
    %6261 = vmatpush.msra.mxu0 %v6140
    %6262 = vmatpush.msra.mxu0 %v6139
    %6263 = vmatpush.msra.mxu0 %v6138
    %6264 = vmatpush.msra.mxu0 %v6137
    %6265 = vmatpush.msra.mxu0 %v6136
    %6266 = vmatpush.msra.mxu0 %v6135
    %6267 = vmatmul.f32.gmra.mxu0 %v6069
    %v6268 = vpop.f32.mrf.mxu0
    %v6269 = vadd.f32 %v6249, %v6268
    %6270 = vdwg.mxu0
    %6271 = vmatpush.msra.mxu0 %v6166
    %6272 = vmatpush.msra.mxu0 %v6165
    %6273 = vmatpush.msra.mxu0 %v6164
    %6274 = vmatpush.msra.mxu0 %v6163
    %6275 = vmatpush.msra.mxu0 %v6162
    %6276 = vmatpush.msra.mxu0 %v6161
    %6277 = vmatpush.msra.mxu0 %v6160
    %6278 = vmatpush.msra.mxu0 %v6159
    %6279 = vmatpush.msra.mxu0 %v6158
    %6280 = vmatpush.msra.mxu0 %v6157
    %6281 = vmatpush.msra.mxu0 %v6156
    %6282 = vmatpush.msra.mxu0 %v6155
    %6283 = vmatpush.msra.mxu0 %v6154
    %6284 = vmatpush.msra.mxu0 %v6153
    %6285 = vmatpush.msra.mxu0 %v6152
    %6286 = vmatpush.msra.mxu0 %v6151
    %6287 = vmatmul.f32.gmra.mxu0 %v6070
    %v6288 = vpop.f32.mrf.mxu0
    %v6289 = vadd.f32 %v6269, %v6288
    %6290 = vdwg.mxu0
    %6291 = vst [vmem:[#allocation12] sm:$0xff] %v6289
    // Predicated region
    $region46: #{tpu_custom_call.1} parent=1 // pred_check
      _
    $region47: #{tpu_custom_call.1} parent=1 // pred_check_branch
      %6293 = sbr.rel (0) target = $region49
    $region48: #{tpu_custom_call.1} parent=1 // pred_region
      %6295 = vsyncadd [#allocation6], 0
      %s6297 = sshll.u32 [#allocation12], 4
      %s6298 = int_to_ptr.vmem [resolvable:$true] %s6297
      %s6299 = sshll.u32 %s7, 4
      %s6300 = int_to_ptr.hbm [resolvable:$true] %s6299
      %6302 = dma.vmem_to_hbm [thread:$0]  %s6298, 128, %s6300, [#allocation6]
    $region49: #{tpu_custom_call.1} parent=1 // pred_fallthru
      _
    // Predicated region
    $region50: #{tpu_custom_call.1} parent=1 // pred_check
      _
    $region51: #{tpu_custom_call.1} parent=1 // pred_check_branch
      %6304 = sbr.rel (0) target = $region53
    $region52: #{tpu_custom_call.1} parent=1 // pred_region
      %6306 = dma.done [#allocation6], 128
    $region53: #{tpu_custom_call.1} parent=1 // pred_fallthru
      _
    %6307 = vsyncpa [#allocation5], 1
    %6308 = vsyncpa [#allocation8], 1
    %6309 = vsyncpa [#allocation11], 1
    %6310 = vsyncpa [#allocation6], 1

</llo_original>
